<compile_context>
chip_gen: v6e
topology: v6e:2x2x1
jax: 0.10.0
libtpu: 0.0.40
codegen_flags: <defaults>
</compile_context>

<pallas_src>
import jax
import jax.numpy as jnp
from jax import lax
from jax.experimental import pallas as pl
from jax.experimental.pallas import tpu as pltpu

HIDDEN = 64
NUM_LAYERS = 3


# ----------------------------------------------------------------------------
# Kernel 1: fused per-frame PointNet MLPs + attention pooling + LSTM layer-0
#           input projection, Fb frames per grid step.
#   BasePointPoseNet (3->6->12->24, concat xyz handled via split w4)
#   GlobalPointPoseNet (27->32->48->64, softmax over points, attention pool)
#   then g0 = vec @ Wih0 + (bih0 + bhh0)  -> lane-dense (Fb, 256) output.
# ----------------------------------------------------------------------------
def _pointnet_attn_kernel(x_ref,
                          w1, b1, w2, b2, w3, b3,
                          w4x, w4h, b4, w5, b5, w6, b6,
                          wa, ba, wih0, b0,
                          g0_ref, attn_ref):
    Fb, N, _ = x_ref.shape
    x = x_ref[...].reshape(Fb * N, 3)                          # all points flat

    def lin(a, w_r, b_r):
        return jnp.dot(a, w_r[...], preferred_element_type=jnp.float32) + b_r[...]

    relu = jax.nn.relu
    h = relu(lin(x, w1, b1))                                   # (Fb*N, 6)
    h = relu(lin(h, w2, b2))                                   # (Fb*N, 12)
    h = relu(lin(h, w3, b3))                                   # (Fb*N, 24)
    # cat([x, h], -1) @ w4  ==  x @ w4x + h @ w4h  (no K=27 concat operand)
    h = relu(jnp.dot(x, w4x[...], preferred_element_type=jnp.float32)
             + jnp.dot(h, w4h[...], preferred_element_type=jnp.float32)
             + b4[...])                                        # (Fb*N, 32)
    h = relu(lin(h, w5, b5))                                   # (Fb*N, 48)
    h = relu(lin(h, w6, b6))                                   # (Fb*N, 64)

    h3 = h.reshape(Fb, N, HIDDEN)                              # per-frame view
    # attn Linear(64 -> 1) as a lane-reduction; softmax per frame over points
    logits = jnp.sum(h3 * wa[...], axis=-1) + ba[...]          # (Fb, N)
    m = jnp.max(logits, axis=-1, keepdims=True)
    e = jnp.exp(logits - m)
    aw = e / jnp.sum(e, axis=-1, keepdims=True)                # (Fb, N)

    attn_ref[...] = aw                                         # lane-dense store
    vec = jnp.sum(h3 * aw[:, :, None], axis=1)                 # (Fb, 64)
    # Fused LSTM layer-0 input projection (no recurrent dependence):
    g0_ref[...] = (jnp.dot(vec, wih0[...], preferred_element_type=jnp.float32)
                   + b0[...])                                  # (Fb, 256)


# ----------------------------------------------------------------------------
# Kernel 2: 3-layer LSTM recurrence, hidden=64, whole sequence per grid step.
#   - layer-0 input-projection gates arrive precomputed (g0_ref, time-major)
#   - layers 1..2 use fused [x, h] @ [Wih; Whh] (K=128) with pre-summed bias
#   - h/c state lives in hn_ref / cn_ref (also the final-state outputs)
# ----------------------------------------------------------------------------
def _lstm_kernel(g0_ref, h0_ref, c0_ref, whh0_ref, wcat_ref, bcat_ref,
                 y_ref, hn_ref, cn_ref):
    L = g0_ref.shape[0]
    H = HIDDEN

    hn_ref[...] = h0_ref[...]
    cn_ref[...] = c0_ref[...]

    def cell(gates, c):
        i = jax.nn.sigmoid(gates[:, 0:H])
        f = jax.nn.sigmoid(gates[:, H:2 * H])
        g = jnp.tanh(gates[:, 2 * H:3 * H])
        o = jax.nn.sigmoid(gates[:, 3 * H:4 * H])
        c_new = f * c + i * g
        h_new = o * jnp.tanh(c_new)
        return h_new, c_new

    def step(t, carry):
        # layer 0: only the recurrent half remains in the serial chain
        gates = g0_ref[t] + jnp.dot(hn_ref[0], whh0_ref[...],
                                    preferred_element_type=jnp.float32)
        h_new, c_new = cell(gates, cn_ref[0])
        hn_ref[0] = h_new
        cn_ref[0] = c_new
        inp = h_new
        # layers 1..2: single K=128 matmul per layer, pre-summed bias
        for layer in range(1, NUM_LAYERS):
            cat = jnp.concatenate([inp, hn_ref[layer]], axis=-1)      # (B, 2H)
            gates = (jnp.dot(cat, wcat_ref[layer - 1],
                             preferred_element_type=jnp.float32)
                     + bcat_ref[layer - 1])
            h_new, c_new = cell(gates, cn_ref[layer])
            hn_ref[layer] = h_new
            cn_ref[layer] = c_new
            inp = h_new
        y_ref[t] = inp                                          # last layer out
        return carry

    lax.fori_loop(0, L, step, 0, unroll=(L <= 16))


# ----------------------------------------------------------------------------
# Wrapper / glue
# ----------------------------------------------------------------------------
def _full_spec(arr):
    nd = arr.ndim
    return pl.BlockSpec(arr.shape, lambda *_, _n=nd: (0,) * _n)


def _pick_frame_block(num_frames, cap=512):
    """Largest frame block: whole thing if small, else a mult-of-8 divisor."""
    if num_frames <= cap:
        return num_frames
    for fb in range(cap, 0, -8):
        if num_frames % fb == 0:
            return fb
    return num_frames


def global_pose_module(x, h0, c0, batch_size, length_size, params):
    """x: (B*L, N, 3) float32; h0, c0: (3, B, 64). Returns (g_vec, attn_w, hn, cn)."""
    F_, N, _ = x.shape
    pw = params["point_weights"]
    wih, whh, bih, bhh = params["wih"], params["whh"], params["bih"], params["bhh"]
    wih0 = wih[0]                                              # (64, 256)
    b0 = bih[0] + bhh[0]                                       # (1, 256)
    Fb = _pick_frame_block(F_)

    g0, attn2d = pl.pallas_call(
        _pointnet_attn_kernel,
        out_shape=(jax.ShapeDtypeStruct((F_, 4 * HIDDEN), jnp.float32),
                   jax.ShapeDtypeStruct((F_, N), jnp.float32)),
        grid=(F_ // Fb,),
        in_specs=[pl.BlockSpec((Fb, N, 3), lambda i: (i, 0, 0))]
                 + [_full_spec(a) for a in pw]
                 + [_full_spec(wih0), _full_spec(b0)],
        out_specs=(pl.BlockSpec((Fb, 4 * HIDDEN), lambda i: (i, 0)),
                   pl.BlockSpec((Fb, N), lambda i: (i, 0))),
        compiler_params=pltpu.CompilerParams(dimension_semantics=("parallel",)),
    )(x, *pw, wih0, b0)
    attn_w = attn2d[:, :, None]                                # (F, N, 1) like torch

    # PyTorch .view(batch, length, 64) then time-major for the serial kernel.
    g0_tm = jnp.transpose(g0.reshape(batch_size, length_size, 4 * HIDDEN),
                          (1, 0, 2))                           # (L, B, 256)

    whh0 = whh[0]                                              # (64, 256)
    wcat = jnp.concatenate([wih[1:], whh[1:]], axis=1)         # (2, 128, 256)
    bcat = bih[1:] + bhh[1:]                                   # (2, 1, 256)

    y_tm, hn, cn = pl.pallas_call(
        _lstm_kernel,
        out_shape=(jax.ShapeDtypeStruct((length_size, batch_size, HIDDEN), jnp.float32),
                   jax.ShapeDtypeStruct((NUM_LAYERS, batch_size, HIDDEN), jnp.float32),
                   jax.ShapeDtypeStruct((NUM_LAYERS, batch_size, HIDDEN), jnp.float32)),
        grid=(1,),
        in_specs=[_full_spec(g0_tm), _full_spec(h0), _full_spec(c0),
                  _full_spec(whh0), _full_spec(wcat), _full_spec(bcat)],
        out_specs=(pl.BlockSpec((length_size, batch_size, HIDDEN), lambda i: (0, 0, 0)),
                   pl.BlockSpec((NUM_LAYERS, batch_size, HIDDEN), lambda i: (0, 0, 0)),
                   pl.BlockSpec((NUM_LAYERS, batch_size, HIDDEN), lambda i: (0, 0, 0))),
        compiler_params=pltpu.CompilerParams(dimension_semantics=("arbitrary",)),
    )(g0_tm, h0, c0, whh0, wcat, bcat)

    g_vec = jnp.transpose(y_tm, (1, 0, 2))                     # back to batch_first
    return g_vec, attn_w, hn, cn


# ----------------------------------------------------------------------------
# Deterministic parameter construction (conv+BN folded, eval-mode BN)
# ----------------------------------------------------------------------------
def init_params(key):
    keys = iter(jax.random.split(key, 64))

    def nrm(shape, scale=0.2):
        return scale * jax.random.normal(next(keys), shape, dtype=jnp.float32)

    def conv_bn(cin, cout):
        w = nrm((cout, cin))                  # Conv1d weight (out, in, 1) squeezed
        b = nrm((cout,))
        gamma = 0.5 + jnp.abs(nrm((cout,)))
        beta = nrm((cout,))
        mean = nrm((cout,))
        var = 0.5 + jnp.abs(nrm((cout,)))
        scale = gamma / jnp.sqrt(var + 1e-5)
        w_t = w.T * scale[None, :]            # (cin, cout), BN folded
        b_f = ((b - mean) * scale + beta).reshape(1, cout)
        return w_t, b_f

    w1, b1 = conv_bn(3, 6)
    w2, b2 = conv_bn(6, 12)
    w3, b3 = conv_bn(12, 24)
    w4, b4 = conv_bn(27, 32)
    w5, b5 = conv_bn(32, 48)
    w6, b6 = conv_bn(48, 64)
    w4x, w4h = w4[:3], w4[3:]                 # split cat([x, h]) operand
    wa = nrm((1, HIDDEN)).reshape(1, 1, HIDDEN)   # attn Linear(64, 1) weight row
    ba = nrm((1,)).reshape(1, 1)
    point_weights = [w1, b1, w2, b2, w3, b3, w4x, w4h, b4, w5, b5, w6, b6, wa, ba]

    wih = jnp.stack([nrm((4 * HIDDEN, HIDDEN)).T for _ in range(NUM_LAYERS)])   # (3, H, 4H)
    whh = jnp.stack([nrm((4 * HIDDEN, HIDDEN)).T for _ in range(NUM_LAYERS)])   # (3, H, 4H)
    bih = jnp.stack([nrm((4 * HIDDEN,)).reshape(1, -1) for _ in range(NUM_LAYERS)])  # (3,1,4H)
    bhh = jnp.stack([nrm((4 * HIDDEN,)).reshape(1, -1) for _ in range(NUM_LAYERS)])  # (3,1,4H)

    return {"point_weights": point_weights, "wih": wih, "whh": whh,
            "bih": bih, "bhh": bhh}


# ----------------------------------------------------------------------------
# Pure-JAX reference for correctness check
# ----------------------------------------------------------------------------
def _reference(x, h0, c0, batch_size, length_size, params):
    (w1, b1, w2, b2, w3, b3, w4x, w4h, b4,
     w5, b5, w6, b6, wa, ba) = params["point_weights"]
    relu = jax.nn.relu
    h = relu(x @ w1 + b1)
    h = relu(h @ w2 + b2)
    h = relu(h @ w3 + b3)
    h = relu(x @ w4x + h @ w4h + b4)
    h = relu(h @ w5 + b5)
    h = relu(h @ w6 + b6)
    logits = jnp.sum(h * wa, axis=-1, keepdims=True) + ba[0, 0]
    aw = jax.nn.softmax(logits, axis=1)
    vec = jnp.sum(h * aw, axis=1)
    seq = vec.reshape(batch_size, length_size, HIDDEN)

    wih, whh, bih, bhh = params["wih"], params["whh"], params["bih"], params["bhh"]
    H = HIDDEN
    h_state = [h0[l] for l in range(NUM_LAYERS)]
    c_state = [c0[l] for l in range(NUM_LAYERS)]
    outs = []
    for t in range(length_size):
        inp = seq[:, t, :]
        for l in range(NUM_LAYERS):
            gates = inp @ wih[l] + h_state[l] @ whh[l] + bih[l] + bhh[l]
            i = jax.nn.sigmoid(gates[:, :H])
            f = jax.nn.sigmoid(gates[:, H:2 * H])
            g = jnp.tanh(gates[:, 2 * H:3 * H])
            o = jax.nn.sigmoid(gates[:, 3 * H:])
            c_state[l] = f * c_state[l] + i * g
            h_state[l] = o * jnp.tanh(c_state[l])
            inp = h_state[l]
        outs.append(inp)
    g_vec = jnp.stack(outs, axis=1)
    return g_vec, aw, jnp.stack(h_state), jnp.stack(c_state)


if __name__ == "__main__":
    B, L, N = 2, 8, 32          # batch_size, length_size, points per frame
    F_ = B * L

    key = jax.random.PRNGKey(0)
    kx, kh, kc, kp = jax.random.split(key, 4)
    x = jax.random.normal(kx, (F_, N, 3), dtype=jnp.float32)
    h0 = jax.random.normal(kh, (NUM_LAYERS, B, HIDDEN), dtype=jnp.float32)
    c0 = jax.random.normal(kc, (NUM_LAYERS, B, HIDDEN), dtype=jnp.float32)
    params = init_params(kp)

    g_vec, attn_w, hn, cn = global_pose_module(x, h0, c0, B, L, params)
    jax.block_until_ready((g_vec, attn_w, hn, cn))

    r_g, r_aw, r_hn, r_cn = _reference(x, h0, c0, B, L, params)
    import numpy as np
    np.testing.assert_allclose(np.asarray(g_vec), np.asarray(r_g), rtol=2e-4, atol=2e-4)
    np.testing.assert_allclose(np.asarray(attn_w), np.asarray(r_aw), rtol=2e-4, atol=2e-4)
    np.testing.assert_allclose(np.asarray(hn), np.asarray(r_hn), rtol=2e-4, atol=2e-4)
    np.testing.assert_allclose(np.asarray(cn), np.asarray(r_cn), rtol=2e-4, atol=2e-4)

    print("KERNEL_OK")
</pallas_src>

<mosaic_0001>
module attributes {stable_mosaic.version = 11 : i64} {
  func.func @_pointnet_attn_kernel(%arg0: i32, %arg1: memref<16x32x3xf32, #tpu.memory_space<vmem>>, %arg2: memref<3x6xf32, #tpu.memory_space<vmem>>, %arg3: memref<1x6xf32, #tpu.memory_space<vmem>>, %arg4: memref<6x12xf32, #tpu.memory_space<vmem>>, %arg5: memref<1x12xf32, #tpu.memory_space<vmem>>, %arg6: memref<12x24xf32, #tpu.memory_space<vmem>>, %arg7: memref<1x24xf32, #tpu.memory_space<vmem>>, %arg8: memref<3x32xf32, #tpu.memory_space<vmem>>, %arg9: memref<24x32xf32, #tpu.memory_space<vmem>>, %arg10: memref<1x32xf32, #tpu.memory_space<vmem>>, %arg11: memref<32x48xf32, #tpu.memory_space<vmem>>, %arg12: memref<1x48xf32, #tpu.memory_space<vmem>>, %arg13: memref<48x64xf32, #tpu.memory_space<vmem>>, %arg14: memref<1x64xf32, #tpu.memory_space<vmem>>, %arg15: memref<1x1x64xf32, #tpu.memory_space<vmem>>, %arg16: memref<1x1xf32, #tpu.memory_space<vmem>>, %arg17: memref<64x256xf32, #tpu.memory_space<vmem>>, %arg18: memref<1x256xf32, #tpu.memory_space<vmem>>, %arg19: memref<16x256xf32, #tpu.memory_space<vmem>>, %arg20: memref<16x32xf32, #tpu.memory_space<vmem>>) attributes {dimension_semantics = [#tpu.dimension_semantics<parallel>], iteration_bounds = array<i64: 1>, scalar_prefetch = 0 : i64, scratch_operands = 0 : i64, tpu.core_type = #tpu.core_type<tc>, window_params = [{transform_indices = @transform_0, window_bounds = array<i64: 16, 32, 3>}, {pipeline_mode = #tpu.pipeline_mode<synchronous>, transform_indices = @transform_1, window_bounds = array<i64: 3, 6>}, {pipeline_mode = #tpu.pipeline_mode<synchronous>, transform_indices = @transform_2, window_bounds = array<i64: 1, 6>}, {pipeline_mode = #tpu.pipeline_mode<synchronous>, transform_indices = @transform_3, window_bounds = array<i64: 6, 12>}, {pipeline_mode = #tpu.pipeline_mode<synchronous>, transform_indices = @transform_4, window_bounds = array<i64: 1, 12>}, {pipeline_mode = #tpu.pipeline_mode<synchronous>, transform_indices = @transform_5, window_bounds = array<i64: 12, 24>}, {pipeline_mode = #tpu.pipeline_mode<synchronous>, transform_indices = @transform_6, window_bounds = array<i64: 1, 24>}, {pipeline_mode = #tpu.pipeline_mode<synchronous>, transform_indices = @transform_7, window_bounds = array<i64: 3, 32>}, {pipeline_mode = #tpu.pipeline_mode<synchronous>, transform_indices = @transform_8, window_bounds = array<i64: 24, 32>}, {pipeline_mode = #tpu.pipeline_mode<synchronous>, transform_indices = @transform_9, window_bounds = array<i64: 1, 32>}, {pipeline_mode = #tpu.pipeline_mode<synchronous>, transform_indices = @transform_10, window_bounds = array<i64: 32, 48>}, {pipeline_mode = #tpu.pipeline_mode<synchronous>, transform_indices = @transform_11, window_bounds = array<i64: 1, 48>}, {pipeline_mode = #tpu.pipeline_mode<synchronous>, transform_indices = @transform_12, window_bounds = array<i64: 48, 64>}, {pipeline_mode = #tpu.pipeline_mode<synchronous>, transform_indices = @transform_13, window_bounds = array<i64: 1, 64>}, {pipeline_mode = #tpu.pipeline_mode<synchronous>, transform_indices = @transform_14, window_bounds = array<i64: 1, 1, 64>}, {pipeline_mode = #tpu.pipeline_mode<synchronous>, transform_indices = @transform_15, window_bounds = array<i64: 1, 1>}, {pipeline_mode = #tpu.pipeline_mode<synchronous>, transform_indices = @transform_16, window_bounds = array<i64: 64, 256>}, {pipeline_mode = #tpu.pipeline_mode<synchronous>, transform_indices = @transform_17, window_bounds = array<i64: 1, 256>}, {transform_indices = @transform_18, window_bounds = array<i64: 16, 256>}, {transform_indices = @transform_19, window_bounds = array<i64: 16, 32>}]} {
    %c0 = arith.constant 0 : index
    %c0_0 = arith.constant 0 : index
    %c0_1 = arith.constant 0 : index
    %0 = vector.load %arg1[%c0, %c0_0, %c0_1] : memref<16x32x3xf32, #tpu.memory_space<vmem>>, vector<16x32x3xf32>
    %1 = vector.shape_cast %0 : vector<16x32x3xf32> to vector<512x3xf32>
    %c0_2 = arith.constant 0 : index
    %c0_3 = arith.constant 0 : index
    %2 = vector.load %arg2[%c0_2, %c0_3] : memref<3x6xf32, #tpu.memory_space<vmem>>, vector<3x6xf32>
    %cst = arith.constant dense<0.000000e+00> : vector<512x6xf32>
    %3 = tpu.matmul %1, %2, %cst {dimension_numbers = #tpu.dot_dimension_numbers<[1], [0], [0], [1], [0, 0, 1, 1], [], []>} : vector<512x3xf32>, vector<3x6xf32>, vector<512x6xf32> -> vector<512x6xf32>
    %c0_4 = arith.constant 0 : index
    %c0_5 = arith.constant 0 : index
    %4 = vector.load %arg3[%c0_4, %c0_5] : memref<1x6xf32, #tpu.memory_space<vmem>>, vector<1x6xf32>
    %5 = vector.broadcast %4 : vector<1x6xf32> to vector<512x6xf32>
    %6 = arith.addf %3, %5 : vector<512x6xf32>
    %cst_6 = arith.constant 0.000000e+00 : f32
    %7 = vector.broadcast %cst_6 : f32 to vector<512x6xf32>
    %8 = arith.maximumf %6, %7 : vector<512x6xf32>
    %c0_7 = arith.constant 0 : index
    %c0_8 = arith.constant 0 : index
    %9 = vector.load %arg4[%c0_7, %c0_8] : memref<6x12xf32, #tpu.memory_space<vmem>>, vector<6x12xf32>
    %cst_9 = arith.constant dense<0.000000e+00> : vector<512x12xf32>
    %10 = tpu.matmul %8, %9, %cst_9 {dimension_numbers = #tpu.dot_dimension_numbers<[1], [0], [0], [1], [0, 0, 1, 1], [], []>} : vector<512x6xf32>, vector<6x12xf32>, vector<512x12xf32> -> vector<512x12xf32>
    %c0_10 = arith.constant 0 : index
    %c0_11 = arith.constant 0 : index
    %11 = vector.load %arg5[%c0_10, %c0_11] : memref<1x12xf32, #tpu.memory_space<vmem>>, vector<1x12xf32>
    %12 = vector.broadcast %11 : vector<1x12xf32> to vector<512x12xf32>
    %13 = arith.addf %10, %12 : vector<512x12xf32>
    %cst_12 = arith.constant 0.000000e+00 : f32
    %14 = vector.broadcast %cst_12 : f32 to vector<512x12xf32>
    %15 = arith.maximumf %13, %14 : vector<512x12xf32>
    %c0_13 = arith.constant 0 : index
    %c0_14 = arith.constant 0 : index
    %16 = vector.load %arg6[%c0_13, %c0_14] : memref<12x24xf32, #tpu.memory_space<vmem>>, vector<12x24xf32>
    %cst_15 = arith.constant dense<0.000000e+00> : vector<512x24xf32>
    %17 = tpu.matmul %15, %16, %cst_15 {dimension_numbers = #tpu.dot_dimension_numbers<[1], [0], [0], [1], [0, 0, 1, 1], [], []>} : vector<512x12xf32>, vector<12x24xf32>, vector<512x24xf32> -> vector<512x24xf32>
    %c0_16 = arith.constant 0 : index
    %c0_17 = arith.constant 0 : index
    %18 = vector.load %arg7[%c0_16, %c0_17] : memref<1x24xf32, #tpu.memory_space<vmem>>, vector<1x24xf32>
    %19 = vector.broadcast %18 : vector<1x24xf32> to vector<512x24xf32>
    %20 = arith.addf %17, %19 : vector<512x24xf32>
    %cst_18 = arith.constant 0.000000e+00 : f32
    %21 = vector.broadcast %cst_18 : f32 to vector<512x24xf32>
    %22 = arith.maximumf %20, %21 : vector<512x24xf32>
    %c0_19 = arith.constant 0 : index
    %c0_20 = arith.constant 0 : index
    %23 = vector.load %arg8[%c0_19, %c0_20] : memref<3x32xf32, #tpu.memory_space<vmem>>, vector<3x32xf32>
    %cst_21 = arith.constant dense<0.000000e+00> : vector<512x32xf32>
    %24 = tpu.matmul %1, %23, %cst_21 {dimension_numbers = #tpu.dot_dimension_numbers<[1], [0], [0], [1], [0, 0, 1, 1], [], []>} : vector<512x3xf32>, vector<3x32xf32>, vector<512x32xf32> -> vector<512x32xf32>
    %c0_22 = arith.constant 0 : index
    %c0_23 = arith.constant 0 : index
    %25 = vector.load %arg9[%c0_22, %c0_23] : memref<24x32xf32, #tpu.memory_space<vmem>>, vector<24x32xf32>
    %cst_24 = arith.constant dense<0.000000e+00> : vector<512x32xf32>
    %26 = tpu.matmul %22, %25, %cst_24 {dimension_numbers = #tpu.dot_dimension_numbers<[1], [0], [0], [1], [0, 0, 1, 1], [], []>} : vector<512x24xf32>, vector<24x32xf32>, vector<512x32xf32> -> vector<512x32xf32>
    %27 = arith.addf %24, %26 : vector<512x32xf32>
    %c0_25 = arith.constant 0 : index
    %c0_26 = arith.constant 0 : index
    %28 = vector.load %arg10[%c0_25, %c0_26] : memref<1x32xf32, #tpu.memory_space<vmem>>, vector<1x32xf32>
    %29 = vector.broadcast %28 : vector<1x32xf32> to vector<512x32xf32>
    %30 = arith.addf %27, %29 : vector<512x32xf32>
    %cst_27 = arith.constant 0.000000e+00 : f32
    %31 = vector.broadcast %cst_27 : f32 to vector<512x32xf32>
    %32 = arith.maximumf %30, %31 : vector<512x32xf32>
    %c0_28 = arith.constant 0 : index
    %c0_29 = arith.constant 0 : index
    %33 = vector.load %arg11[%c0_28, %c0_29] : memref<32x48xf32, #tpu.memory_space<vmem>>, vector<32x48xf32>
    %cst_30 = arith.constant dense<0.000000e+00> : vector<512x48xf32>
    %34 = tpu.matmul %32, %33, %cst_30 {dimension_numbers = #tpu.dot_dimension_numbers<[1], [0], [0], [1], [0, 0, 1, 1], [], []>} : vector<512x32xf32>, vector<32x48xf32>, vector<512x48xf32> -> vector<512x48xf32>
    %c0_31 = arith.constant 0 : index
    %c0_32 = arith.constant 0 : index
    %35 = vector.load %arg12[%c0_31, %c0_32] : memref<1x48xf32, #tpu.memory_space<vmem>>, vector<1x48xf32>
    %36 = vector.broadcast %35 : vector<1x48xf32> to vector<512x48xf32>
    %37 = arith.addf %34, %36 : vector<512x48xf32>
    %cst_33 = arith.constant 0.000000e+00 : f32
    %38 = vector.broadcast %cst_33 : f32 to vector<512x48xf32>
    %39 = arith.maximumf %37, %38 : vector<512x48xf32>
    %c0_34 = arith.constant 0 : index
    %c0_35 = arith.constant 0 : index
    %40 = vector.load %arg13[%c0_34, %c0_35] : memref<48x64xf32, #tpu.memory_space<vmem>>, vector<48x64xf32>
    %cst_36 = arith.constant dense<0.000000e+00> : vector<512x64xf32>
    %41 = tpu.matmul %39, %40, %cst_36 {dimension_numbers = #tpu.dot_dimension_numbers<[1], [0], [0], [1], [0, 0, 1, 1], [], []>} : vector<512x48xf32>, vector<48x64xf32>, vector<512x64xf32> -> vector<512x64xf32>
    %c0_37 = arith.constant 0 : index
    %c0_38 = arith.constant 0 : index
    %42 = vector.load %arg14[%c0_37, %c0_38] : memref<1x64xf32, #tpu.memory_space<vmem>>, vector<1x64xf32>
    %43 = vector.broadcast %42 : vector<1x64xf32> to vector<512x64xf32>
    %44 = arith.addf %41, %43 : vector<512x64xf32>
    %cst_39 = arith.constant 0.000000e+00 : f32
    %45 = vector.broadcast %cst_39 : f32 to vector<512x64xf32>
    %46 = arith.maximumf %44, %45 : vector<512x64xf32>
    %47 = vector.shape_cast %46 : vector<512x64xf32> to vector<16x32x64xf32>
    %c0_40 = arith.constant 0 : index
    %c0_41 = arith.constant 0 : index
    %c0_42 = arith.constant 0 : index
    %48 = vector.load %arg15[%c0_40, %c0_41, %c0_42] : memref<1x1x64xf32, #tpu.memory_space<vmem>>, vector<1x1x64xf32>
    %49 = vector.broadcast %48 : vector<1x1x64xf32> to vector<16x32x64xf32>
    %50 = arith.mulf %47, %49 : vector<16x32x64xf32>
    %cst_43 = arith.constant dense<0.000000e+00> : vector<16x32xf32>
    %51 = vector.multi_reduction <add>, %50, %cst_43 [2] : vector<16x32x64xf32> to vector<16x32xf32>
    %c0_44 = arith.constant 0 : index
    %c0_45 = arith.constant 0 : index
    %52 = vector.load %arg16[%c0_44, %c0_45] : memref<1x1xf32, #tpu.memory_space<vmem>>, vector<1x1xf32>
    %53 = vector.broadcast %52 : vector<1x1xf32> to vector<16x32xf32>
    %54 = arith.addf %51, %53 : vector<16x32xf32>
    %cst_46 = arith.constant dense<0xFF800000> : vector<16xf32>
    %55 = vector.multi_reduction <maximumf>, %54, %cst_46 [1] : vector<16x32xf32> to vector<16xf32>
    %56 = vector.shape_cast %55 : vector<16xf32> to vector<16x1xf32>
    %57 = vector.broadcast %56 : vector<16x1xf32> to vector<16x32xf32>
    %58 = arith.subf %54, %57 : vector<16x32xf32>
    %59 = math.exp %58 : vector<16x32xf32>
    %cst_47 = arith.constant dense<0.000000e+00> : vector<16xf32>
    %60 = vector.multi_reduction <add>, %59, %cst_47 [1] : vector<16x32xf32> to vector<16xf32>
    %61 = vector.shape_cast %60 : vector<16xf32> to vector<16x1xf32>
    %62 = vector.broadcast %61 : vector<16x1xf32> to vector<16x32xf32>
    %63 = arith.divf %59, %62 : vector<16x32xf32>
    %c0_48 = arith.constant 0 : index
    %c0_49 = arith.constant 0 : index
    %64 = vector.load %arg20[%c0_48, %c0_49] : memref<16x32xf32, #tpu.memory_space<vmem>>, vector<16x32xf32>
    tpu.vector_store %arg20[%c0_48, %c0_49], %63 {strides = array<i32>} : memref<16x32xf32, #tpu.memory_space<vmem>>, vector<16x32xf32>,
    %65 = vector.shape_cast %63 : vector<16x32xf32> to vector<16x32x1xf32>
    %66 = vector.broadcast %65 : vector<16x32x1xf32> to vector<16x32x64xf32>
    %67 = arith.mulf %47, %66 : vector<16x32x64xf32>
    %cst_50 = arith.constant dense<0.000000e+00> : vector<16x64xf32>
    %68 = vector.multi_reduction <add>, %67, %cst_50 [1] : vector<16x32x64xf32> to vector<16x64xf32>
    %c0_51 = arith.constant 0 : index
    %c0_52 = arith.constant 0 : index
    %69 = vector.load %arg17[%c0_51, %c0_52] : memref<64x256xf32, #tpu.memory_space<vmem>>, vector<64x256xf32>
    %cst_53 = arith.constant dense<0.000000e+00> : vector<16x256xf32>
    %70 = tpu.matmul %68, %69, %cst_53 {dimension_numbers = #tpu.dot_dimension_numbers<[1], [0], [0], [1], [0, 0, 1, 1], [], []>} : vector<16x64xf32>, vector<64x256xf32>, vector<16x256xf32> -> vector<16x256xf32>
    %c0_54 = arith.constant 0 : index
    %c0_55 = arith.constant 0 : index
    %71 = vector.load %arg18[%c0_54, %c0_55] : memref<1x256xf32, #tpu.memory_space<vmem>>, vector<1x256xf32>
    %72 = vector.broadcast %71 : vector<1x256xf32> to vector<16x256xf32>
    %73 = arith.addf %70, %72 : vector<16x256xf32>
    %c0_56 = arith.constant 0 : index
    %c0_57 = arith.constant 0 : index
    %74 = vector.load %arg19[%c0_56, %c0_57] : memref<16x256xf32, #tpu.memory_space<vmem>>, vector<16x256xf32>
    tpu.vector_store %arg19[%c0_56, %c0_57], %73 {strides = array<i32>} : memref<16x256xf32, #tpu.memory_space<vmem>>, vector<16x256xf32>,
    return
  }
  func.func @transform_0(%arg0: i32) -> (i32, i32, i32) {
    %c0_i32 = arith.constant 0 : i32
    %c0_i32_0 = arith.constant 0 : i32
    %c0_i32_1 = arith.constant 0 : i32
    return %arg0, %c0_i32, %c0_i32_0 : i32, i32, i32
  }
  func.func @transform_1(%arg0: i32) -> (i32, i32) {
    %c0_i32 = arith.constant 0 : i32
    %c0_i32_0 = arith.constant 0 : i32
    %c0_i32_1 = arith.constant 0 : i32
    return %c0_i32, %c0_i32_0 : i32, i32
  }
  func.func @transform_2(%arg0: i32) -> (i32, i32) {
    %c0_i32 = arith.constant 0 : i32
    %c0_i32_0 = arith.constant 0 : i32
    %c0_i32_1 = arith.constant 0 : i32
    return %c0_i32, %c0_i32_0 : i32, i32
  }
  func.func @transform_3(%arg0: i32) -> (i32, i32) {
    %c0_i32 = arith.constant 0 : i32
    %c0_i32_0 = arith.constant 0 : i32
    %c0_i32_1 = arith.constant 0 : i32
    return %c0_i32, %c0_i32_0 : i32, i32
  }
  func.func @transform_4(%arg0: i32) -> (i32, i32) {
    %c0_i32 = arith.constant 0 : i32
    %c0_i32_0 = arith.constant 0 : i32
    %c0_i32_1 = arith.constant 0 : i32
    return %c0_i32, %c0_i32_0 : i32, i32
  }
  func.func @transform_5(%arg0: i32) -> (i32, i32) {
    %c0_i32 = arith.constant 0 : i32
    %c0_i32_0 = arith.constant 0 : i32
    %c0_i32_1 = arith.constant 0 : i32
    return %c0_i32, %c0_i32_0 : i32, i32
  }
  func.func @transform_6(%arg0: i32) -> (i32, i32) {
    %c0_i32 = arith.constant 0 : i32
    %c0_i32_0 = arith.constant 0 : i32
    %c0_i32_1 = arith.constant 0 : i32
    return %c0_i32, %c0_i32_0 : i32, i32
  }
  func.func @transform_7(%arg0: i32) -> (i32, i32) {
    %c0_i32 = arith.constant 0 : i32
    %c0_i32_0 = arith.constant 0 : i32
    %c0_i32_1 = arith.constant 0 : i32
    return %c0_i32, %c0_i32_0 : i32, i32
  }
  func.func @transform_8(%arg0: i32) -> (i32, i32) {
    %c0_i32 = arith.constant 0 : i32
    %c0_i32_0 = arith.constant 0 : i32
    %c0_i32_1 = arith.constant 0 : i32
    return %c0_i32, %c0_i32_0 : i32, i32
  }
  func.func @transform_9(%arg0: i32) -> (i32, i32) {
    %c0_i32 = arith.constant 0 : i32
    %c0_i32_0 = arith.constant 0 : i32
    %c0_i32_1 = arith.constant 0 : i32
    return %c0_i32, %c0_i32_0 : i32, i32
  }
  func.func @transform_10(%arg0: i32) -> (i32, i32) {
    %c0_i32 = arith.constant 0 : i32
    %c0_i32_0 = arith.constant 0 : i32
    %c0_i32_1 = arith.constant 0 : i32
    return %c0_i32, %c0_i32_0 : i32, i32
  }
  func.func @transform_11(%arg0: i32) -> (i32, i32) {
    %c0_i32 = arith.constant 0 : i32
    %c0_i32_0 = arith.constant 0 : i32
    %c0_i32_1 = arith.constant 0 : i32
    return %c0_i32, %c0_i32_0 : i32, i32
  }
  func.func @transform_12(%arg0: i32) -> (i32, i32) {
    %c0_i32 = arith.constant 0 : i32
    %c0_i32_0 = arith.constant 0 : i32
    %c0_i32_1 = arith.constant 0 : i32
    return %c0_i32, %c0_i32_0 : i32, i32
  }
  func.func @transform_13(%arg0: i32) -> (i32, i32) {
    %c0_i32 = arith.constant 0 : i32
    %c0_i32_0 = arith.constant 0 : i32
    %c0_i32_1 = arith.constant 0 : i32
    return %c0_i32, %c0_i32_0 : i32, i32
  }
  func.func @transform_14(%arg0: i32) -> (i32, i32, i32) {
    %c0_i32 = arith.constant 0 : i32
    %c0_i32_0 = arith.constant 0 : i32
    %c0_i32_1 = arith.constant 0 : i32
    %c0_i32_2 = arith.constant 0 : i32
    return %c0_i32, %c0_i32_0, %c0_i32_1 : i32, i32, i32
  }
  func.func @transform_15(%arg0: i32) -> (i32, i32) {
    %c0_i32 = arith.constant 0 : i32
    %c0_i32_0 = arith.constant 0 : i32
    %c0_i32_1 = arith.constant 0 : i32
    return %c0_i32, %c0_i32_0 : i32, i32
  }
  func.func @transform_16(%arg0: i32) -> (i32, i32) {
    %c0_i32 = arith.constant 0 : i32
    %c0_i32_0 = arith.constant 0 : i32
    %c0_i32_1 = arith.constant 0 : i32
    return %c0_i32, %c0_i32_0 : i32, i32
  }
  func.func @transform_17(%arg0: i32) -> (i32, i32) {
    %c0_i32 = arith.constant 0 : i32
    %c0_i32_0 = arith.constant 0 : i32
    %c0_i32_1 = arith.constant 0 : i32
    return %c0_i32, %c0_i32_0 : i32, i32
  }
  func.func @transform_18(%arg0: i32) -> (i32, i32) {
    %c0_i32 = arith.constant 0 : i32
    %c0_i32_0 = arith.constant 0 : i32
    return %arg0, %c0_i32 : i32, i32
  }
  func.func @transform_19(%arg0: i32) -> (i32, i32) {
    %c0_i32 = arith.constant 0 : i32
    %c0_i32_0 = arith.constant 0 : i32
    return %arg0, %c0_i32 : i32, i32
  }
}

</mosaic_0001>

<llo_original>
// kernel: tpu_custom_call.1
$region0: #{tpu_custom_call.1}
  #allocation0 [shape = 'u32[]', space=smem, size = 0x4, offset = 0x4, fixed_abs, tag = 'smem constant byte address 0x4 - core index']
  #allocation1 [shape = 'u32[144,128]{1,0:T(1,128)}', space=vmem, size = 0x12000, scoped, tag = 'internal scratch']
  #allocation2 [shape = 'f32[1,1]{1,0:T(1,128)S(1)}', space=vmem, size = 0x200, scoped, tag = 'scoped memory for tpu_custom_call.1']
  %s0 = inlined_call_operand.vmem [shape: f32[16,32,3], index: 0, kind: input, shape index: {}]
  %s1 = inlined_call_operand.vmem [shape: f32[3,6], index: 1, kind: input, shape index: {}]
  %s2 = inlined_call_operand.vmem [shape: f32[1,6], index: 2, kind: input, shape index: {}]
  %s3 = inlined_call_operand.vmem [shape: f32[6,12], index: 3, kind: input, shape index: {}]
  %s4 = inlined_call_operand.vmem [shape: f32[1,12], index: 4, kind: input, shape index: {}]
  %s5 = inlined_call_operand.vmem [shape: f32[12,24], index: 5, kind: input, shape index: {}]
  %s6 = inlined_call_operand.vmem [shape: f32[1,24], index: 6, kind: input, shape index: {}]
  %s7 = inlined_call_operand.vmem [shape: f32[3,32], index: 7, kind: input, shape index: {}]
  %s8 = inlined_call_operand.vmem [shape: f32[24,32], index: 8, kind: input, shape index: {}]
  %s9 = inlined_call_operand.vmem [shape: f32[1,32], index: 9, kind: input, shape index: {}]
  %s10 = inlined_call_operand.vmem [shape: f32[32,48], index: 10, kind: input, shape index: {}]
  %s11 = inlined_call_operand.vmem [shape: f32[1,48], index: 11, kind: input, shape index: {}]
  %s12 = inlined_call_operand.vmem [shape: f32[48,64], index: 12, kind: input, shape index: {}]
  %s13 = inlined_call_operand.vmem [shape: f32[1,64], index: 13, kind: input, shape index: {}]
  %s14 = inlined_call_operand.vmem [shape: f32[1,1,64], index: 14, kind: input, shape index: {}]
  %s15 = inlined_call_operand.<no memory space> [shape: f32[1,1], index: 15, kind: input, shape index: {}]
  %s16 = inlined_call_operand.vmem [shape: f32[64,256], index: 16, kind: input, shape index: {}]
  %s17 = inlined_call_operand.vmem [shape: f32[1,256], index: 17, kind: input, shape index: {}]
  %s18 = inlined_call_operand.hbm [shape: f32[16,256], index: 18, kind: output, shape index: {0}]
  %s19 = inlined_call_operand.hbm [shape: f32[16,32], index: 19, kind: output, shape index: {1}]
  %20 = xla_tuple %s18, %s19
  %s21 = sld [smem:[#allocation0]]
  $region90: #{tpu_custom_call.1} parent=0
    _
  %s23 = ssub.s32 1, %s21
  %s24 = scalar_select 0, %s23, %s21
  %v25 = vstv %s15
  %26 = vst [vmem:[#allocation2] sm:$0x1] %v25
  $region1: #{tpu_custom_call.1} parent=0
    #allocation3 [shape = 'u8[16384]{0}', space=vmem, size = 0x4000, scoped, tag = 'output window, operand 0, single buffered']
    #allocation4 [shape = 's32[1]{0}', space=sflag, size = 0x4, scoped, tag = 'scoped memory for tpu_custom_call.1']
    #allocation5 [shape = 'u8[8192]{0}', space=vmem, size = 0x2000, scoped, tag = 'output window, operand 1, single buffered']
    #allocation6 [shape = 's32[1]{0}', space=sflag, size = 0x4, scoped, tag = 'scoped memory for tpu_custom_call.1']
    %27 = vsyncpa [#allocation4], 0
    %28 = vsyncpa [#allocation6], 0
    // Predicated region
    $region2: #{tpu_custom_call.1} parent=1 // pred_check
      _
    $region3: #{tpu_custom_call.1} parent=1 // pred_check_branch
      %30 = sbr.rel (0) target = $region5
    $region4: #{tpu_custom_call.1} parent=1 // pred_region
      _
    $region5: #{tpu_custom_call.1} parent=1 // pred_fallthru
      _
    // Predicated region
    $region6: #{tpu_custom_call.1} parent=1 // pred_check
      _
    $region7: #{tpu_custom_call.1} parent=1 // pred_check_branch
      %32 = sbr.rel (0) target = $region9
    $region8: #{tpu_custom_call.1} parent=1 // pred_region
      _
    $region9: #{tpu_custom_call.1} parent=1 // pred_fallthru
      _
    // Predicated region
    $region10: #{tpu_custom_call.1} parent=1 // pred_check
      _
    $region11: #{tpu_custom_call.1} parent=1 // pred_check_branch
      %34 = sbr.rel (0) target = $region13
    $region12: #{tpu_custom_call.1} parent=1 // pred_region
      _
    $region13: #{tpu_custom_call.1} parent=1 // pred_fallthru
      _
    // Predicated region
    $region14: #{tpu_custom_call.1} parent=1 // pred_check
      _
    $region15: #{tpu_custom_call.1} parent=1 // pred_check_branch
      %36 = sbr.rel (0) target = $region17
    $region16: #{tpu_custom_call.1} parent=1 // pred_region
      _
    $region17: #{tpu_custom_call.1} parent=1 // pred_fallthru
      _
    // Predicated region
    $region18: #{tpu_custom_call.1} parent=1 // pred_check
      _
    $region19: #{tpu_custom_call.1} parent=1 // pred_check_branch
      %38 = sbr.rel (0) target = $region21
    $region20: #{tpu_custom_call.1} parent=1 // pred_region
      _
    $region21: #{tpu_custom_call.1} parent=1 // pred_fallthru
      _
    // Predicated region
    $region22: #{tpu_custom_call.1} parent=1 // pred_check
      _
    $region23: #{tpu_custom_call.1} parent=1 // pred_check_branch
      %40 = sbr.rel (0) target = $region25
    $region24: #{tpu_custom_call.1} parent=1 // pred_region
      _
    $region25: #{tpu_custom_call.1} parent=1 // pred_fallthru
      _
    // Predicated region
    $region26: #{tpu_custom_call.1} parent=1 // pred_check
      _
    $region27: #{tpu_custom_call.1} parent=1 // pred_check_branch
      %42 = sbr.rel (0) target = $region29
    $region28: #{tpu_custom_call.1} parent=1 // pred_region
      _
    $region29: #{tpu_custom_call.1} parent=1 // pred_fallthru
      _
    // Predicated region
    $region30: #{tpu_custom_call.1} parent=1 // pred_check
      _
    $region31: #{tpu_custom_call.1} parent=1 // pred_check_branch
      %44 = sbr.rel (0) target = $region33
    $region32: #{tpu_custom_call.1} parent=1 // pred_region
      _
    $region33: #{tpu_custom_call.1} parent=1 // pred_fallthru
      _
    // Predicated region
    $region34: #{tpu_custom_call.1} parent=1 // pred_check
      _
    $region35: #{tpu_custom_call.1} parent=1 // pred_check_branch
      %46 = sbr.rel (0) target = $region37
    $region36: #{tpu_custom_call.1} parent=1 // pred_region
      _
    $region37: #{tpu_custom_call.1} parent=1 // pred_fallthru
      _
    // Predicated region
    $region38: #{tpu_custom_call.1} parent=1 // pred_check
      _
    $region39: #{tpu_custom_call.1} parent=1 // pred_check_branch
      %48 = sbr.rel (0) target = $region41
    $region40: #{tpu_custom_call.1} parent=1 // pred_region
      _
    $region41: #{tpu_custom_call.1} parent=1 // pred_fallthru
      _
    // Predicated region
    $region42: #{tpu_custom_call.1} parent=1 // pred_check
      _
    $region43: #{tpu_custom_call.1} parent=1 // pred_check_branch
      %50 = sbr.rel (0) target = $region45
    $region44: #{tpu_custom_call.1} parent=1 // pred_region
      _
    $region45: #{tpu_custom_call.1} parent=1 // pred_fallthru
      _
    // Predicated region
    $region46: #{tpu_custom_call.1} parent=1 // pred_check
      _
    $region47: #{tpu_custom_call.1} parent=1 // pred_check_branch
      %52 = sbr.rel (0) target = $region49
    $region48: #{tpu_custom_call.1} parent=1 // pred_region
      _
    $region49: #{tpu_custom_call.1} parent=1 // pred_fallthru
      _
    // Predicated region
    $region50: #{tpu_custom_call.1} parent=1 // pred_check
      _
    $region51: #{tpu_custom_call.1} parent=1 // pred_check_branch
      %54 = sbr.rel (0) target = $region53
    $region52: #{tpu_custom_call.1} parent=1 // pred_region
      _
    $region53: #{tpu_custom_call.1} parent=1 // pred_fallthru
      _
    // Predicated region
    $region54: #{tpu_custom_call.1} parent=1 // pred_check
      _
    $region55: #{tpu_custom_call.1} parent=1 // pred_check_branch
      %56 = sbr.rel (0) target = $region57
    $region56: #{tpu_custom_call.1} parent=1 // pred_region
      _
    $region57: #{tpu_custom_call.1} parent=1 // pred_fallthru
      _
    // Predicated region
    $region58: #{tpu_custom_call.1} parent=1 // pred_check
      _
    $region59: #{tpu_custom_call.1} parent=1 // pred_check_branch
      %58 = sbr.rel (0) target = $region61
    $region60: #{tpu_custom_call.1} parent=1 // pred_region
      _
    $region61: #{tpu_custom_call.1} parent=1 // pred_fallthru
      _
    // Predicated region
    $region62: #{tpu_custom_call.1} parent=1 // pred_check
      _
    $region63: #{tpu_custom_call.1} parent=1 // pred_check_branch
      %60 = sbr.rel (0) target = $region65
    $region64: #{tpu_custom_call.1} parent=1 // pred_region
      _
    $region65: #{tpu_custom_call.1} parent=1 // pred_fallthru
      _
    // Predicated region
    $region66: #{tpu_custom_call.1} parent=1 // pred_check
      _
    $region67: #{tpu_custom_call.1} parent=1 // pred_check_branch
      %62 = sbr.rel (0) target = $region69
    $region68: #{tpu_custom_call.1} parent=1 // pred_region
      _
    $region69: #{tpu_custom_call.1} parent=1 // pred_fallthru
      _
    // Predicated region
    $region70: #{tpu_custom_call.1} parent=1 // pred_check
      _
    $region71: #{tpu_custom_call.1} parent=1 // pred_check_branch
      %64 = sbr.rel (0) target = $region73
    $region72: #{tpu_custom_call.1} parent=1 // pred_region
      _
    $region73: #{tpu_custom_call.1} parent=1 // pred_fallthru
      _
    %v65 = vld [vmem:[%s0] sm:$0xff]
    %v66 = vld [vmem:[%s0 + $0x8] sm:$0xff]
    %v67 = vld [vmem:[%s0 + $0x10] sm:$0xff]
    %v68 = vld [vmem:[%s0 + $0x18] sm:$0xff]
    %v69 = vld [vmem:[%s0 + $0x20] sm:$0xff]
    %v70 = vld [vmem:[%s0 + $0x28] sm:$0xff]
    %v71 = vld [vmem:[%s0 + $0x30] sm:$0xff]
    %v72 = vld [vmem:[%s0 + $0x38] sm:$0xff]
    %v73 = vld [vmem:[%s0 + $0x40] sm:$0xff]
    %v74 = vld [vmem:[%s0 + $0x48] sm:$0xff]
    %v75 = vld [vmem:[%s0 + $0x50] sm:$0xff]
    %v76 = vld [vmem:[%s0 + $0x58] sm:$0xff]
    %v77 = vld [vmem:[%s0 + $0x60] sm:$0xff]
    %v78 = vld [vmem:[%s0 + $0x68] sm:$0xff]
    %v79 = vld [vmem:[%s0 + $0x70] sm:$0xff]
    %v80 = vld [vmem:[%s0 + $0x78] sm:$0xff]
    %v81 = vld [vmem:[%s0 + $0x80] sm:$0xff]
    %v82 = vld [vmem:[%s0 + $0x88] sm:$0xff]
    %v83 = vld [vmem:[%s0 + $0x90] sm:$0xff]
    %v84 = vld [vmem:[%s0 + $0x98] sm:$0xff]
    %v85 = vld [vmem:[%s0 + $0xa0] sm:$0xff]
    %v86 = vld [vmem:[%s0 + $0xa8] sm:$0xff]
    %v87 = vld [vmem:[%s0 + $0xb0] sm:$0xff]
    %v88 = vld [vmem:[%s0 + $0xb8] sm:$0xff]
    %v89 = vld [vmem:[%s0 + $0xc0] sm:$0xff]
    %v90 = vld [vmem:[%s0 + $0xc8] sm:$0xff]
    %v91 = vld [vmem:[%s0 + $0xd0] sm:$0xff]
    %v92 = vld [vmem:[%s0 + $0xd8] sm:$0xff]
    %v93 = vld [vmem:[%s0 + $0xe0] sm:$0xff]
    %v94 = vld [vmem:[%s0 + $0xe8] sm:$0xff]
    %v95 = vld [vmem:[%s0 + $0xf0] sm:$0xff]
    %v96 = vld [vmem:[%s0 + $0xf8] sm:$0xff]
    %v97 = vld [vmem:[%s0 + $0x100] sm:$0xff]
    %v98 = vld [vmem:[%s0 + $0x108] sm:$0xff]
    %v99 = vld [vmem:[%s0 + $0x110] sm:$0xff]
    %v100 = vld [vmem:[%s0 + $0x118] sm:$0xff]
    %v101 = vld [vmem:[%s0 + $0x120] sm:$0xff]
    %v102 = vld [vmem:[%s0 + $0x128] sm:$0xff]
    %v103 = vld [vmem:[%s0 + $0x130] sm:$0xff]
    %v104 = vld [vmem:[%s0 + $0x138] sm:$0xff]
    %v105 = vld [vmem:[%s0 + $0x140] sm:$0xff]
    %v106 = vld [vmem:[%s0 + $0x148] sm:$0xff]
    %v107 = vld [vmem:[%s0 + $0x150] sm:$0xff]
    %v108 = vld [vmem:[%s0 + $0x158] sm:$0xff]
    %v109 = vld [vmem:[%s0 + $0x160] sm:$0xff]
    %v110 = vld [vmem:[%s0 + $0x168] sm:$0xff]
    %v111 = vld [vmem:[%s0 + $0x170] sm:$0xff]
    %v112 = vld [vmem:[%s0 + $0x178] sm:$0xff]
    %v113 = vld [vmem:[%s0 + $0x180] sm:$0xff]
    %v114 = vld [vmem:[%s0 + $0x188] sm:$0xff]
    %v115 = vld [vmem:[%s0 + $0x190] sm:$0xff]
    %v116 = vld [vmem:[%s0 + $0x198] sm:$0xff]
    %v117 = vld [vmem:[%s0 + $0x1a0] sm:$0xff]
    %v118 = vld [vmem:[%s0 + $0x1a8] sm:$0xff]
    %v119 = vld [vmem:[%s0 + $0x1b0] sm:$0xff]
    %v120 = vld [vmem:[%s0 + $0x1b8] sm:$0xff]
    %v121 = vld [vmem:[%s0 + $0x1c0] sm:$0xff]
    %v122 = vld [vmem:[%s0 + $0x1c8] sm:$0xff]
    %v123 = vld [vmem:[%s0 + $0x1d0] sm:$0xff]
    %v124 = vld [vmem:[%s0 + $0x1d8] sm:$0xff]
    %v125 = vld [vmem:[%s0 + $0x1e0] sm:$0xff]
    %v126 = vld [vmem:[%s0 + $0x1e8] sm:$0xff]
    %v127 = vld [vmem:[%s0 + $0x1f0] sm:$0xff]
    %v128 = vld [vmem:[%s0 + $0x1f8] sm:$0xff]
    %v129 = vld [vmem:[%s1] sm:$0x7]
    %v130 = vld [vmem:[%s2] sm:$0x1]
    %v132 = vlaneseq
    %v133 = vshrl.u32 %v132, 7
    %v134 = vsub.s32 0, %v133
    %v135 = vrot.slane %v130, %v134
    %vm137 = vcmask 23552
    %v139 = vsel %vm137, %v65, 0
    %v142 = vsel %vm137, %v66, 0
    %v145 = vsel %vm137, %v67, 0
    %v148 = vsel %vm137, %v68, 0
    %v151 = vsel %vm137, %v69, 0
    %v154 = vsel %vm137, %v70, 0
    %v157 = vsel %vm137, %v71, 0
    %v160 = vsel %vm137, %v72, 0
    %v163 = vsel %vm137, %v73, 0
    %v166 = vsel %vm137, %v74, 0
    %v169 = vsel %vm137, %v75, 0
    %v172 = vsel %vm137, %v76, 0
    %v175 = vsel %vm137, %v77, 0
    %v178 = vsel %vm137, %v78, 0
    %v181 = vsel %vm137, %v79, 0
    %v184 = vsel %vm137, %v80, 0
    %v187 = vsel %vm137, %v81, 0
    %v190 = vsel %vm137, %v82, 0
    %v193 = vsel %vm137, %v83, 0
    %v196 = vsel %vm137, %v84, 0
    %v199 = vsel %vm137, %v85, 0
    %v202 = vsel %vm137, %v86, 0
    %v205 = vsel %vm137, %v87, 0
    %v208 = vsel %vm137, %v88, 0
    %v211 = vsel %vm137, %v89, 0
    %v214 = vsel %vm137, %v90, 0
    %v217 = vsel %vm137, %v91, 0
    %v220 = vsel %vm137, %v92, 0
    %v223 = vsel %vm137, %v93, 0
    %v226 = vsel %vm137, %v94, 0
    %v229 = vsel %vm137, %v95, 0
    %v232 = vsel %vm137, %v96, 0
    %v235 = vsel %vm137, %v97, 0
    %v238 = vsel %vm137, %v98, 0
    %v241 = vsel %vm137, %v99, 0
    %v244 = vsel %vm137, %v100, 0
    %v247 = vsel %vm137, %v101, 0
    %v250 = vsel %vm137, %v102, 0
    %v253 = vsel %vm137, %v103, 0
    %v256 = vsel %vm137, %v104, 0
    %v259 = vsel %vm137, %v105, 0
    %v262 = vsel %vm137, %v106, 0
    %v265 = vsel %vm137, %v107, 0
    %v268 = vsel %vm137, %v108, 0
    %v271 = vsel %vm137, %v109, 0
    %v274 = vsel %vm137, %v110, 0
    %v277 = vsel %vm137, %v111, 0
    %v280 = vsel %vm137, %v112, 0
    %v283 = vsel %vm137, %v113, 0
    %v286 = vsel %vm137, %v114, 0
    %v289 = vsel %vm137, %v115, 0
    %v292 = vsel %vm137, %v116, 0
    %v295 = vsel %vm137, %v117, 0
    %v298 = vsel %vm137, %v118, 0
    %v301 = vsel %vm137, %v119, 0
    %v304 = vsel %vm137, %v120, 0
    %v307 = vsel %vm137, %v121, 0
    %v310 = vsel %vm137, %v122, 0
    %v313 = vsel %vm137, %v123, 0
    %v316 = vsel %vm137, %v124, 0
    %v319 = vsel %vm137, %v125, 0
    %v322 = vsel %vm137, %v126, 0
    %v325 = vsel %vm137, %v127, 0
    %v328 = vsel %vm137, %v128, 0
    %vm330 = vcmask 1042432
    %v332 = vsel %vm330, %v129, 0
    %334 = vmatprep.subr.mxu0 0.0
    %335 = vmatpush1.msra.mxu0 0.0
    %336 = vmatprep.subr.mxu0 0.0
    %337 = vmatpush1.msra.mxu0 0.0
    %338 = vmatprep.subr.mxu0 0.0
    %339 = vmatpush1.msra.mxu0 0.0
    %340 = vmatprep.subr.mxu0 0.0
    %341 = vmatpush1.msra.mxu0 0.0
    %342 = vmatprep.subr.mxu0 0.0
    %343 = vmatpush1.msra.mxu0 0.0
    %344 = vmatprep.subr.mxu0 0.0
    %345 = vmatpush1.msra.mxu0 0.0
    %346 = vmatprep.subr.mxu0 0.0
    %347 = vmatpush1.msra.mxu0 0.0
    %348 = vmatprep.subr.mxu0 0.0
    %349 = vmatpush1.msra.mxu0 0.0
    %350 = vmatprep.subr.mxu0 0.0
    %351 = vmatpush1.msra.mxu0 0.0
    %352 = vmatprep.subr.mxu0 0.0
    %353 = vmatpush1.msra.mxu0 0.0
    %354 = vmatprep.subr.mxu0 0.0
    %355 = vmatpush1.msra.mxu0 0.0
    %356 = vmatprep.subr.mxu0 0.0
    %357 = vmatpush1.msra.mxu0 0.0
    %358 = vmatprep.subr.mxu0 0.0
    %359 = vmatpush1.msra.mxu0 0.0
    %360 = vmatprep.subr.mxu0 0.0
    %361 = vmatpush1.msra.mxu0 0.0
    %362 = vmatprep.subr.mxu0 0.0
    %363 = vmatpush1.msra.mxu0 0.0
    %364 = vmatprep.subr.mxu0 0.0
    %365 = vmatpush1.msra.mxu0 %v332
    %366 = vmatprep.subr.mxu0 0.0
    %367 = vmatpush2.msra.mxu0 0.0
    %368 = vmatprep.subr.mxu0 0.0
    %369 = vmatpush2.msra.mxu0 0.0
    %370 = vmatprep.subr.mxu0 0.0
    %371 = vmatpush2.msra.mxu0 0.0
    %372 = vmatprep.subr.mxu0 0.0
    %373 = vmatpush2.msra.mxu0 0.0
    %374 = vmatprep.subr.mxu0 0.0
    %375 = vmatpush2.msra.mxu0 0.0
    %376 = vmatprep.subr.mxu0 0.0
    %377 = vmatpush2.msra.mxu0 0.0
    %378 = vmatprep.subr.mxu0 0.0
    %379 = vmatpush2.msra.mxu0 0.0
    %380 = vmatprep.subr.mxu0 0.0
    %381 = vmatpush2.msra.mxu0 0.0
    %382 = vmatprep.subr.mxu0 0.0
    %383 = vmatpush2.msra.mxu0 0.0
    %384 = vmatprep.subr.mxu0 0.0
    %385 = vmatpush2.msra.mxu0 0.0
    %386 = vmatprep.subr.mxu0 0.0
    %387 = vmatpush2.msra.mxu0 0.0
    %388 = vmatprep.subr.mxu0 0.0
    %389 = vmatpush2.msra.mxu0 0.0
    %390 = vmatprep.subr.mxu0 0.0
    %391 = vmatpush2.msra.mxu0 0.0
    %392 = vmatprep.subr.mxu0 0.0
    %393 = vmatpush2.msra.mxu0 0.0
    %394 = vmatprep.subr.mxu0 0.0
    %395 = vmatpush2.msra.mxu0 0.0
    %396 = vmatprep.subr.mxu0 0.0
    %397 = vmatpush2.msra.mxu0 0.0
    %398 = vmatprep.mubr.f32.mxu0 0.0
    %399 = vmatmul.mubr.f32.gmra.mxu0 %v139
    %v400 = vpop.f32.mrf.mxu0
    %v401 = vadd.f32 %v135, %v400
    %v402 = vpop.f32.mrf.mxu0
    %403 = vmatprep.mubr.f32.mxu0 0.0
    %404 = vmatmul.mubr.f32.gmra.mxu0 %v142
    %v405 = vpop.f32.mrf.mxu0
    %v406 = vadd.f32 %v135, %v405
    %v407 = vpop.f32.mrf.mxu0
    %408 = vmatprep.mubr.f32.mxu0 0.0
    %409 = vmatmul.mubr.f32.gmra.mxu0 %v145
    %v410 = vpop.f32.mrf.mxu0
    %v411 = vadd.f32 %v135, %v410
    %v412 = vpop.f32.mrf.mxu0
    %413 = vmatprep.mubr.f32.mxu0 0.0
    %414 = vmatmul.mubr.f32.gmra.mxu0 %v148
    %v415 = vpop.f32.mrf.mxu0
    %v416 = vadd.f32 %v135, %v415
    %v417 = vpop.f32.mrf.mxu0
    %418 = vmatprep.mubr.f32.mxu0 0.0
    %419 = vmatmul.mubr.f32.gmra.mxu0 %v151
    %v420 = vpop.f32.mrf.mxu0
    %v421 = vadd.f32 %v135, %v420
    %v422 = vpop.f32.mrf.mxu0
    %423 = vmatprep.mubr.f32.mxu0 0.0
    %424 = vmatmul.mubr.f32.gmra.mxu0 %v154
    %v425 = vpop.f32.mrf.mxu0
    %v426 = vadd.f32 %v135, %v425
    %v427 = vpop.f32.mrf.mxu0
    %428 = vmatprep.mubr.f32.mxu0 0.0
    %429 = vmatmul.mubr.f32.gmra.mxu0 %v157
    %v430 = vpop.f32.mrf.mxu0
    %v431 = vadd.f32 %v135, %v430
    %v432 = vpop.f32.mrf.mxu0
    %433 = vmatprep.mubr.f32.mxu0 0.0
    %434 = vmatmul.mubr.f32.gmra.mxu0 %v160
    %v435 = vpop.f32.mrf.mxu0
    %v436 = vadd.f32 %v135, %v435
    %v437 = vpop.f32.mrf.mxu0
    %438 = vmatprep.mubr.f32.mxu0 0.0
    %439 = vmatmul.mubr.f32.gmra.mxu0 %v163
    %v440 = vpop.f32.mrf.mxu0
    %v441 = vadd.f32 %v135, %v440
    %v442 = vpop.f32.mrf.mxu0
    %443 = vmatprep.mubr.f32.mxu0 0.0
    %444 = vmatmul.mubr.f32.gmra.mxu0 %v166
    %v445 = vpop.f32.mrf.mxu0
    %v446 = vadd.f32 %v135, %v445
    %v447 = vpop.f32.mrf.mxu0
    %448 = vmatprep.mubr.f32.mxu0 0.0
    %449 = vmatmul.mubr.f32.gmra.mxu0 %v169
    %v450 = vpop.f32.mrf.mxu0
    %v451 = vadd.f32 %v135, %v450
    %v452 = vpop.f32.mrf.mxu0
    %453 = vmatprep.mubr.f32.mxu0 0.0
    %454 = vmatmul.mubr.f32.gmra.mxu0 %v172
    %v455 = vpop.f32.mrf.mxu0
    %v456 = vadd.f32 %v135, %v455
    %v457 = vpop.f32.mrf.mxu0
    %458 = vmatprep.mubr.f32.mxu0 0.0
    %459 = vmatmul.mubr.f32.gmra.mxu0 %v175
    %v460 = vpop.f32.mrf.mxu0
    %v461 = vadd.f32 %v135, %v460
    %v462 = vpop.f32.mrf.mxu0
    %463 = vmatprep.mubr.f32.mxu0 0.0
    %464 = vmatmul.mubr.f32.gmra.mxu0 %v178
    %v465 = vpop.f32.mrf.mxu0
    %v466 = vadd.f32 %v135, %v465
    %v467 = vpop.f32.mrf.mxu0
    %468 = vmatprep.mubr.f32.mxu0 0.0
    %469 = vmatmul.mubr.f32.gmra.mxu0 %v181
    %v470 = vpop.f32.mrf.mxu0
    %v471 = vadd.f32 %v135, %v470
    %v472 = vpop.f32.mrf.mxu0
    %473 = vmatprep.mubr.f32.mxu0 0.0
    %474 = vmatmul.mubr.f32.gmra.mxu0 %v184
    %v475 = vpop.f32.mrf.mxu0
    %v476 = vadd.f32 %v135, %v475
    %v477 = vpop.f32.mrf.mxu0
    %478 = vmatprep.mubr.f32.mxu0 0.0
    %479 = vmatmul.mubr.f32.gmra.mxu0 %v187
    %v480 = vpop.f32.mrf.mxu0
    %v481 = vadd.f32 %v135, %v480
    %v482 = vpop.f32.mrf.mxu0
    %483 = vmatprep.mubr.f32.mxu0 0.0
    %484 = vmatmul.mubr.f32.gmra.mxu0 %v190
    %v485 = vpop.f32.mrf.mxu0
    %v486 = vadd.f32 %v135, %v485
    %v487 = vpop.f32.mrf.mxu0
    %488 = vmatprep.mubr.f32.mxu0 0.0
    %489 = vmatmul.mubr.f32.gmra.mxu0 %v193
    %v490 = vpop.f32.mrf.mxu0
    %v491 = vadd.f32 %v135, %v490
    %v492 = vpop.f32.mrf.mxu0
    %493 = vmatprep.mubr.f32.mxu0 0.0
    %494 = vmatmul.mubr.f32.gmra.mxu0 %v196
    %v495 = vpop.f32.mrf.mxu0
    %v496 = vadd.f32 %v135, %v495
    %v497 = vpop.f32.mrf.mxu0
    %498 = vmatprep.mubr.f32.mxu0 0.0
    %499 = vmatmul.mubr.f32.gmra.mxu0 %v199
    %v500 = vpop.f32.mrf.mxu0
    %v501 = vadd.f32 %v135, %v500
    %v502 = vpop.f32.mrf.mxu0
    %503 = vmatprep.mubr.f32.mxu0 0.0
    %504 = vmatmul.mubr.f32.gmra.mxu0 %v202
    %v505 = vpop.f32.mrf.mxu0
    %v506 = vadd.f32 %v135, %v505
    %v507 = vpop.f32.mrf.mxu0
    %508 = vmatprep.mubr.f32.mxu0 0.0
    %509 = vmatmul.mubr.f32.gmra.mxu0 %v205
    %v510 = vpop.f32.mrf.mxu0
    %v511 = vadd.f32 %v135, %v510
    %v512 = vpop.f32.mrf.mxu0
    %513 = vmatprep.mubr.f32.mxu0 0.0
    %514 = vmatmul.mubr.f32.gmra.mxu0 %v208
    %v515 = vpop.f32.mrf.mxu0
    %v516 = vadd.f32 %v135, %v515
    %v517 = vpop.f32.mrf.mxu0
    %518 = vmatprep.mubr.f32.mxu0 0.0
    %519 = vmatmul.mubr.f32.gmra.mxu0 %v211
    %v520 = vpop.f32.mrf.mxu0
    %v521 = vadd.f32 %v135, %v520
    %v522 = vpop.f32.mrf.mxu0
    %523 = vmatprep.mubr.f32.mxu0 0.0
    %524 = vmatmul.mubr.f32.gmra.mxu0 %v214
    %v525 = vpop.f32.mrf.mxu0
    %v526 = vadd.f32 %v135, %v525
    %v527 = vpop.f32.mrf.mxu0
    %528 = vmatprep.mubr.f32.mxu0 0.0
    %529 = vmatmul.mubr.f32.gmra.mxu0 %v217
    %v530 = vpop.f32.mrf.mxu0
    %v531 = vadd.f32 %v135, %v530
    %v532 = vpop.f32.mrf.mxu0
    %533 = vmatprep.mubr.f32.mxu0 0.0
    %534 = vmatmul.mubr.f32.gmra.mxu0 %v220
    %v535 = vpop.f32.mrf.mxu0
    %v536 = vadd.f32 %v135, %v535
    %v537 = vpop.f32.mrf.mxu0
    %538 = vmatprep.mubr.f32.mxu0 0.0
    %539 = vmatmul.mubr.f32.gmra.mxu0 %v223
    %v540 = vpop.f32.mrf.mxu0
    %v541 = vadd.f32 %v135, %v540
    %v542 = vpop.f32.mrf.mxu0
    %543 = vmatprep.mubr.f32.mxu0 0.0
    %544 = vmatmul.mubr.f32.gmra.mxu0 %v226
    %v545 = vpop.f32.mrf.mxu0
    %v546 = vadd.f32 %v135, %v545
    %v547 = vpop.f32.mrf.mxu0
    %548 = vmatprep.mubr.f32.mxu0 0.0
    %549 = vmatmul.mubr.f32.gmra.mxu0 %v229
    %v550 = vpop.f32.mrf.mxu0
    %v551 = vadd.f32 %v135, %v550
    %v552 = vpop.f32.mrf.mxu0
    %553 = vmatprep.mubr.f32.mxu0 0.0
    %554 = vmatmul.mubr.f32.gmra.mxu0 %v232
    %v555 = vpop.f32.mrf.mxu0
    %v556 = vadd.f32 %v135, %v555
    %v557 = vpop.f32.mrf.mxu0
    %558 = vmatprep.mubr.f32.mxu0 0.0
    %559 = vmatmul.mubr.f32.gmra.mxu0 %v235
    %v560 = vpop.f32.mrf.mxu0
    %v561 = vadd.f32 %v135, %v560
    %v562 = vpop.f32.mrf.mxu0
    %563 = vmatprep.mubr.f32.mxu0 0.0
    %564 = vmatmul.mubr.f32.gmra.mxu0 %v238
    %v565 = vpop.f32.mrf.mxu0
    %v566 = vadd.f32 %v135, %v565
    %v567 = vpop.f32.mrf.mxu0
    %568 = vmatprep.mubr.f32.mxu0 0.0
    %569 = vmatmul.mubr.f32.gmra.mxu0 %v241
    %v570 = vpop.f32.mrf.mxu0
    %v571 = vadd.f32 %v135, %v570
    %v572 = vpop.f32.mrf.mxu0
    %573 = vmatprep.mubr.f32.mxu0 0.0
    %574 = vmatmul.mubr.f32.gmra.mxu0 %v244
    %v575 = vpop.f32.mrf.mxu0
    %v576 = vadd.f32 %v135, %v575
    %v577 = vpop.f32.mrf.mxu0
    %578 = vmatprep.mubr.f32.mxu0 0.0
    %579 = vmatmul.mubr.f32.gmra.mxu0 %v247
    %v580 = vpop.f32.mrf.mxu0
    %v581 = vadd.f32 %v135, %v580
    %v582 = vpop.f32.mrf.mxu0
    %583 = vmatprep.mubr.f32.mxu0 0.0
    %584 = vmatmul.mubr.f32.gmra.mxu0 %v250
    %v585 = vpop.f32.mrf.mxu0
    %v586 = vadd.f32 %v135, %v585
    %v587 = vpop.f32.mrf.mxu0
    %588 = vmatprep.mubr.f32.mxu0 0.0
    %589 = vmatmul.mubr.f32.gmra.mxu0 %v253
    %v590 = vpop.f32.mrf.mxu0
    %v591 = vadd.f32 %v135, %v590
    %v592 = vpop.f32.mrf.mxu0
    %593 = vmatprep.mubr.f32.mxu0 0.0
    %594 = vmatmul.mubr.f32.gmra.mxu0 %v256
    %v595 = vpop.f32.mrf.mxu0
    %v596 = vadd.f32 %v135, %v595
    %v597 = vpop.f32.mrf.mxu0
    %598 = vmatprep.mubr.f32.mxu0 0.0
    %599 = vmatmul.mubr.f32.gmra.mxu0 %v259
    %v600 = vpop.f32.mrf.mxu0
    %v601 = vadd.f32 %v135, %v600
    %v602 = vpop.f32.mrf.mxu0
    %603 = vmatprep.mubr.f32.mxu0 0.0
    %604 = vmatmul.mubr.f32.gmra.mxu0 %v262
    %v605 = vpop.f32.mrf.mxu0
    %v606 = vadd.f32 %v135, %v605
    %v607 = vpop.f32.mrf.mxu0
    %608 = vmatprep.mubr.f32.mxu0 0.0
    %609 = vmatmul.mubr.f32.gmra.mxu0 %v265
    %v610 = vpop.f32.mrf.mxu0
    %v611 = vadd.f32 %v135, %v610
    %v612 = vpop.f32.mrf.mxu0
    %613 = vmatprep.mubr.f32.mxu0 0.0
    %614 = vmatmul.mubr.f32.gmra.mxu0 %v268
    %v615 = vpop.f32.mrf.mxu0
    %v616 = vadd.f32 %v135, %v615
    %v617 = vpop.f32.mrf.mxu0
    %618 = vmatprep.mubr.f32.mxu0 0.0
    %619 = vmatmul.mubr.f32.gmra.mxu0 %v271
    %v620 = vpop.f32.mrf.mxu0
    %v621 = vadd.f32 %v135, %v620
    %v622 = vpop.f32.mrf.mxu0
    %623 = vmatprep.mubr.f32.mxu0 0.0
    %624 = vmatmul.mubr.f32.gmra.mxu0 %v274
    %v625 = vpop.f32.mrf.mxu0
    %v626 = vadd.f32 %v135, %v625
    %v627 = vpop.f32.mrf.mxu0
    %628 = vmatprep.mubr.f32.mxu0 0.0
    %629 = vmatmul.mubr.f32.gmra.mxu0 %v277
    %v630 = vpop.f32.mrf.mxu0
    %v631 = vadd.f32 %v135, %v630
    %v632 = vpop.f32.mrf.mxu0
    %633 = vmatprep.mubr.f32.mxu0 0.0
    %634 = vmatmul.mubr.f32.gmra.mxu0 %v280
    %v635 = vpop.f32.mrf.mxu0
    %v636 = vadd.f32 %v135, %v635
    %v637 = vpop.f32.mrf.mxu0
    %638 = vmatprep.mubr.f32.mxu0 0.0
    %639 = vmatmul.mubr.f32.gmra.mxu0 %v283
    %v640 = vpop.f32.mrf.mxu0
    %v641 = vadd.f32 %v135, %v640
    %v642 = vpop.f32.mrf.mxu0
    %643 = vmatprep.mubr.f32.mxu0 0.0
    %644 = vmatmul.mubr.f32.gmra.mxu0 %v286
    %v645 = vpop.f32.mrf.mxu0
    %v646 = vadd.f32 %v135, %v645
    %v647 = vpop.f32.mrf.mxu0
    %648 = vmatprep.mubr.f32.mxu0 0.0
    %649 = vmatmul.mubr.f32.gmra.mxu0 %v289
    %v650 = vpop.f32.mrf.mxu0
    %v651 = vadd.f32 %v135, %v650
    %v652 = vpop.f32.mrf.mxu0
    %653 = vmatprep.mubr.f32.mxu0 0.0
    %654 = vmatmul.mubr.f32.gmra.mxu0 %v292
    %v655 = vpop.f32.mrf.mxu0
    %v656 = vadd.f32 %v135, %v655
    %v657 = vpop.f32.mrf.mxu0
    %658 = vmatprep.mubr.f32.mxu0 0.0
    %659 = vmatmul.mubr.f32.gmra.mxu0 %v295
    %v660 = vpop.f32.mrf.mxu0
    %v661 = vadd.f32 %v135, %v660
    %v662 = vpop.f32.mrf.mxu0
    %663 = vmatprep.mubr.f32.mxu0 0.0
    %664 = vmatmul.mubr.f32.gmra.mxu0 %v298
    %v665 = vpop.f32.mrf.mxu0
    %v666 = vadd.f32 %v135, %v665
    %v667 = vpop.f32.mrf.mxu0
    %668 = vmatprep.mubr.f32.mxu0 0.0
    %669 = vmatmul.mubr.f32.gmra.mxu0 %v301
    %v670 = vpop.f32.mrf.mxu0
    %v671 = vadd.f32 %v135, %v670
    %v672 = vpop.f32.mrf.mxu0
    %673 = vmatprep.mubr.f32.mxu0 0.0
    %674 = vmatmul.mubr.f32.gmra.mxu0 %v304
    %v675 = vpop.f32.mrf.mxu0
    %v676 = vadd.f32 %v135, %v675
    %v677 = vpop.f32.mrf.mxu0
    %678 = vmatprep.mubr.f32.mxu0 0.0
    %679 = vmatmul.mubr.f32.gmra.mxu0 %v307
    %v680 = vpop.f32.mrf.mxu0
    %v681 = vadd.f32 %v135, %v680
    %v682 = vpop.f32.mrf.mxu0
    %683 = vmatprep.mubr.f32.mxu0 0.0
    %684 = vmatmul.mubr.f32.gmra.mxu0 %v310
    %v685 = vpop.f32.mrf.mxu0
    %v686 = vadd.f32 %v135, %v685
    %v687 = vpop.f32.mrf.mxu0
    %688 = vmatprep.mubr.f32.mxu0 0.0
    %689 = vmatmul.mubr.f32.gmra.mxu0 %v313
    %v690 = vpop.f32.mrf.mxu0
    %v691 = vadd.f32 %v135, %v690
    %v692 = vpop.f32.mrf.mxu0
    %693 = vmatprep.mubr.f32.mxu0 0.0
    %694 = vmatmul.mubr.f32.gmra.mxu0 %v316
    %v695 = vpop.f32.mrf.mxu0
    %v696 = vadd.f32 %v135, %v695
    %v697 = vpop.f32.mrf.mxu0
    %698 = vmatprep.mubr.f32.mxu0 0.0
    %699 = vmatmul.mubr.f32.gmra.mxu0 %v319
    %v700 = vpop.f32.mrf.mxu0
    %v701 = vadd.f32 %v135, %v700
    %v702 = vpop.f32.mrf.mxu0
    %703 = vmatprep.mubr.f32.mxu0 0.0
    %704 = vmatmul.mubr.f32.gmra.mxu0 %v322
    %v705 = vpop.f32.mrf.mxu0
    %v706 = vadd.f32 %v135, %v705
    %v707 = vpop.f32.mrf.mxu0
    %708 = vmatprep.mubr.f32.mxu0 0.0
    %709 = vmatmul.mubr.f32.gmra.mxu0 %v325
    %v710 = vpop.f32.mrf.mxu0
    %v711 = vadd.f32 %v135, %v710
    %v712 = vpop.f32.mrf.mxu0
    %713 = vmatprep.mubr.f32.mxu0 0.0
    %714 = vmatmul.mubr.f32.gmra.mxu0 %v328
    %v715 = vpop.f32.mrf.mxu0
    %v716 = vadd.f32 %v135, %v715
    %v717 = vpop.f32.mrf.mxu0
    %718 = vdwg.mxu0
    %v719 = vmax.f32 %v401, 0.0
    %v720 = vmax.f32 %v406, 0.0
    %v721 = vmax.f32 %v411, 0.0
    %v722 = vmax.f32 %v416, 0.0
    %v723 = vmax.f32 %v421, 0.0
    %v724 = vmax.f32 %v426, 0.0
    %v725 = vmax.f32 %v431, 0.0
    %v726 = vmax.f32 %v436, 0.0
    %v727 = vmax.f32 %v441, 0.0
    %v728 = vmax.f32 %v446, 0.0
    %v729 = vmax.f32 %v451, 0.0
    %v730 = vmax.f32 %v456, 0.0
    %v731 = vmax.f32 %v461, 0.0
    %v732 = vmax.f32 %v466, 0.0
    %v733 = vmax.f32 %v471, 0.0
    %v734 = vmax.f32 %v476, 0.0
    %v735 = vmax.f32 %v481, 0.0
    %v736 = vmax.f32 %v486, 0.0
    %v737 = vmax.f32 %v491, 0.0
    %v738 = vmax.f32 %v496, 0.0
    %v739 = vmax.f32 %v501, 0.0
    %v740 = vmax.f32 %v506, 0.0
    %v741 = vmax.f32 %v511, 0.0
    %v742 = vmax.f32 %v516, 0.0
    %v743 = vmax.f32 %v521, 0.0
    %v744 = vmax.f32 %v526, 0.0
    %v745 = vmax.f32 %v531, 0.0
    %v746 = vmax.f32 %v536, 0.0
    %v747 = vmax.f32 %v541, 0.0
    %v748 = vmax.f32 %v546, 0.0
    %v749 = vmax.f32 %v551, 0.0
    %v750 = vmax.f32 %v556, 0.0
    %v751 = vmax.f32 %v561, 0.0
    %v752 = vmax.f32 %v566, 0.0
    %v753 = vmax.f32 %v571, 0.0
    %v754 = vmax.f32 %v576, 0.0
    %v755 = vmax.f32 %v581, 0.0
    %v756 = vmax.f32 %v586, 0.0
    %v757 = vmax.f32 %v591, 0.0
    %v758 = vmax.f32 %v596, 0.0
    %v759 = vmax.f32 %v601, 0.0
    %v760 = vmax.f32 %v606, 0.0
    %v761 = vmax.f32 %v611, 0.0
    %v762 = vmax.f32 %v616, 0.0
    %v763 = vmax.f32 %v621, 0.0
    %v764 = vmax.f32 %v626, 0.0
    %v765 = vmax.f32 %v631, 0.0
    %v766 = vmax.f32 %v636, 0.0
    %v767 = vmax.f32 %v641, 0.0
    %v768 = vmax.f32 %v646, 0.0
    %v769 = vmax.f32 %v651, 0.0
    %v770 = vmax.f32 %v656, 0.0
    %v771 = vmax.f32 %v661, 0.0
    %v772 = vmax.f32 %v666, 0.0
    %v773 = vmax.f32 %v671, 0.0
    %v774 = vmax.f32 %v676, 0.0
    %v775 = vmax.f32 %v681, 0.0
    %v776 = vmax.f32 %v686, 0.0
    %v777 = vmax.f32 %v691, 0.0
    %v778 = vmax.f32 %v696, 0.0
    %v779 = vmax.f32 %v701, 0.0
    %v780 = vmax.f32 %v706, 0.0
    %v781 = vmax.f32 %v711, 0.0
    %v782 = vmax.f32 %v716, 0.0
    %v783 = vld [vmem:[%s3] sm:$0x3f]
    %v784 = vld [vmem:[%s4] sm:$0x1]
    %v786 = vlaneseq
    %v787 = vshrl.u32 %v786, 7
    %v788 = vsub.s32 0, %v787
    %v789 = vrot.slane %v784, %v788
    %vm791 = vcmask 48128
    %v793 = vsel %vm791, %v719, 0
    %v796 = vsel %vm791, %v720, 0
    %v799 = vsel %vm791, %v721, 0
    %v802 = vsel %vm791, %v722, 0
    %v805 = vsel %vm791, %v723, 0
    %v808 = vsel %vm791, %v724, 0
    %v811 = vsel %vm791, %v725, 0
    %v814 = vsel %vm791, %v726, 0
    %v817 = vsel %vm791, %v727, 0
    %v820 = vsel %vm791, %v728, 0
    %v823 = vsel %vm791, %v729, 0
    %v826 = vsel %vm791, %v730, 0
    %v829 = vsel %vm791, %v731, 0
    %v832 = vsel %vm791, %v732, 0
    %v835 = vsel %vm791, %v733, 0
    %v838 = vsel %vm791, %v734, 0
    %v841 = vsel %vm791, %v735, 0
    %v844 = vsel %vm791, %v736, 0
    %v847 = vsel %vm791, %v737, 0
    %v850 = vsel %vm791, %v738, 0
    %v853 = vsel %vm791, %v739, 0
    %v856 = vsel %vm791, %v740, 0
    %v859 = vsel %vm791, %v741, 0
    %v862 = vsel %vm791, %v742, 0
    %v865 = vsel %vm791, %v743, 0
    %v868 = vsel %vm791, %v744, 0
    %v871 = vsel %vm791, %v745, 0
    %v874 = vsel %vm791, %v746, 0
    %v877 = vsel %vm791, %v747, 0
    %v880 = vsel %vm791, %v748, 0
    %v883 = vsel %vm791, %v749, 0
    %v886 = vsel %vm791, %v750, 0
    %v889 = vsel %vm791, %v751, 0
    %v892 = vsel %vm791, %v752, 0
    %v895 = vsel %vm791, %v753, 0
    %v898 = vsel %vm791, %v754, 0
    %v901 = vsel %vm791, %v755, 0
    %v904 = vsel %vm791, %v756, 0
    %v907 = vsel %vm791, %v757, 0
    %v910 = vsel %vm791, %v758, 0
    %v913 = vsel %vm791, %v759, 0
    %v916 = vsel %vm791, %v760, 0
    %v919 = vsel %vm791, %v761, 0
    %v922 = vsel %vm791, %v762, 0
    %v925 = vsel %vm791, %v763, 0
    %v928 = vsel %vm791, %v764, 0
    %v931 = vsel %vm791, %v765, 0
    %v934 = vsel %vm791, %v766, 0
    %v937 = vsel %vm791, %v767, 0
    %v940 = vsel %vm791, %v768, 0
    %v943 = vsel %vm791, %v769, 0
    %v946 = vsel %vm791, %v770, 0
    %v949 = vsel %vm791, %v771, 0
    %v952 = vsel %vm791, %v772, 0
    %v955 = vsel %vm791, %v773, 0
    %v958 = vsel %vm791, %v774, 0
    %v961 = vsel %vm791, %v775, 0
    %v964 = vsel %vm791, %v776, 0
    %v967 = vsel %vm791, %v777, 0
    %v970 = vsel %vm791, %v778, 0
    %v973 = vsel %vm791, %v779, 0
    %v976 = vsel %vm791, %v780, 0
    %v979 = vsel %vm791, %v781, 0
    %v982 = vsel %vm791, %v782, 0
    %vm984 = vcmask 1045504
    %v986 = vsel %vm984, %v783, 0
    %988 = vmatprep.subr.mxu0 0.0
    %989 = vmatpush1.msra.mxu0 0.0
    %990 = vmatprep.subr.mxu0 0.0
    %991 = vmatpush1.msra.mxu0 0.0
    %992 = vmatprep.subr.mxu0 0.0
    %993 = vmatpush1.msra.mxu0 0.0
    %994 = vmatprep.subr.mxu0 0.0
    %995 = vmatpush1.msra.mxu0 0.0
    %996 = vmatprep.subr.mxu0 0.0
    %997 = vmatpush1.msra.mxu0 0.0
    %998 = vmatprep.subr.mxu0 0.0
    %999 = vmatpush1.msra.mxu0 0.0
    %1000 = vmatprep.subr.mxu0 0.0
    %1001 = vmatpush1.msra.mxu0 0.0
    %1002 = vmatprep.subr.mxu0 0.0
    %1003 = vmatpush1.msra.mxu0 0.0
    %1004 = vmatprep.subr.mxu0 0.0
    %1005 = vmatpush1.msra.mxu0 0.0
    %1006 = vmatprep.subr.mxu0 0.0
    %1007 = vmatpush1.msra.mxu0 0.0
    %1008 = vmatprep.subr.mxu0 0.0
    %1009 = vmatpush1.msra.mxu0 0.0
    %1010 = vmatprep.subr.mxu0 0.0
    %1011 = vmatpush1.msra.mxu0 0.0
    %1012 = vmatprep.subr.mxu0 0.0
    %1013 = vmatpush1.msra.mxu0 0.0
    %1014 = vmatprep.subr.mxu0 0.0
    %1015 = vmatpush1.msra.mxu0 0.0
    %1016 = vmatprep.subr.mxu0 0.0
    %1017 = vmatpush1.msra.mxu0 0.0
    %1018 = vmatprep.subr.mxu0 0.0
    %1019 = vmatpush1.msra.mxu0 %v986
    %1020 = vmatprep.subr.mxu0 0.0
    %1021 = vmatpush2.msra.mxu0 0.0
    %1022 = vmatprep.subr.mxu0 0.0
    %1023 = vmatpush2.msra.mxu0 0.0
    %1024 = vmatprep.subr.mxu0 0.0
    %1025 = vmatpush2.msra.mxu0 0.0
    %1026 = vmatprep.subr.mxu0 0.0
    %1027 = vmatpush2.msra.mxu0 0.0
    %1028 = vmatprep.subr.mxu0 0.0
    %1029 = vmatpush2.msra.mxu0 0.0
    %1030 = vmatprep.subr.mxu0 0.0
    %1031 = vmatpush2.msra.mxu0 0.0
    %1032 = vmatprep.subr.mxu0 0.0
    %1033 = vmatpush2.msra.mxu0 0.0
    %1034 = vmatprep.subr.mxu0 0.0
    %1035 = vmatpush2.msra.mxu0 0.0
    %1036 = vmatprep.subr.mxu0 0.0
    %1037 = vmatpush2.msra.mxu0 0.0
    %1038 = vmatprep.subr.mxu0 0.0
    %1039 = vmatpush2.msra.mxu0 0.0
    %1040 = vmatprep.subr.mxu0 0.0
    %1041 = vmatpush2.msra.mxu0 0.0
    %1042 = vmatprep.subr.mxu0 0.0
    %1043 = vmatpush2.msra.mxu0 0.0
    %1044 = vmatprep.subr.mxu0 0.0
    %1045 = vmatpush2.msra.mxu0 0.0
    %1046 = vmatprep.subr.mxu0 0.0
    %1047 = vmatpush2.msra.mxu0 0.0
    %1048 = vmatprep.subr.mxu0 0.0
    %1049 = vmatpush2.msra.mxu0 0.0
    %1050 = vmatprep.subr.mxu0 0.0
    %1051 = vmatpush2.msra.mxu0 0.0
    %1052 = vmatprep.mubr.f32.mxu0 0.0
    %1053 = vmatmul.mubr.f32.gmra.mxu0 %v793
    %v1054 = vpop.f32.mrf.mxu0
    %v1055 = vadd.f32 %v789, %v1054
    %v1056 = vpop.f32.mrf.mxu0
    %1057 = vmatprep.mubr.f32.mxu0 0.0
    %1058 = vmatmul.mubr.f32.gmra.mxu0 %v796
    %v1059 = vpop.f32.mrf.mxu0
    %v1060 = vadd.f32 %v789, %v1059
    %v1061 = vpop.f32.mrf.mxu0
    %1062 = vmatprep.mubr.f32.mxu0 0.0
    %1063 = vmatmul.mubr.f32.gmra.mxu0 %v799
    %v1064 = vpop.f32.mrf.mxu0
    %v1065 = vadd.f32 %v789, %v1064
    %v1066 = vpop.f32.mrf.mxu0
    %1067 = vmatprep.mubr.f32.mxu0 0.0
    %1068 = vmatmul.mubr.f32.gmra.mxu0 %v802
    %v1069 = vpop.f32.mrf.mxu0
    %v1070 = vadd.f32 %v789, %v1069
    %v1071 = vpop.f32.mrf.mxu0
    %1072 = vmatprep.mubr.f32.mxu0 0.0
    %1073 = vmatmul.mubr.f32.gmra.mxu0 %v805
    %v1074 = vpop.f32.mrf.mxu0
    %v1075 = vadd.f32 %v789, %v1074
    %v1076 = vpop.f32.mrf.mxu0
    %1077 = vmatprep.mubr.f32.mxu0 0.0
    %1078 = vmatmul.mubr.f32.gmra.mxu0 %v808
    %v1079 = vpop.f32.mrf.mxu0
    %v1080 = vadd.f32 %v789, %v1079
    %v1081 = vpop.f32.mrf.mxu0
    %1082 = vmatprep.mubr.f32.mxu0 0.0
    %1083 = vmatmul.mubr.f32.gmra.mxu0 %v811
    %v1084 = vpop.f32.mrf.mxu0
    %v1085 = vadd.f32 %v789, %v1084
    %v1086 = vpop.f32.mrf.mxu0
    %1087 = vmatprep.mubr.f32.mxu0 0.0
    %1088 = vmatmul.mubr.f32.gmra.mxu0 %v814
    %v1089 = vpop.f32.mrf.mxu0
    %v1090 = vadd.f32 %v789, %v1089
    %v1091 = vpop.f32.mrf.mxu0
    %1092 = vmatprep.mubr.f32.mxu0 0.0
    %1093 = vmatmul.mubr.f32.gmra.mxu0 %v817
    %v1094 = vpop.f32.mrf.mxu0
    %v1095 = vadd.f32 %v789, %v1094
    %v1096 = vpop.f32.mrf.mxu0
    %1097 = vmatprep.mubr.f32.mxu0 0.0
    %1098 = vmatmul.mubr.f32.gmra.mxu0 %v820
    %v1099 = vpop.f32.mrf.mxu0
    %v1100 = vadd.f32 %v789, %v1099
    %v1101 = vpop.f32.mrf.mxu0
    %1102 = vmatprep.mubr.f32.mxu0 0.0
    %1103 = vmatmul.mubr.f32.gmra.mxu0 %v823
    %v1104 = vpop.f32.mrf.mxu0
    %v1105 = vadd.f32 %v789, %v1104
    %v1106 = vpop.f32.mrf.mxu0
    %1107 = vmatprep.mubr.f32.mxu0 0.0
    %1108 = vmatmul.mubr.f32.gmra.mxu0 %v826
    %v1109 = vpop.f32.mrf.mxu0
    %v1110 = vadd.f32 %v789, %v1109
    %v1111 = vpop.f32.mrf.mxu0
    %1112 = vmatprep.mubr.f32.mxu0 0.0
    %1113 = vmatmul.mubr.f32.gmra.mxu0 %v829
    %v1114 = vpop.f32.mrf.mxu0
    %v1115 = vadd.f32 %v789, %v1114
    %v1116 = vpop.f32.mrf.mxu0
    %1117 = vmatprep.mubr.f32.mxu0 0.0
    %1118 = vmatmul.mubr.f32.gmra.mxu0 %v832
    %v1119 = vpop.f32.mrf.mxu0
    %v1120 = vadd.f32 %v789, %v1119
    %v1121 = vpop.f32.mrf.mxu0
    %1122 = vmatprep.mubr.f32.mxu0 0.0
    %1123 = vmatmul.mubr.f32.gmra.mxu0 %v835
    %v1124 = vpop.f32.mrf.mxu0
    %v1125 = vadd.f32 %v789, %v1124
    %v1126 = vpop.f32.mrf.mxu0
    %1127 = vmatprep.mubr.f32.mxu0 0.0
    %1128 = vmatmul.mubr.f32.gmra.mxu0 %v838
    %v1129 = vpop.f32.mrf.mxu0
    %v1130 = vadd.f32 %v789, %v1129
    %v1131 = vpop.f32.mrf.mxu0
    %1132 = vmatprep.mubr.f32.mxu0 0.0
    %1133 = vmatmul.mubr.f32.gmra.mxu0 %v841
    %v1134 = vpop.f32.mrf.mxu0
    %v1135 = vadd.f32 %v789, %v1134
    %v1136 = vpop.f32.mrf.mxu0
    %1137 = vmatprep.mubr.f32.mxu0 0.0
    %1138 = vmatmul.mubr.f32.gmra.mxu0 %v844
    %v1139 = vpop.f32.mrf.mxu0
    %v1140 = vadd.f32 %v789, %v1139
    %v1141 = vpop.f32.mrf.mxu0
    %1142 = vmatprep.mubr.f32.mxu0 0.0
    %1143 = vmatmul.mubr.f32.gmra.mxu0 %v847
    %v1144 = vpop.f32.mrf.mxu0
    %v1145 = vadd.f32 %v789, %v1144
    %v1146 = vpop.f32.mrf.mxu0
    %1147 = vmatprep.mubr.f32.mxu0 0.0
    %1148 = vmatmul.mubr.f32.gmra.mxu0 %v850
    %v1149 = vpop.f32.mrf.mxu0
    %v1150 = vadd.f32 %v789, %v1149
    %v1151 = vpop.f32.mrf.mxu0
    %1152 = vmatprep.mubr.f32.mxu0 0.0
    %1153 = vmatmul.mubr.f32.gmra.mxu0 %v853
    %v1154 = vpop.f32.mrf.mxu0
    %v1155 = vadd.f32 %v789, %v1154
    %v1156 = vpop.f32.mrf.mxu0
    %1157 = vmatprep.mubr.f32.mxu0 0.0
    %1158 = vmatmul.mubr.f32.gmra.mxu0 %v856
    %v1159 = vpop.f32.mrf.mxu0
    %v1160 = vadd.f32 %v789, %v1159
    %v1161 = vpop.f32.mrf.mxu0
    %1162 = vmatprep.mubr.f32.mxu0 0.0
    %1163 = vmatmul.mubr.f32.gmra.mxu0 %v859
    %v1164 = vpop.f32.mrf.mxu0
    %v1165 = vadd.f32 %v789, %v1164
    %v1166 = vpop.f32.mrf.mxu0
    %1167 = vmatprep.mubr.f32.mxu0 0.0
    %1168 = vmatmul.mubr.f32.gmra.mxu0 %v862
    %v1169 = vpop.f32.mrf.mxu0
    %v1170 = vadd.f32 %v789, %v1169
    %v1171 = vpop.f32.mrf.mxu0
    %1172 = vmatprep.mubr.f32.mxu0 0.0
    %1173 = vmatmul.mubr.f32.gmra.mxu0 %v865
    %v1174 = vpop.f32.mrf.mxu0
    %v1175 = vadd.f32 %v789, %v1174
    %v1176 = vpop.f32.mrf.mxu0
    %1177 = vmatprep.mubr.f32.mxu0 0.0
    %1178 = vmatmul.mubr.f32.gmra.mxu0 %v868
    %v1179 = vpop.f32.mrf.mxu0
    %v1180 = vadd.f32 %v789, %v1179
    %v1181 = vpop.f32.mrf.mxu0
    %1182 = vmatprep.mubr.f32.mxu0 0.0
    %1183 = vmatmul.mubr.f32.gmra.mxu0 %v871
    %v1184 = vpop.f32.mrf.mxu0
    %v1185 = vadd.f32 %v789, %v1184
    %v1186 = vpop.f32.mrf.mxu0
    %1187 = vmatprep.mubr.f32.mxu0 0.0
    %1188 = vmatmul.mubr.f32.gmra.mxu0 %v874
    %v1189 = vpop.f32.mrf.mxu0
    %v1190 = vadd.f32 %v789, %v1189
    %v1191 = vpop.f32.mrf.mxu0
    %1192 = vmatprep.mubr.f32.mxu0 0.0
    %1193 = vmatmul.mubr.f32.gmra.mxu0 %v877
    %v1194 = vpop.f32.mrf.mxu0
    %v1195 = vadd.f32 %v789, %v1194
    %v1196 = vpop.f32.mrf.mxu0
    %1197 = vmatprep.mubr.f32.mxu0 0.0
    %1198 = vmatmul.mubr.f32.gmra.mxu0 %v880
    %v1199 = vpop.f32.mrf.mxu0
    %v1200 = vadd.f32 %v789, %v1199
    %v1201 = vpop.f32.mrf.mxu0
    %1202 = vmatprep.mubr.f32.mxu0 0.0
    %1203 = vmatmul.mubr.f32.gmra.mxu0 %v883
    %v1204 = vpop.f32.mrf.mxu0
    %v1205 = vadd.f32 %v789, %v1204
    %v1206 = vpop.f32.mrf.mxu0
    %1207 = vmatprep.mubr.f32.mxu0 0.0
    %1208 = vmatmul.mubr.f32.gmra.mxu0 %v886
    %v1209 = vpop.f32.mrf.mxu0
    %v1210 = vadd.f32 %v789, %v1209
    %v1211 = vpop.f32.mrf.mxu0
    %1212 = vmatprep.mubr.f32.mxu0 0.0
    %1213 = vmatmul.mubr.f32.gmra.mxu0 %v889
    %v1214 = vpop.f32.mrf.mxu0
    %v1215 = vadd.f32 %v789, %v1214
    %v1216 = vpop.f32.mrf.mxu0
    %1217 = vmatprep.mubr.f32.mxu0 0.0
    %1218 = vmatmul.mubr.f32.gmra.mxu0 %v892
    %v1219 = vpop.f32.mrf.mxu0
    %v1220 = vadd.f32 %v789, %v1219
    %v1221 = vpop.f32.mrf.mxu0
    %1222 = vmatprep.mubr.f32.mxu0 0.0
    %1223 = vmatmul.mubr.f32.gmra.mxu0 %v895
    %v1224 = vpop.f32.mrf.mxu0
    %v1225 = vadd.f32 %v789, %v1224
    %v1226 = vpop.f32.mrf.mxu0
    %1227 = vmatprep.mubr.f32.mxu0 0.0
    %1228 = vmatmul.mubr.f32.gmra.mxu0 %v898
    %v1229 = vpop.f32.mrf.mxu0
    %v1230 = vadd.f32 %v789, %v1229
    %v1231 = vpop.f32.mrf.mxu0
    %1232 = vmatprep.mubr.f32.mxu0 0.0
    %1233 = vmatmul.mubr.f32.gmra.mxu0 %v901
    %v1234 = vpop.f32.mrf.mxu0
    %v1235 = vadd.f32 %v789, %v1234
    %v1236 = vpop.f32.mrf.mxu0
    %1237 = vmatprep.mubr.f32.mxu0 0.0
    %1238 = vmatmul.mubr.f32.gmra.mxu0 %v904
    %v1239 = vpop.f32.mrf.mxu0
    %v1240 = vadd.f32 %v789, %v1239
    %v1241 = vpop.f32.mrf.mxu0
    %1242 = vmatprep.mubr.f32.mxu0 0.0
    %1243 = vmatmul.mubr.f32.gmra.mxu0 %v907
    %v1244 = vpop.f32.mrf.mxu0
    %v1245 = vadd.f32 %v789, %v1244
    %v1246 = vpop.f32.mrf.mxu0
    %1247 = vmatprep.mubr.f32.mxu0 0.0
    %1248 = vmatmul.mubr.f32.gmra.mxu0 %v910
    %v1249 = vpop.f32.mrf.mxu0
    %v1250 = vadd.f32 %v789, %v1249
    %v1251 = vpop.f32.mrf.mxu0
    %1252 = vmatprep.mubr.f32.mxu0 0.0
    %1253 = vmatmul.mubr.f32.gmra.mxu0 %v913
    %v1254 = vpop.f32.mrf.mxu0
    %v1255 = vadd.f32 %v789, %v1254
    %v1256 = vpop.f32.mrf.mxu0
    %1257 = vmatprep.mubr.f32.mxu0 0.0
    %1258 = vmatmul.mubr.f32.gmra.mxu0 %v916
    %v1259 = vpop.f32.mrf.mxu0
    %v1260 = vadd.f32 %v789, %v1259
    %v1261 = vpop.f32.mrf.mxu0
    %1262 = vmatprep.mubr.f32.mxu0 0.0
    %1263 = vmatmul.mubr.f32.gmra.mxu0 %v919
    %v1264 = vpop.f32.mrf.mxu0
    %v1265 = vadd.f32 %v789, %v1264
    %v1266 = vpop.f32.mrf.mxu0
    %1267 = vmatprep.mubr.f32.mxu0 0.0
    %1268 = vmatmul.mubr.f32.gmra.mxu0 %v922
    %v1269 = vpop.f32.mrf.mxu0
    %v1270 = vadd.f32 %v789, %v1269
    %v1271 = vpop.f32.mrf.mxu0
    %1272 = vmatprep.mubr.f32.mxu0 0.0
    %1273 = vmatmul.mubr.f32.gmra.mxu0 %v925
    %v1274 = vpop.f32.mrf.mxu0
    %v1275 = vadd.f32 %v789, %v1274
    %v1276 = vpop.f32.mrf.mxu0
    %1277 = vmatprep.mubr.f32.mxu0 0.0
    %1278 = vmatmul.mubr.f32.gmra.mxu0 %v928
    %v1279 = vpop.f32.mrf.mxu0
    %v1280 = vadd.f32 %v789, %v1279
    %v1281 = vpop.f32.mrf.mxu0
    %1282 = vmatprep.mubr.f32.mxu0 0.0
    %1283 = vmatmul.mubr.f32.gmra.mxu0 %v931
    %v1284 = vpop.f32.mrf.mxu0
    %v1285 = vadd.f32 %v789, %v1284
    %v1286 = vpop.f32.mrf.mxu0
    %1287 = vmatprep.mubr.f32.mxu0 0.0
    %1288 = vmatmul.mubr.f32.gmra.mxu0 %v934
    %v1289 = vpop.f32.mrf.mxu0
    %v1290 = vadd.f32 %v789, %v1289
    %v1291 = vpop.f32.mrf.mxu0
    %1292 = vmatprep.mubr.f32.mxu0 0.0
    %1293 = vmatmul.mubr.f32.gmra.mxu0 %v937
    %v1294 = vpop.f32.mrf.mxu0
    %v1295 = vadd.f32 %v789, %v1294
    %v1296 = vpop.f32.mrf.mxu0
    %1297 = vmatprep.mubr.f32.mxu0 0.0
    %1298 = vmatmul.mubr.f32.gmra.mxu0 %v940
    %v1299 = vpop.f32.mrf.mxu0
    %v1300 = vadd.f32 %v789, %v1299
    %v1301 = vpop.f32.mrf.mxu0
    %1302 = vmatprep.mubr.f32.mxu0 0.0
    %1303 = vmatmul.mubr.f32.gmra.mxu0 %v943
    %v1304 = vpop.f32.mrf.mxu0
    %v1305 = vadd.f32 %v789, %v1304
    %v1306 = vpop.f32.mrf.mxu0
    %1307 = vmatprep.mubr.f32.mxu0 0.0
    %1308 = vmatmul.mubr.f32.gmra.mxu0 %v946
    %v1309 = vpop.f32.mrf.mxu0
    %v1310 = vadd.f32 %v789, %v1309
    %v1311 = vpop.f32.mrf.mxu0
    %1312 = vmatprep.mubr.f32.mxu0 0.0
    %1313 = vmatmul.mubr.f32.gmra.mxu0 %v949
    %v1314 = vpop.f32.mrf.mxu0
    %v1315 = vadd.f32 %v789, %v1314
    %v1316 = vpop.f32.mrf.mxu0
    %1317 = vmatprep.mubr.f32.mxu0 0.0
    %1318 = vmatmul.mubr.f32.gmra.mxu0 %v952
    %v1319 = vpop.f32.mrf.mxu0
    %v1320 = vadd.f32 %v789, %v1319
    %v1321 = vpop.f32.mrf.mxu0
    %1322 = vmatprep.mubr.f32.mxu0 0.0
    %1323 = vmatmul.mubr.f32.gmra.mxu0 %v955
    %v1324 = vpop.f32.mrf.mxu0
    %v1325 = vadd.f32 %v789, %v1324
    %v1326 = vpop.f32.mrf.mxu0
    %1327 = vmatprep.mubr.f32.mxu0 0.0
    %1328 = vmatmul.mubr.f32.gmra.mxu0 %v958
    %v1329 = vpop.f32.mrf.mxu0
    %v1330 = vadd.f32 %v789, %v1329
    %v1331 = vpop.f32.mrf.mxu0
    %1332 = vmatprep.mubr.f32.mxu0 0.0
    %1333 = vmatmul.mubr.f32.gmra.mxu0 %v961
    %v1334 = vpop.f32.mrf.mxu0
    %v1335 = vadd.f32 %v789, %v1334
    %v1336 = vpop.f32.mrf.mxu0
    %1337 = vmatprep.mubr.f32.mxu0 0.0
    %1338 = vmatmul.mubr.f32.gmra.mxu0 %v964
    %v1339 = vpop.f32.mrf.mxu0
    %v1340 = vadd.f32 %v789, %v1339
    %v1341 = vpop.f32.mrf.mxu0
    %1342 = vmatprep.mubr.f32.mxu0 0.0
    %1343 = vmatmul.mubr.f32.gmra.mxu0 %v967
    %v1344 = vpop.f32.mrf.mxu0
    %v1345 = vadd.f32 %v789, %v1344
    %v1346 = vpop.f32.mrf.mxu0
    %1347 = vmatprep.mubr.f32.mxu0 0.0
    %1348 = vmatmul.mubr.f32.gmra.mxu0 %v970
    %v1349 = vpop.f32.mrf.mxu0
    %v1350 = vadd.f32 %v789, %v1349
    %v1351 = vpop.f32.mrf.mxu0
    %1352 = vmatprep.mubr.f32.mxu0 0.0
    %1353 = vmatmul.mubr.f32.gmra.mxu0 %v973
    %v1354 = vpop.f32.mrf.mxu0
    %v1355 = vadd.f32 %v789, %v1354
    %v1356 = vpop.f32.mrf.mxu0
    %1357 = vmatprep.mubr.f32.mxu0 0.0
    %1358 = vmatmul.mubr.f32.gmra.mxu0 %v976
    %v1359 = vpop.f32.mrf.mxu0
    %v1360 = vadd.f32 %v789, %v1359
    %v1361 = vpop.f32.mrf.mxu0
    %1362 = vmatprep.mubr.f32.mxu0 0.0
    %1363 = vmatmul.mubr.f32.gmra.mxu0 %v979
    %v1364 = vpop.f32.mrf.mxu0
    %v1365 = vadd.f32 %v789, %v1364
    %v1366 = vpop.f32.mrf.mxu0
    %1367 = vmatprep.mubr.f32.mxu0 0.0
    %1368 = vmatmul.mubr.f32.gmra.mxu0 %v982
    %v1369 = vpop.f32.mrf.mxu0
    %v1370 = vadd.f32 %v789, %v1369
    %v1371 = vpop.f32.mrf.mxu0
    %1372 = vdwg.mxu0
    %v1373 = vmax.f32 %v1055, 0.0
    %v1374 = vmax.f32 %v1060, 0.0
    %v1375 = vmax.f32 %v1065, 0.0
    %v1376 = vmax.f32 %v1070, 0.0
    %v1377 = vmax.f32 %v1075, 0.0
    %v1378 = vmax.f32 %v1080, 0.0
    %v1379 = vmax.f32 %v1085, 0.0
    %v1380 = vmax.f32 %v1090, 0.0
    %v1381 = vmax.f32 %v1095, 0.0
    %v1382 = vmax.f32 %v1100, 0.0
    %v1383 = vmax.f32 %v1105, 0.0
    %v1384 = vmax.f32 %v1110, 0.0
    %v1385 = vmax.f32 %v1115, 0.0
    %v1386 = vmax.f32 %v1120, 0.0
    %v1387 = vmax.f32 %v1125, 0.0
    %v1388 = vmax.f32 %v1130, 0.0
    %v1389 = vmax.f32 %v1135, 0.0
    %v1390 = vmax.f32 %v1140, 0.0
    %v1391 = vmax.f32 %v1145, 0.0
    %v1392 = vmax.f32 %v1150, 0.0
    %v1393 = vmax.f32 %v1155, 0.0
    %v1394 = vmax.f32 %v1160, 0.0
    %v1395 = vmax.f32 %v1165, 0.0
    %v1396 = vmax.f32 %v1170, 0.0
    %v1397 = vmax.f32 %v1175, 0.0
    %v1398 = vmax.f32 %v1180, 0.0
    %v1399 = vmax.f32 %v1185, 0.0
    %v1400 = vmax.f32 %v1190, 0.0
    %v1401 = vmax.f32 %v1195, 0.0
    %v1402 = vmax.f32 %v1200, 0.0
    %v1403 = vmax.f32 %v1205, 0.0
    %v1404 = vmax.f32 %v1210, 0.0
    %v1405 = vmax.f32 %v1215, 0.0
    %v1406 = vmax.f32 %v1220, 0.0
    %v1407 = vmax.f32 %v1225, 0.0
    %v1408 = vmax.f32 %v1230, 0.0
    %v1409 = vmax.f32 %v1235, 0.0
    %v1410 = vmax.f32 %v1240, 0.0
    %v1411 = vmax.f32 %v1245, 0.0
    %v1412 = vmax.f32 %v1250, 0.0
    %v1413 = vmax.f32 %v1255, 0.0
    %v1414 = vmax.f32 %v1260, 0.0
    %v1415 = vmax.f32 %v1265, 0.0
    %v1416 = vmax.f32 %v1270, 0.0
    %v1417 = vmax.f32 %v1275, 0.0
    %v1418 = vmax.f32 %v1280, 0.0
    %v1419 = vmax.f32 %v1285, 0.0
    %v1420 = vmax.f32 %v1290, 0.0
    %v1421 = vmax.f32 %v1295, 0.0
    %v1422 = vmax.f32 %v1300, 0.0
    %v1423 = vmax.f32 %v1305, 0.0
    %v1424 = vmax.f32 %v1310, 0.0
    %v1425 = vmax.f32 %v1315, 0.0
    %v1426 = vmax.f32 %v1320, 0.0
    %v1427 = vmax.f32 %v1325, 0.0
    %v1428 = vmax.f32 %v1330, 0.0
    %v1429 = vmax.f32 %v1335, 0.0
    %v1430 = vmax.f32 %v1340, 0.0
    %v1431 = vmax.f32 %v1345, 0.0
    %v1432 = vmax.f32 %v1350, 0.0
    %v1433 = vmax.f32 %v1355, 0.0
    %v1434 = vmax.f32 %v1360, 0.0
    %v1435 = vmax.f32 %v1365, 0.0
    %v1436 = vmax.f32 %v1370, 0.0
    %v1437 = vld [vmem:[%s5] sm:$0xff]
    %v1438 = vld [vmem:[%s5 + $0x8] sm:$0xf]
    %v1439 = vld [vmem:[%s6] sm:$0x1]
    %v1441 = vlaneseq
    %v1442 = vshrl.u32 %v1441, 7
    %v1443 = vsub.s32 0, %v1442
    %v1444 = vrot.slane %v1439, %v1443
    %vm1446 = vcmask 97280
    %v1448 = vsel %vm1446, %v1373, 0
    %v1451 = vsel %vm1446, %v1374, 0
    %v1454 = vsel %vm1446, %v1375, 0
    %v1457 = vsel %vm1446, %v1376, 0
    %v1460 = vsel %vm1446, %v1377, 0
    %v1463 = vsel %vm1446, %v1378, 0
    %v1466 = vsel %vm1446, %v1379, 0
    %v1469 = vsel %vm1446, %v1380, 0
    %v1472 = vsel %vm1446, %v1381, 0
    %v1475 = vsel %vm1446, %v1382, 0
    %v1478 = vsel %vm1446, %v1383, 0
    %v1481 = vsel %vm1446, %v1384, 0
    %v1484 = vsel %vm1446, %v1385, 0
    %v1487 = vsel %vm1446, %v1386, 0
    %v1490 = vsel %vm1446, %v1387, 0
    %v1493 = vsel %vm1446, %v1388, 0
    %v1496 = vsel %vm1446, %v1389, 0
    %v1499 = vsel %vm1446, %v1390, 0
    %v1502 = vsel %vm1446, %v1391, 0
    %v1505 = vsel %vm1446, %v1392, 0
    %v1508 = vsel %vm1446, %v1393, 0
    %v1511 = vsel %vm1446, %v1394, 0
    %v1514 = vsel %vm1446, %v1395, 0
    %v1517 = vsel %vm1446, %v1396, 0
    %v1520 = vsel %vm1446, %v1397, 0
    %v1523 = vsel %vm1446, %v1398, 0
    %v1526 = vsel %vm1446, %v1399, 0
    %v1529 = vsel %vm1446, %v1400, 0
    %v1532 = vsel %vm1446, %v1401, 0
    %v1535 = vsel %vm1446, %v1402, 0
    %v1538 = vsel %vm1446, %v1403, 0
    %v1541 = vsel %vm1446, %v1404, 0
    %v1544 = vsel %vm1446, %v1405, 0
    %v1547 = vsel %vm1446, %v1406, 0
    %v1550 = vsel %vm1446, %v1407, 0
    %v1553 = vsel %vm1446, %v1408, 0
    %v1556 = vsel %vm1446, %v1409, 0
    %v1559 = vsel %vm1446, %v1410, 0
    %v1562 = vsel %vm1446, %v1411, 0
    %v1565 = vsel %vm1446, %v1412, 0
    %v1568 = vsel %vm1446, %v1413, 0
    %v1571 = vsel %vm1446, %v1414, 0
    %v1574 = vsel %vm1446, %v1415, 0
    %v1577 = vsel %vm1446, %v1416, 0
    %v1580 = vsel %vm1446, %v1417, 0
    %v1583 = vsel %vm1446, %v1418, 0
    %v1586 = vsel %vm1446, %v1419, 0
    %v1589 = vsel %vm1446, %v1420, 0
    %v1592 = vsel %vm1446, %v1421, 0
    %v1595 = vsel %vm1446, %v1422, 0
    %v1598 = vsel %vm1446, %v1423, 0
    %v1601 = vsel %vm1446, %v1424, 0
    %v1604 = vsel %vm1446, %v1425, 0
    %v1607 = vsel %vm1446, %v1426, 0
    %v1610 = vsel %vm1446, %v1427, 0
    %v1613 = vsel %vm1446, %v1428, 0
    %v1616 = vsel %vm1446, %v1429, 0
    %v1619 = vsel %vm1446, %v1430, 0
    %v1622 = vsel %vm1446, %v1431, 0
    %v1625 = vsel %vm1446, %v1432, 0
    %v1628 = vsel %vm1446, %v1433, 0
    %v1631 = vsel %vm1446, %v1434, 0
    %v1634 = vsel %vm1446, %v1435, 0
    %v1637 = vsel %vm1446, %v1436, 0
    %vm1639 = vcmask 1043456
    %v1641 = vsel %vm1639, %v1438, 0
    %1643 = vmatprep.subr.mxu0 0.0
    %1644 = vmatpush1.msra.mxu0 0.0
    %1645 = vmatprep.subr.mxu0 0.0
    %1646 = vmatpush1.msra.mxu0 0.0
    %1647 = vmatprep.subr.mxu0 0.0
    %1648 = vmatpush1.msra.mxu0 0.0
    %1649 = vmatprep.subr.mxu0 0.0
    %1650 = vmatpush1.msra.mxu0 0.0
    %1651 = vmatprep.subr.mxu0 0.0
    %1652 = vmatpush1.msra.mxu0 0.0
    %1653 = vmatprep.subr.mxu0 0.0
    %1654 = vmatpush1.msra.mxu0 0.0
    %1655 = vmatprep.subr.mxu0 0.0
    %1656 = vmatpush1.msra.mxu0 0.0
    %1657 = vmatprep.subr.mxu0 0.0
    %1658 = vmatpush1.msra.mxu0 0.0
    %1659 = vmatprep.subr.mxu0 0.0
    %1660 = vmatpush1.msra.mxu0 0.0
    %1661 = vmatprep.subr.mxu0 0.0
    %1662 = vmatpush1.msra.mxu0 0.0
    %1663 = vmatprep.subr.mxu0 0.0
    %1664 = vmatpush1.msra.mxu0 0.0
    %1665 = vmatprep.subr.mxu0 0.0
    %1666 = vmatpush1.msra.mxu0 0.0
    %1667 = vmatprep.subr.mxu0 0.0
    %1668 = vmatpush1.msra.mxu0 0.0
    %1669 = vmatprep.subr.mxu0 0.0
    %1670 = vmatpush1.msra.mxu0 0.0
    %1671 = vmatprep.subr.mxu0 0.0
    %1672 = vmatpush1.msra.mxu0 %v1641
    %1673 = vmatprep.subr.mxu0 0.0
    %1674 = vmatpush1.msra.mxu0 %v1437
    %1675 = vmatprep.subr.mxu0 0.0
    %1676 = vmatpush2.msra.mxu0 0.0
    %1677 = vmatprep.subr.mxu0 0.0
    %1678 = vmatpush2.msra.mxu0 0.0
    %1679 = vmatprep.subr.mxu0 0.0
    %1680 = vmatpush2.msra.mxu0 0.0
    %1681 = vmatprep.subr.mxu0 0.0
    %1682 = vmatpush2.msra.mxu0 0.0
    %1683 = vmatprep.subr.mxu0 0.0
    %1684 = vmatpush2.msra.mxu0 0.0
    %1685 = vmatprep.subr.mxu0 0.0
    %1686 = vmatpush2.msra.mxu0 0.0
    %1687 = vmatprep.subr.mxu0 0.0
    %1688 = vmatpush2.msra.mxu0 0.0
    %1689 = vmatprep.subr.mxu0 0.0
    %1690 = vmatpush2.msra.mxu0 0.0
    %1691 = vmatprep.subr.mxu0 0.0
    %1692 = vmatpush2.msra.mxu0 0.0
    %1693 = vmatprep.subr.mxu0 0.0
    %1694 = vmatpush2.msra.mxu0 0.0
    %1695 = vmatprep.subr.mxu0 0.0
    %1696 = vmatpush2.msra.mxu0 0.0
    %1697 = vmatprep.subr.mxu0 0.0
    %1698 = vmatpush2.msra.mxu0 0.0
    %1699 = vmatprep.subr.mxu0 0.0
    %1700 = vmatpush2.msra.mxu0 0.0
    %1701 = vmatprep.subr.mxu0 0.0
    %1702 = vmatpush2.msra.mxu0 0.0
    %1703 = vmatprep.subr.mxu0 0.0
    %1704 = vmatpush2.msra.mxu0 0.0
    %1705 = vmatprep.subr.mxu0 0.0
    %1706 = vmatpush2.msra.mxu0 0.0
    %1707 = vmatprep.mubr.f32.mxu0 0.0
    %1708 = vmatmul.mubr.f32.gmra.mxu0 %v1448
    %v1709 = vpop.f32.mrf.mxu0
    %v1710 = vadd.f32 %v1444, %v1709
    %v1711 = vpop.f32.mrf.mxu0
    %1712 = vmatprep.mubr.f32.mxu0 0.0
    %1713 = vmatmul.mubr.f32.gmra.mxu0 %v1451
    %v1714 = vpop.f32.mrf.mxu0
    %v1715 = vadd.f32 %v1444, %v1714
    %v1716 = vpop.f32.mrf.mxu0
    %1717 = vmatprep.mubr.f32.mxu0 0.0
    %1718 = vmatmul.mubr.f32.gmra.mxu0 %v1454
    %v1719 = vpop.f32.mrf.mxu0
    %v1720 = vadd.f32 %v1444, %v1719
    %v1721 = vpop.f32.mrf.mxu0
    %1722 = vmatprep.mubr.f32.mxu0 0.0
    %1723 = vmatmul.mubr.f32.gmra.mxu0 %v1457
    %v1724 = vpop.f32.mrf.mxu0
    %v1725 = vadd.f32 %v1444, %v1724
    %v1726 = vpop.f32.mrf.mxu0
    %1727 = vmatprep.mubr.f32.mxu0 0.0
    %1728 = vmatmul.mubr.f32.gmra.mxu0 %v1460
    %v1729 = vpop.f32.mrf.mxu0
    %v1730 = vadd.f32 %v1444, %v1729
    %v1731 = vpop.f32.mrf.mxu0
    %1732 = vmatprep.mubr.f32.mxu0 0.0
    %1733 = vmatmul.mubr.f32.gmra.mxu0 %v1463
    %v1734 = vpop.f32.mrf.mxu0
    %v1735 = vadd.f32 %v1444, %v1734
    %v1736 = vpop.f32.mrf.mxu0
    %1737 = vmatprep.mubr.f32.mxu0 0.0
    %1738 = vmatmul.mubr.f32.gmra.mxu0 %v1466
    %v1739 = vpop.f32.mrf.mxu0
    %v1740 = vadd.f32 %v1444, %v1739
    %v1741 = vpop.f32.mrf.mxu0
    %1742 = vmatprep.mubr.f32.mxu0 0.0
    %1743 = vmatmul.mubr.f32.gmra.mxu0 %v1469
    %v1744 = vpop.f32.mrf.mxu0
    %v1745 = vadd.f32 %v1444, %v1744
    %v1746 = vpop.f32.mrf.mxu0
    %1747 = vmatprep.mubr.f32.mxu0 0.0
    %1748 = vmatmul.mubr.f32.gmra.mxu0 %v1472
    %v1749 = vpop.f32.mrf.mxu0
    %v1750 = vadd.f32 %v1444, %v1749
    %v1751 = vpop.f32.mrf.mxu0
    %1752 = vmatprep.mubr.f32.mxu0 0.0
    %1753 = vmatmul.mubr.f32.gmra.mxu0 %v1475
    %v1754 = vpop.f32.mrf.mxu0
    %v1755 = vadd.f32 %v1444, %v1754
    %v1756 = vpop.f32.mrf.mxu0
    %1757 = vmatprep.mubr.f32.mxu0 0.0
    %1758 = vmatmul.mubr.f32.gmra.mxu0 %v1478
    %v1759 = vpop.f32.mrf.mxu0
    %v1760 = vadd.f32 %v1444, %v1759
    %v1761 = vpop.f32.mrf.mxu0
    %1762 = vmatprep.mubr.f32.mxu0 0.0
    %1763 = vmatmul.mubr.f32.gmra.mxu0 %v1481
    %v1764 = vpop.f32.mrf.mxu0
    %v1765 = vadd.f32 %v1444, %v1764
    %v1766 = vpop.f32.mrf.mxu0
    %1767 = vmatprep.mubr.f32.mxu0 0.0
    %1768 = vmatmul.mubr.f32.gmra.mxu0 %v1484
    %v1769 = vpop.f32.mrf.mxu0
    %v1770 = vadd.f32 %v1444, %v1769
    %v1771 = vpop.f32.mrf.mxu0
    %1772 = vmatprep.mubr.f32.mxu0 0.0
    %1773 = vmatmul.mubr.f32.gmra.mxu0 %v1487
    %v1774 = vpop.f32.mrf.mxu0
    %v1775 = vadd.f32 %v1444, %v1774
    %v1776 = vpop.f32.mrf.mxu0
    %1777 = vmatprep.mubr.f32.mxu0 0.0
    %1778 = vmatmul.mubr.f32.gmra.mxu0 %v1490
    %v1779 = vpop.f32.mrf.mxu0
    %v1780 = vadd.f32 %v1444, %v1779
    %v1781 = vpop.f32.mrf.mxu0
    %1782 = vmatprep.mubr.f32.mxu0 0.0
    %1783 = vmatmul.mubr.f32.gmra.mxu0 %v1493
    %v1784 = vpop.f32.mrf.mxu0
    %v1785 = vadd.f32 %v1444, %v1784
    %v1786 = vpop.f32.mrf.mxu0
    %1787 = vmatprep.mubr.f32.mxu0 0.0
    %1788 = vmatmul.mubr.f32.gmra.mxu0 %v1496
    %v1789 = vpop.f32.mrf.mxu0
    %v1790 = vadd.f32 %v1444, %v1789
    %v1791 = vpop.f32.mrf.mxu0
    %1792 = vmatprep.mubr.f32.mxu0 0.0
    %1793 = vmatmul.mubr.f32.gmra.mxu0 %v1499
    %v1794 = vpop.f32.mrf.mxu0
    %v1795 = vadd.f32 %v1444, %v1794
    %v1796 = vpop.f32.mrf.mxu0
    %1797 = vmatprep.mubr.f32.mxu0 0.0
    %1798 = vmatmul.mubr.f32.gmra.mxu0 %v1502
    %v1799 = vpop.f32.mrf.mxu0
    %v1800 = vadd.f32 %v1444, %v1799
    %v1801 = vpop.f32.mrf.mxu0
    %1802 = vmatprep.mubr.f32.mxu0 0.0
    %1803 = vmatmul.mubr.f32.gmra.mxu0 %v1505
    %v1804 = vpop.f32.mrf.mxu0
    %v1805 = vadd.f32 %v1444, %v1804
    %v1806 = vpop.f32.mrf.mxu0
    %1807 = vmatprep.mubr.f32.mxu0 0.0
    %1808 = vmatmul.mubr.f32.gmra.mxu0 %v1508
    %v1809 = vpop.f32.mrf.mxu0
    %v1810 = vadd.f32 %v1444, %v1809
    %v1811 = vpop.f32.mrf.mxu0
    %1812 = vmatprep.mubr.f32.mxu0 0.0
    %1813 = vmatmul.mubr.f32.gmra.mxu0 %v1511
    %v1814 = vpop.f32.mrf.mxu0
    %v1815 = vadd.f32 %v1444, %v1814
    %v1816 = vpop.f32.mrf.mxu0
    %1817 = vmatprep.mubr.f32.mxu0 0.0
    %1818 = vmatmul.mubr.f32.gmra.mxu0 %v1514
    %v1819 = vpop.f32.mrf.mxu0
    %v1820 = vadd.f32 %v1444, %v1819
    %v1821 = vpop.f32.mrf.mxu0
    %1822 = vmatprep.mubr.f32.mxu0 0.0
    %1823 = vmatmul.mubr.f32.gmra.mxu0 %v1517
    %v1824 = vpop.f32.mrf.mxu0
    %v1825 = vadd.f32 %v1444, %v1824
    %v1826 = vpop.f32.mrf.mxu0
    %1827 = vmatprep.mubr.f32.mxu0 0.0
    %1828 = vmatmul.mubr.f32.gmra.mxu0 %v1520
    %v1829 = vpop.f32.mrf.mxu0
    %v1830 = vadd.f32 %v1444, %v1829
    %v1831 = vpop.f32.mrf.mxu0
    %1832 = vmatprep.mubr.f32.mxu0 0.0
    %1833 = vmatmul.mubr.f32.gmra.mxu0 %v1523
    %v1834 = vpop.f32.mrf.mxu0
    %v1835 = vadd.f32 %v1444, %v1834
    %v1836 = vpop.f32.mrf.mxu0
    %1837 = vmatprep.mubr.f32.mxu0 0.0
    %1838 = vmatmul.mubr.f32.gmra.mxu0 %v1526
    %v1839 = vpop.f32.mrf.mxu0
    %v1840 = vadd.f32 %v1444, %v1839
    %v1841 = vpop.f32.mrf.mxu0
    %1842 = vmatprep.mubr.f32.mxu0 0.0
    %1843 = vmatmul.mubr.f32.gmra.mxu0 %v1529
    %v1844 = vpop.f32.mrf.mxu0
    %v1845 = vadd.f32 %v1444, %v1844
    %v1846 = vpop.f32.mrf.mxu0
    %1847 = vmatprep.mubr.f32.mxu0 0.0
    %1848 = vmatmul.mubr.f32.gmra.mxu0 %v1532
    %v1849 = vpop.f32.mrf.mxu0
    %v1850 = vadd.f32 %v1444, %v1849
    %v1851 = vpop.f32.mrf.mxu0
    %1852 = vmatprep.mubr.f32.mxu0 0.0
    %1853 = vmatmul.mubr.f32.gmra.mxu0 %v1535
    %v1854 = vpop.f32.mrf.mxu0
    %v1855 = vadd.f32 %v1444, %v1854
    %v1856 = vpop.f32.mrf.mxu0
    %1857 = vmatprep.mubr.f32.mxu0 0.0
    %1858 = vmatmul.mubr.f32.gmra.mxu0 %v1538
    %v1859 = vpop.f32.mrf.mxu0
    %v1860 = vadd.f32 %v1444, %v1859
    %v1861 = vpop.f32.mrf.mxu0
    %1862 = vmatprep.mubr.f32.mxu0 0.0
    %1863 = vmatmul.mubr.f32.gmra.mxu0 %v1541
    %v1864 = vpop.f32.mrf.mxu0
    %v1865 = vadd.f32 %v1444, %v1864
    %v1866 = vpop.f32.mrf.mxu0
    %1867 = vmatprep.mubr.f32.mxu0 0.0
    %1868 = vmatmul.mubr.f32.gmra.mxu0 %v1544
    %v1869 = vpop.f32.mrf.mxu0
    %v1870 = vadd.f32 %v1444, %v1869
    %v1871 = vpop.f32.mrf.mxu0
    %1872 = vmatprep.mubr.f32.mxu0 0.0
    %1873 = vmatmul.mubr.f32.gmra.mxu0 %v1547
    %v1874 = vpop.f32.mrf.mxu0
    %v1875 = vadd.f32 %v1444, %v1874
    %v1876 = vpop.f32.mrf.mxu0
    %1877 = vmatprep.mubr.f32.mxu0 0.0
    %1878 = vmatmul.mubr.f32.gmra.mxu0 %v1550
    %v1879 = vpop.f32.mrf.mxu0
    %v1880 = vadd.f32 %v1444, %v1879
    %v1881 = vpop.f32.mrf.mxu0
    %1882 = vmatprep.mubr.f32.mxu0 0.0
    %1883 = vmatmul.mubr.f32.gmra.mxu0 %v1553
    %v1884 = vpop.f32.mrf.mxu0
    %v1885 = vadd.f32 %v1444, %v1884
    %v1886 = vpop.f32.mrf.mxu0
    %1887 = vmatprep.mubr.f32.mxu0 0.0
    %1888 = vmatmul.mubr.f32.gmra.mxu0 %v1556
    %v1889 = vpop.f32.mrf.mxu0
    %v1890 = vadd.f32 %v1444, %v1889
    %v1891 = vpop.f32.mrf.mxu0
    %1892 = vmatprep.mubr.f32.mxu0 0.0
    %1893 = vmatmul.mubr.f32.gmra.mxu0 %v1559
    %v1894 = vpop.f32.mrf.mxu0
    %v1895 = vadd.f32 %v1444, %v1894
    %v1896 = vpop.f32.mrf.mxu0
    %1897 = vmatprep.mubr.f32.mxu0 0.0
    %1898 = vmatmul.mubr.f32.gmra.mxu0 %v1562
    %v1899 = vpop.f32.mrf.mxu0
    %v1900 = vadd.f32 %v1444, %v1899
    %v1901 = vpop.f32.mrf.mxu0
    %1902 = vmatprep.mubr.f32.mxu0 0.0
    %1903 = vmatmul.mubr.f32.gmra.mxu0 %v1565
    %v1904 = vpop.f32.mrf.mxu0
    %v1905 = vadd.f32 %v1444, %v1904
    %v1906 = vpop.f32.mrf.mxu0
    %1907 = vmatprep.mubr.f32.mxu0 0.0
    %1908 = vmatmul.mubr.f32.gmra.mxu0 %v1568
    %v1909 = vpop.f32.mrf.mxu0
    %v1910 = vadd.f32 %v1444, %v1909
    %v1911 = vpop.f32.mrf.mxu0
    %1912 = vmatprep.mubr.f32.mxu0 0.0
    %1913 = vmatmul.mubr.f32.gmra.mxu0 %v1571
    %v1914 = vpop.f32.mrf.mxu0
    %v1915 = vadd.f32 %v1444, %v1914
    %v1916 = vpop.f32.mrf.mxu0
    %1917 = vmatprep.mubr.f32.mxu0 0.0
    %1918 = vmatmul.mubr.f32.gmra.mxu0 %v1574
    %v1919 = vpop.f32.mrf.mxu0
    %v1920 = vadd.f32 %v1444, %v1919
    %v1921 = vpop.f32.mrf.mxu0
    %1922 = vmatprep.mubr.f32.mxu0 0.0
    %1923 = vmatmul.mubr.f32.gmra.mxu0 %v1577
    %v1924 = vpop.f32.mrf.mxu0
    %v1925 = vadd.f32 %v1444, %v1924
    %v1926 = vpop.f32.mrf.mxu0
    %1927 = vmatprep.mubr.f32.mxu0 0.0
    %1928 = vmatmul.mubr.f32.gmra.mxu0 %v1580
    %v1929 = vpop.f32.mrf.mxu0
    %v1930 = vadd.f32 %v1444, %v1929
    %v1931 = vpop.f32.mrf.mxu0
    %1932 = vmatprep.mubr.f32.mxu0 0.0
    %1933 = vmatmul.mubr.f32.gmra.mxu0 %v1583
    %v1934 = vpop.f32.mrf.mxu0
    %v1935 = vadd.f32 %v1444, %v1934
    %v1936 = vpop.f32.mrf.mxu0
    %1937 = vmatprep.mubr.f32.mxu0 0.0
    %1938 = vmatmul.mubr.f32.gmra.mxu0 %v1586
    %v1939 = vpop.f32.mrf.mxu0
    %v1940 = vadd.f32 %v1444, %v1939
    %v1941 = vpop.f32.mrf.mxu0
    %1942 = vmatprep.mubr.f32.mxu0 0.0
    %1943 = vmatmul.mubr.f32.gmra.mxu0 %v1589
    %v1944 = vpop.f32.mrf.mxu0
    %v1945 = vadd.f32 %v1444, %v1944
    %v1946 = vpop.f32.mrf.mxu0
    %1947 = vmatprep.mubr.f32.mxu0 0.0
    %1948 = vmatmul.mubr.f32.gmra.mxu0 %v1592
    %v1949 = vpop.f32.mrf.mxu0
    %v1950 = vadd.f32 %v1444, %v1949
    %v1951 = vpop.f32.mrf.mxu0
    %1952 = vmatprep.mubr.f32.mxu0 0.0
    %1953 = vmatmul.mubr.f32.gmra.mxu0 %v1595
    %v1954 = vpop.f32.mrf.mxu0
    %v1955 = vadd.f32 %v1444, %v1954
    %v1956 = vpop.f32.mrf.mxu0
    %1957 = vmatprep.mubr.f32.mxu0 0.0
    %1958 = vmatmul.mubr.f32.gmra.mxu0 %v1598
    %v1959 = vpop.f32.mrf.mxu0
    %v1960 = vadd.f32 %v1444, %v1959
    %v1961 = vpop.f32.mrf.mxu0
    %1962 = vmatprep.mubr.f32.mxu0 0.0
    %1963 = vmatmul.mubr.f32.gmra.mxu0 %v1601
    %v1964 = vpop.f32.mrf.mxu0
    %v1965 = vadd.f32 %v1444, %v1964
    %v1966 = vpop.f32.mrf.mxu0
    %1967 = vmatprep.mubr.f32.mxu0 0.0
    %1968 = vmatmul.mubr.f32.gmra.mxu0 %v1604
    %v1969 = vpop.f32.mrf.mxu0
    %v1970 = vadd.f32 %v1444, %v1969
    %v1971 = vpop.f32.mrf.mxu0
    %1972 = vmatprep.mubr.f32.mxu0 0.0
    %1973 = vmatmul.mubr.f32.gmra.mxu0 %v1607
    %v1974 = vpop.f32.mrf.mxu0
    %v1975 = vadd.f32 %v1444, %v1974
    %v1976 = vpop.f32.mrf.mxu0
    %1977 = vmatprep.mubr.f32.mxu0 0.0
    %1978 = vmatmul.mubr.f32.gmra.mxu0 %v1610
    %v1979 = vpop.f32.mrf.mxu0
    %v1980 = vadd.f32 %v1444, %v1979
    %v1981 = vpop.f32.mrf.mxu0
    %1982 = vmatprep.mubr.f32.mxu0 0.0
    %1983 = vmatmul.mubr.f32.gmra.mxu0 %v1613
    %v1984 = vpop.f32.mrf.mxu0
    %v1985 = vadd.f32 %v1444, %v1984
    %v1986 = vpop.f32.mrf.mxu0
    %1987 = vmatprep.mubr.f32.mxu0 0.0
    %1988 = vmatmul.mubr.f32.gmra.mxu0 %v1616
    %v1989 = vpop.f32.mrf.mxu0
    %v1990 = vadd.f32 %v1444, %v1989
    %v1991 = vpop.f32.mrf.mxu0
    %1992 = vmatprep.mubr.f32.mxu0 0.0
    %1993 = vmatmul.mubr.f32.gmra.mxu0 %v1619
    %v1994 = vpop.f32.mrf.mxu0
    %v1995 = vadd.f32 %v1444, %v1994
    %v1996 = vpop.f32.mrf.mxu0
    %1997 = vmatprep.mubr.f32.mxu0 0.0
    %1998 = vmatmul.mubr.f32.gmra.mxu0 %v1622
    %v1999 = vpop.f32.mrf.mxu0
    %v2000 = vadd.f32 %v1444, %v1999
    %v2001 = vpop.f32.mrf.mxu0
    %2002 = vmatprep.mubr.f32.mxu0 0.0
    %2003 = vmatmul.mubr.f32.gmra.mxu0 %v1625
    %v2004 = vpop.f32.mrf.mxu0
    %v2005 = vadd.f32 %v1444, %v2004
    %v2006 = vpop.f32.mrf.mxu0
    %2007 = vmatprep.mubr.f32.mxu0 0.0
    %2008 = vmatmul.mubr.f32.gmra.mxu0 %v1628
    %v2009 = vpop.f32.mrf.mxu0
    %v2010 = vadd.f32 %v1444, %v2009
    %v2011 = vpop.f32.mrf.mxu0
    %2012 = vmatprep.mubr.f32.mxu0 0.0
    %2013 = vmatmul.mubr.f32.gmra.mxu0 %v1631
    %v2014 = vpop.f32.mrf.mxu0
    %v2015 = vadd.f32 %v1444, %v2014
    %v2016 = vpop.f32.mrf.mxu0
    %2017 = vmatprep.mubr.f32.mxu0 0.0
    %2018 = vmatmul.mubr.f32.gmra.mxu0 %v1634
    %v2019 = vpop.f32.mrf.mxu0
    %v2020 = vadd.f32 %v1444, %v2019
    %v2021 = vpop.f32.mrf.mxu0
    %2022 = vmatprep.mubr.f32.mxu0 0.0
    %2023 = vmatmul.mubr.f32.gmra.mxu0 %v1637
    %v2024 = vpop.f32.mrf.mxu0
    %v2025 = vadd.f32 %v1444, %v2024
    %v2026 = vpop.f32.mrf.mxu0
    %2027 = vdwg.mxu0
    %v2028 = vmax.f32 %v1710, 0.0
    %v2029 = vmax.f32 %v1715, 0.0
    %v2030 = vmax.f32 %v1720, 0.0
    %v2031 = vmax.f32 %v1725, 0.0
    %v2032 = vmax.f32 %v1730, 0.0
    %v2033 = vmax.f32 %v1735, 0.0
    %v2034 = vmax.f32 %v1740, 0.0
    %v2035 = vmax.f32 %v1745, 0.0
    %v2036 = vmax.f32 %v1750, 0.0
    %v2037 = vmax.f32 %v1755, 0.0
    %v2038 = vmax.f32 %v1760, 0.0
    %v2039 = vmax.f32 %v1765, 0.0
    %v2040 = vmax.f32 %v1770, 0.0
    %v2041 = vmax.f32 %v1775, 0.0
    %v2042 = vmax.f32 %v1780, 0.0
    %v2043 = vmax.f32 %v1785, 0.0
    %v2044 = vmax.f32 %v1790, 0.0
    %v2045 = vmax.f32 %v1795, 0.0
    %v2046 = vmax.f32 %v1800, 0.0
    %v2047 = vmax.f32 %v1805, 0.0
    %v2048 = vmax.f32 %v1810, 0.0
    %v2049 = vmax.f32 %v1815, 0.0
    %v2050 = vmax.f32 %v1820, 0.0
    %v2051 = vmax.f32 %v1825, 0.0
    %v2052 = vmax.f32 %v1830, 0.0
    %v2053 = vmax.f32 %v1835, 0.0
    %v2054 = vmax.f32 %v1840, 0.0
    %v2055 = vmax.f32 %v1845, 0.0
    %v2056 = vmax.f32 %v1850, 0.0
    %v2057 = vmax.f32 %v1855, 0.0
    %v2058 = vmax.f32 %v1860, 0.0
    %v2059 = vmax.f32 %v1865, 0.0
    %v2060 = vmax.f32 %v1870, 0.0
    %v2061 = vmax.f32 %v1875, 0.0
    %v2062 = vmax.f32 %v1880, 0.0
    %v2063 = vmax.f32 %v1885, 0.0
    %v2064 = vmax.f32 %v1890, 0.0
    %v2065 = vmax.f32 %v1895, 0.0
    %v2066 = vmax.f32 %v1900, 0.0
    %v2067 = vmax.f32 %v1905, 0.0
    %v2068 = vmax.f32 %v1910, 0.0
    %v2069 = vmax.f32 %v1915, 0.0
    %v2070 = vmax.f32 %v1920, 0.0
    %v2071 = vmax.f32 %v1925, 0.0
    %v2072 = vmax.f32 %v1930, 0.0
    %v2073 = vmax.f32 %v1935, 0.0
    %v2074 = vmax.f32 %v1940, 0.0
    %v2075 = vmax.f32 %v1945, 0.0
    %v2076 = vmax.f32 %v1950, 0.0
    %v2077 = vmax.f32 %v1955, 0.0
    %v2078 = vmax.f32 %v1960, 0.0
    %v2079 = vmax.f32 %v1965, 0.0
    %v2080 = vmax.f32 %v1970, 0.0
    %v2081 = vmax.f32 %v1975, 0.0
    %v2082 = vmax.f32 %v1980, 0.0
    %v2083 = vmax.f32 %v1985, 0.0
    %v2084 = vmax.f32 %v1990, 0.0
    %v2085 = vmax.f32 %v1995, 0.0
    %v2086 = vmax.f32 %v2000, 0.0
    %v2087 = vmax.f32 %v2005, 0.0
    %v2088 = vmax.f32 %v2010, 0.0
    %v2089 = vmax.f32 %v2015, 0.0
    %v2090 = vmax.f32 %v2020, 0.0
    %v2091 = vmax.f32 %v2025, 0.0
    %v2092 = vld [vmem:[%s7] sm:$0x7]
    %v2093 = vld [vmem:[%s8] sm:$0xff]
    %v2094 = vld [vmem:[%s8 + $0x8] sm:$0xff]
    %v2095 = vld [vmem:[%s8 + $0x10] sm:$0xff]
    %vm2096 = vcmask 195584
    %v2098 = vsel %vm2096, %v2028, 0
    %v2101 = vsel %vm2096, %v2029, 0
    %v2104 = vsel %vm2096, %v2030, 0
    %v2107 = vsel %vm2096, %v2031, 0
    %v2110 = vsel %vm2096, %v2032, 0
    %v2113 = vsel %vm2096, %v2033, 0
    %v2116 = vsel %vm2096, %v2034, 0
    %v2119 = vsel %vm2096, %v2035, 0
    %v2122 = vsel %vm2096, %v2036, 0
    %v2125 = vsel %vm2096, %v2037, 0
    %v2128 = vsel %vm2096, %v2038, 0
    %v2131 = vsel %vm2096, %v2039, 0
    %v2134 = vsel %vm2096, %v2040, 0
    %v2137 = vsel %vm2096, %v2041, 0
    %v2140 = vsel %vm2096, %v2042, 0
    %v2143 = vsel %vm2096, %v2043, 0
    %v2146 = vsel %vm2096, %v2044, 0
    %v2149 = vsel %vm2096, %v2045, 0
    %v2152 = vsel %vm2096, %v2046, 0
    %v2155 = vsel %vm2096, %v2047, 0
    %v2158 = vsel %vm2096, %v2048, 0
    %v2161 = vsel %vm2096, %v2049, 0
    %v2164 = vsel %vm2096, %v2050, 0
    %v2167 = vsel %vm2096, %v2051, 0
    %v2170 = vsel %vm2096, %v2052, 0
    %v2173 = vsel %vm2096, %v2053, 0
    %v2176 = vsel %vm2096, %v2054, 0
    %v2179 = vsel %vm2096, %v2055, 0
    %v2182 = vsel %vm2096, %v2056, 0
    %v2185 = vsel %vm2096, %v2057, 0
    %v2188 = vsel %vm2096, %v2058, 0
    %v2191 = vsel %vm2096, %v2059, 0
    %v2194 = vsel %vm2096, %v2060, 0
    %v2197 = vsel %vm2096, %v2061, 0
    %v2200 = vsel %vm2096, %v2062, 0
    %v2203 = vsel %vm2096, %v2063, 0
    %v2206 = vsel %vm2096, %v2064, 0
    %v2209 = vsel %vm2096, %v2065, 0
    %v2212 = vsel %vm2096, %v2066, 0
    %v2215 = vsel %vm2096, %v2067, 0
    %v2218 = vsel %vm2096, %v2068, 0
    %v2221 = vsel %vm2096, %v2069, 0
    %v2224 = vsel %vm2096, %v2070, 0
    %v2227 = vsel %vm2096, %v2071, 0
    %v2230 = vsel %vm2096, %v2072, 0
    %v2233 = vsel %vm2096, %v2073, 0
    %v2236 = vsel %vm2096, %v2074, 0
    %v2239 = vsel %vm2096, %v2075, 0
    %v2242 = vsel %vm2096, %v2076, 0
    %v2245 = vsel %vm2096, %v2077, 0
    %v2248 = vsel %vm2096, %v2078, 0
    %v2251 = vsel %vm2096, %v2079, 0
    %v2254 = vsel %vm2096, %v2080, 0
    %v2257 = vsel %vm2096, %v2081, 0
    %v2260 = vsel %vm2096, %v2082, 0
    %v2263 = vsel %vm2096, %v2083, 0
    %v2266 = vsel %vm2096, %v2084, 0
    %v2269 = vsel %vm2096, %v2085, 0
    %v2272 = vsel %vm2096, %v2086, 0
    %v2275 = vsel %vm2096, %v2087, 0
    %v2278 = vsel %vm2096, %v2088, 0
    %v2281 = vsel %vm2096, %v2089, 0
    %v2284 = vsel %vm2096, %v2090, 0
    %v2287 = vsel %vm2096, %v2091, 0
    %2289 = vmatprep.subr.mxu0 0.0
    %2290 = vmatpush1.msra.mxu0 0.0
    %2291 = vmatprep.subr.mxu0 0.0
    %2292 = vmatpush1.msra.mxu0 0.0
    %2293 = vmatprep.subr.mxu0 0.0
    %2294 = vmatpush1.msra.mxu0 0.0
    %2295 = vmatprep.subr.mxu0 0.0
    %2296 = vmatpush1.msra.mxu0 0.0
    %2297 = vmatprep.subr.mxu0 0.0
    %2298 = vmatpush1.msra.mxu0 0.0
    %2299 = vmatprep.subr.mxu0 0.0
    %2300 = vmatpush1.msra.mxu0 0.0
    %2301 = vmatprep.subr.mxu0 0.0
    %2302 = vmatpush1.msra.mxu0 0.0
    %2303 = vmatprep.subr.mxu0 0.0
    %2304 = vmatpush1.msra.mxu0 0.0
    %2305 = vmatprep.subr.mxu0 0.0
    %2306 = vmatpush1.msra.mxu0 0.0
    %2307 = vmatprep.subr.mxu0 0.0
    %2308 = vmatpush1.msra.mxu0 0.0
    %2309 = vmatprep.subr.mxu0 0.0
    %2310 = vmatpush1.msra.mxu0 0.0
    %2311 = vmatprep.subr.mxu0 0.0
    %2312 = vmatpush1.msra.mxu0 0.0
    %2313 = vmatprep.subr.mxu0 0.0
    %2314 = vmatpush1.msra.mxu0 0.0
    %2315 = vmatprep.subr.mxu0 0.0
    %2316 = vmatpush1.msra.mxu0 %v2095
    %2317 = vmatprep.subr.mxu0 0.0
    %2318 = vmatpush1.msra.mxu0 %v2094
    %2319 = vmatprep.subr.mxu0 0.0
    %2320 = vmatpush1.msra.mxu0 %v2093
    %2321 = vmatprep.subr.mxu0 0.0
    %2322 = vmatpush2.msra.mxu0 0.0
    %2323 = vmatprep.subr.mxu0 0.0
    %2324 = vmatpush2.msra.mxu0 0.0
    %2325 = vmatprep.subr.mxu0 0.0
    %2326 = vmatpush2.msra.mxu0 0.0
    %2327 = vmatprep.subr.mxu0 0.0
    %2328 = vmatpush2.msra.mxu0 0.0
    %2329 = vmatprep.subr.mxu0 0.0
    %2330 = vmatpush2.msra.mxu0 0.0
    %2331 = vmatprep.subr.mxu0 0.0
    %2332 = vmatpush2.msra.mxu0 0.0
    %2333 = vmatprep.subr.mxu0 0.0
    %2334 = vmatpush2.msra.mxu0 0.0
    %2335 = vmatprep.subr.mxu0 0.0
    %2336 = vmatpush2.msra.mxu0 0.0
    %2337 = vmatprep.subr.mxu0 0.0
    %2338 = vmatpush2.msra.mxu0 0.0
    %2339 = vmatprep.subr.mxu0 0.0
    %2340 = vmatpush2.msra.mxu0 0.0
    %2341 = vmatprep.subr.mxu0 0.0
    %2342 = vmatpush2.msra.mxu0 0.0
    %2343 = vmatprep.subr.mxu0 0.0
    %2344 = vmatpush2.msra.mxu0 0.0
    %2345 = vmatprep.subr.mxu0 0.0
    %2346 = vmatpush2.msra.mxu0 0.0
    %2347 = vmatprep.subr.mxu0 0.0
    %2348 = vmatpush2.msra.mxu0 0.0
    %2349 = vmatprep.subr.mxu0 0.0
    %2350 = vmatpush2.msra.mxu0 0.0
    %2351 = vmatprep.subr.mxu0 0.0
    %2352 = vmatpush2.msra.mxu0 0.0
    %2353 = vmatprep.mubr.f32.mxu0 0.0
    %2354 = vmatmul.mubr.f32.gmra.mxu0 %v2098
    %v2355 = vpop.f32.mrf.mxu0
    %v2356 = vadd.f32 0.0, %v2355
    %v2357 = vpop.f32.mrf.mxu0
    %2358 = vmatprep.mubr.f32.mxu0 0.0
    %2359 = vmatmul.mubr.f32.gmra.mxu0 %v2101
    %v2360 = vpop.f32.mrf.mxu0
    %v2361 = vadd.f32 0.0, %v2360
    %v2362 = vpop.f32.mrf.mxu0
    %2363 = vmatprep.mubr.f32.mxu0 0.0
    %2364 = vmatmul.mubr.f32.gmra.mxu0 %v2104
    %v2365 = vpop.f32.mrf.mxu0
    %v2366 = vadd.f32 0.0, %v2365
    %v2367 = vpop.f32.mrf.mxu0
    %2368 = vmatprep.mubr.f32.mxu0 0.0
    %2369 = vmatmul.mubr.f32.gmra.mxu0 %v2107
    %v2370 = vpop.f32.mrf.mxu0
    %v2371 = vadd.f32 0.0, %v2370
    %v2372 = vpop.f32.mrf.mxu0
    %2373 = vmatprep.mubr.f32.mxu0 0.0
    %2374 = vmatmul.mubr.f32.gmra.mxu0 %v2110
    %v2375 = vpop.f32.mrf.mxu0
    %v2376 = vadd.f32 0.0, %v2375
    %v2377 = vpop.f32.mrf.mxu0
    %2378 = vmatprep.mubr.f32.mxu0 0.0
    %2379 = vmatmul.mubr.f32.gmra.mxu0 %v2113
    %v2380 = vpop.f32.mrf.mxu0
    %v2381 = vadd.f32 0.0, %v2380
    %v2382 = vpop.f32.mrf.mxu0
    %2383 = vmatprep.mubr.f32.mxu0 0.0
    %2384 = vmatmul.mubr.f32.gmra.mxu0 %v2116
    %v2385 = vpop.f32.mrf.mxu0
    %v2386 = vadd.f32 0.0, %v2385
    %v2387 = vpop.f32.mrf.mxu0
    %2388 = vmatprep.mubr.f32.mxu0 0.0
    %2389 = vmatmul.mubr.f32.gmra.mxu0 %v2119
    %v2390 = vpop.f32.mrf.mxu0
    %v2391 = vadd.f32 0.0, %v2390
    %v2392 = vpop.f32.mrf.mxu0
    %2393 = vmatprep.mubr.f32.mxu0 0.0
    %2394 = vmatmul.mubr.f32.gmra.mxu0 %v2122
    %v2395 = vpop.f32.mrf.mxu0
    %v2396 = vadd.f32 0.0, %v2395
    %v2397 = vpop.f32.mrf.mxu0
    %2398 = vmatprep.mubr.f32.mxu0 0.0
    %2399 = vmatmul.mubr.f32.gmra.mxu0 %v2125
    %v2400 = vpop.f32.mrf.mxu0
    %v2401 = vadd.f32 0.0, %v2400
    %v2402 = vpop.f32.mrf.mxu0
    %2403 = vmatprep.mubr.f32.mxu0 0.0
    %2404 = vmatmul.mubr.f32.gmra.mxu0 %v2128
    %v2405 = vpop.f32.mrf.mxu0
    %v2406 = vadd.f32 0.0, %v2405
    %v2407 = vpop.f32.mrf.mxu0
    %2408 = vmatprep.mubr.f32.mxu0 0.0
    %2409 = vmatmul.mubr.f32.gmra.mxu0 %v2131
    %v2410 = vpop.f32.mrf.mxu0
    %v2411 = vadd.f32 0.0, %v2410
    %v2412 = vpop.f32.mrf.mxu0
    %2413 = vmatprep.mubr.f32.mxu0 0.0
    %2414 = vmatmul.mubr.f32.gmra.mxu0 %v2134
    %v2415 = vpop.f32.mrf.mxu0
    %v2416 = vadd.f32 0.0, %v2415
    %v2417 = vpop.f32.mrf.mxu0
    %2418 = vmatprep.mubr.f32.mxu0 0.0
    %2419 = vmatmul.mubr.f32.gmra.mxu0 %v2137
    %v2420 = vpop.f32.mrf.mxu0
    %v2421 = vadd.f32 0.0, %v2420
    %v2422 = vpop.f32.mrf.mxu0
    %2423 = vmatprep.mubr.f32.mxu0 0.0
    %2424 = vmatmul.mubr.f32.gmra.mxu0 %v2140
    %v2425 = vpop.f32.mrf.mxu0
    %v2426 = vadd.f32 0.0, %v2425
    %v2427 = vpop.f32.mrf.mxu0
    %2428 = vmatprep.mubr.f32.mxu0 0.0
    %2429 = vmatmul.mubr.f32.gmra.mxu0 %v2143
    %v2430 = vpop.f32.mrf.mxu0
    %v2431 = vadd.f32 0.0, %v2430
    %v2432 = vpop.f32.mrf.mxu0
    %2433 = vmatprep.mubr.f32.mxu0 0.0
    %2434 = vmatmul.mubr.f32.gmra.mxu0 %v2146
    %v2435 = vpop.f32.mrf.mxu0
    %v2436 = vadd.f32 0.0, %v2435
    %v2437 = vpop.f32.mrf.mxu0
    %2438 = vmatprep.mubr.f32.mxu0 0.0
    %2439 = vmatmul.mubr.f32.gmra.mxu0 %v2149
    %v2440 = vpop.f32.mrf.mxu0
    %v2441 = vadd.f32 0.0, %v2440
    %v2442 = vpop.f32.mrf.mxu0
    %2443 = vmatprep.mubr.f32.mxu0 0.0
    %2444 = vmatmul.mubr.f32.gmra.mxu0 %v2152
    %v2445 = vpop.f32.mrf.mxu0
    %v2446 = vadd.f32 0.0, %v2445
    %v2447 = vpop.f32.mrf.mxu0
    %2448 = vmatprep.mubr.f32.mxu0 0.0
    %2449 = vmatmul.mubr.f32.gmra.mxu0 %v2155
    %v2450 = vpop.f32.mrf.mxu0
    %v2451 = vadd.f32 0.0, %v2450
    %v2452 = vpop.f32.mrf.mxu0
    %2453 = vmatprep.mubr.f32.mxu0 0.0
    %2454 = vmatmul.mubr.f32.gmra.mxu0 %v2158
    %v2455 = vpop.f32.mrf.mxu0
    %v2456 = vadd.f32 0.0, %v2455
    %v2457 = vpop.f32.mrf.mxu0
    %2458 = vmatprep.mubr.f32.mxu0 0.0
    %2459 = vmatmul.mubr.f32.gmra.mxu0 %v2161
    %v2460 = vpop.f32.mrf.mxu0
    %v2461 = vadd.f32 0.0, %v2460
    %v2462 = vpop.f32.mrf.mxu0
    %2463 = vmatprep.mubr.f32.mxu0 0.0
    %2464 = vmatmul.mubr.f32.gmra.mxu0 %v2164
    %v2465 = vpop.f32.mrf.mxu0
    %v2466 = vadd.f32 0.0, %v2465
    %v2467 = vpop.f32.mrf.mxu0
    %2468 = vmatprep.mubr.f32.mxu0 0.0
    %2469 = vmatmul.mubr.f32.gmra.mxu0 %v2167
    %v2470 = vpop.f32.mrf.mxu0
    %v2471 = vadd.f32 0.0, %v2470
    %v2472 = vpop.f32.mrf.mxu0
    %2473 = vmatprep.mubr.f32.mxu0 0.0
    %2474 = vmatmul.mubr.f32.gmra.mxu0 %v2170
    %v2475 = vpop.f32.mrf.mxu0
    %v2476 = vadd.f32 0.0, %v2475
    %v2477 = vpop.f32.mrf.mxu0
    %2478 = vmatprep.mubr.f32.mxu0 0.0
    %2479 = vmatmul.mubr.f32.gmra.mxu0 %v2173
    %v2480 = vpop.f32.mrf.mxu0
    %v2481 = vadd.f32 0.0, %v2480
    %v2482 = vpop.f32.mrf.mxu0
    %2483 = vmatprep.mubr.f32.mxu0 0.0
    %2484 = vmatmul.mubr.f32.gmra.mxu0 %v2176
    %v2485 = vpop.f32.mrf.mxu0
    %v2486 = vadd.f32 0.0, %v2485
    %v2487 = vpop.f32.mrf.mxu0
    %2488 = vmatprep.mubr.f32.mxu0 0.0
    %2489 = vmatmul.mubr.f32.gmra.mxu0 %v2179
    %v2490 = vpop.f32.mrf.mxu0
    %v2491 = vadd.f32 0.0, %v2490
    %v2492 = vpop.f32.mrf.mxu0
    %2493 = vmatprep.mubr.f32.mxu0 0.0
    %2494 = vmatmul.mubr.f32.gmra.mxu0 %v2182
    %v2495 = vpop.f32.mrf.mxu0
    %v2496 = vadd.f32 0.0, %v2495
    %v2497 = vpop.f32.mrf.mxu0
    %2498 = vmatprep.mubr.f32.mxu0 0.0
    %2499 = vmatmul.mubr.f32.gmra.mxu0 %v2185
    %v2500 = vpop.f32.mrf.mxu0
    %v2501 = vadd.f32 0.0, %v2500
    %v2502 = vpop.f32.mrf.mxu0
    %2503 = vmatprep.mubr.f32.mxu0 0.0
    %2504 = vmatmul.mubr.f32.gmra.mxu0 %v2188
    %v2505 = vpop.f32.mrf.mxu0
    %v2506 = vadd.f32 0.0, %v2505
    %v2507 = vpop.f32.mrf.mxu0
    %2508 = vmatprep.mubr.f32.mxu0 0.0
    %2509 = vmatmul.mubr.f32.gmra.mxu0 %v2191
    %v2510 = vpop.f32.mrf.mxu0
    %v2511 = vadd.f32 0.0, %v2510
    %v2512 = vpop.f32.mrf.mxu0
    %2513 = vmatprep.mubr.f32.mxu0 0.0
    %2514 = vmatmul.mubr.f32.gmra.mxu0 %v2194
    %v2515 = vpop.f32.mrf.mxu0
    %v2516 = vadd.f32 0.0, %v2515
    %v2517 = vpop.f32.mrf.mxu0
    %2518 = vmatprep.mubr.f32.mxu0 0.0
    %2519 = vmatmul.mubr.f32.gmra.mxu0 %v2197
    %v2520 = vpop.f32.mrf.mxu0
    %v2521 = vadd.f32 0.0, %v2520
    %v2522 = vpop.f32.mrf.mxu0
    %2523 = vmatprep.mubr.f32.mxu0 0.0
    %2524 = vmatmul.mubr.f32.gmra.mxu0 %v2200
    %v2525 = vpop.f32.mrf.mxu0
    %v2526 = vadd.f32 0.0, %v2525
    %v2527 = vpop.f32.mrf.mxu0
    %2528 = vmatprep.mubr.f32.mxu0 0.0
    %2529 = vmatmul.mubr.f32.gmra.mxu0 %v2203
    %v2530 = vpop.f32.mrf.mxu0
    %v2531 = vadd.f32 0.0, %v2530
    %v2532 = vpop.f32.mrf.mxu0
    %2533 = vmatprep.mubr.f32.mxu0 0.0
    %2534 = vmatmul.mubr.f32.gmra.mxu0 %v2206
    %v2535 = vpop.f32.mrf.mxu0
    %v2536 = vadd.f32 0.0, %v2535
    %v2537 = vpop.f32.mrf.mxu0
    %2538 = vmatprep.mubr.f32.mxu0 0.0
    %2539 = vmatmul.mubr.f32.gmra.mxu0 %v2209
    %v2540 = vpop.f32.mrf.mxu0
    %v2541 = vadd.f32 0.0, %v2540
    %v2542 = vpop.f32.mrf.mxu0
    %2543 = vmatprep.mubr.f32.mxu0 0.0
    %2544 = vmatmul.mubr.f32.gmra.mxu0 %v2212
    %v2545 = vpop.f32.mrf.mxu0
    %v2546 = vadd.f32 0.0, %v2545
    %v2547 = vpop.f32.mrf.mxu0
    %2548 = vmatprep.mubr.f32.mxu0 0.0
    %2549 = vmatmul.mubr.f32.gmra.mxu0 %v2215
    %v2550 = vpop.f32.mrf.mxu0
    %v2551 = vadd.f32 0.0, %v2550
    %v2552 = vpop.f32.mrf.mxu0
    %2553 = vmatprep.mubr.f32.mxu0 0.0
    %2554 = vmatmul.mubr.f32.gmra.mxu0 %v2218
    %v2555 = vpop.f32.mrf.mxu0
    %v2556 = vadd.f32 0.0, %v2555
    %v2557 = vpop.f32.mrf.mxu0
    %2558 = vmatprep.mubr.f32.mxu0 0.0
    %2559 = vmatmul.mubr.f32.gmra.mxu0 %v2221
    %v2560 = vpop.f32.mrf.mxu0
    %v2561 = vadd.f32 0.0, %v2560
    %v2562 = vpop.f32.mrf.mxu0
    %2563 = vmatprep.mubr.f32.mxu0 0.0
    %2564 = vmatmul.mubr.f32.gmra.mxu0 %v2224
    %v2565 = vpop.f32.mrf.mxu0
    %v2566 = vadd.f32 0.0, %v2565
    %v2567 = vpop.f32.mrf.mxu0
    %2568 = vmatprep.mubr.f32.mxu0 0.0
    %2569 = vmatmul.mubr.f32.gmra.mxu0 %v2227
    %v2570 = vpop.f32.mrf.mxu0
    %v2571 = vadd.f32 0.0, %v2570
    %v2572 = vpop.f32.mrf.mxu0
    %2573 = vmatprep.mubr.f32.mxu0 0.0
    %2574 = vmatmul.mubr.f32.gmra.mxu0 %v2230
    %v2575 = vpop.f32.mrf.mxu0
    %v2576 = vadd.f32 0.0, %v2575
    %v2577 = vpop.f32.mrf.mxu0
    %2578 = vmatprep.mubr.f32.mxu0 0.0
    %2579 = vmatmul.mubr.f32.gmra.mxu0 %v2233
    %v2580 = vpop.f32.mrf.mxu0
    %v2581 = vadd.f32 0.0, %v2580
    %v2582 = vpop.f32.mrf.mxu0
    %2583 = vmatprep.mubr.f32.mxu0 0.0
    %2584 = vmatmul.mubr.f32.gmra.mxu0 %v2236
    %v2585 = vpop.f32.mrf.mxu0
    %v2586 = vadd.f32 0.0, %v2585
    %v2587 = vpop.f32.mrf.mxu0
    %2588 = vmatprep.mubr.f32.mxu0 0.0
    %2589 = vmatmul.mubr.f32.gmra.mxu0 %v2239
    %v2590 = vpop.f32.mrf.mxu0
    %v2591 = vadd.f32 0.0, %v2590
    %v2592 = vpop.f32.mrf.mxu0
    %2593 = vmatprep.mubr.f32.mxu0 0.0
    %2594 = vmatmul.mubr.f32.gmra.mxu0 %v2242
    %v2595 = vpop.f32.mrf.mxu0
    %v2596 = vadd.f32 0.0, %v2595
    %v2597 = vpop.f32.mrf.mxu0
    %2598 = vmatprep.mubr.f32.mxu0 0.0
    %2599 = vmatmul.mubr.f32.gmra.mxu0 %v2245
    %v2600 = vpop.f32.mrf.mxu0
    %v2601 = vadd.f32 0.0, %v2600
    %v2602 = vpop.f32.mrf.mxu0
    %2603 = vmatprep.mubr.f32.mxu0 0.0
    %2604 = vmatmul.mubr.f32.gmra.mxu0 %v2248
    %v2605 = vpop.f32.mrf.mxu0
    %v2606 = vadd.f32 0.0, %v2605
    %v2607 = vpop.f32.mrf.mxu0
    %2608 = vmatprep.mubr.f32.mxu0 0.0
    %2609 = vmatmul.mubr.f32.gmra.mxu0 %v2251
    %v2610 = vpop.f32.mrf.mxu0
    %v2611 = vadd.f32 0.0, %v2610
    %v2612 = vpop.f32.mrf.mxu0
    %2613 = vmatprep.mubr.f32.mxu0 0.0
    %2614 = vmatmul.mubr.f32.gmra.mxu0 %v2254
    %v2615 = vpop.f32.mrf.mxu0
    %v2616 = vadd.f32 0.0, %v2615
    %v2617 = vpop.f32.mrf.mxu0
    %2618 = vmatprep.mubr.f32.mxu0 0.0
    %2619 = vmatmul.mubr.f32.gmra.mxu0 %v2257
    %v2620 = vpop.f32.mrf.mxu0
    %v2621 = vadd.f32 0.0, %v2620
    %v2622 = vpop.f32.mrf.mxu0
    %2623 = vmatprep.mubr.f32.mxu0 0.0
    %2624 = vmatmul.mubr.f32.gmra.mxu0 %v2260
    %v2625 = vpop.f32.mrf.mxu0
    %v2626 = vadd.f32 0.0, %v2625
    %v2627 = vpop.f32.mrf.mxu0
    %2628 = vmatprep.mubr.f32.mxu0 0.0
    %2629 = vmatmul.mubr.f32.gmra.mxu0 %v2263
    %v2630 = vpop.f32.mrf.mxu0
    %v2631 = vadd.f32 0.0, %v2630
    %v2632 = vpop.f32.mrf.mxu0
    %2633 = vmatprep.mubr.f32.mxu0 0.0
    %2634 = vmatmul.mubr.f32.gmra.mxu0 %v2266
    %v2635 = vpop.f32.mrf.mxu0
    %v2636 = vadd.f32 0.0, %v2635
    %v2637 = vpop.f32.mrf.mxu0
    %2638 = vmatprep.mubr.f32.mxu0 0.0
    %2639 = vmatmul.mubr.f32.gmra.mxu0 %v2269
    %v2640 = vpop.f32.mrf.mxu0
    %v2641 = vadd.f32 0.0, %v2640
    %v2642 = vpop.f32.mrf.mxu0
    %2643 = vmatprep.mubr.f32.mxu0 0.0
    %2644 = vmatmul.mubr.f32.gmra.mxu0 %v2272
    %v2645 = vpop.f32.mrf.mxu0
    %v2646 = vadd.f32 0.0, %v2645
    %v2647 = vpop.f32.mrf.mxu0
    %2648 = vmatprep.mubr.f32.mxu0 0.0
    %2649 = vmatmul.mubr.f32.gmra.mxu0 %v2275
    %v2650 = vpop.f32.mrf.mxu0
    %v2651 = vadd.f32 0.0, %v2650
    %v2652 = vpop.f32.mrf.mxu0
    %2653 = vmatprep.mubr.f32.mxu0 0.0
    %2654 = vmatmul.mubr.f32.gmra.mxu0 %v2278
    %v2655 = vpop.f32.mrf.mxu0
    %v2656 = vadd.f32 0.0, %v2655
    %v2657 = vpop.f32.mrf.mxu0
    %2658 = vmatprep.mubr.f32.mxu0 0.0
    %2659 = vmatmul.mubr.f32.gmra.mxu0 %v2281
    %v2660 = vpop.f32.mrf.mxu0
    %v2661 = vadd.f32 0.0, %v2660
    %v2662 = vpop.f32.mrf.mxu0
    %2663 = vmatprep.mubr.f32.mxu0 0.0
    %2664 = vmatmul.mubr.f32.gmra.mxu0 %v2284
    %v2665 = vpop.f32.mrf.mxu0
    %v2666 = vadd.f32 0.0, %v2665
    %v2667 = vpop.f32.mrf.mxu0
    %2668 = vmatprep.mubr.f32.mxu0 0.0
    %2669 = vmatmul.mubr.f32.gmra.mxu0 %v2287
    %v2670 = vpop.f32.mrf.mxu0
    %v2671 = vadd.f32 0.0, %v2670
    %v2672 = vpop.f32.mrf.mxu0
    %2673 = vdwg.mxu0
    %v2675 = vsel %vm330, %v2092, 0
    %2677 = vmatprep.subr.mxu0 0.0
    %2678 = vmatpush1.msra.mxu0 0.0
    %2679 = vmatprep.subr.mxu0 0.0
    %2680 = vmatpush1.msra.mxu0 0.0
    %2681 = vmatprep.subr.mxu0 0.0
    %2682 = vmatpush1.msra.mxu0 0.0
    %2683 = vmatprep.subr.mxu0 0.0
    %2684 = vmatpush1.msra.mxu0 0.0
    %2685 = vmatprep.subr.mxu0 0.0
    %2686 = vmatpush1.msra.mxu0 0.0
    %2687 = vmatprep.subr.mxu0 0.0
    %2688 = vmatpush1.msra.mxu0 0.0
    %2689 = vmatprep.subr.mxu0 0.0
    %2690 = vmatpush1.msra.mxu0 0.0
    %2691 = vmatprep.subr.mxu0 0.0
    %2692 = vmatpush1.msra.mxu0 0.0
    %2693 = vmatprep.subr.mxu0 0.0
    %2694 = vmatpush1.msra.mxu0 0.0
    %2695 = vmatprep.subr.mxu0 0.0
    %2696 = vmatpush1.msra.mxu0 0.0
    %2697 = vmatprep.subr.mxu0 0.0
    %2698 = vmatpush1.msra.mxu0 0.0
    %2699 = vmatprep.subr.mxu0 0.0
    %2700 = vmatpush1.msra.mxu0 0.0
    %2701 = vmatprep.subr.mxu0 0.0
    %2702 = vmatpush1.msra.mxu0 0.0
    %2703 = vmatprep.subr.mxu0 0.0
    %2704 = vmatpush1.msra.mxu0 0.0
    %2705 = vmatprep.subr.mxu0 0.0
    %2706 = vmatpush1.msra.mxu0 0.0
    %2707 = vmatprep.subr.mxu0 0.0
    %2708 = vmatpush1.msra.mxu0 %v2675
    %2709 = vmatprep.subr.mxu0 0.0
    %2710 = vmatpush2.msra.mxu0 0.0
    %2711 = vmatprep.subr.mxu0 0.0
    %2712 = vmatpush2.msra.mxu0 0.0
    %2713 = vmatprep.subr.mxu0 0.0
    %2714 = vmatpush2.msra.mxu0 0.0
    %2715 = vmatprep.subr.mxu0 0.0
    %2716 = vmatpush2.msra.mxu0 0.0
    %2717 = vmatprep.subr.mxu0 0.0
    %2718 = vmatpush2.msra.mxu0 0.0
    %2719 = vmatprep.subr.mxu0 0.0
    %2720 = vmatpush2.msra.mxu0 0.0
    %2721 = vmatprep.subr.mxu0 0.0
    %2722 = vmatpush2.msra.mxu0 0.0
    %2723 = vmatprep.subr.mxu0 0.0
    %2724 = vmatpush2.msra.mxu0 0.0
    %2725 = vmatprep.subr.mxu0 0.0
    %2726 = vmatpush2.msra.mxu0 0.0
    %2727 = vmatprep.subr.mxu0 0.0
    %2728 = vmatpush2.msra.mxu0 0.0
    %2729 = vmatprep.subr.mxu0 0.0
    %2730 = vmatpush2.msra.mxu0 0.0
    %2731 = vmatprep.subr.mxu0 0.0
    %2732 = vmatpush2.msra.mxu0 0.0
    %2733 = vmatprep.subr.mxu0 0.0
    %2734 = vmatpush2.msra.mxu0 0.0
    %2735 = vmatprep.subr.mxu0 0.0
    %2736 = vmatpush2.msra.mxu0 0.0
    %2737 = vmatprep.subr.mxu0 0.0
    %2738 = vmatpush2.msra.mxu0 0.0
    %2739 = vmatprep.subr.mxu0 0.0
    %2740 = vmatpush2.msra.mxu0 0.0
    %2741 = vmatprep.mubr.f32.mxu0 0.0
    %2742 = vmatmul.mubr.f32.gmra.mxu0 %v139
    %v2743 = vpop.f32.mrf.mxu0
    %v2744 = vadd.f32 %v2356, %v2743
    %v2745 = vpop.f32.mrf.mxu0
    %2746 = vmatprep.mubr.f32.mxu0 0.0
    %2747 = vmatmul.mubr.f32.gmra.mxu0 %v142
    %v2748 = vpop.f32.mrf.mxu0
    %v2749 = vadd.f32 %v2361, %v2748
    %v2750 = vpop.f32.mrf.mxu0
    %2751 = vmatprep.mubr.f32.mxu0 0.0
    %2752 = vmatmul.mubr.f32.gmra.mxu0 %v145
    %v2753 = vpop.f32.mrf.mxu0
    %v2754 = vadd.f32 %v2366, %v2753
    %v2755 = vpop.f32.mrf.mxu0
    %2756 = vmatprep.mubr.f32.mxu0 0.0
    %2757 = vmatmul.mubr.f32.gmra.mxu0 %v148
    %v2758 = vpop.f32.mrf.mxu0
    %v2759 = vadd.f32 %v2371, %v2758
    %v2760 = vpop.f32.mrf.mxu0
    %2761 = vmatprep.mubr.f32.mxu0 0.0
    %2762 = vmatmul.mubr.f32.gmra.mxu0 %v151
    %v2763 = vpop.f32.mrf.mxu0
    %v2764 = vadd.f32 %v2376, %v2763
    %v2765 = vpop.f32.mrf.mxu0
    %2766 = vmatprep.mubr.f32.mxu0 0.0
    %2767 = vmatmul.mubr.f32.gmra.mxu0 %v154
    %v2768 = vpop.f32.mrf.mxu0
    %v2769 = vadd.f32 %v2381, %v2768
    %v2770 = vpop.f32.mrf.mxu0
    %2771 = vmatprep.mubr.f32.mxu0 0.0
    %2772 = vmatmul.mubr.f32.gmra.mxu0 %v157
    %v2773 = vpop.f32.mrf.mxu0
    %v2774 = vadd.f32 %v2386, %v2773
    %v2775 = vpop.f32.mrf.mxu0
    %2776 = vmatprep.mubr.f32.mxu0 0.0
    %2777 = vmatmul.mubr.f32.gmra.mxu0 %v160
    %v2778 = vpop.f32.mrf.mxu0
    %v2779 = vadd.f32 %v2391, %v2778
    %v2780 = vpop.f32.mrf.mxu0
    %2781 = vmatprep.mubr.f32.mxu0 0.0
    %2782 = vmatmul.mubr.f32.gmra.mxu0 %v163
    %v2783 = vpop.f32.mrf.mxu0
    %v2784 = vadd.f32 %v2396, %v2783
    %v2785 = vpop.f32.mrf.mxu0
    %2786 = vmatprep.mubr.f32.mxu0 0.0
    %2787 = vmatmul.mubr.f32.gmra.mxu0 %v166
    %v2788 = vpop.f32.mrf.mxu0
    %v2789 = vadd.f32 %v2401, %v2788
    %v2790 = vpop.f32.mrf.mxu0
    %2791 = vmatprep.mubr.f32.mxu0 0.0
    %2792 = vmatmul.mubr.f32.gmra.mxu0 %v169
    %v2793 = vpop.f32.mrf.mxu0
    %v2794 = vadd.f32 %v2406, %v2793
    %v2795 = vpop.f32.mrf.mxu0
    %2796 = vmatprep.mubr.f32.mxu0 0.0
    %2797 = vmatmul.mubr.f32.gmra.mxu0 %v172
    %v2798 = vpop.f32.mrf.mxu0
    %v2799 = vadd.f32 %v2411, %v2798
    %v2800 = vpop.f32.mrf.mxu0
    %2801 = vmatprep.mubr.f32.mxu0 0.0
    %2802 = vmatmul.mubr.f32.gmra.mxu0 %v175
    %v2803 = vpop.f32.mrf.mxu0
    %v2804 = vadd.f32 %v2416, %v2803
    %v2805 = vpop.f32.mrf.mxu0
    %2806 = vmatprep.mubr.f32.mxu0 0.0
    %2807 = vmatmul.mubr.f32.gmra.mxu0 %v178
    %v2808 = vpop.f32.mrf.mxu0
    %v2809 = vadd.f32 %v2421, %v2808
    %v2810 = vpop.f32.mrf.mxu0
    %2811 = vmatprep.mubr.f32.mxu0 0.0
    %2812 = vmatmul.mubr.f32.gmra.mxu0 %v181
    %v2813 = vpop.f32.mrf.mxu0
    %v2814 = vadd.f32 %v2426, %v2813
    %v2815 = vpop.f32.mrf.mxu0
    %2816 = vmatprep.mubr.f32.mxu0 0.0
    %2817 = vmatmul.mubr.f32.gmra.mxu0 %v184
    %v2818 = vpop.f32.mrf.mxu0
    %v2819 = vadd.f32 %v2431, %v2818
    %v2820 = vpop.f32.mrf.mxu0
    %2821 = vmatprep.mubr.f32.mxu0 0.0
    %2822 = vmatmul.mubr.f32.gmra.mxu0 %v187
    %v2823 = vpop.f32.mrf.mxu0
    %v2824 = vadd.f32 %v2436, %v2823
    %v2825 = vpop.f32.mrf.mxu0
    %2826 = vmatprep.mubr.f32.mxu0 0.0
    %2827 = vmatmul.mubr.f32.gmra.mxu0 %v190
    %v2828 = vpop.f32.mrf.mxu0
    %v2829 = vadd.f32 %v2441, %v2828
    %v2830 = vpop.f32.mrf.mxu0
    %2831 = vmatprep.mubr.f32.mxu0 0.0
    %2832 = vmatmul.mubr.f32.gmra.mxu0 %v193
    %v2833 = vpop.f32.mrf.mxu0
    %v2834 = vadd.f32 %v2446, %v2833
    %v2835 = vpop.f32.mrf.mxu0
    %2836 = vmatprep.mubr.f32.mxu0 0.0
    %2837 = vmatmul.mubr.f32.gmra.mxu0 %v196
    %v2838 = vpop.f32.mrf.mxu0
    %v2839 = vadd.f32 %v2451, %v2838
    %v2840 = vpop.f32.mrf.mxu0
    %2841 = vmatprep.mubr.f32.mxu0 0.0
    %2842 = vmatmul.mubr.f32.gmra.mxu0 %v199
    %v2843 = vpop.f32.mrf.mxu0
    %v2844 = vadd.f32 %v2456, %v2843
    %v2845 = vpop.f32.mrf.mxu0
    %2846 = vmatprep.mubr.f32.mxu0 0.0
    %2847 = vmatmul.mubr.f32.gmra.mxu0 %v202
    %v2848 = vpop.f32.mrf.mxu0
    %v2849 = vadd.f32 %v2461, %v2848
    %v2850 = vpop.f32.mrf.mxu0
    %2851 = vmatprep.mubr.f32.mxu0 0.0
    %2852 = vmatmul.mubr.f32.gmra.mxu0 %v205
    %v2853 = vpop.f32.mrf.mxu0
    %v2854 = vadd.f32 %v2466, %v2853
    %v2855 = vpop.f32.mrf.mxu0
    %2856 = vmatprep.mubr.f32.mxu0 0.0
    %2857 = vmatmul.mubr.f32.gmra.mxu0 %v208
    %v2858 = vpop.f32.mrf.mxu0
    %v2859 = vadd.f32 %v2471, %v2858
    %v2860 = vpop.f32.mrf.mxu0
    %2861 = vmatprep.mubr.f32.mxu0 0.0
    %2862 = vmatmul.mubr.f32.gmra.mxu0 %v211
    %v2863 = vpop.f32.mrf.mxu0
    %v2864 = vadd.f32 %v2476, %v2863
    %v2865 = vpop.f32.mrf.mxu0
    %2866 = vmatprep.mubr.f32.mxu0 0.0
    %2867 = vmatmul.mubr.f32.gmra.mxu0 %v214
    %v2868 = vpop.f32.mrf.mxu0
    %v2869 = vadd.f32 %v2481, %v2868
    %v2870 = vpop.f32.mrf.mxu0
    %2871 = vmatprep.mubr.f32.mxu0 0.0
    %2872 = vmatmul.mubr.f32.gmra.mxu0 %v217
    %v2873 = vpop.f32.mrf.mxu0
    %v2874 = vadd.f32 %v2486, %v2873
    %v2875 = vpop.f32.mrf.mxu0
    %2876 = vmatprep.mubr.f32.mxu0 0.0
    %2877 = vmatmul.mubr.f32.gmra.mxu0 %v220
    %v2878 = vpop.f32.mrf.mxu0
    %v2879 = vadd.f32 %v2491, %v2878
    %v2880 = vpop.f32.mrf.mxu0
    %2881 = vmatprep.mubr.f32.mxu0 0.0
    %2882 = vmatmul.mubr.f32.gmra.mxu0 %v223
    %v2883 = vpop.f32.mrf.mxu0
    %v2884 = vadd.f32 %v2496, %v2883
    %v2885 = vpop.f32.mrf.mxu0
    %2886 = vmatprep.mubr.f32.mxu0 0.0
    %2887 = vmatmul.mubr.f32.gmra.mxu0 %v226
    %v2888 = vpop.f32.mrf.mxu0
    %v2889 = vadd.f32 %v2501, %v2888
    %v2890 = vpop.f32.mrf.mxu0
    %2891 = vmatprep.mubr.f32.mxu0 0.0
    %2892 = vmatmul.mubr.f32.gmra.mxu0 %v229
    %v2893 = vpop.f32.mrf.mxu0
    %v2894 = vadd.f32 %v2506, %v2893
    %v2895 = vpop.f32.mrf.mxu0
    %2896 = vmatprep.mubr.f32.mxu0 0.0
    %2897 = vmatmul.mubr.f32.gmra.mxu0 %v232
    %v2898 = vpop.f32.mrf.mxu0
    %v2899 = vadd.f32 %v2511, %v2898
    %v2900 = vpop.f32.mrf.mxu0
    %2901 = vmatprep.mubr.f32.mxu0 0.0
    %2902 = vmatmul.mubr.f32.gmra.mxu0 %v235
    %v2903 = vpop.f32.mrf.mxu0
    %v2904 = vadd.f32 %v2516, %v2903
    %v2905 = vpop.f32.mrf.mxu0
    %2906 = vmatprep.mubr.f32.mxu0 0.0
    %2907 = vmatmul.mubr.f32.gmra.mxu0 %v238
    %v2908 = vpop.f32.mrf.mxu0
    %v2909 = vadd.f32 %v2521, %v2908
    %v2910 = vpop.f32.mrf.mxu0
    %2911 = vmatprep.mubr.f32.mxu0 0.0
    %2912 = vmatmul.mubr.f32.gmra.mxu0 %v241
    %v2913 = vpop.f32.mrf.mxu0
    %v2914 = vadd.f32 %v2526, %v2913
    %v2915 = vpop.f32.mrf.mxu0
    %2916 = vmatprep.mubr.f32.mxu0 0.0
    %2917 = vmatmul.mubr.f32.gmra.mxu0 %v244
    %v2918 = vpop.f32.mrf.mxu0
    %v2919 = vadd.f32 %v2531, %v2918
    %v2920 = vpop.f32.mrf.mxu0
    %2921 = vmatprep.mubr.f32.mxu0 0.0
    %2922 = vmatmul.mubr.f32.gmra.mxu0 %v247
    %v2923 = vpop.f32.mrf.mxu0
    %v2924 = vadd.f32 %v2536, %v2923
    %v2925 = vpop.f32.mrf.mxu0
    %2926 = vmatprep.mubr.f32.mxu0 0.0
    %2927 = vmatmul.mubr.f32.gmra.mxu0 %v250
    %v2928 = vpop.f32.mrf.mxu0
    %v2929 = vadd.f32 %v2541, %v2928
    %v2930 = vpop.f32.mrf.mxu0
    %2931 = vmatprep.mubr.f32.mxu0 0.0
    %2932 = vmatmul.mubr.f32.gmra.mxu0 %v253
    %v2933 = vpop.f32.mrf.mxu0
    %v2934 = vadd.f32 %v2546, %v2933
    %v2935 = vpop.f32.mrf.mxu0
    %2936 = vmatprep.mubr.f32.mxu0 0.0
    %2937 = vmatmul.mubr.f32.gmra.mxu0 %v256
    %v2938 = vpop.f32.mrf.mxu0
    %v2939 = vadd.f32 %v2551, %v2938
    %v2940 = vpop.f32.mrf.mxu0
    %2941 = vmatprep.mubr.f32.mxu0 0.0
    %2942 = vmatmul.mubr.f32.gmra.mxu0 %v259
    %v2943 = vpop.f32.mrf.mxu0
    %v2944 = vadd.f32 %v2556, %v2943
    %v2945 = vpop.f32.mrf.mxu0
    %2946 = vmatprep.mubr.f32.mxu0 0.0
    %2947 = vmatmul.mubr.f32.gmra.mxu0 %v262
    %v2948 = vpop.f32.mrf.mxu0
    %v2949 = vadd.f32 %v2561, %v2948
    %v2950 = vpop.f32.mrf.mxu0
    %2951 = vmatprep.mubr.f32.mxu0 0.0
    %2952 = vmatmul.mubr.f32.gmra.mxu0 %v265
    %v2953 = vpop.f32.mrf.mxu0
    %v2954 = vadd.f32 %v2566, %v2953
    %v2955 = vpop.f32.mrf.mxu0
    %2956 = vmatprep.mubr.f32.mxu0 0.0
    %2957 = vmatmul.mubr.f32.gmra.mxu0 %v268
    %v2958 = vpop.f32.mrf.mxu0
    %v2959 = vadd.f32 %v2571, %v2958
    %v2960 = vpop.f32.mrf.mxu0
    %2961 = vmatprep.mubr.f32.mxu0 0.0
    %2962 = vmatmul.mubr.f32.gmra.mxu0 %v271
    %v2963 = vpop.f32.mrf.mxu0
    %v2964 = vadd.f32 %v2576, %v2963
    %v2965 = vpop.f32.mrf.mxu0
    %2966 = vmatprep.mubr.f32.mxu0 0.0
    %2967 = vmatmul.mubr.f32.gmra.mxu0 %v274
    %v2968 = vpop.f32.mrf.mxu0
    %v2969 = vadd.f32 %v2581, %v2968
    %v2970 = vpop.f32.mrf.mxu0
    %2971 = vmatprep.mubr.f32.mxu0 0.0
    %2972 = vmatmul.mubr.f32.gmra.mxu0 %v277
    %v2973 = vpop.f32.mrf.mxu0
    %v2974 = vadd.f32 %v2586, %v2973
    %v2975 = vpop.f32.mrf.mxu0
    %2976 = vmatprep.mubr.f32.mxu0 0.0
    %2977 = vmatmul.mubr.f32.gmra.mxu0 %v280
    %v2978 = vpop.f32.mrf.mxu0
    %v2979 = vadd.f32 %v2591, %v2978
    %v2980 = vpop.f32.mrf.mxu0
    %2981 = vmatprep.mubr.f32.mxu0 0.0
    %2982 = vmatmul.mubr.f32.gmra.mxu0 %v283
    %v2983 = vpop.f32.mrf.mxu0
    %v2984 = vadd.f32 %v2596, %v2983
    %v2985 = vpop.f32.mrf.mxu0
    %2986 = vmatprep.mubr.f32.mxu0 0.0
    %2987 = vmatmul.mubr.f32.gmra.mxu0 %v286
    %v2988 = vpop.f32.mrf.mxu0
    %v2989 = vadd.f32 %v2601, %v2988
    %v2990 = vpop.f32.mrf.mxu0
    %2991 = vmatprep.mubr.f32.mxu0 0.0
    %2992 = vmatmul.mubr.f32.gmra.mxu0 %v289
    %v2993 = vpop.f32.mrf.mxu0
    %v2994 = vadd.f32 %v2606, %v2993
    %v2995 = vpop.f32.mrf.mxu0
    %2996 = vmatprep.mubr.f32.mxu0 0.0
    %2997 = vmatmul.mubr.f32.gmra.mxu0 %v292
    %v2998 = vpop.f32.mrf.mxu0
    %v2999 = vadd.f32 %v2611, %v2998
    %v3000 = vpop.f32.mrf.mxu0
    %3001 = vmatprep.mubr.f32.mxu0 0.0
    %3002 = vmatmul.mubr.f32.gmra.mxu0 %v295
    %v3003 = vpop.f32.mrf.mxu0
    %v3004 = vadd.f32 %v2616, %v3003
    %v3005 = vpop.f32.mrf.mxu0
    %3006 = vmatprep.mubr.f32.mxu0 0.0
    %3007 = vmatmul.mubr.f32.gmra.mxu0 %v298
    %v3008 = vpop.f32.mrf.mxu0
    %v3009 = vadd.f32 %v2621, %v3008
    %v3010 = vpop.f32.mrf.mxu0
    %3011 = vmatprep.mubr.f32.mxu0 0.0
    %3012 = vmatmul.mubr.f32.gmra.mxu0 %v301
    %v3013 = vpop.f32.mrf.mxu0
    %v3014 = vadd.f32 %v2626, %v3013
    %v3015 = vpop.f32.mrf.mxu0
    %3016 = vmatprep.mubr.f32.mxu0 0.0
    %3017 = vmatmul.mubr.f32.gmra.mxu0 %v304
    %v3018 = vpop.f32.mrf.mxu0
    %v3019 = vadd.f32 %v2631, %v3018
    %v3020 = vpop.f32.mrf.mxu0
    %3021 = vmatprep.mubr.f32.mxu0 0.0
    %3022 = vmatmul.mubr.f32.gmra.mxu0 %v307
    %v3023 = vpop.f32.mrf.mxu0
    %v3024 = vadd.f32 %v2636, %v3023
    %v3025 = vpop.f32.mrf.mxu0
    %3026 = vmatprep.mubr.f32.mxu0 0.0
    %3027 = vmatmul.mubr.f32.gmra.mxu0 %v310
    %v3028 = vpop.f32.mrf.mxu0
    %v3029 = vadd.f32 %v2641, %v3028
    %v3030 = vpop.f32.mrf.mxu0
    %3031 = vmatprep.mubr.f32.mxu0 0.0
    %3032 = vmatmul.mubr.f32.gmra.mxu0 %v313
    %v3033 = vpop.f32.mrf.mxu0
    %v3034 = vadd.f32 %v2646, %v3033
    %v3035 = vpop.f32.mrf.mxu0
    %3036 = vmatprep.mubr.f32.mxu0 0.0
    %3037 = vmatmul.mubr.f32.gmra.mxu0 %v316
    %v3038 = vpop.f32.mrf.mxu0
    %v3039 = vadd.f32 %v2651, %v3038
    %v3040 = vpop.f32.mrf.mxu0
    %3041 = vmatprep.mubr.f32.mxu0 0.0
    %3042 = vmatmul.mubr.f32.gmra.mxu0 %v319
    %v3043 = vpop.f32.mrf.mxu0
    %v3044 = vadd.f32 %v2656, %v3043
    %v3045 = vpop.f32.mrf.mxu0
    %3046 = vmatprep.mubr.f32.mxu0 0.0
    %3047 = vmatmul.mubr.f32.gmra.mxu0 %v322
    %v3048 = vpop.f32.mrf.mxu0
    %v3049 = vadd.f32 %v2661, %v3048
    %v3050 = vpop.f32.mrf.mxu0
    %3051 = vmatprep.mubr.f32.mxu0 0.0
    %3052 = vmatmul.mubr.f32.gmra.mxu0 %v325
    %v3053 = vpop.f32.mrf.mxu0
    %v3054 = vadd.f32 %v2666, %v3053
    %v3055 = vpop.f32.mrf.mxu0
    %3056 = vmatprep.mubr.f32.mxu0 0.0
    %3057 = vmatmul.mubr.f32.gmra.mxu0 %v328
    %v3058 = vpop.f32.mrf.mxu0
    %v3059 = vadd.f32 %v2671, %v3058
    %v3060 = vpop.f32.mrf.mxu0
    %3061 = vdwg.mxu0
    %v3062 = vld [vmem:[%s9] sm:$0x1]
    %v3064 = vlaneseq
    %v3065 = vshrl.u32 %v3064, 7
    %v3066 = vsub.s32 0, %v3065
    %v3067 = vrot.slane %v3062, %v3066
    %v3069 = vadd.f32 %v2744, %v3067
    %v3070 = vadd.f32 %v2749, %v3067
    %v3071 = vadd.f32 %v2754, %v3067
    %v3072 = vadd.f32 %v2759, %v3067
    %v3073 = vadd.f32 %v2764, %v3067
    %v3074 = vadd.f32 %v2769, %v3067
    %v3075 = vadd.f32 %v2774, %v3067
    %v3076 = vadd.f32 %v2779, %v3067
    %v3077 = vadd.f32 %v2784, %v3067
    %v3078 = vadd.f32 %v2789, %v3067
    %v3079 = vadd.f32 %v2794, %v3067
    %v3080 = vadd.f32 %v2799, %v3067
    %v3081 = vadd.f32 %v2804, %v3067
    %v3082 = vadd.f32 %v2809, %v3067
    %v3083 = vadd.f32 %v2814, %v3067
    %v3084 = vadd.f32 %v2819, %v3067
    %v3085 = vadd.f32 %v2824, %v3067
    %v3086 = vadd.f32 %v2829, %v3067
    %v3087 = vadd.f32 %v2834, %v3067
    %v3088 = vadd.f32 %v2839, %v3067
    %v3089 = vadd.f32 %v2844, %v3067
    %v3090 = vadd.f32 %v2849, %v3067
    %v3091 = vadd.f32 %v2854, %v3067
    %v3092 = vadd.f32 %v2859, %v3067
    %v3093 = vadd.f32 %v2864, %v3067
    %v3094 = vadd.f32 %v2869, %v3067
    %v3095 = vadd.f32 %v2874, %v3067
    %v3096 = vadd.f32 %v2879, %v3067
    %v3097 = vadd.f32 %v2884, %v3067
    %v3098 = vadd.f32 %v2889, %v3067
    %v3099 = vadd.f32 %v2894, %v3067
    %v3100 = vadd.f32 %v2899, %v3067
    %v3101 = vadd.f32 %v2904, %v3067
    %v3102 = vadd.f32 %v2909, %v3067
    %v3103 = vadd.f32 %v2914, %v3067
    %v3104 = vadd.f32 %v2919, %v3067
    %v3105 = vadd.f32 %v2924, %v3067
    %v3106 = vadd.f32 %v2929, %v3067
    %v3107 = vadd.f32 %v2934, %v3067
    %v3108 = vadd.f32 %v2939, %v3067
    %v3109 = vadd.f32 %v2944, %v3067
    %v3110 = vadd.f32 %v2949, %v3067
    %v3111 = vadd.f32 %v2954, %v3067
    %v3112 = vadd.f32 %v2959, %v3067
    %v3113 = vadd.f32 %v2964, %v3067
    %v3114 = vadd.f32 %v2969, %v3067
    %v3115 = vadd.f32 %v2974, %v3067
    %v3116 = vadd.f32 %v2979, %v3067
    %v3117 = vadd.f32 %v2984, %v3067
    %v3118 = vadd.f32 %v2989, %v3067
    %v3119 = vadd.f32 %v2994, %v3067
    %v3120 = vadd.f32 %v2999, %v3067
    %v3121 = vadd.f32 %v3004, %v3067
    %v3122 = vadd.f32 %v3009, %v3067
    %v3123 = vadd.f32 %v3014, %v3067
    %v3124 = vadd.f32 %v3019, %v3067
    %v3125 = vadd.f32 %v3024, %v3067
    %v3126 = vadd.f32 %v3029, %v3067
    %v3127 = vadd.f32 %v3034, %v3067
    %v3128 = vadd.f32 %v3039, %v3067
    %v3129 = vadd.f32 %v3044, %v3067
    %v3130 = vadd.f32 %v3049, %v3067
    %v3131 = vadd.f32 %v3054, %v3067
    %v3132 = vadd.f32 %v3059, %v3067
    %v3133 = vmax.f32 %v3069, 0.0
    %v3134 = vmax.f32 %v3070, 0.0
    %v3135 = vmax.f32 %v3071, 0.0
    %v3136 = vmax.f32 %v3072, 0.0
    %v3137 = vmax.f32 %v3073, 0.0
    %v3138 = vmax.f32 %v3074, 0.0
    %v3139 = vmax.f32 %v3075, 0.0
    %v3140 = vmax.f32 %v3076, 0.0
    %v3141 = vmax.f32 %v3077, 0.0
    %v3142 = vmax.f32 %v3078, 0.0
    %v3143 = vmax.f32 %v3079, 0.0
    %v3144 = vmax.f32 %v3080, 0.0
    %v3145 = vmax.f32 %v3081, 0.0
    %v3146 = vmax.f32 %v3082, 0.0
    %v3147 = vmax.f32 %v3083, 0.0
    %v3148 = vmax.f32 %v3084, 0.0
    %v3149 = vmax.f32 %v3085, 0.0
    %v3150 = vmax.f32 %v3086, 0.0
    %v3151 = vmax.f32 %v3087, 0.0
    %v3152 = vmax.f32 %v3088, 0.0
    %v3153 = vmax.f32 %v3089, 0.0
    %v3154 = vmax.f32 %v3090, 0.0
    %v3155 = vmax.f32 %v3091, 0.0
    %v3156 = vmax.f32 %v3092, 0.0
    %v3157 = vmax.f32 %v3093, 0.0
    %v3158 = vmax.f32 %v3094, 0.0
    %v3159 = vmax.f32 %v3095, 0.0
    %v3160 = vmax.f32 %v3096, 0.0
    %v3161 = vmax.f32 %v3097, 0.0
    %v3162 = vmax.f32 %v3098, 0.0
    %v3163 = vmax.f32 %v3099, 0.0
    %v3164 = vmax.f32 %v3100, 0.0
    %v3165 = vmax.f32 %v3101, 0.0
    %v3166 = vmax.f32 %v3102, 0.0
    %v3167 = vmax.f32 %v3103, 0.0
    %v3168 = vmax.f32 %v3104, 0.0
    %v3169 = vmax.f32 %v3105, 0.0
    %v3170 = vmax.f32 %v3106, 0.0
    %v3171 = vmax.f32 %v3107, 0.0
    %v3172 = vmax.f32 %v3108, 0.0
    %v3173 = vmax.f32 %v3109, 0.0
    %v3174 = vmax.f32 %v3110, 0.0
    %v3175 = vmax.f32 %v3111, 0.0
    %v3176 = vmax.f32 %v3112, 0.0
    %v3177 = vmax.f32 %v3113, 0.0
    %v3178 = vmax.f32 %v3114, 0.0
    %v3179 = vmax.f32 %v3115, 0.0
    %v3180 = vmax.f32 %v3116, 0.0
    %v3181 = vmax.f32 %v3117, 0.0
    %v3182 = vmax.f32 %v3118, 0.0
    %v3183 = vmax.f32 %v3119, 0.0
    %v3184 = vmax.f32 %v3120, 0.0
    %v3185 = vmax.f32 %v3121, 0.0
    %v3186 = vmax.f32 %v3122, 0.0
    %v3187 = vmax.f32 %v3123, 0.0
    %v3188 = vmax.f32 %v3124, 0.0
    %v3189 = vmax.f32 %v3125, 0.0
    %v3190 = vmax.f32 %v3126, 0.0
    %v3191 = vmax.f32 %v3127, 0.0
    %v3192 = vmax.f32 %v3128, 0.0
    %v3193 = vmax.f32 %v3129, 0.0
    %v3194 = vmax.f32 %v3130, 0.0
    %v3195 = vmax.f32 %v3131, 0.0
    %v3196 = vmax.f32 %v3132, 0.0
    %v3197 = vld [vmem:[%s10] sm:$0xff]
    %v3198 = vld [vmem:[%s10 + $0x8] sm:$0xff]
    %v3199 = vld [vmem:[%s10 + $0x10] sm:$0xff]
    %v3200 = vld [vmem:[%s10 + $0x18] sm:$0xff]
    %v3201 = vld [vmem:[%s11] sm:$0x1]
    %v3203 = vlaneseq
    %v3204 = vshrl.u32 %v3203, 7
    %v3205 = vsub.s32 0, %v3204
    %v3206 = vrot.slane %v3201, %v3205
    %vm3208 = vcmask 261120
    %v3210 = vsel %vm3208, %v3133, 0
    %v3213 = vsel %vm3208, %v3134, 0
    %v3216 = vsel %vm3208, %v3135, 0
    %v3219 = vsel %vm3208, %v3136, 0
    %v3222 = vsel %vm3208, %v3137, 0
    %v3225 = vsel %vm3208, %v3138, 0
    %v3228 = vsel %vm3208, %v3139, 0
    %v3231 = vsel %vm3208, %v3140, 0
    %v3234 = vsel %vm3208, %v3141, 0
    %v3237 = vsel %vm3208, %v3142, 0
    %v3240 = vsel %vm3208, %v3143, 0
    %v3243 = vsel %vm3208, %v3144, 0
    %v3246 = vsel %vm3208, %v3145, 0
    %v3249 = vsel %vm3208, %v3146, 0
    %v3252 = vsel %vm3208, %v3147, 0
    %v3255 = vsel %vm3208, %v3148, 0
    %v3258 = vsel %vm3208, %v3149, 0
    %v3261 = vsel %vm3208, %v3150, 0
    %v3264 = vsel %vm3208, %v3151, 0
    %v3267 = vsel %vm3208, %v3152, 0
    %v3270 = vsel %vm3208, %v3153, 0
    %v3273 = vsel %vm3208, %v3154, 0
    %v3276 = vsel %vm3208, %v3155, 0
    %v3279 = vsel %vm3208, %v3156, 0
    %v3282 = vsel %vm3208, %v3157, 0
    %v3285 = vsel %vm3208, %v3158, 0
    %v3288 = vsel %vm3208, %v3159, 0
    %v3291 = vsel %vm3208, %v3160, 0
    %v3294 = vsel %vm3208, %v3161, 0
    %v3297 = vsel %vm3208, %v3162, 0
    %v3300 = vsel %vm3208, %v3163, 0
    %v3303 = vsel %vm3208, %v3164, 0
    %v3306 = vsel %vm3208, %v3165, 0
    %v3309 = vsel %vm3208, %v3166, 0
    %v3312 = vsel %vm3208, %v3167, 0
    %v3315 = vsel %vm3208, %v3168, 0
    %v3318 = vsel %vm3208, %v3169, 0
    %v3321 = vsel %vm3208, %v3170, 0
    %v3324 = vsel %vm3208, %v3171, 0
    %v3327 = vsel %vm3208, %v3172, 0
    %v3330 = vsel %vm3208, %v3173, 0
    %v3333 = vsel %vm3208, %v3174, 0
    %v3336 = vsel %vm3208, %v3175, 0
    %v3339 = vsel %vm3208, %v3176, 0
    %v3342 = vsel %vm3208, %v3177, 0
    %v3345 = vsel %vm3208, %v3178, 0
    %v3348 = vsel %vm3208, %v3179, 0
    %v3351 = vsel %vm3208, %v3180, 0
    %v3354 = vsel %vm3208, %v3181, 0
    %v3357 = vsel %vm3208, %v3182, 0
    %v3360 = vsel %vm3208, %v3183, 0
    %v3363 = vsel %vm3208, %v3184, 0
    %v3366 = vsel %vm3208, %v3185, 0
    %v3369 = vsel %vm3208, %v3186, 0
    %v3372 = vsel %vm3208, %v3187, 0
    %v3375 = vsel %vm3208, %v3188, 0
    %v3378 = vsel %vm3208, %v3189, 0
    %v3381 = vsel %vm3208, %v3190, 0
    %v3384 = vsel %vm3208, %v3191, 0
    %v3387 = vsel %vm3208, %v3192, 0
    %v3390 = vsel %vm3208, %v3193, 0
    %v3393 = vsel %vm3208, %v3194, 0
    %v3396 = vsel %vm3208, %v3195, 0
    %v3399 = vsel %vm3208, %v3196, 0
    %3401 = vmatprep.subr.mxu0 0.0
    %3402 = vmatpush1.msra.mxu0 0.0
    %3403 = vmatprep.subr.mxu0 0.0
    %3404 = vmatpush1.msra.mxu0 0.0
    %3405 = vmatprep.subr.mxu0 0.0
    %3406 = vmatpush1.msra.mxu0 0.0
    %3407 = vmatprep.subr.mxu0 0.0
    %3408 = vmatpush1.msra.mxu0 0.0
    %3409 = vmatprep.subr.mxu0 0.0
    %3410 = vmatpush1.msra.mxu0 0.0
    %3411 = vmatprep.subr.mxu0 0.0
    %3412 = vmatpush1.msra.mxu0 0.0
    %3413 = vmatprep.subr.mxu0 0.0
    %3414 = vmatpush1.msra.mxu0 0.0
    %3415 = vmatprep.subr.mxu0 0.0
    %3416 = vmatpush1.msra.mxu0 0.0
    %3417 = vmatprep.subr.mxu0 0.0
    %3418 = vmatpush1.msra.mxu0 0.0
    %3419 = vmatprep.subr.mxu0 0.0
    %3420 = vmatpush1.msra.mxu0 0.0
    %3421 = vmatprep.subr.mxu0 0.0
    %3422 = vmatpush1.msra.mxu0 0.0
    %3423 = vmatprep.subr.mxu0 0.0
    %3424 = vmatpush1.msra.mxu0 0.0
    %3425 = vmatprep.subr.mxu0 0.0
    %3426 = vmatpush1.msra.mxu0 %v3200
    %3427 = vmatprep.subr.mxu0 0.0
    %3428 = vmatpush1.msra.mxu0 %v3199
    %3429 = vmatprep.subr.mxu0 0.0
    %3430 = vmatpush1.msra.mxu0 %v3198
    %3431 = vmatprep.subr.mxu0 0.0
    %3432 = vmatpush1.msra.mxu0 %v3197
    %3433 = vmatprep.subr.mxu0 0.0
    %3434 = vmatpush2.msra.mxu0 0.0
    %3435 = vmatprep.subr.mxu0 0.0
    %3436 = vmatpush2.msra.mxu0 0.0
    %3437 = vmatprep.subr.mxu0 0.0
    %3438 = vmatpush2.msra.mxu0 0.0
    %3439 = vmatprep.subr.mxu0 0.0
    %3440 = vmatpush2.msra.mxu0 0.0
    %3441 = vmatprep.subr.mxu0 0.0
    %3442 = vmatpush2.msra.mxu0 0.0
    %3443 = vmatprep.subr.mxu0 0.0
    %3444 = vmatpush2.msra.mxu0 0.0
    %3445 = vmatprep.subr.mxu0 0.0
    %3446 = vmatpush2.msra.mxu0 0.0
    %3447 = vmatprep.subr.mxu0 0.0
    %3448 = vmatpush2.msra.mxu0 0.0
    %3449 = vmatprep.subr.mxu0 0.0
    %3450 = vmatpush2.msra.mxu0 0.0
    %3451 = vmatprep.subr.mxu0 0.0
    %3452 = vmatpush2.msra.mxu0 0.0
    %3453 = vmatprep.subr.mxu0 0.0
    %3454 = vmatpush2.msra.mxu0 0.0
    %3455 = vmatprep.subr.mxu0 0.0
    %3456 = vmatpush2.msra.mxu0 0.0
    %3457 = vmatprep.subr.mxu0 0.0
    %3458 = vmatpush2.msra.mxu0 0.0
    %3459 = vmatprep.subr.mxu0 0.0
    %3460 = vmatpush2.msra.mxu0 0.0
    %3461 = vmatprep.subr.mxu0 0.0
    %3462 = vmatpush2.msra.mxu0 0.0
    %3463 = vmatprep.subr.mxu0 0.0
    %3464 = vmatpush2.msra.mxu0 0.0
    %3465 = vmatprep.mubr.f32.mxu0 0.0
    %3466 = vmatmul.mubr.f32.gmra.mxu0 %v3210
    %v3467 = vpop.f32.mrf.mxu0
    %v3468 = vadd.f32 %v3206, %v3467
    %v3469 = vpop.f32.mrf.mxu0
    %3470 = vmatprep.mubr.f32.mxu0 0.0
    %3471 = vmatmul.mubr.f32.gmra.mxu0 %v3213
    %v3472 = vpop.f32.mrf.mxu0
    %v3473 = vadd.f32 %v3206, %v3472
    %v3474 = vpop.f32.mrf.mxu0
    %3475 = vmatprep.mubr.f32.mxu0 0.0
    %3476 = vmatmul.mubr.f32.gmra.mxu0 %v3216
    %v3477 = vpop.f32.mrf.mxu0
    %v3478 = vadd.f32 %v3206, %v3477
    %v3479 = vpop.f32.mrf.mxu0
    %3480 = vmatprep.mubr.f32.mxu0 0.0
    %3481 = vmatmul.mubr.f32.gmra.mxu0 %v3219
    %v3482 = vpop.f32.mrf.mxu0
    %v3483 = vadd.f32 %v3206, %v3482
    %v3484 = vpop.f32.mrf.mxu0
    %3485 = vmatprep.mubr.f32.mxu0 0.0
    %3486 = vmatmul.mubr.f32.gmra.mxu0 %v3222
    %v3487 = vpop.f32.mrf.mxu0
    %v3488 = vadd.f32 %v3206, %v3487
    %v3489 = vpop.f32.mrf.mxu0
    %3490 = vmatprep.mubr.f32.mxu0 0.0
    %3491 = vmatmul.mubr.f32.gmra.mxu0 %v3225
    %v3492 = vpop.f32.mrf.mxu0
    %v3493 = vadd.f32 %v3206, %v3492
    %v3494 = vpop.f32.mrf.mxu0
    %3495 = vmatprep.mubr.f32.mxu0 0.0
    %3496 = vmatmul.mubr.f32.gmra.mxu0 %v3228
    %v3497 = vpop.f32.mrf.mxu0
    %v3498 = vadd.f32 %v3206, %v3497
    %v3499 = vpop.f32.mrf.mxu0
    %3500 = vmatprep.mubr.f32.mxu0 0.0
    %3501 = vmatmul.mubr.f32.gmra.mxu0 %v3231
    %v3502 = vpop.f32.mrf.mxu0
    %v3503 = vadd.f32 %v3206, %v3502
    %v3504 = vpop.f32.mrf.mxu0
    %3505 = vmatprep.mubr.f32.mxu0 0.0
    %3506 = vmatmul.mubr.f32.gmra.mxu0 %v3234
    %v3507 = vpop.f32.mrf.mxu0
    %v3508 = vadd.f32 %v3206, %v3507
    %v3509 = vpop.f32.mrf.mxu0
    %3510 = vmatprep.mubr.f32.mxu0 0.0
    %3511 = vmatmul.mubr.f32.gmra.mxu0 %v3237
    %v3512 = vpop.f32.mrf.mxu0
    %v3513 = vadd.f32 %v3206, %v3512
    %v3514 = vpop.f32.mrf.mxu0
    %3515 = vmatprep.mubr.f32.mxu0 0.0
    %3516 = vmatmul.mubr.f32.gmra.mxu0 %v3240
    %v3517 = vpop.f32.mrf.mxu0
    %v3518 = vadd.f32 %v3206, %v3517
    %v3519 = vpop.f32.mrf.mxu0
    %3520 = vmatprep.mubr.f32.mxu0 0.0
    %3521 = vmatmul.mubr.f32.gmra.mxu0 %v3243
    %v3522 = vpop.f32.mrf.mxu0
    %v3523 = vadd.f32 %v3206, %v3522
    %v3524 = vpop.f32.mrf.mxu0
    %3525 = vmatprep.mubr.f32.mxu0 0.0
    %3526 = vmatmul.mubr.f32.gmra.mxu0 %v3246
    %v3527 = vpop.f32.mrf.mxu0
    %v3528 = vadd.f32 %v3206, %v3527
    %v3529 = vpop.f32.mrf.mxu0
    %3530 = vmatprep.mubr.f32.mxu0 0.0
    %3531 = vmatmul.mubr.f32.gmra.mxu0 %v3249
    %v3532 = vpop.f32.mrf.mxu0
    %v3533 = vadd.f32 %v3206, %v3532
    %v3534 = vpop.f32.mrf.mxu0
    %3535 = vmatprep.mubr.f32.mxu0 0.0
    %3536 = vmatmul.mubr.f32.gmra.mxu0 %v3252
    %v3537 = vpop.f32.mrf.mxu0
    %v3538 = vadd.f32 %v3206, %v3537
    %v3539 = vpop.f32.mrf.mxu0
    %3540 = vmatprep.mubr.f32.mxu0 0.0
    %3541 = vmatmul.mubr.f32.gmra.mxu0 %v3255
    %v3542 = vpop.f32.mrf.mxu0
    %v3543 = vadd.f32 %v3206, %v3542
    %v3544 = vpop.f32.mrf.mxu0
    %3545 = vmatprep.mubr.f32.mxu0 0.0
    %3546 = vmatmul.mubr.f32.gmra.mxu0 %v3258
    %v3547 = vpop.f32.mrf.mxu0
    %v3548 = vadd.f32 %v3206, %v3547
    %v3549 = vpop.f32.mrf.mxu0
    %3550 = vmatprep.mubr.f32.mxu0 0.0
    %3551 = vmatmul.mubr.f32.gmra.mxu0 %v3261
    %v3552 = vpop.f32.mrf.mxu0
    %v3553 = vadd.f32 %v3206, %v3552
    %v3554 = vpop.f32.mrf.mxu0
    %3555 = vmatprep.mubr.f32.mxu0 0.0
    %3556 = vmatmul.mubr.f32.gmra.mxu0 %v3264
    %v3557 = vpop.f32.mrf.mxu0
    %v3558 = vadd.f32 %v3206, %v3557
    %v3559 = vpop.f32.mrf.mxu0
    %3560 = vmatprep.mubr.f32.mxu0 0.0
    %3561 = vmatmul.mubr.f32.gmra.mxu0 %v3267
    %v3562 = vpop.f32.mrf.mxu0
    %v3563 = vadd.f32 %v3206, %v3562
    %v3564 = vpop.f32.mrf.mxu0
    %3565 = vmatprep.mubr.f32.mxu0 0.0
    %3566 = vmatmul.mubr.f32.gmra.mxu0 %v3270
    %v3567 = vpop.f32.mrf.mxu0
    %v3568 = vadd.f32 %v3206, %v3567
    %v3569 = vpop.f32.mrf.mxu0
    %3570 = vmatprep.mubr.f32.mxu0 0.0
    %3571 = vmatmul.mubr.f32.gmra.mxu0 %v3273
    %v3572 = vpop.f32.mrf.mxu0
    %v3573 = vadd.f32 %v3206, %v3572
    %v3574 = vpop.f32.mrf.mxu0
    %3575 = vmatprep.mubr.f32.mxu0 0.0
    %3576 = vmatmul.mubr.f32.gmra.mxu0 %v3276
    %v3577 = vpop.f32.mrf.mxu0
    %v3578 = vadd.f32 %v3206, %v3577
    %v3579 = vpop.f32.mrf.mxu0
    %3580 = vmatprep.mubr.f32.mxu0 0.0
    %3581 = vmatmul.mubr.f32.gmra.mxu0 %v3279
    %v3582 = vpop.f32.mrf.mxu0
    %v3583 = vadd.f32 %v3206, %v3582
    %v3584 = vpop.f32.mrf.mxu0
    %3585 = vmatprep.mubr.f32.mxu0 0.0
    %3586 = vmatmul.mubr.f32.gmra.mxu0 %v3282
    %v3587 = vpop.f32.mrf.mxu0
    %v3588 = vadd.f32 %v3206, %v3587
    %v3589 = vpop.f32.mrf.mxu0
    %3590 = vmatprep.mubr.f32.mxu0 0.0
    %3591 = vmatmul.mubr.f32.gmra.mxu0 %v3285
    %v3592 = vpop.f32.mrf.mxu0
    %v3593 = vadd.f32 %v3206, %v3592
    %v3594 = vpop.f32.mrf.mxu0
    %3595 = vmatprep.mubr.f32.mxu0 0.0
    %3596 = vmatmul.mubr.f32.gmra.mxu0 %v3288
    %v3597 = vpop.f32.mrf.mxu0
    %v3598 = vadd.f32 %v3206, %v3597
    %v3599 = vpop.f32.mrf.mxu0
    %3600 = vmatprep.mubr.f32.mxu0 0.0
    %3601 = vmatmul.mubr.f32.gmra.mxu0 %v3291
    %v3602 = vpop.f32.mrf.mxu0
    %v3603 = vadd.f32 %v3206, %v3602
    %v3604 = vpop.f32.mrf.mxu0
    %3605 = vmatprep.mubr.f32.mxu0 0.0
    %3606 = vmatmul.mubr.f32.gmra.mxu0 %v3294
    %v3607 = vpop.f32.mrf.mxu0
    %v3608 = vadd.f32 %v3206, %v3607
    %v3609 = vpop.f32.mrf.mxu0
    %3610 = vmatprep.mubr.f32.mxu0 0.0
    %3611 = vmatmul.mubr.f32.gmra.mxu0 %v3297
    %v3612 = vpop.f32.mrf.mxu0
    %v3613 = vadd.f32 %v3206, %v3612
    %v3614 = vpop.f32.mrf.mxu0
    %3615 = vmatprep.mubr.f32.mxu0 0.0
    %3616 = vmatmul.mubr.f32.gmra.mxu0 %v3300
    %v3617 = vpop.f32.mrf.mxu0
    %v3618 = vadd.f32 %v3206, %v3617
    %v3619 = vpop.f32.mrf.mxu0
    %3620 = vmatprep.mubr.f32.mxu0 0.0
    %3621 = vmatmul.mubr.f32.gmra.mxu0 %v3303
    %v3622 = vpop.f32.mrf.mxu0
    %v3623 = vadd.f32 %v3206, %v3622
    %v3624 = vpop.f32.mrf.mxu0
    %3625 = vmatprep.mubr.f32.mxu0 0.0
    %3626 = vmatmul.mubr.f32.gmra.mxu0 %v3306
    %v3627 = vpop.f32.mrf.mxu0
    %v3628 = vadd.f32 %v3206, %v3627
    %v3629 = vpop.f32.mrf.mxu0
    %3630 = vmatprep.mubr.f32.mxu0 0.0
    %3631 = vmatmul.mubr.f32.gmra.mxu0 %v3309
    %v3632 = vpop.f32.mrf.mxu0
    %v3633 = vadd.f32 %v3206, %v3632
    %v3634 = vpop.f32.mrf.mxu0
    %3635 = vmatprep.mubr.f32.mxu0 0.0
    %3636 = vmatmul.mubr.f32.gmra.mxu0 %v3312
    %v3637 = vpop.f32.mrf.mxu0
    %v3638 = vadd.f32 %v3206, %v3637
    %v3639 = vpop.f32.mrf.mxu0
    %3640 = vmatprep.mubr.f32.mxu0 0.0
    %3641 = vmatmul.mubr.f32.gmra.mxu0 %v3315
    %v3642 = vpop.f32.mrf.mxu0
    %v3643 = vadd.f32 %v3206, %v3642
    %v3644 = vpop.f32.mrf.mxu0
    %3645 = vmatprep.mubr.f32.mxu0 0.0
    %3646 = vmatmul.mubr.f32.gmra.mxu0 %v3318
    %v3647 = vpop.f32.mrf.mxu0
    %v3648 = vadd.f32 %v3206, %v3647
    %v3649 = vpop.f32.mrf.mxu0
    %3650 = vmatprep.mubr.f32.mxu0 0.0
    %3651 = vmatmul.mubr.f32.gmra.mxu0 %v3321
    %v3652 = vpop.f32.mrf.mxu0
    %v3653 = vadd.f32 %v3206, %v3652
    %v3654 = vpop.f32.mrf.mxu0
    %3655 = vmatprep.mubr.f32.mxu0 0.0
    %3656 = vmatmul.mubr.f32.gmra.mxu0 %v3324
    %v3657 = vpop.f32.mrf.mxu0
    %v3658 = vadd.f32 %v3206, %v3657
    %v3659 = vpop.f32.mrf.mxu0
    %3660 = vmatprep.mubr.f32.mxu0 0.0
    %3661 = vmatmul.mubr.f32.gmra.mxu0 %v3327
    %v3662 = vpop.f32.mrf.mxu0
    %v3663 = vadd.f32 %v3206, %v3662
    %v3664 = vpop.f32.mrf.mxu0
    %3665 = vmatprep.mubr.f32.mxu0 0.0
    %3666 = vmatmul.mubr.f32.gmra.mxu0 %v3330
    %v3667 = vpop.f32.mrf.mxu0
    %v3668 = vadd.f32 %v3206, %v3667
    %v3669 = vpop.f32.mrf.mxu0
    %3670 = vmatprep.mubr.f32.mxu0 0.0
    %3671 = vmatmul.mubr.f32.gmra.mxu0 %v3333
    %v3672 = vpop.f32.mrf.mxu0
    %v3673 = vadd.f32 %v3206, %v3672
    %v3674 = vpop.f32.mrf.mxu0
    %3675 = vmatprep.mubr.f32.mxu0 0.0
    %3676 = vmatmul.mubr.f32.gmra.mxu0 %v3336
    %v3677 = vpop.f32.mrf.mxu0
    %v3678 = vadd.f32 %v3206, %v3677
    %v3679 = vpop.f32.mrf.mxu0
    %3680 = vmatprep.mubr.f32.mxu0 0.0
    %3681 = vmatmul.mubr.f32.gmra.mxu0 %v3339
    %v3682 = vpop.f32.mrf.mxu0
    %v3683 = vadd.f32 %v3206, %v3682
    %v3684 = vpop.f32.mrf.mxu0
    %3685 = vmatprep.mubr.f32.mxu0 0.0
    %3686 = vmatmul.mubr.f32.gmra.mxu0 %v3342
    %v3687 = vpop.f32.mrf.mxu0
    %v3688 = vadd.f32 %v3206, %v3687
    %v3689 = vpop.f32.mrf.mxu0
    %3690 = vmatprep.mubr.f32.mxu0 0.0
    %3691 = vmatmul.mubr.f32.gmra.mxu0 %v3345
    %v3692 = vpop.f32.mrf.mxu0
    %v3693 = vadd.f32 %v3206, %v3692
    %v3694 = vpop.f32.mrf.mxu0
    %3695 = vmatprep.mubr.f32.mxu0 0.0
    %3696 = vmatmul.mubr.f32.gmra.mxu0 %v3348
    %v3697 = vpop.f32.mrf.mxu0
    %v3698 = vadd.f32 %v3206, %v3697
    %v3699 = vpop.f32.mrf.mxu0
    %3700 = vmatprep.mubr.f32.mxu0 0.0
    %3701 = vmatmul.mubr.f32.gmra.mxu0 %v3351
    %v3702 = vpop.f32.mrf.mxu0
    %v3703 = vadd.f32 %v3206, %v3702
    %v3704 = vpop.f32.mrf.mxu0
    %3705 = vmatprep.mubr.f32.mxu0 0.0
    %3706 = vmatmul.mubr.f32.gmra.mxu0 %v3354
    %v3707 = vpop.f32.mrf.mxu0
    %v3708 = vadd.f32 %v3206, %v3707
    %v3709 = vpop.f32.mrf.mxu0
    %3710 = vmatprep.mubr.f32.mxu0 0.0
    %3711 = vmatmul.mubr.f32.gmra.mxu0 %v3357
    %v3712 = vpop.f32.mrf.mxu0
    %v3713 = vadd.f32 %v3206, %v3712
    %v3714 = vpop.f32.mrf.mxu0
    %3715 = vmatprep.mubr.f32.mxu0 0.0
    %3716 = vmatmul.mubr.f32.gmra.mxu0 %v3360
    %v3717 = vpop.f32.mrf.mxu0
    %v3718 = vadd.f32 %v3206, %v3717
    %v3719 = vpop.f32.mrf.mxu0
    %3720 = vmatprep.mubr.f32.mxu0 0.0
    %3721 = vmatmul.mubr.f32.gmra.mxu0 %v3363
    %v3722 = vpop.f32.mrf.mxu0
    %v3723 = vadd.f32 %v3206, %v3722
    %v3724 = vpop.f32.mrf.mxu0
    %3725 = vmatprep.mubr.f32.mxu0 0.0
    %3726 = vmatmul.mubr.f32.gmra.mxu0 %v3366
    %v3727 = vpop.f32.mrf.mxu0
    %v3728 = vadd.f32 %v3206, %v3727
    %v3729 = vpop.f32.mrf.mxu0
    %3730 = vmatprep.mubr.f32.mxu0 0.0
    %3731 = vmatmul.mubr.f32.gmra.mxu0 %v3369
    %v3732 = vpop.f32.mrf.mxu0
    %v3733 = vadd.f32 %v3206, %v3732
    %v3734 = vpop.f32.mrf.mxu0
    %3735 = vmatprep.mubr.f32.mxu0 0.0
    %3736 = vmatmul.mubr.f32.gmra.mxu0 %v3372
    %v3737 = vpop.f32.mrf.mxu0
    %v3738 = vadd.f32 %v3206, %v3737
    %v3739 = vpop.f32.mrf.mxu0
    %3740 = vmatprep.mubr.f32.mxu0 0.0
    %3741 = vmatmul.mubr.f32.gmra.mxu0 %v3375
    %v3742 = vpop.f32.mrf.mxu0
    %v3743 = vadd.f32 %v3206, %v3742
    %v3744 = vpop.f32.mrf.mxu0
    %3745 = vmatprep.mubr.f32.mxu0 0.0
    %3746 = vmatmul.mubr.f32.gmra.mxu0 %v3378
    %v3747 = vpop.f32.mrf.mxu0
    %v3748 = vadd.f32 %v3206, %v3747
    %v3749 = vpop.f32.mrf.mxu0
    %3750 = vmatprep.mubr.f32.mxu0 0.0
    %3751 = vmatmul.mubr.f32.gmra.mxu0 %v3381
    %v3752 = vpop.f32.mrf.mxu0
    %v3753 = vadd.f32 %v3206, %v3752
    %v3754 = vpop.f32.mrf.mxu0
    %3755 = vmatprep.mubr.f32.mxu0 0.0
    %3756 = vmatmul.mubr.f32.gmra.mxu0 %v3384
    %v3757 = vpop.f32.mrf.mxu0
    %v3758 = vadd.f32 %v3206, %v3757
    %v3759 = vpop.f32.mrf.mxu0
    %3760 = vmatprep.mubr.f32.mxu0 0.0
    %3761 = vmatmul.mubr.f32.gmra.mxu0 %v3387
    %v3762 = vpop.f32.mrf.mxu0
    %v3763 = vadd.f32 %v3206, %v3762
    %v3764 = vpop.f32.mrf.mxu0
    %3765 = vmatprep.mubr.f32.mxu0 0.0
    %3766 = vmatmul.mubr.f32.gmra.mxu0 %v3390
    %v3767 = vpop.f32.mrf.mxu0
    %v3768 = vadd.f32 %v3206, %v3767
    %v3769 = vpop.f32.mrf.mxu0
    %3770 = vmatprep.mubr.f32.mxu0 0.0
    %3771 = vmatmul.mubr.f32.gmra.mxu0 %v3393
    %v3772 = vpop.f32.mrf.mxu0
    %v3773 = vadd.f32 %v3206, %v3772
    %v3774 = vpop.f32.mrf.mxu0
    %3775 = vmatprep.mubr.f32.mxu0 0.0
    %3776 = vmatmul.mubr.f32.gmra.mxu0 %v3396
    %v3777 = vpop.f32.mrf.mxu0
    %v3778 = vadd.f32 %v3206, %v3777
    %v3779 = vpop.f32.mrf.mxu0
    %3780 = vmatprep.mubr.f32.mxu0 0.0
    %3781 = vmatmul.mubr.f32.gmra.mxu0 %v3399
    %v3782 = vpop.f32.mrf.mxu0
    %v3783 = vadd.f32 %v3206, %v3782
    %v3784 = vpop.f32.mrf.mxu0
    %3785 = vdwg.mxu0
    %v3786 = vmax.f32 %v3468, 0.0
    %v3787 = vmax.f32 %v3473, 0.0
    %v3788 = vmax.f32 %v3478, 0.0
    %v3789 = vmax.f32 %v3483, 0.0
    %v3790 = vmax.f32 %v3488, 0.0
    %v3791 = vmax.f32 %v3493, 0.0
    %v3792 = vmax.f32 %v3498, 0.0
    %v3793 = vmax.f32 %v3503, 0.0
    %v3794 = vmax.f32 %v3508, 0.0
    %v3795 = vmax.f32 %v3513, 0.0
    %v3796 = vmax.f32 %v3518, 0.0
    %v3797 = vmax.f32 %v3523, 0.0
    %v3798 = vmax.f32 %v3528, 0.0
    %v3799 = vmax.f32 %v3533, 0.0
    %v3800 = vmax.f32 %v3538, 0.0
    %v3801 = vmax.f32 %v3543, 0.0
    %v3802 = vmax.f32 %v3548, 0.0
    %v3803 = vmax.f32 %v3553, 0.0
    %v3804 = vmax.f32 %v3558, 0.0
    %v3805 = vmax.f32 %v3563, 0.0
    %v3806 = vmax.f32 %v3568, 0.0
    %v3807 = vmax.f32 %v3573, 0.0
    %v3808 = vmax.f32 %v3578, 0.0
    %v3809 = vmax.f32 %v3583, 0.0
    %v3810 = vmax.f32 %v3588, 0.0
    %v3811 = vmax.f32 %v3593, 0.0
    %v3812 = vmax.f32 %v3598, 0.0
    %v3813 = vmax.f32 %v3603, 0.0
    %v3814 = vmax.f32 %v3608, 0.0
    %v3815 = vmax.f32 %v3613, 0.0
    %v3816 = vmax.f32 %v3618, 0.0
    %v3817 = vmax.f32 %v3623, 0.0
    %v3818 = vmax.f32 %v3628, 0.0
    %v3819 = vmax.f32 %v3633, 0.0
    %v3820 = vmax.f32 %v3638, 0.0
    %v3821 = vmax.f32 %v3643, 0.0
    %v3822 = vmax.f32 %v3648, 0.0
    %v3823 = vmax.f32 %v3653, 0.0
    %v3824 = vmax.f32 %v3658, 0.0
    %v3825 = vmax.f32 %v3663, 0.0
    %v3826 = vmax.f32 %v3668, 0.0
    %v3827 = vmax.f32 %v3673, 0.0
    %v3828 = vmax.f32 %v3678, 0.0
    %v3829 = vmax.f32 %v3683, 0.0
    %v3830 = vmax.f32 %v3688, 0.0
    %v3831 = vmax.f32 %v3693, 0.0
    %v3832 = vmax.f32 %v3698, 0.0
    %v3833 = vmax.f32 %v3703, 0.0
    %v3834 = vmax.f32 %v3708, 0.0
    %v3835 = vmax.f32 %v3713, 0.0
    %v3836 = vmax.f32 %v3718, 0.0
    %v3837 = vmax.f32 %v3723, 0.0
    %v3838 = vmax.f32 %v3728, 0.0
    %v3839 = vmax.f32 %v3733, 0.0
    %v3840 = vmax.f32 %v3738, 0.0
    %v3841 = vmax.f32 %v3743, 0.0
    %v3842 = vmax.f32 %v3748, 0.0
    %v3843 = vmax.f32 %v3753, 0.0
    %v3844 = vmax.f32 %v3758, 0.0
    %v3845 = vmax.f32 %v3763, 0.0
    %v3846 = vmax.f32 %v3768, 0.0
    %v3847 = vmax.f32 %v3773, 0.0
    %v3848 = vmax.f32 %v3778, 0.0
    %v3849 = vmax.f32 %v3783, 0.0
    %v3850 = vld [vmem:[%s12] sm:$0xff]
    %v3851 = vld [vmem:[%s12 + $0x8] sm:$0xff]
    %v3852 = vld [vmem:[%s12 + $0x10] sm:$0xff]
    %v3853 = vld [vmem:[%s12 + $0x18] sm:$0xff]
    %v3854 = vld [vmem:[%s12 + $0x20] sm:$0xff]
    %v3855 = vld [vmem:[%s12 + $0x28] sm:$0xff]
    %v3856 = vld [vmem:[%s13] sm:$0x1]
    %v3858 = vlaneseq
    %v3859 = vshrl.u32 %v3858, 7
    %v3860 = vsub.s32 0, %v3859
    %v3861 = vrot.slane %v3856, %v3860
    %vm3863 = vcmask 392192
    %v3865 = vsel %vm3863, %v3786, 0
    %v3868 = vsel %vm3863, %v3787, 0
    %v3871 = vsel %vm3863, %v3788, 0
    %v3874 = vsel %vm3863, %v3789, 0
    %v3877 = vsel %vm3863, %v3790, 0
    %v3880 = vsel %vm3863, %v3791, 0
    %v3883 = vsel %vm3863, %v3792, 0
    %v3886 = vsel %vm3863, %v3793, 0
    %v3889 = vsel %vm3863, %v3794, 0
    %v3892 = vsel %vm3863, %v3795, 0
    %v3895 = vsel %vm3863, %v3796, 0
    %v3898 = vsel %vm3863, %v3797, 0
    %v3901 = vsel %vm3863, %v3798, 0
    %v3904 = vsel %vm3863, %v3799, 0
    %v3907 = vsel %vm3863, %v3800, 0
    %v3910 = vsel %vm3863, %v3801, 0
    %v3913 = vsel %vm3863, %v3802, 0
    %v3916 = vsel %vm3863, %v3803, 0
    %v3919 = vsel %vm3863, %v3804, 0
    %v3922 = vsel %vm3863, %v3805, 0
    %v3925 = vsel %vm3863, %v3806, 0
    %v3928 = vsel %vm3863, %v3807, 0
    %v3931 = vsel %vm3863, %v3808, 0
    %v3934 = vsel %vm3863, %v3809, 0
    %v3937 = vsel %vm3863, %v3810, 0
    %v3940 = vsel %vm3863, %v3811, 0
    %v3943 = vsel %vm3863, %v3812, 0
    %v3946 = vsel %vm3863, %v3813, 0
    %v3949 = vsel %vm3863, %v3814, 0
    %v3952 = vsel %vm3863, %v3815, 0
    %v3955 = vsel %vm3863, %v3816, 0
    %v3958 = vsel %vm3863, %v3817, 0
    %v3961 = vsel %vm3863, %v3818, 0
    %v3964 = vsel %vm3863, %v3819, 0
    %v3967 = vsel %vm3863, %v3820, 0
    %v3970 = vsel %vm3863, %v3821, 0
    %v3973 = vsel %vm3863, %v3822, 0
    %v3976 = vsel %vm3863, %v3823, 0
    %v3979 = vsel %vm3863, %v3824, 0
    %v3982 = vsel %vm3863, %v3825, 0
    %v3985 = vsel %vm3863, %v3826, 0
    %v3988 = vsel %vm3863, %v3827, 0
    %v3991 = vsel %vm3863, %v3828, 0
    %v3994 = vsel %vm3863, %v3829, 0
    %v3997 = vsel %vm3863, %v3830, 0
    %v4000 = vsel %vm3863, %v3831, 0
    %v4003 = vsel %vm3863, %v3832, 0
    %v4006 = vsel %vm3863, %v3833, 0
    %v4009 = vsel %vm3863, %v3834, 0
    %v4012 = vsel %vm3863, %v3835, 0
    %v4015 = vsel %vm3863, %v3836, 0
    %v4018 = vsel %vm3863, %v3837, 0
    %v4021 = vsel %vm3863, %v3838, 0
    %v4024 = vsel %vm3863, %v3839, 0
    %v4027 = vsel %vm3863, %v3840, 0
    %v4030 = vsel %vm3863, %v3841, 0
    %v4033 = vsel %vm3863, %v3842, 0
    %v4036 = vsel %vm3863, %v3843, 0
    %v4039 = vsel %vm3863, %v3844, 0
    %v4042 = vsel %vm3863, %v3845, 0
    %v4045 = vsel %vm3863, %v3846, 0
    %v4048 = vsel %vm3863, %v3847, 0
    %v4051 = vsel %vm3863, %v3848, 0
    %v4054 = vsel %vm3863, %v3849, 0
    %4056 = vmatprep.subr.mxu0 0.0
    %4057 = vmatpush1.msra.mxu0 0.0
    %4058 = vmatprep.subr.mxu0 0.0
    %4059 = vmatpush1.msra.mxu0 0.0
    %4060 = vmatprep.subr.mxu0 0.0
    %4061 = vmatpush1.msra.mxu0 0.0
    %4062 = vmatprep.subr.mxu0 0.0
    %4063 = vmatpush1.msra.mxu0 0.0
    %4064 = vmatprep.subr.mxu0 0.0
    %4065 = vmatpush1.msra.mxu0 0.0
    %4066 = vmatprep.subr.mxu0 0.0
    %4067 = vmatpush1.msra.mxu0 0.0
    %4068 = vmatprep.subr.mxu0 0.0
    %4069 = vmatpush1.msra.mxu0 0.0
    %4070 = vmatprep.subr.mxu0 0.0
    %4071 = vmatpush1.msra.mxu0 0.0
    %4072 = vmatprep.subr.mxu0 0.0
    %4073 = vmatpush1.msra.mxu0 0.0
    %4074 = vmatprep.subr.mxu0 0.0
    %4075 = vmatpush1.msra.mxu0 0.0
    %4076 = vmatprep.subr.mxu0 0.0
    %4077 = vmatpush1.msra.mxu0 %v3855
    %4078 = vmatprep.subr.mxu0 0.0
    %4079 = vmatpush1.msra.mxu0 %v3854
    %4080 = vmatprep.subr.mxu0 0.0
    %4081 = vmatpush1.msra.mxu0 %v3853
    %4082 = vmatprep.subr.mxu0 0.0
    %4083 = vmatpush1.msra.mxu0 %v3852
    %4084 = vmatprep.subr.mxu0 0.0
    %4085 = vmatpush1.msra.mxu0 %v3851
    %4086 = vmatprep.subr.mxu0 0.0
    %4087 = vmatpush1.msra.mxu0 %v3850
    %4088 = vmatprep.subr.mxu0 0.0
    %4089 = vmatpush2.msra.mxu0 0.0
    %4090 = vmatprep.subr.mxu0 0.0
    %4091 = vmatpush2.msra.mxu0 0.0
    %4092 = vmatprep.subr.mxu0 0.0
    %4093 = vmatpush2.msra.mxu0 0.0
    %4094 = vmatprep.subr.mxu0 0.0
    %4095 = vmatpush2.msra.mxu0 0.0
    %4096 = vmatprep.subr.mxu0 0.0
    %4097 = vmatpush2.msra.mxu0 0.0
    %4098 = vmatprep.subr.mxu0 0.0
    %4099 = vmatpush2.msra.mxu0 0.0
    %4100 = vmatprep.subr.mxu0 0.0
    %4101 = vmatpush2.msra.mxu0 0.0
    %4102 = vmatprep.subr.mxu0 0.0
    %4103 = vmatpush2.msra.mxu0 0.0
    %4104 = vmatprep.subr.mxu0 0.0
    %4105 = vmatpush2.msra.mxu0 0.0
    %4106 = vmatprep.subr.mxu0 0.0
    %4107 = vmatpush2.msra.mxu0 0.0
    %4108 = vmatprep.subr.mxu0 0.0
    %4109 = vmatpush2.msra.mxu0 0.0
    %4110 = vmatprep.subr.mxu0 0.0
    %4111 = vmatpush2.msra.mxu0 0.0
    %4112 = vmatprep.subr.mxu0 0.0
    %4113 = vmatpush2.msra.mxu0 0.0
    %4114 = vmatprep.subr.mxu0 0.0
    %4115 = vmatpush2.msra.mxu0 0.0
    %4116 = vmatprep.subr.mxu0 0.0
    %4117 = vmatpush2.msra.mxu0 0.0
    %4118 = vmatprep.subr.mxu0 0.0
    %4119 = vmatpush2.msra.mxu0 0.0
    %4120 = vmatprep.mubr.f32.mxu0 0.0
    %4121 = vmatmul.mubr.f32.gmra.mxu0 %v3865
    %v4122 = vpop.f32.mrf.mxu0
    %v4123 = vadd.f32 %v3861, %v4122
    %v4124 = vpop.f32.mrf.mxu0
    %4125 = vmatprep.mubr.f32.mxu0 0.0
    %4126 = vmatmul.mubr.f32.gmra.mxu0 %v3868
    %v4127 = vpop.f32.mrf.mxu0
    %v4128 = vadd.f32 %v3861, %v4127
    %v4129 = vpop.f32.mrf.mxu0
    %4130 = vmatprep.mubr.f32.mxu0 0.0
    %4131 = vmatmul.mubr.f32.gmra.mxu0 %v3871
    %v4132 = vpop.f32.mrf.mxu0
    %v4133 = vadd.f32 %v3861, %v4132
    %v4134 = vpop.f32.mrf.mxu0
    %4135 = vmatprep.mubr.f32.mxu0 0.0
    %4136 = vmatmul.mubr.f32.gmra.mxu0 %v3874
    %v4137 = vpop.f32.mrf.mxu0
    %v4138 = vadd.f32 %v3861, %v4137
    %v4139 = vpop.f32.mrf.mxu0
    %4140 = vmatprep.mubr.f32.mxu0 0.0
    %4141 = vmatmul.mubr.f32.gmra.mxu0 %v3877
    %v4142 = vpop.f32.mrf.mxu0
    %v4143 = vadd.f32 %v3861, %v4142
    %v4144 = vpop.f32.mrf.mxu0
    %4145 = vmatprep.mubr.f32.mxu0 0.0
    %4146 = vmatmul.mubr.f32.gmra.mxu0 %v3880
    %v4147 = vpop.f32.mrf.mxu0
    %v4148 = vadd.f32 %v3861, %v4147
    %v4149 = vpop.f32.mrf.mxu0
    %4150 = vmatprep.mubr.f32.mxu0 0.0
    %4151 = vmatmul.mubr.f32.gmra.mxu0 %v3883
    %v4152 = vpop.f32.mrf.mxu0
    %v4153 = vadd.f32 %v3861, %v4152
    %v4154 = vpop.f32.mrf.mxu0
    %4155 = vmatprep.mubr.f32.mxu0 0.0
    %4156 = vmatmul.mubr.f32.gmra.mxu0 %v3886
    %v4157 = vpop.f32.mrf.mxu0
    %v4158 = vadd.f32 %v3861, %v4157
    %v4159 = vpop.f32.mrf.mxu0
    %4160 = vmatprep.mubr.f32.mxu0 0.0
    %4161 = vmatmul.mubr.f32.gmra.mxu0 %v3889
    %v4162 = vpop.f32.mrf.mxu0
    %v4163 = vadd.f32 %v3861, %v4162
    %v4164 = vpop.f32.mrf.mxu0
    %4165 = vmatprep.mubr.f32.mxu0 0.0
    %4166 = vmatmul.mubr.f32.gmra.mxu0 %v3892
    %v4167 = vpop.f32.mrf.mxu0
    %v4168 = vadd.f32 %v3861, %v4167
    %v4169 = vpop.f32.mrf.mxu0
    %4170 = vmatprep.mubr.f32.mxu0 0.0
    %4171 = vmatmul.mubr.f32.gmra.mxu0 %v3895
    %v4172 = vpop.f32.mrf.mxu0
    %v4173 = vadd.f32 %v3861, %v4172
    %v4174 = vpop.f32.mrf.mxu0
    %4175 = vmatprep.mubr.f32.mxu0 0.0
    %4176 = vmatmul.mubr.f32.gmra.mxu0 %v3898
    %v4177 = vpop.f32.mrf.mxu0
    %v4178 = vadd.f32 %v3861, %v4177
    %v4179 = vpop.f32.mrf.mxu0
    %4180 = vmatprep.mubr.f32.mxu0 0.0
    %4181 = vmatmul.mubr.f32.gmra.mxu0 %v3901
    %v4182 = vpop.f32.mrf.mxu0
    %v4183 = vadd.f32 %v3861, %v4182
    %v4184 = vpop.f32.mrf.mxu0
    %4185 = vmatprep.mubr.f32.mxu0 0.0
    %4186 = vmatmul.mubr.f32.gmra.mxu0 %v3904
    %v4187 = vpop.f32.mrf.mxu0
    %v4188 = vadd.f32 %v3861, %v4187
    %v4189 = vpop.f32.mrf.mxu0
    %4190 = vmatprep.mubr.f32.mxu0 0.0
    %4191 = vmatmul.mubr.f32.gmra.mxu0 %v3907
    %v4192 = vpop.f32.mrf.mxu0
    %v4193 = vadd.f32 %v3861, %v4192
    %v4194 = vpop.f32.mrf.mxu0
    %4195 = vmatprep.mubr.f32.mxu0 0.0
    %4196 = vmatmul.mubr.f32.gmra.mxu0 %v3910
    %v4197 = vpop.f32.mrf.mxu0
    %v4198 = vadd.f32 %v3861, %v4197
    %v4199 = vpop.f32.mrf.mxu0
    %4200 = vmatprep.mubr.f32.mxu0 0.0
    %4201 = vmatmul.mubr.f32.gmra.mxu0 %v3913
    %v4202 = vpop.f32.mrf.mxu0
    %v4203 = vadd.f32 %v3861, %v4202
    %v4204 = vpop.f32.mrf.mxu0
    %4205 = vmatprep.mubr.f32.mxu0 0.0
    %4206 = vmatmul.mubr.f32.gmra.mxu0 %v3916
    %v4207 = vpop.f32.mrf.mxu0
    %v4208 = vadd.f32 %v3861, %v4207
    %v4209 = vpop.f32.mrf.mxu0
    %4210 = vmatprep.mubr.f32.mxu0 0.0
    %4211 = vmatmul.mubr.f32.gmra.mxu0 %v3919
    %v4212 = vpop.f32.mrf.mxu0
    %v4213 = vadd.f32 %v3861, %v4212
    %v4214 = vpop.f32.mrf.mxu0
    %4215 = vmatprep.mubr.f32.mxu0 0.0
    %4216 = vmatmul.mubr.f32.gmra.mxu0 %v3922
    %v4217 = vpop.f32.mrf.mxu0
    %v4218 = vadd.f32 %v3861, %v4217
    %v4219 = vpop.f32.mrf.mxu0
    %4220 = vmatprep.mubr.f32.mxu0 0.0
    %4221 = vmatmul.mubr.f32.gmra.mxu0 %v3925
    %v4222 = vpop.f32.mrf.mxu0
    %v4223 = vadd.f32 %v3861, %v4222
    %v4224 = vpop.f32.mrf.mxu0
    %4225 = vmatprep.mubr.f32.mxu0 0.0
    %4226 = vmatmul.mubr.f32.gmra.mxu0 %v3928
    %v4227 = vpop.f32.mrf.mxu0
    %v4228 = vadd.f32 %v3861, %v4227
    %v4229 = vpop.f32.mrf.mxu0
    %4230 = vmatprep.mubr.f32.mxu0 0.0
    %4231 = vmatmul.mubr.f32.gmra.mxu0 %v3931
    %v4232 = vpop.f32.mrf.mxu0
    %v4233 = vadd.f32 %v3861, %v4232
    %v4234 = vpop.f32.mrf.mxu0
    %4235 = vmatprep.mubr.f32.mxu0 0.0
    %4236 = vmatmul.mubr.f32.gmra.mxu0 %v3934
    %v4237 = vpop.f32.mrf.mxu0
    %v4238 = vadd.f32 %v3861, %v4237
    %v4239 = vpop.f32.mrf.mxu0
    %4240 = vmatprep.mubr.f32.mxu0 0.0
    %4241 = vmatmul.mubr.f32.gmra.mxu0 %v3937
    %v4242 = vpop.f32.mrf.mxu0
    %v4243 = vadd.f32 %v3861, %v4242
    %v4244 = vpop.f32.mrf.mxu0
    %4245 = vmatprep.mubr.f32.mxu0 0.0
    %4246 = vmatmul.mubr.f32.gmra.mxu0 %v3940
    %v4247 = vpop.f32.mrf.mxu0
    %v4248 = vadd.f32 %v3861, %v4247
    %v4249 = vpop.f32.mrf.mxu0
    %4250 = vmatprep.mubr.f32.mxu0 0.0
    %4251 = vmatmul.mubr.f32.gmra.mxu0 %v3943
    %v4252 = vpop.f32.mrf.mxu0
    %v4253 = vadd.f32 %v3861, %v4252
    %v4254 = vpop.f32.mrf.mxu0
    %4255 = vmatprep.mubr.f32.mxu0 0.0
    %4256 = vmatmul.mubr.f32.gmra.mxu0 %v3946
    %v4257 = vpop.f32.mrf.mxu0
    %v4258 = vadd.f32 %v3861, %v4257
    %v4259 = vpop.f32.mrf.mxu0
    %4260 = vmatprep.mubr.f32.mxu0 0.0
    %4261 = vmatmul.mubr.f32.gmra.mxu0 %v3949
    %v4262 = vpop.f32.mrf.mxu0
    %v4263 = vadd.f32 %v3861, %v4262
    %v4264 = vpop.f32.mrf.mxu0
    %4265 = vmatprep.mubr.f32.mxu0 0.0
    %4266 = vmatmul.mubr.f32.gmra.mxu0 %v3952
    %v4267 = vpop.f32.mrf.mxu0
    %v4268 = vadd.f32 %v3861, %v4267
    %v4269 = vpop.f32.mrf.mxu0
    %4270 = vmatprep.mubr.f32.mxu0 0.0
    %4271 = vmatmul.mubr.f32.gmra.mxu0 %v3955
    %v4272 = vpop.f32.mrf.mxu0
    %v4273 = vadd.f32 %v3861, %v4272
    %v4274 = vpop.f32.mrf.mxu0
    %4275 = vmatprep.mubr.f32.mxu0 0.0
    %4276 = vmatmul.mubr.f32.gmra.mxu0 %v3958
    %v4277 = vpop.f32.mrf.mxu0
    %v4278 = vadd.f32 %v3861, %v4277
    %v4279 = vpop.f32.mrf.mxu0
    %4280 = vmatprep.mubr.f32.mxu0 0.0
    %4281 = vmatmul.mubr.f32.gmra.mxu0 %v3961
    %v4282 = vpop.f32.mrf.mxu0
    %v4283 = vadd.f32 %v3861, %v4282
    %v4284 = vpop.f32.mrf.mxu0
    %4285 = vmatprep.mubr.f32.mxu0 0.0
    %4286 = vmatmul.mubr.f32.gmra.mxu0 %v3964
    %v4287 = vpop.f32.mrf.mxu0
    %v4288 = vadd.f32 %v3861, %v4287
    %v4289 = vpop.f32.mrf.mxu0
    %4290 = vmatprep.mubr.f32.mxu0 0.0
    %4291 = vmatmul.mubr.f32.gmra.mxu0 %v3967
    %v4292 = vpop.f32.mrf.mxu0
    %v4293 = vadd.f32 %v3861, %v4292
    %v4294 = vpop.f32.mrf.mxu0
    %4295 = vmatprep.mubr.f32.mxu0 0.0
    %4296 = vmatmul.mubr.f32.gmra.mxu0 %v3970
    %v4297 = vpop.f32.mrf.mxu0
    %v4298 = vadd.f32 %v3861, %v4297
    %v4299 = vpop.f32.mrf.mxu0
    %4300 = vmatprep.mubr.f32.mxu0 0.0
    %4301 = vmatmul.mubr.f32.gmra.mxu0 %v3973
    %v4302 = vpop.f32.mrf.mxu0
    %v4303 = vadd.f32 %v3861, %v4302
    %v4304 = vpop.f32.mrf.mxu0
    %4305 = vmatprep.mubr.f32.mxu0 0.0
    %4306 = vmatmul.mubr.f32.gmra.mxu0 %v3976
    %v4307 = vpop.f32.mrf.mxu0
    %v4308 = vadd.f32 %v3861, %v4307
    %v4309 = vpop.f32.mrf.mxu0
    %4310 = vmatprep.mubr.f32.mxu0 0.0
    %4311 = vmatmul.mubr.f32.gmra.mxu0 %v3979
    %v4312 = vpop.f32.mrf.mxu0
    %v4313 = vadd.f32 %v3861, %v4312
    %v4314 = vpop.f32.mrf.mxu0
    %4315 = vmatprep.mubr.f32.mxu0 0.0
    %4316 = vmatmul.mubr.f32.gmra.mxu0 %v3982
    %v4317 = vpop.f32.mrf.mxu0
    %v4318 = vadd.f32 %v3861, %v4317
    %v4319 = vpop.f32.mrf.mxu0
    %4320 = vmatprep.mubr.f32.mxu0 0.0
    %4321 = vmatmul.mubr.f32.gmra.mxu0 %v3985
    %v4322 = vpop.f32.mrf.mxu0
    %v4323 = vadd.f32 %v3861, %v4322
    %v4324 = vpop.f32.mrf.mxu0
    %4325 = vmatprep.mubr.f32.mxu0 0.0
    %4326 = vmatmul.mubr.f32.gmra.mxu0 %v3988
    %v4327 = vpop.f32.mrf.mxu0
    %v4328 = vadd.f32 %v3861, %v4327
    %v4329 = vpop.f32.mrf.mxu0
    %4330 = vmatprep.mubr.f32.mxu0 0.0
    %4331 = vmatmul.mubr.f32.gmra.mxu0 %v3991
    %v4332 = vpop.f32.mrf.mxu0
    %v4333 = vadd.f32 %v3861, %v4332
    %v4334 = vpop.f32.mrf.mxu0
    %4335 = vmatprep.mubr.f32.mxu0 0.0
    %4336 = vmatmul.mubr.f32.gmra.mxu0 %v3994
    %v4337 = vpop.f32.mrf.mxu0
    %v4338 = vadd.f32 %v3861, %v4337
    %v4339 = vpop.f32.mrf.mxu0
    %4340 = vmatprep.mubr.f32.mxu0 0.0
    %4341 = vmatmul.mubr.f32.gmra.mxu0 %v3997
    %v4342 = vpop.f32.mrf.mxu0
    %v4343 = vadd.f32 %v3861, %v4342
    %v4344 = vpop.f32.mrf.mxu0
    %4345 = vmatprep.mubr.f32.mxu0 0.0
    %4346 = vmatmul.mubr.f32.gmra.mxu0 %v4000
    %v4347 = vpop.f32.mrf.mxu0
    %v4348 = vadd.f32 %v3861, %v4347
    %v4349 = vpop.f32.mrf.mxu0
    %4350 = vmatprep.mubr.f32.mxu0 0.0
    %4351 = vmatmul.mubr.f32.gmra.mxu0 %v4003
    %v4352 = vpop.f32.mrf.mxu0
    %v4353 = vadd.f32 %v3861, %v4352
    %v4354 = vpop.f32.mrf.mxu0
    %4355 = vmatprep.mubr.f32.mxu0 0.0
    %4356 = vmatmul.mubr.f32.gmra.mxu0 %v4006
    %v4357 = vpop.f32.mrf.mxu0
    %v4358 = vadd.f32 %v3861, %v4357
    %v4359 = vpop.f32.mrf.mxu0
    %4360 = vmatprep.mubr.f32.mxu0 0.0
    %4361 = vmatmul.mubr.f32.gmra.mxu0 %v4009
    %v4362 = vpop.f32.mrf.mxu0
    %v4363 = vadd.f32 %v3861, %v4362
    %v4364 = vpop.f32.mrf.mxu0
    %4365 = vmatprep.mubr.f32.mxu0 0.0
    %4366 = vmatmul.mubr.f32.gmra.mxu0 %v4012
    %v4367 = vpop.f32.mrf.mxu0
    %v4368 = vadd.f32 %v3861, %v4367
    %v4369 = vpop.f32.mrf.mxu0
    %4370 = vmatprep.mubr.f32.mxu0 0.0
    %4371 = vmatmul.mubr.f32.gmra.mxu0 %v4015
    %v4372 = vpop.f32.mrf.mxu0
    %v4373 = vadd.f32 %v3861, %v4372
    %v4374 = vpop.f32.mrf.mxu0
    %4375 = vmatprep.mubr.f32.mxu0 0.0
    %4376 = vmatmul.mubr.f32.gmra.mxu0 %v4018
    %v4377 = vpop.f32.mrf.mxu0
    %v4378 = vadd.f32 %v3861, %v4377
    %v4379 = vpop.f32.mrf.mxu0
    %4380 = vmatprep.mubr.f32.mxu0 0.0
    %4381 = vmatmul.mubr.f32.gmra.mxu0 %v4021
    %v4382 = vpop.f32.mrf.mxu0
    %v4383 = vadd.f32 %v3861, %v4382
    %v4384 = vpop.f32.mrf.mxu0
    %4385 = vmatprep.mubr.f32.mxu0 0.0
    %4386 = vmatmul.mubr.f32.gmra.mxu0 %v4024
    %v4387 = vpop.f32.mrf.mxu0
    %v4388 = vadd.f32 %v3861, %v4387
    %v4389 = vpop.f32.mrf.mxu0
    %4390 = vmatprep.mubr.f32.mxu0 0.0
    %4391 = vmatmul.mubr.f32.gmra.mxu0 %v4027
    %v4392 = vpop.f32.mrf.mxu0
    %v4393 = vadd.f32 %v3861, %v4392
    %v4394 = vpop.f32.mrf.mxu0
    %4395 = vmatprep.mubr.f32.mxu0 0.0
    %4396 = vmatmul.mubr.f32.gmra.mxu0 %v4030
    %v4397 = vpop.f32.mrf.mxu0
    %v4398 = vadd.f32 %v3861, %v4397
    %v4399 = vpop.f32.mrf.mxu0
    %4400 = vmatprep.mubr.f32.mxu0 0.0
    %4401 = vmatmul.mubr.f32.gmra.mxu0 %v4033
    %v4402 = vpop.f32.mrf.mxu0
    %v4403 = vadd.f32 %v3861, %v4402
    %v4404 = vpop.f32.mrf.mxu0
    %4405 = vmatprep.mubr.f32.mxu0 0.0
    %4406 = vmatmul.mubr.f32.gmra.mxu0 %v4036
    %v4407 = vpop.f32.mrf.mxu0
    %v4408 = vadd.f32 %v3861, %v4407
    %v4409 = vpop.f32.mrf.mxu0
    %4410 = vmatprep.mubr.f32.mxu0 0.0
    %4411 = vmatmul.mubr.f32.gmra.mxu0 %v4039
    %v4412 = vpop.f32.mrf.mxu0
    %v4413 = vadd.f32 %v3861, %v4412
    %v4414 = vpop.f32.mrf.mxu0
    %4415 = vmatprep.mubr.f32.mxu0 0.0
    %4416 = vmatmul.mubr.f32.gmra.mxu0 %v4042
    %v4417 = vpop.f32.mrf.mxu0
    %v4418 = vadd.f32 %v3861, %v4417
    %v4419 = vpop.f32.mrf.mxu0
    %4420 = vmatprep.mubr.f32.mxu0 0.0
    %4421 = vmatmul.mubr.f32.gmra.mxu0 %v4045
    %v4422 = vpop.f32.mrf.mxu0
    %v4423 = vadd.f32 %v3861, %v4422
    %v4424 = vpop.f32.mrf.mxu0
    %4425 = vmatprep.mubr.f32.mxu0 0.0
    %4426 = vmatmul.mubr.f32.gmra.mxu0 %v4048
    %v4427 = vpop.f32.mrf.mxu0
    %v4428 = vadd.f32 %v3861, %v4427
    %v4429 = vpop.f32.mrf.mxu0
    %4430 = vmatprep.mubr.f32.mxu0 0.0
    %4431 = vmatmul.mubr.f32.gmra.mxu0 %v4051
    %v4432 = vpop.f32.mrf.mxu0
    %v4433 = vadd.f32 %v3861, %v4432
    %v4434 = vpop.f32.mrf.mxu0
    %4435 = vmatprep.mubr.f32.mxu0 0.0
    %4436 = vmatmul.mubr.f32.gmra.mxu0 %v4054
    %v4437 = vpop.f32.mrf.mxu0
    %v4438 = vadd.f32 %v3861, %v4437
    %v4439 = vpop.f32.mrf.mxu0
    %4440 = vdwg.mxu0
    %v4441 = vmax.f32 %v4123, 0.0
    %v4442 = vmax.f32 %v4128, 0.0
    %v4443 = vmax.f32 %v4133, 0.0
    %v4444 = vmax.f32 %v4138, 0.0
    %v4445 = vmax.f32 %v4143, 0.0
    %v4446 = vmax.f32 %v4148, 0.0
    %v4447 = vmax.f32 %v4153, 0.0
    %v4448 = vmax.f32 %v4158, 0.0
    %v4449 = vmax.f32 %v4163, 0.0
    %v4450 = vmax.f32 %v4168, 0.0
    %v4451 = vmax.f32 %v4173, 0.0
    %v4452 = vmax.f32 %v4178, 0.0
    %v4453 = vmax.f32 %v4183, 0.0
    %v4454 = vmax.f32 %v4188, 0.0
    %v4455 = vmax.f32 %v4193, 0.0
    %v4456 = vmax.f32 %v4198, 0.0
    %v4457 = vmax.f32 %v4203, 0.0
    %v4458 = vmax.f32 %v4208, 0.0
    %v4459 = vmax.f32 %v4213, 0.0
    %v4460 = vmax.f32 %v4218, 0.0
    %v4461 = vmax.f32 %v4223, 0.0
    %v4462 = vmax.f32 %v4228, 0.0
    %v4463 = vmax.f32 %v4233, 0.0
    %v4464 = vmax.f32 %v4238, 0.0
    %v4465 = vmax.f32 %v4243, 0.0
    %v4466 = vmax.f32 %v4248, 0.0
    %v4467 = vmax.f32 %v4253, 0.0
    %v4468 = vmax.f32 %v4258, 0.0
    %v4469 = vmax.f32 %v4263, 0.0
    %v4470 = vmax.f32 %v4268, 0.0
    %v4471 = vmax.f32 %v4273, 0.0
    %v4472 = vmax.f32 %v4278, 0.0
    %v4473 = vmax.f32 %v4283, 0.0
    %v4474 = vmax.f32 %v4288, 0.0
    %v4475 = vmax.f32 %v4293, 0.0
    %v4476 = vmax.f32 %v4298, 0.0
    %v4477 = vmax.f32 %v4303, 0.0
    %v4478 = vmax.f32 %v4308, 0.0
    %v4479 = vmax.f32 %v4313, 0.0
    %v4480 = vmax.f32 %v4318, 0.0
    %v4481 = vmax.f32 %v4323, 0.0
    %v4482 = vmax.f32 %v4328, 0.0
    %v4483 = vmax.f32 %v4333, 0.0
    %v4484 = vmax.f32 %v4338, 0.0
    %v4485 = vmax.f32 %v4343, 0.0
    %v4486 = vmax.f32 %v4348, 0.0
    %v4487 = vmax.f32 %v4353, 0.0
    %v4488 = vmax.f32 %v4358, 0.0
    %v4489 = vmax.f32 %v4363, 0.0
    %v4490 = vmax.f32 %v4368, 0.0
    %v4491 = vmax.f32 %v4373, 0.0
    %v4492 = vmax.f32 %v4378, 0.0
    %v4493 = vmax.f32 %v4383, 0.0
    %v4494 = vmax.f32 %v4388, 0.0
    %v4495 = vmax.f32 %v4393, 0.0
    %v4496 = vmax.f32 %v4398, 0.0
    %v4497 = vmax.f32 %v4403, 0.0
    %v4498 = vmax.f32 %v4408, 0.0
    %v4499 = vmax.f32 %v4413, 0.0
    %v4500 = vmax.f32 %v4418, 0.0
    %v4501 = vmax.f32 %v4423, 0.0
    %v4502 = vmax.f32 %v4428, 0.0
    %v4503 = vmax.f32 %v4433, 0.0
    %v4504 = vmax.f32 %v4438, 0.0
    %v4505 = vld [vmem:[%s14] sm:$0x1]
    %v4507 = vlaneseq
    %v4508 = vshrl.u32 %v4507, 7
    %v4509 = vsub.s32 0, %v4508
    %v4510 = vrot.slane %v4505, %v4509
    %v4512 = vmul.f32 %v4441, %v4510
    %v4513 = vmul.f32 %v4442, %v4510
    %v4514 = vmul.f32 %v4443, %v4510
    %v4515 = vmul.f32 %v4444, %v4510
    %v4516 = vmul.f32 %v4445, %v4510
    %v4517 = vmul.f32 %v4446, %v4510
    %v4518 = vmul.f32 %v4447, %v4510
    %v4519 = vmul.f32 %v4448, %v4510
    %v4520 = vmul.f32 %v4449, %v4510
    %v4521 = vmul.f32 %v4450, %v4510
    %v4522 = vmul.f32 %v4451, %v4510
    %v4523 = vmul.f32 %v4452, %v4510
    %v4524 = vmul.f32 %v4453, %v4510
    %v4525 = vmul.f32 %v4454, %v4510
    %v4526 = vmul.f32 %v4455, %v4510
    %v4527 = vmul.f32 %v4456, %v4510
    %v4528 = vmul.f32 %v4457, %v4510
    %v4529 = vmul.f32 %v4458, %v4510
    %v4530 = vmul.f32 %v4459, %v4510
    %v4531 = vmul.f32 %v4460, %v4510
    %v4532 = vmul.f32 %v4461, %v4510
    %v4533 = vmul.f32 %v4462, %v4510
    %v4534 = vmul.f32 %v4463, %v4510
    %v4535 = vmul.f32 %v4464, %v4510
    %v4536 = vmul.f32 %v4465, %v4510
    %v4537 = vmul.f32 %v4466, %v4510
    %v4538 = vmul.f32 %v4467, %v4510
    %v4539 = vmul.f32 %v4468, %v4510
    %v4540 = vmul.f32 %v4469, %v4510
    %v4541 = vmul.f32 %v4470, %v4510
    %v4542 = vmul.f32 %v4471, %v4510
    %v4543 = vmul.f32 %v4472, %v4510
    %v4544 = vmul.f32 %v4473, %v4510
    %v4545 = vmul.f32 %v4474, %v4510
    %v4546 = vmul.f32 %v4475, %v4510
    %v4547 = vmul.f32 %v4476, %v4510
    %v4548 = vmul.f32 %v4477, %v4510
    %v4549 = vmul.f32 %v4478, %v4510
    %v4550 = vmul.f32 %v4479, %v4510
    %v4551 = vmul.f32 %v4480, %v4510
    %v4552 = vmul.f32 %v4481, %v4510
    %v4553 = vmul.f32 %v4482, %v4510
    %v4554 = vmul.f32 %v4483, %v4510
    %v4555 = vmul.f32 %v4484, %v4510
    %v4556 = vmul.f32 %v4485, %v4510
    %v4557 = vmul.f32 %v4486, %v4510
    %v4558 = vmul.f32 %v4487, %v4510
    %v4559 = vmul.f32 %v4488, %v4510
    %v4560 = vmul.f32 %v4489, %v4510
    %v4561 = vmul.f32 %v4490, %v4510
    %v4562 = vmul.f32 %v4491, %v4510
    %v4563 = vmul.f32 %v4492, %v4510
    %v4564 = vmul.f32 %v4493, %v4510
    %v4565 = vmul.f32 %v4494, %v4510
    %v4566 = vmul.f32 %v4495, %v4510
    %v4567 = vmul.f32 %v4496, %v4510
    %v4568 = vmul.f32 %v4497, %v4510
    %v4569 = vmul.f32 %v4498, %v4510
    %v4570 = vmul.f32 %v4499, %v4510
    %v4571 = vmul.f32 %v4500, %v4510
    %v4572 = vmul.f32 %v4501, %v4510
    %v4573 = vmul.f32 %v4502, %v4510
    %v4574 = vmul.f32 %v4503, %v4510
    %v4575 = vmul.f32 %v4504, %v4510
    %vm4576 = vcmask 523264
    %v4577 = vsel %vm4576, %v4512, 0.0
    %4578 = vadd.xlane.f32.xlu0 %v4577
    %v4579 = vpop.xlane.xlu0 %4578
    %v4580 = vsel %vm4576, %v4513, 0.0
    %4581 = vadd.xlane.f32.xlu0 %v4580
    %v4582 = vpop.xlane.xlu0 %4581
    %v4583 = vsel %vm4576, %v4514, 0.0
    %4584 = vadd.xlane.f32.xlu0 %v4583
    %v4585 = vpop.xlane.xlu0 %4584
    %v4586 = vsel %vm4576, %v4515, 0.0
    %4587 = vadd.xlane.f32.xlu0 %v4586
    %v4588 = vpop.xlane.xlu0 %4587
    %v4589 = vsel %vm4576, %v4516, 0.0
    %4590 = vadd.xlane.f32.xlu0 %v4589
    %v4591 = vpop.xlane.xlu0 %4590
    %v4592 = vsel %vm4576, %v4517, 0.0
    %4593 = vadd.xlane.f32.xlu0 %v4592
    %v4594 = vpop.xlane.xlu0 %4593
    %v4595 = vsel %vm4576, %v4518, 0.0
    %4596 = vadd.xlane.f32.xlu0 %v4595
    %v4597 = vpop.xlane.xlu0 %4596
    %v4598 = vsel %vm4576, %v4519, 0.0
    %4599 = vadd.xlane.f32.xlu0 %v4598
    %v4600 = vpop.xlane.xlu0 %4599
    %v4601 = vsel %vm4576, %v4520, 0.0
    %4602 = vadd.xlane.f32.xlu0 %v4601
    %v4603 = vpop.xlane.xlu0 %4602
    %v4604 = vsel %vm4576, %v4521, 0.0
    %4605 = vadd.xlane.f32.xlu0 %v4604
    %v4606 = vpop.xlane.xlu0 %4605
    %v4607 = vsel %vm4576, %v4522, 0.0
    %4608 = vadd.xlane.f32.xlu0 %v4607
    %v4609 = vpop.xlane.xlu0 %4608
    %v4610 = vsel %vm4576, %v4523, 0.0
    %4611 = vadd.xlane.f32.xlu0 %v4610
    %v4612 = vpop.xlane.xlu0 %4611
    %v4613 = vsel %vm4576, %v4524, 0.0
    %4614 = vadd.xlane.f32.xlu0 %v4613
    %v4615 = vpop.xlane.xlu0 %4614
    %v4616 = vsel %vm4576, %v4525, 0.0
    %4617 = vadd.xlane.f32.xlu0 %v4616
    %v4618 = vpop.xlane.xlu0 %4617
    %v4619 = vsel %vm4576, %v4526, 0.0
    %4620 = vadd.xlane.f32.xlu0 %v4619
    %v4621 = vpop.xlane.xlu0 %4620
    %v4622 = vsel %vm4576, %v4527, 0.0
    %4623 = vadd.xlane.f32.xlu0 %v4622
    %v4624 = vpop.xlane.xlu0 %4623
    %v4625 = vsel %vm4576, %v4528, 0.0
    %4626 = vadd.xlane.f32.xlu0 %v4625
    %v4627 = vpop.xlane.xlu0 %4626
    %v4628 = vsel %vm4576, %v4529, 0.0
    %4629 = vadd.xlane.f32.xlu0 %v4628
    %v4630 = vpop.xlane.xlu0 %4629
    %v4631 = vsel %vm4576, %v4530, 0.0
    %4632 = vadd.xlane.f32.xlu0 %v4631
    %v4633 = vpop.xlane.xlu0 %4632
    %v4634 = vsel %vm4576, %v4531, 0.0
    %4635 = vadd.xlane.f32.xlu0 %v4634
    %v4636 = vpop.xlane.xlu0 %4635
    %v4637 = vsel %vm4576, %v4532, 0.0
    %4638 = vadd.xlane.f32.xlu0 %v4637
    %v4639 = vpop.xlane.xlu0 %4638
    %v4640 = vsel %vm4576, %v4533, 0.0
    %4641 = vadd.xlane.f32.xlu0 %v4640
    %v4642 = vpop.xlane.xlu0 %4641
    %v4643 = vsel %vm4576, %v4534, 0.0
    %4644 = vadd.xlane.f32.xlu0 %v4643
    %v4645 = vpop.xlane.xlu0 %4644
    %v4646 = vsel %vm4576, %v4535, 0.0
    %4647 = vadd.xlane.f32.xlu0 %v4646
    %v4648 = vpop.xlane.xlu0 %4647
    %v4649 = vsel %vm4576, %v4536, 0.0
    %4650 = vadd.xlane.f32.xlu0 %v4649
    %v4651 = vpop.xlane.xlu0 %4650
    %v4652 = vsel %vm4576, %v4537, 0.0
    %4653 = vadd.xlane.f32.xlu0 %v4652
    %v4654 = vpop.xlane.xlu0 %4653
    %v4655 = vsel %vm4576, %v4538, 0.0
    %4656 = vadd.xlane.f32.xlu0 %v4655
    %v4657 = vpop.xlane.xlu0 %4656
    %v4658 = vsel %vm4576, %v4539, 0.0
    %4659 = vadd.xlane.f32.xlu0 %v4658
    %v4660 = vpop.xlane.xlu0 %4659
    %v4661 = vsel %vm4576, %v4540, 0.0
    %4662 = vadd.xlane.f32.xlu0 %v4661
    %v4663 = vpop.xlane.xlu0 %4662
    %v4664 = vsel %vm4576, %v4541, 0.0
    %4665 = vadd.xlane.f32.xlu0 %v4664
    %v4666 = vpop.xlane.xlu0 %4665
    %v4667 = vsel %vm4576, %v4542, 0.0
    %4668 = vadd.xlane.f32.xlu0 %v4667
    %v4669 = vpop.xlane.xlu0 %4668
    %v4670 = vsel %vm4576, %v4543, 0.0
    %4671 = vadd.xlane.f32.xlu0 %v4670
    %v4672 = vpop.xlane.xlu0 %4671
    %v4673 = vsel %vm4576, %v4544, 0.0
    %4674 = vadd.xlane.f32.xlu0 %v4673
    %v4675 = vpop.xlane.xlu0 %4674
    %v4676 = vsel %vm4576, %v4545, 0.0
    %4677 = vadd.xlane.f32.xlu0 %v4676
    %v4678 = vpop.xlane.xlu0 %4677
    %v4679 = vsel %vm4576, %v4546, 0.0
    %4680 = vadd.xlane.f32.xlu0 %v4679
    %v4681 = vpop.xlane.xlu0 %4680
    %v4682 = vsel %vm4576, %v4547, 0.0
    %4683 = vadd.xlane.f32.xlu0 %v4682
    %v4684 = vpop.xlane.xlu0 %4683
    %v4685 = vsel %vm4576, %v4548, 0.0
    %4686 = vadd.xlane.f32.xlu0 %v4685
    %v4687 = vpop.xlane.xlu0 %4686
    %v4688 = vsel %vm4576, %v4549, 0.0
    %4689 = vadd.xlane.f32.xlu0 %v4688
    %v4690 = vpop.xlane.xlu0 %4689
    %v4691 = vsel %vm4576, %v4550, 0.0
    %4692 = vadd.xlane.f32.xlu0 %v4691
    %v4693 = vpop.xlane.xlu0 %4692
    %v4694 = vsel %vm4576, %v4551, 0.0
    %4695 = vadd.xlane.f32.xlu0 %v4694
    %v4696 = vpop.xlane.xlu0 %4695
    %v4697 = vsel %vm4576, %v4552, 0.0
    %4698 = vadd.xlane.f32.xlu0 %v4697
    %v4699 = vpop.xlane.xlu0 %4698
    %v4700 = vsel %vm4576, %v4553, 0.0
    %4701 = vadd.xlane.f32.xlu0 %v4700
    %v4702 = vpop.xlane.xlu0 %4701
    %v4703 = vsel %vm4576, %v4554, 0.0
    %4704 = vadd.xlane.f32.xlu0 %v4703
    %v4705 = vpop.xlane.xlu0 %4704
    %v4706 = vsel %vm4576, %v4555, 0.0
    %4707 = vadd.xlane.f32.xlu0 %v4706
    %v4708 = vpop.xlane.xlu0 %4707
    %v4709 = vsel %vm4576, %v4556, 0.0
    %4710 = vadd.xlane.f32.xlu0 %v4709
    %v4711 = vpop.xlane.xlu0 %4710
    %v4712 = vsel %vm4576, %v4557, 0.0
    %4713 = vadd.xlane.f32.xlu0 %v4712
    %v4714 = vpop.xlane.xlu0 %4713
    %v4715 = vsel %vm4576, %v4558, 0.0
    %4716 = vadd.xlane.f32.xlu0 %v4715
    %v4717 = vpop.xlane.xlu0 %4716
    %v4718 = vsel %vm4576, %v4559, 0.0
    %4719 = vadd.xlane.f32.xlu0 %v4718
    %v4720 = vpop.xlane.xlu0 %4719
    %v4721 = vsel %vm4576, %v4560, 0.0
    %4722 = vadd.xlane.f32.xlu0 %v4721
    %v4723 = vpop.xlane.xlu0 %4722
    %v4724 = vsel %vm4576, %v4561, 0.0
    %4725 = vadd.xlane.f32.xlu0 %v4724
    %v4726 = vpop.xlane.xlu0 %4725
    %v4727 = vsel %vm4576, %v4562, 0.0
    %4728 = vadd.xlane.f32.xlu0 %v4727
    %v4729 = vpop.xlane.xlu0 %4728
    %v4730 = vsel %vm4576, %v4563, 0.0
    %4731 = vadd.xlane.f32.xlu0 %v4730
    %v4732 = vpop.xlane.xlu0 %4731
    %v4733 = vsel %vm4576, %v4564, 0.0
    %4734 = vadd.xlane.f32.xlu0 %v4733
    %v4735 = vpop.xlane.xlu0 %4734
    %v4736 = vsel %vm4576, %v4565, 0.0
    %4737 = vadd.xlane.f32.xlu0 %v4736
    %v4738 = vpop.xlane.xlu0 %4737
    %v4739 = vsel %vm4576, %v4566, 0.0
    %4740 = vadd.xlane.f32.xlu0 %v4739
    %v4741 = vpop.xlane.xlu0 %4740
    %v4742 = vsel %vm4576, %v4567, 0.0
    %4743 = vadd.xlane.f32.xlu0 %v4742
    %v4744 = vpop.xlane.xlu0 %4743
    %v4745 = vsel %vm4576, %v4568, 0.0
    %4746 = vadd.xlane.f32.xlu0 %v4745
    %v4747 = vpop.xlane.xlu0 %4746
    %v4748 = vsel %vm4576, %v4569, 0.0
    %4749 = vadd.xlane.f32.xlu0 %v4748
    %v4750 = vpop.xlane.xlu0 %4749
    %v4751 = vsel %vm4576, %v4570, 0.0
    %4752 = vadd.xlane.f32.xlu0 %v4751
    %v4753 = vpop.xlane.xlu0 %4752
    %v4754 = vsel %vm4576, %v4571, 0.0
    %4755 = vadd.xlane.f32.xlu0 %v4754
    %v4756 = vpop.xlane.xlu0 %4755
    %v4757 = vsel %vm4576, %v4572, 0.0
    %4758 = vadd.xlane.f32.xlu0 %v4757
    %v4759 = vpop.xlane.xlu0 %4758
    %v4760 = vsel %vm4576, %v4573, 0.0
    %4761 = vadd.xlane.f32.xlu0 %v4760
    %v4762 = vpop.xlane.xlu0 %4761
    %v4763 = vsel %vm4576, %v4574, 0.0
    %4764 = vadd.xlane.f32.xlu0 %v4763
    %v4765 = vpop.xlane.xlu0 %4764
    %v4766 = vsel %vm4576, %v4575, 0.0
    %4767 = vadd.xlane.f32.xlu0 %v4766
    %v4768 = vpop.xlane.xlu0 %4767
    %v4769 = vld [vmem:[#allocation2] sm:$0x1]
    %v4771 = vlaneseq
    %v4772 = vshrl.u32 %v4771, 7
    %v4773 = vsub.s32 0, %v4772
    %v4774 = vrot.slane %v4769, %v4773
    %4775 = vset.pattern.permute.xlu0 0
    %4776 = vperm.xlu0 %4775, %v4774
    %v4777 = vpop.permute.xlu0 %4776
    %v4779 = vadd.f32 %v4579, %v4777
    %v4780 = vadd.f32 %v4582, %v4777
    %v4781 = vadd.f32 %v4585, %v4777
    %v4782 = vadd.f32 %v4588, %v4777
    %v4783 = vadd.f32 %v4591, %v4777
    %v4784 = vadd.f32 %v4594, %v4777
    %v4785 = vadd.f32 %v4597, %v4777
    %v4786 = vadd.f32 %v4600, %v4777
    %v4787 = vadd.f32 %v4603, %v4777
    %v4788 = vadd.f32 %v4606, %v4777
    %v4789 = vadd.f32 %v4609, %v4777
    %v4790 = vadd.f32 %v4612, %v4777
    %v4791 = vadd.f32 %v4615, %v4777
    %v4792 = vadd.f32 %v4618, %v4777
    %v4793 = vadd.f32 %v4621, %v4777
    %v4794 = vadd.f32 %v4624, %v4777
    %v4795 = vadd.f32 %v4627, %v4777
    %v4796 = vadd.f32 %v4630, %v4777
    %v4797 = vadd.f32 %v4633, %v4777
    %v4798 = vadd.f32 %v4636, %v4777
    %v4799 = vadd.f32 %v4639, %v4777
    %v4800 = vadd.f32 %v4642, %v4777
    %v4801 = vadd.f32 %v4645, %v4777
    %v4802 = vadd.f32 %v4648, %v4777
    %v4803 = vadd.f32 %v4651, %v4777
    %v4804 = vadd.f32 %v4654, %v4777
    %v4805 = vadd.f32 %v4657, %v4777
    %v4806 = vadd.f32 %v4660, %v4777
    %v4807 = vadd.f32 %v4663, %v4777
    %v4808 = vadd.f32 %v4666, %v4777
    %v4809 = vadd.f32 %v4669, %v4777
    %v4810 = vadd.f32 %v4672, %v4777
    %v4811 = vadd.f32 %v4675, %v4777
    %v4812 = vadd.f32 %v4678, %v4777
    %v4813 = vadd.f32 %v4681, %v4777
    %v4814 = vadd.f32 %v4684, %v4777
    %v4815 = vadd.f32 %v4687, %v4777
    %v4816 = vadd.f32 %v4690, %v4777
    %v4817 = vadd.f32 %v4693, %v4777
    %v4818 = vadd.f32 %v4696, %v4777
    %v4819 = vadd.f32 %v4699, %v4777
    %v4820 = vadd.f32 %v4702, %v4777
    %v4821 = vadd.f32 %v4705, %v4777
    %v4822 = vadd.f32 %v4708, %v4777
    %v4823 = vadd.f32 %v4711, %v4777
    %v4824 = vadd.f32 %v4714, %v4777
    %v4825 = vadd.f32 %v4717, %v4777
    %v4826 = vadd.f32 %v4720, %v4777
    %v4827 = vadd.f32 %v4723, %v4777
    %v4828 = vadd.f32 %v4726, %v4777
    %v4829 = vadd.f32 %v4729, %v4777
    %v4830 = vadd.f32 %v4732, %v4777
    %v4831 = vadd.f32 %v4735, %v4777
    %v4832 = vadd.f32 %v4738, %v4777
    %v4833 = vadd.f32 %v4741, %v4777
    %v4834 = vadd.f32 %v4744, %v4777
    %v4835 = vadd.f32 %v4747, %v4777
    %v4836 = vadd.f32 %v4750, %v4777
    %v4837 = vadd.f32 %v4753, %v4777
    %v4838 = vadd.f32 %v4756, %v4777
    %v4839 = vadd.f32 %v4759, %v4777
    %v4840 = vadd.f32 %v4762, %v4777
    %v4841 = vadd.f32 %v4765, %v4777
    %v4842 = vadd.f32 %v4768, %v4777
    %v4907 = vlaneseq
    %v4908 = vand.u32 %v4907, 127
    %v4909 = vlaneseq
    %v4910 = vshrl.u32 %v4909, 7
    %v4911 = vsub.s32 %v4908, %v4910
    %v4912 = vrot.slane %v4779, %v4911
    %v4913 = vadd.s32 %v4908, 4294967288
    %v4914 = vlaneseq
    %v4915 = vshrl.u32 %v4914, 7
    %v4916 = vsub.s32 %v4913, %v4915
    %v4917 = vrot.slane %v4780, %v4916
    %vm4918 = vcmask 130112
    %v4919 = vsel %vm4918, %v4917, %v4912
    %v4920 = vadd.s32 %v4908, 4294967280
    %v4921 = vlaneseq
    %v4922 = vshrl.u32 %v4921, 7
    %v4923 = vsub.s32 %v4920, %v4922
    %v4924 = vrot.slane %v4781, %v4923
    %vm4925 = vcmask 195712
    %v4926 = vsel %vm4925, %v4924, %v4919
    %v4927 = vadd.s32 %v4908, 4294967272
    %v4928 = vlaneseq
    %v4929 = vshrl.u32 %v4928, 7
    %v4930 = vsub.s32 %v4927, %v4929
    %v4931 = vrot.slane %v4782, %v4930
    %vm4932 = vcmask 261312
    %v4933 = vsel %vm4932, %v4931, %v4926
    %v4934 = vlaneseq
    %v4935 = vshrl.u32 %v4934, 7
    %v4936 = vsub.s32 %v4908, %v4935
    %v4937 = vrot.slane %v4783, %v4936
    %v4938 = vlaneseq
    %v4939 = vshrl.u32 %v4938, 7
    %v4940 = vsub.s32 %v4913, %v4939
    %v4941 = vrot.slane %v4784, %v4940
    %v4942 = vsel %vm4918, %v4941, %v4937
    %v4943 = vlaneseq
    %v4944 = vshrl.u32 %v4943, 7
    %v4945 = vsub.s32 %v4920, %v4944
    %v4946 = vrot.slane %v4785, %v4945
    %v4947 = vsel %vm4925, %v4946, %v4942
    %v4948 = vlaneseq
    %v4949 = vshrl.u32 %v4948, 7
    %v4950 = vsub.s32 %v4927, %v4949
    %v4951 = vrot.slane %v4786, %v4950
    %v4952 = vsel %vm4932, %v4951, %v4947
    %v4953 = vlaneseq
    %v4954 = vshrl.u32 %v4953, 7
    %v4955 = vsub.s32 %v4908, %v4954
    %v4956 = vrot.slane %v4787, %v4955
    %v4957 = vlaneseq
    %v4958 = vshrl.u32 %v4957, 7
    %v4959 = vsub.s32 %v4913, %v4958
    %v4960 = vrot.slane %v4788, %v4959
    %v4961 = vsel %vm4918, %v4960, %v4956
    %v4962 = vlaneseq
    %v4963 = vshrl.u32 %v4962, 7
    %v4964 = vsub.s32 %v4920, %v4963
    %v4965 = vrot.slane %v4789, %v4964
    %v4966 = vsel %vm4925, %v4965, %v4961
    %v4967 = vlaneseq
    %v4968 = vshrl.u32 %v4967, 7
    %v4969 = vsub.s32 %v4927, %v4968
    %v4970 = vrot.slane %v4790, %v4969
    %v4971 = vsel %vm4932, %v4970, %v4966
    %v4972 = vlaneseq
    %v4973 = vshrl.u32 %v4972, 7
    %v4974 = vsub.s32 %v4908, %v4973
    %v4975 = vrot.slane %v4791, %v4974
    %v4976 = vlaneseq
    %v4977 = vshrl.u32 %v4976, 7
    %v4978 = vsub.s32 %v4913, %v4977
    %v4979 = vrot.slane %v4792, %v4978
    %v4980 = vsel %vm4918, %v4979, %v4975
    %v4981 = vlaneseq
    %v4982 = vshrl.u32 %v4981, 7
    %v4983 = vsub.s32 %v4920, %v4982
    %v4984 = vrot.slane %v4793, %v4983
    %v4985 = vsel %vm4925, %v4984, %v4980
    %v4986 = vlaneseq
    %v4987 = vshrl.u32 %v4986, 7
    %v4988 = vsub.s32 %v4927, %v4987
    %v4989 = vrot.slane %v4794, %v4988
    %v4990 = vsel %vm4932, %v4989, %v4985
    %v4991 = vlaneseq
    %v4992 = vshrl.u32 %v4991, 7
    %v4993 = vsub.s32 %v4908, %v4992
    %v4994 = vrot.slane %v4795, %v4993
    %v4995 = vlaneseq
    %v4996 = vshrl.u32 %v4995, 7
    %v4997 = vsub.s32 %v4913, %v4996
    %v4998 = vrot.slane %v4796, %v4997
    %v4999 = vsel %vm4918, %v4998, %v4994
    %v5000 = vlaneseq
    %v5001 = vshrl.u32 %v5000, 7
    %v5002 = vsub.s32 %v4920, %v5001
    %v5003 = vrot.slane %v4797, %v5002
    %v5004 = vsel %vm4925, %v5003, %v4999
    %v5005 = vlaneseq
    %v5006 = vshrl.u32 %v5005, 7
    %v5007 = vsub.s32 %v4927, %v5006
    %v5008 = vrot.slane %v4798, %v5007
    %v5009 = vsel %vm4932, %v5008, %v5004
    %v5010 = vlaneseq
    %v5011 = vshrl.u32 %v5010, 7
    %v5012 = vsub.s32 %v4908, %v5011
    %v5013 = vrot.slane %v4799, %v5012
    %v5014 = vlaneseq
    %v5015 = vshrl.u32 %v5014, 7
    %v5016 = vsub.s32 %v4913, %v5015
    %v5017 = vrot.slane %v4800, %v5016
    %v5018 = vsel %vm4918, %v5017, %v5013
    %v5019 = vlaneseq
    %v5020 = vshrl.u32 %v5019, 7
    %v5021 = vsub.s32 %v4920, %v5020
    %v5022 = vrot.slane %v4801, %v5021
    %v5023 = vsel %vm4925, %v5022, %v5018
    %v5024 = vlaneseq
    %v5025 = vshrl.u32 %v5024, 7
    %v5026 = vsub.s32 %v4927, %v5025
    %v5027 = vrot.slane %v4802, %v5026
    %v5028 = vsel %vm4932, %v5027, %v5023
    %v5029 = vlaneseq
    %v5030 = vshrl.u32 %v5029, 7
    %v5031 = vsub.s32 %v4908, %v5030
    %v5032 = vrot.slane %v4803, %v5031
    %v5033 = vlaneseq
    %v5034 = vshrl.u32 %v5033, 7
    %v5035 = vsub.s32 %v4913, %v5034
    %v5036 = vrot.slane %v4804, %v5035
    %v5037 = vsel %vm4918, %v5036, %v5032
    %v5038 = vlaneseq
    %v5039 = vshrl.u32 %v5038, 7
    %v5040 = vsub.s32 %v4920, %v5039
    %v5041 = vrot.slane %v4805, %v5040
    %v5042 = vsel %vm4925, %v5041, %v5037
    %v5043 = vlaneseq
    %v5044 = vshrl.u32 %v5043, 7
    %v5045 = vsub.s32 %v4927, %v5044
    %v5046 = vrot.slane %v4806, %v5045
    %v5047 = vsel %vm4932, %v5046, %v5042
    %v5048 = vlaneseq
    %v5049 = vshrl.u32 %v5048, 7
    %v5050 = vsub.s32 %v4908, %v5049
    %v5051 = vrot.slane %v4807, %v5050
    %v5052 = vlaneseq
    %v5053 = vshrl.u32 %v5052, 7
    %v5054 = vsub.s32 %v4913, %v5053
    %v5055 = vrot.slane %v4808, %v5054
    %v5056 = vsel %vm4918, %v5055, %v5051
    %v5057 = vlaneseq
    %v5058 = vshrl.u32 %v5057, 7
    %v5059 = vsub.s32 %v4920, %v5058
    %v5060 = vrot.slane %v4809, %v5059
    %v5061 = vsel %vm4925, %v5060, %v5056
    %v5062 = vlaneseq
    %v5063 = vshrl.u32 %v5062, 7
    %v5064 = vsub.s32 %v4927, %v5063
    %v5065 = vrot.slane %v4810, %v5064
    %v5066 = vsel %vm4932, %v5065, %v5061
    %v5067 = vlaneseq
    %v5068 = vshrl.u32 %v5067, 7
    %v5069 = vsub.s32 %v4908, %v5068
    %v5070 = vrot.slane %v4811, %v5069
    %v5071 = vlaneseq
    %v5072 = vshrl.u32 %v5071, 7
    %v5073 = vsub.s32 %v4913, %v5072
    %v5074 = vrot.slane %v4812, %v5073
    %v5075 = vsel %vm4918, %v5074, %v5070
    %v5076 = vlaneseq
    %v5077 = vshrl.u32 %v5076, 7
    %v5078 = vsub.s32 %v4920, %v5077
    %v5079 = vrot.slane %v4813, %v5078
    %v5080 = vsel %vm4925, %v5079, %v5075
    %v5081 = vlaneseq
    %v5082 = vshrl.u32 %v5081, 7
    %v5083 = vsub.s32 %v4927, %v5082
    %v5084 = vrot.slane %v4814, %v5083
    %v5085 = vsel %vm4932, %v5084, %v5080
    %v5086 = vlaneseq
    %v5087 = vshrl.u32 %v5086, 7
    %v5088 = vsub.s32 %v4908, %v5087
    %v5089 = vrot.slane %v4815, %v5088
    %v5090 = vlaneseq
    %v5091 = vshrl.u32 %v5090, 7
    %v5092 = vsub.s32 %v4913, %v5091
    %v5093 = vrot.slane %v4816, %v5092
    %v5094 = vsel %vm4918, %v5093, %v5089
    %v5095 = vlaneseq
    %v5096 = vshrl.u32 %v5095, 7
    %v5097 = vsub.s32 %v4920, %v5096
    %v5098 = vrot.slane %v4817, %v5097
    %v5099 = vsel %vm4925, %v5098, %v5094
    %v5100 = vlaneseq
    %v5101 = vshrl.u32 %v5100, 7
    %v5102 = vsub.s32 %v4927, %v5101
    %v5103 = vrot.slane %v4818, %v5102
    %v5104 = vsel %vm4932, %v5103, %v5099
    %v5105 = vlaneseq
    %v5106 = vshrl.u32 %v5105, 7
    %v5107 = vsub.s32 %v4908, %v5106
    %v5108 = vrot.slane %v4819, %v5107
    %v5109 = vlaneseq
    %v5110 = vshrl.u32 %v5109, 7
    %v5111 = vsub.s32 %v4913, %v5110
    %v5112 = vrot.slane %v4820, %v5111
    %v5113 = vsel %vm4918, %v5112, %v5108
    %v5114 = vlaneseq
    %v5115 = vshrl.u32 %v5114, 7
    %v5116 = vsub.s32 %v4920, %v5115
    %v5117 = vrot.slane %v4821, %v5116
    %v5118 = vsel %vm4925, %v5117, %v5113
    %v5119 = vlaneseq
    %v5120 = vshrl.u32 %v5119, 7
    %v5121 = vsub.s32 %v4927, %v5120
    %v5122 = vrot.slane %v4822, %v5121
    %v5123 = vsel %vm4932, %v5122, %v5118
    %v5124 = vlaneseq
    %v5125 = vshrl.u32 %v5124, 7
    %v5126 = vsub.s32 %v4908, %v5125
    %v5127 = vrot.slane %v4823, %v5126
    %v5128 = vlaneseq
    %v5129 = vshrl.u32 %v5128, 7
    %v5130 = vsub.s32 %v4913, %v5129
    %v5131 = vrot.slane %v4824, %v5130
    %v5132 = vsel %vm4918, %v5131, %v5127
    %v5133 = vlaneseq
    %v5134 = vshrl.u32 %v5133, 7
    %v5135 = vsub.s32 %v4920, %v5134
    %v5136 = vrot.slane %v4825, %v5135
    %v5137 = vsel %vm4925, %v5136, %v5132
    %v5138 = vlaneseq
    %v5139 = vshrl.u32 %v5138, 7
    %v5140 = vsub.s32 %v4927, %v5139
    %v5141 = vrot.slane %v4826, %v5140
    %v5142 = vsel %vm4932, %v5141, %v5137
    %v5143 = vlaneseq
    %v5144 = vshrl.u32 %v5143, 7
    %v5145 = vsub.s32 %v4908, %v5144
    %v5146 = vrot.slane %v4827, %v5145
    %v5147 = vlaneseq
    %v5148 = vshrl.u32 %v5147, 7
    %v5149 = vsub.s32 %v4913, %v5148
    %v5150 = vrot.slane %v4828, %v5149
    %v5151 = vsel %vm4918, %v5150, %v5146
    %v5152 = vlaneseq
    %v5153 = vshrl.u32 %v5152, 7
    %v5154 = vsub.s32 %v4920, %v5153
    %v5155 = vrot.slane %v4829, %v5154
    %v5156 = vsel %vm4925, %v5155, %v5151
    %v5157 = vlaneseq
    %v5158 = vshrl.u32 %v5157, 7
    %v5159 = vsub.s32 %v4927, %v5158
    %v5160 = vrot.slane %v4830, %v5159
    %v5161 = vsel %vm4932, %v5160, %v5156
    %v5162 = vlaneseq
    %v5163 = vshrl.u32 %v5162, 7
    %v5164 = vsub.s32 %v4908, %v5163
    %v5165 = vrot.slane %v4831, %v5164
    %v5166 = vlaneseq
    %v5167 = vshrl.u32 %v5166, 7
    %v5168 = vsub.s32 %v4913, %v5167
    %v5169 = vrot.slane %v4832, %v5168
    %v5170 = vsel %vm4918, %v5169, %v5165
    %v5171 = vlaneseq
    %v5172 = vshrl.u32 %v5171, 7
    %v5173 = vsub.s32 %v4920, %v5172
    %v5174 = vrot.slane %v4833, %v5173
    %v5175 = vsel %vm4925, %v5174, %v5170
    %v5176 = vlaneseq
    %v5177 = vshrl.u32 %v5176, 7
    %v5178 = vsub.s32 %v4927, %v5177
    %v5179 = vrot.slane %v4834, %v5178
    %v5180 = vsel %vm4932, %v5179, %v5175
    %v5181 = vlaneseq
    %v5182 = vshrl.u32 %v5181, 7
    %v5183 = vsub.s32 %v4908, %v5182
    %v5184 = vrot.slane %v4835, %v5183
    %v5185 = vlaneseq
    %v5186 = vshrl.u32 %v5185, 7
    %v5187 = vsub.s32 %v4913, %v5186
    %v5188 = vrot.slane %v4836, %v5187
    %v5189 = vsel %vm4918, %v5188, %v5184
    %v5190 = vlaneseq
    %v5191 = vshrl.u32 %v5190, 7
    %v5192 = vsub.s32 %v4920, %v5191
    %v5193 = vrot.slane %v4837, %v5192
    %v5194 = vsel %vm4925, %v5193, %v5189
    %v5195 = vlaneseq
    %v5196 = vshrl.u32 %v5195, 7
    %v5197 = vsub.s32 %v4927, %v5196
    %v5198 = vrot.slane %v4838, %v5197
    %v5199 = vsel %vm4932, %v5198, %v5194
    %v5200 = vlaneseq
    %v5201 = vshrl.u32 %v5200, 7
    %v5202 = vsub.s32 %v4908, %v5201
    %v5203 = vrot.slane %v4839, %v5202
    %v5204 = vlaneseq
    %v5205 = vshrl.u32 %v5204, 7
    %v5206 = vsub.s32 %v4913, %v5205
    %v5207 = vrot.slane %v4840, %v5206
    %v5208 = vsel %vm4918, %v5207, %v5203
    %v5209 = vlaneseq
    %v5210 = vshrl.u32 %v5209, 7
    %v5211 = vsub.s32 %v4920, %v5210
    %v5212 = vrot.slane %v4841, %v5211
    %v5213 = vsel %vm4925, %v5212, %v5208
    %v5214 = vlaneseq
    %v5215 = vshrl.u32 %v5214, 7
    %v5216 = vsub.s32 %v4927, %v5215
    %v5217 = vrot.slane %v4842, %v5216
    %v5218 = vsel %vm4932, %v5217, %v5213
    %vm5219 = vcmask 1041409
    %v5220 = vsel %vm5219, %v4952, %v4933
    %vm5221 = vcmask 1042434
    %v5222 = vsel %vm5221, %v4971, %v5220
    %vm5223 = vcmask 1043459
    %v5224 = vsel %vm5223, %v4990, %v5222
    %vm5225 = vcmask 1044484
    %v5226 = vsel %vm5225, %v5009, %v5224
    %vm5227 = vcmask 1045509
    %v5228 = vsel %vm5227, %v5028, %v5226
    %vm5229 = vcmask 1046534
    %v5230 = vsel %vm5229, %v5047, %v5228
    %vm5231 = vcmask 1047559
    %v5232 = vsel %vm5231, %v5066, %v5230
    %v5233 = vsel %vm5219, %v5104, %v5085
    %v5234 = vsel %vm5221, %v5123, %v5233
    %v5235 = vsel %vm5223, %v5142, %v5234
    %v5236 = vsel %vm5225, %v5161, %v5235
    %v5237 = vsel %vm5227, %v5180, %v5236
    %v5238 = vsel %vm5229, %v5199, %v5237
    %v5239 = vsel %vm5231, %v5218, %v5238
    %v5242 = vsel %vm3208, %v5232, -inf
    %5243 = vmax.xlane.f32.xlu0 %v5242
    %v5244 = vpop.xlane.xlu0 %5243
    %v5245 = vsel %vm3208, %v5239, -inf
    %5246 = vmax.xlane.f32.xlu0 %v5245
    %v5247 = vpop.xlane.xlu0 %5246
    %v5250 = vlaneseq
    %v5251 = vshrl.u32 %v5250, 7
    %v5252 = vsub.s32 0, %v5251
    %v5253 = vrot.slane %v5244, %v5252
    %v5254 = vlaneseq
    %v5255 = vshrl.u32 %v5254, 7
    %v5256 = vsub.s32 1, %v5255
    %v5257 = vrot.slane %v5244, %v5256
    %v5258 = vlaneseq
    %v5259 = vshrl.u32 %v5258, 7
    %v5260 = vsub.s32 2, %v5259
    %v5261 = vrot.slane %v5244, %v5260
    %v5262 = vlaneseq
    %v5263 = vshrl.u32 %v5262, 7
    %v5264 = vsub.s32 3, %v5263
    %v5265 = vrot.slane %v5244, %v5264
    %v5266 = vlaneseq
    %v5267 = vshrl.u32 %v5266, 7
    %v5268 = vsub.s32 4, %v5267
    %v5269 = vrot.slane %v5244, %v5268
    %v5270 = vlaneseq
    %v5271 = vshrl.u32 %v5270, 7
    %v5272 = vsub.s32 5, %v5271
    %v5273 = vrot.slane %v5244, %v5272
    %v5274 = vlaneseq
    %v5275 = vshrl.u32 %v5274, 7
    %v5276 = vsub.s32 6, %v5275
    %v5277 = vrot.slane %v5244, %v5276
    %v5278 = vlaneseq
    %v5279 = vshrl.u32 %v5278, 7
    %v5280 = vsub.s32 7, %v5279
    %v5281 = vrot.slane %v5244, %v5280
    %v5282 = vlaneseq
    %v5283 = vshrl.u32 %v5282, 7
    %v5284 = vsub.s32 0, %v5283
    %v5285 = vrot.slane %v5247, %v5284
    %v5286 = vlaneseq
    %v5287 = vshrl.u32 %v5286, 7
    %v5288 = vsub.s32 1, %v5287
    %v5289 = vrot.slane %v5247, %v5288
    %v5290 = vlaneseq
    %v5291 = vshrl.u32 %v5290, 7
    %v5292 = vsub.s32 2, %v5291
    %v5293 = vrot.slane %v5247, %v5292
    %v5294 = vlaneseq
    %v5295 = vshrl.u32 %v5294, 7
    %v5296 = vsub.s32 3, %v5295
    %v5297 = vrot.slane %v5247, %v5296
    %v5298 = vlaneseq
    %v5299 = vshrl.u32 %v5298, 7
    %v5300 = vsub.s32 4, %v5299
    %v5301 = vrot.slane %v5247, %v5300
    %v5302 = vlaneseq
    %v5303 = vshrl.u32 %v5302, 7
    %v5304 = vsub.s32 5, %v5303
    %v5305 = vrot.slane %v5247, %v5304
    %v5306 = vlaneseq
    %v5307 = vshrl.u32 %v5306, 7
    %v5308 = vsub.s32 6, %v5307
    %v5309 = vrot.slane %v5247, %v5308
    %v5310 = vlaneseq
    %v5311 = vshrl.u32 %v5310, 7
    %v5312 = vsub.s32 7, %v5311
    %v5313 = vrot.slane %v5247, %v5312
    %v5330 = vsub.f32 %v4779, %v5253
    %v5331 = vsub.f32 %v4780, %v5253
    %v5332 = vsub.f32 %v4781, %v5253
    %v5333 = vsub.f32 %v4782, %v5253
    %v5334 = vsub.f32 %v4783, %v5257
    %v5335 = vsub.f32 %v4784, %v5257
    %v5336 = vsub.f32 %v4785, %v5257
    %v5337 = vsub.f32 %v4786, %v5257
    %v5338 = vsub.f32 %v4787, %v5261
    %v5339 = vsub.f32 %v4788, %v5261
    %v5340 = vsub.f32 %v4789, %v5261
    %v5341 = vsub.f32 %v4790, %v5261
    %v5342 = vsub.f32 %v4791, %v5265
    %v5343 = vsub.f32 %v4792, %v5265
    %v5344 = vsub.f32 %v4793, %v5265
    %v5345 = vsub.f32 %v4794, %v5265
    %v5346 = vsub.f32 %v4795, %v5269
    %v5347 = vsub.f32 %v4796, %v5269
    %v5348 = vsub.f32 %v4797, %v5269
    %v5349 = vsub.f32 %v4798, %v5269
    %v5350 = vsub.f32 %v4799, %v5273
    %v5351 = vsub.f32 %v4800, %v5273
    %v5352 = vsub.f32 %v4801, %v5273
    %v5353 = vsub.f32 %v4802, %v5273
    %v5354 = vsub.f32 %v4803, %v5277
    %v5355 = vsub.f32 %v4804, %v5277
    %v5356 = vsub.f32 %v4805, %v5277
    %v5357 = vsub.f32 %v4806, %v5277
    %v5358 = vsub.f32 %v4807, %v5281
    %v5359 = vsub.f32 %v4808, %v5281
    %v5360 = vsub.f32 %v4809, %v5281
    %v5361 = vsub.f32 %v4810, %v5281
    %v5362 = vsub.f32 %v4811, %v5285
    %v5363 = vsub.f32 %v4812, %v5285
    %v5364 = vsub.f32 %v4813, %v5285
    %v5365 = vsub.f32 %v4814, %v5285
    %v5366 = vsub.f32 %v4815, %v5289
    %v5367 = vsub.f32 %v4816, %v5289
    %v5368 = vsub.f32 %v4817, %v5289
    %v5369 = vsub.f32 %v4818, %v5289
    %v5370 = vsub.f32 %v4819, %v5293
    %v5371 = vsub.f32 %v4820, %v5293
    %v5372 = vsub.f32 %v4821, %v5293
    %v5373 = vsub.f32 %v4822, %v5293
    %v5374 = vsub.f32 %v4823, %v5297
    %v5375 = vsub.f32 %v4824, %v5297
    %v5376 = vsub.f32 %v4825, %v5297
    %v5377 = vsub.f32 %v4826, %v5297
    %v5378 = vsub.f32 %v4827, %v5301
    %v5379 = vsub.f32 %v4828, %v5301
    %v5380 = vsub.f32 %v4829, %v5301
    %v5381 = vsub.f32 %v4830, %v5301
    %v5382 = vsub.f32 %v4831, %v5305
    %v5383 = vsub.f32 %v4832, %v5305
    %v5384 = vsub.f32 %v4833, %v5305
    %v5385 = vsub.f32 %v4834, %v5305
    %v5386 = vsub.f32 %v4835, %v5309
    %v5387 = vsub.f32 %v4836, %v5309
    %v5388 = vsub.f32 %v4837, %v5309
    %v5389 = vsub.f32 %v4838, %v5309
    %v5390 = vsub.f32 %v4839, %v5313
    %v5391 = vsub.f32 %v4840, %v5313
    %v5392 = vsub.f32 %v4841, %v5313
    %v5393 = vsub.f32 %v4842, %v5313
    %v5394 = vmul.f32 %v5330, 1.442695
    %v5395 = vpow.pop %v5394
    %v5396 = vmul.f32 %v5331, 1.442695
    %v5397 = vpow.pop %v5396
    %v5398 = vmul.f32 %v5332, 1.442695
    %v5399 = vpow.pop %v5398
    %v5400 = vmul.f32 %v5333, 1.442695
    %v5401 = vpow.pop %v5400
    %v5402 = vmul.f32 %v5334, 1.442695
    %v5403 = vpow.pop %v5402
    %v5404 = vmul.f32 %v5335, 1.442695
    %v5405 = vpow.pop %v5404
    %v5406 = vmul.f32 %v5336, 1.442695
    %v5407 = vpow.pop %v5406
    %v5408 = vmul.f32 %v5337, 1.442695
    %v5409 = vpow.pop %v5408
    %v5410 = vmul.f32 %v5338, 1.442695
    %v5411 = vpow.pop %v5410
    %v5412 = vmul.f32 %v5339, 1.442695
    %v5413 = vpow.pop %v5412
    %v5414 = vmul.f32 %v5340, 1.442695
    %v5415 = vpow.pop %v5414
    %v5416 = vmul.f32 %v5341, 1.442695
    %v5417 = vpow.pop %v5416
    %v5418 = vmul.f32 %v5342, 1.442695
    %v5419 = vpow.pop %v5418
    %v5420 = vmul.f32 %v5343, 1.442695
    %v5421 = vpow.pop %v5420
    %v5422 = vmul.f32 %v5344, 1.442695
    %v5423 = vpow.pop %v5422
    %v5424 = vmul.f32 %v5345, 1.442695
    %v5425 = vpow.pop %v5424
    %v5426 = vmul.f32 %v5346, 1.442695
    %v5427 = vpow.pop %v5426
    %v5428 = vmul.f32 %v5347, 1.442695
    %v5429 = vpow.pop %v5428
    %v5430 = vmul.f32 %v5348, 1.442695
    %v5431 = vpow.pop %v5430
    %v5432 = vmul.f32 %v5349, 1.442695
    %v5433 = vpow.pop %v5432
    %v5434 = vmul.f32 %v5350, 1.442695
    %v5435 = vpow.pop %v5434
    %v5436 = vmul.f32 %v5351, 1.442695
    %v5437 = vpow.pop %v5436
    %v5438 = vmul.f32 %v5352, 1.442695
    %v5439 = vpow.pop %v5438
    %v5440 = vmul.f32 %v5353, 1.442695
    %v5441 = vpow.pop %v5440
    %v5442 = vmul.f32 %v5354, 1.442695
    %v5443 = vpow.pop %v5442
    %v5444 = vmul.f32 %v5355, 1.442695
    %v5445 = vpow.pop %v5444
    %v5446 = vmul.f32 %v5356, 1.442695
    %v5447 = vpow.pop %v5446
    %v5448 = vmul.f32 %v5357, 1.442695
    %v5449 = vpow.pop %v5448
    %v5450 = vmul.f32 %v5358, 1.442695
    %v5451 = vpow.pop %v5450
    %v5452 = vmul.f32 %v5359, 1.442695
    %v5453 = vpow.pop %v5452
    %v5454 = vmul.f32 %v5360, 1.442695
    %v5455 = vpow.pop %v5454
    %v5456 = vmul.f32 %v5361, 1.442695
    %v5457 = vpow.pop %v5456
    %v5458 = vmul.f32 %v5362, 1.442695
    %v5459 = vpow.pop %v5458
    %v5460 = vmul.f32 %v5363, 1.442695
    %v5461 = vpow.pop %v5460
    %v5462 = vmul.f32 %v5364, 1.442695
    %v5463 = vpow.pop %v5462
    %v5464 = vmul.f32 %v5365, 1.442695
    %v5465 = vpow.pop %v5464
    %v5466 = vmul.f32 %v5366, 1.442695
    %v5467 = vpow.pop %v5466
    %v5468 = vmul.f32 %v5367, 1.442695
    %v5469 = vpow.pop %v5468
    %v5470 = vmul.f32 %v5368, 1.442695
    %v5471 = vpow.pop %v5470
    %v5472 = vmul.f32 %v5369, 1.442695
    %v5473 = vpow.pop %v5472
    %v5474 = vmul.f32 %v5370, 1.442695
    %v5475 = vpow.pop %v5474
    %v5476 = vmul.f32 %v5371, 1.442695
    %v5477 = vpow.pop %v5476
    %v5478 = vmul.f32 %v5372, 1.442695
    %v5479 = vpow.pop %v5478
    %v5480 = vmul.f32 %v5373, 1.442695
    %v5481 = vpow.pop %v5480
    %v5482 = vmul.f32 %v5374, 1.442695
    %v5483 = vpow.pop %v5482
    %v5484 = vmul.f32 %v5375, 1.442695
    %v5485 = vpow.pop %v5484
    %v5486 = vmul.f32 %v5376, 1.442695
    %v5487 = vpow.pop %v5486
    %v5488 = vmul.f32 %v5377, 1.442695
    %v5489 = vpow.pop %v5488
    %v5490 = vmul.f32 %v5378, 1.442695
    %v5491 = vpow.pop %v5490
    %v5492 = vmul.f32 %v5379, 1.442695
    %v5493 = vpow.pop %v5492
    %v5494 = vmul.f32 %v5380, 1.442695
    %v5495 = vpow.pop %v5494
    %v5496 = vmul.f32 %v5381, 1.442695
    %v5497 = vpow.pop %v5496
    %v5498 = vmul.f32 %v5382, 1.442695
    %v5499 = vpow.pop %v5498
    %v5500 = vmul.f32 %v5383, 1.442695
    %v5501 = vpow.pop %v5500
    %v5502 = vmul.f32 %v5384, 1.442695
    %v5503 = vpow.pop %v5502
    %v5504 = vmul.f32 %v5385, 1.442695
    %v5505 = vpow.pop %v5504
    %v5506 = vmul.f32 %v5386, 1.442695
    %v5507 = vpow.pop %v5506
    %v5508 = vmul.f32 %v5387, 1.442695
    %v5509 = vpow.pop %v5508
    %v5510 = vmul.f32 %v5388, 1.442695
    %v5511 = vpow.pop %v5510
    %v5512 = vmul.f32 %v5389, 1.442695
    %v5513 = vpow.pop %v5512
    %v5514 = vmul.f32 %v5390, 1.442695
    %v5515 = vpow.pop %v5514
    %v5516 = vmul.f32 %v5391, 1.442695
    %v5517 = vpow.pop %v5516
    %v5518 = vmul.f32 %v5392, 1.442695
    %v5519 = vpow.pop %v5518
    %v5520 = vmul.f32 %v5393, 1.442695
    %v5521 = vpow.pop %v5520
    %5586 = vset.pattern.permute.xlu0 0
    %5587 = vperm.xlu0 %5586, %v5395
    %v5588 = vpop.permute.xlu0 %5587
    %5589 = vset.pattern.permute.xlu0 0
    %5590 = vperm.xlu0 %5589, %v5397
    %v5591 = vpop.permute.xlu0 %5590
    %5592 = vset.pattern.permute.xlu0 0
    %5593 = vperm.xlu0 %5592, %v5399
    %v5594 = vpop.permute.xlu0 %5593
    %5595 = vset.pattern.permute.xlu0 0
    %5596 = vperm.xlu0 %5595, %v5401
    %v5597 = vpop.permute.xlu0 %5596
    %5598 = vset.pattern.permute.xlu0 0
    %5599 = vperm.xlu0 %5598, %v5403
    %v5600 = vpop.permute.xlu0 %5599
    %5601 = vset.pattern.permute.xlu0 0
    %5602 = vperm.xlu0 %5601, %v5405
    %v5603 = vpop.permute.xlu0 %5602
    %5604 = vset.pattern.permute.xlu0 0
    %5605 = vperm.xlu0 %5604, %v5407
    %v5606 = vpop.permute.xlu0 %5605
    %5607 = vset.pattern.permute.xlu0 0
    %5608 = vperm.xlu0 %5607, %v5409
    %v5609 = vpop.permute.xlu0 %5608
    %5610 = vset.pattern.permute.xlu0 0
    %5611 = vperm.xlu0 %5610, %v5411
    %v5612 = vpop.permute.xlu0 %5611
    %5613 = vset.pattern.permute.xlu0 0
    %5614 = vperm.xlu0 %5613, %v5413
    %v5615 = vpop.permute.xlu0 %5614
    %5616 = vset.pattern.permute.xlu0 0
    %5617 = vperm.xlu0 %5616, %v5415
    %v5618 = vpop.permute.xlu0 %5617
    %5619 = vset.pattern.permute.xlu0 0
    %5620 = vperm.xlu0 %5619, %v5417
    %v5621 = vpop.permute.xlu0 %5620
    %5622 = vset.pattern.permute.xlu0 0
    %5623 = vperm.xlu0 %5622, %v5419
    %v5624 = vpop.permute.xlu0 %5623
    %5625 = vset.pattern.permute.xlu0 0
    %5626 = vperm.xlu0 %5625, %v5421
    %v5627 = vpop.permute.xlu0 %5626
    %5628 = vset.pattern.permute.xlu0 0
    %5629 = vperm.xlu0 %5628, %v5423
    %v5630 = vpop.permute.xlu0 %5629
    %5631 = vset.pattern.permute.xlu0 0
    %5632 = vperm.xlu0 %5631, %v5425
    %v5633 = vpop.permute.xlu0 %5632
    %5634 = vset.pattern.permute.xlu0 0
    %5635 = vperm.xlu0 %5634, %v5427
    %v5636 = vpop.permute.xlu0 %5635
    %5637 = vset.pattern.permute.xlu0 0
    %5638 = vperm.xlu0 %5637, %v5429
    %v5639 = vpop.permute.xlu0 %5638
    %5640 = vset.pattern.permute.xlu0 0
    %5641 = vperm.xlu0 %5640, %v5431
    %v5642 = vpop.permute.xlu0 %5641
    %5643 = vset.pattern.permute.xlu0 0
    %5644 = vperm.xlu0 %5643, %v5433
    %v5645 = vpop.permute.xlu0 %5644
    %5646 = vset.pattern.permute.xlu0 0
    %5647 = vperm.xlu0 %5646, %v5435
    %v5648 = vpop.permute.xlu0 %5647
    %5649 = vset.pattern.permute.xlu0 0
    %5650 = vperm.xlu0 %5649, %v5437
    %v5651 = vpop.permute.xlu0 %5650
    %5652 = vset.pattern.permute.xlu0 0
    %5653 = vperm.xlu0 %5652, %v5439
    %v5654 = vpop.permute.xlu0 %5653
    %5655 = vset.pattern.permute.xlu0 0
    %5656 = vperm.xlu0 %5655, %v5441
    %v5657 = vpop.permute.xlu0 %5656
    %5658 = vset.pattern.permute.xlu0 0
    %5659 = vperm.xlu0 %5658, %v5443
    %v5660 = vpop.permute.xlu0 %5659
    %5661 = vset.pattern.permute.xlu0 0
    %5662 = vperm.xlu0 %5661, %v5445
    %v5663 = vpop.permute.xlu0 %5662
    %5664 = vset.pattern.permute.xlu0 0
    %5665 = vperm.xlu0 %5664, %v5447
    %v5666 = vpop.permute.xlu0 %5665
    %5667 = vset.pattern.permute.xlu0 0
    %5668 = vperm.xlu0 %5667, %v5449
    %v5669 = vpop.permute.xlu0 %5668
    %5670 = vset.pattern.permute.xlu0 0
    %5671 = vperm.xlu0 %5670, %v5451
    %v5672 = vpop.permute.xlu0 %5671
    %5673 = vset.pattern.permute.xlu0 0
    %5674 = vperm.xlu0 %5673, %v5453
    %v5675 = vpop.permute.xlu0 %5674
    %5676 = vset.pattern.permute.xlu0 0
    %5677 = vperm.xlu0 %5676, %v5455
    %v5678 = vpop.permute.xlu0 %5677
    %5679 = vset.pattern.permute.xlu0 0
    %5680 = vperm.xlu0 %5679, %v5457
    %v5681 = vpop.permute.xlu0 %5680
    %5682 = vset.pattern.permute.xlu0 0
    %5683 = vperm.xlu0 %5682, %v5459
    %v5684 = vpop.permute.xlu0 %5683
    %5685 = vset.pattern.permute.xlu0 0
    %5686 = vperm.xlu0 %5685, %v5461
    %v5687 = vpop.permute.xlu0 %5686
    %5688 = vset.pattern.permute.xlu0 0
    %5689 = vperm.xlu0 %5688, %v5463
    %v5690 = vpop.permute.xlu0 %5689
    %5691 = vset.pattern.permute.xlu0 0
    %5692 = vperm.xlu0 %5691, %v5465
    %v5693 = vpop.permute.xlu0 %5692
    %5694 = vset.pattern.permute.xlu0 0
    %5695 = vperm.xlu0 %5694, %v5467
    %v5696 = vpop.permute.xlu0 %5695
    %5697 = vset.pattern.permute.xlu0 0
    %5698 = vperm.xlu0 %5697, %v5469
    %v5699 = vpop.permute.xlu0 %5698
    %5700 = vset.pattern.permute.xlu0 0
    %5701 = vperm.xlu0 %5700, %v5471
    %v5702 = vpop.permute.xlu0 %5701
    %5703 = vset.pattern.permute.xlu0 0
    %5704 = vperm.xlu0 %5703, %v5473
    %v5705 = vpop.permute.xlu0 %5704
    %5706 = vset.pattern.permute.xlu0 0
    %5707 = vperm.xlu0 %5706, %v5475
    %v5708 = vpop.permute.xlu0 %5707
    %5709 = vset.pattern.permute.xlu0 0
    %5710 = vperm.xlu0 %5709, %v5477
    %v5711 = vpop.permute.xlu0 %5710
    %5712 = vset.pattern.permute.xlu0 0
    %5713 = vperm.xlu0 %5712, %v5479
    %v5714 = vpop.permute.xlu0 %5713
    %5715 = vset.pattern.permute.xlu0 0
    %5716 = vperm.xlu0 %5715, %v5481
    %v5717 = vpop.permute.xlu0 %5716
    %5718 = vset.pattern.permute.xlu0 0
    %5719 = vperm.xlu0 %5718, %v5483
    %v5720 = vpop.permute.xlu0 %5719
    %5721 = vset.pattern.permute.xlu0 0
    %5722 = vperm.xlu0 %5721, %v5485
    %v5723 = vpop.permute.xlu0 %5722
    %5724 = vset.pattern.permute.xlu0 0
    %5725 = vperm.xlu0 %5724, %v5487
    %v5726 = vpop.permute.xlu0 %5725
    %5727 = vset.pattern.permute.xlu0 0
    %5728 = vperm.xlu0 %5727, %v5489
    %v5729 = vpop.permute.xlu0 %5728
    %5730 = vset.pattern.permute.xlu0 0
    %5731 = vperm.xlu0 %5730, %v5491
    %v5732 = vpop.permute.xlu0 %5731
    %5733 = vset.pattern.permute.xlu0 0
    %5734 = vperm.xlu0 %5733, %v5493
    %v5735 = vpop.permute.xlu0 %5734
    %5736 = vset.pattern.permute.xlu0 0
    %5737 = vperm.xlu0 %5736, %v5495
    %v5738 = vpop.permute.xlu0 %5737
    %5739 = vset.pattern.permute.xlu0 0
    %5740 = vperm.xlu0 %5739, %v5497
    %v5741 = vpop.permute.xlu0 %5740
    %5742 = vset.pattern.permute.xlu0 0
    %5743 = vperm.xlu0 %5742, %v5499
    %v5744 = vpop.permute.xlu0 %5743
    %5745 = vset.pattern.permute.xlu0 0
    %5746 = vperm.xlu0 %5745, %v5501
    %v5747 = vpop.permute.xlu0 %5746
    %5748 = vset.pattern.permute.xlu0 0
    %5749 = vperm.xlu0 %5748, %v5503
    %v5750 = vpop.permute.xlu0 %5749
    %5751 = vset.pattern.permute.xlu0 0
    %5752 = vperm.xlu0 %5751, %v5505
    %v5753 = vpop.permute.xlu0 %5752
    %5754 = vset.pattern.permute.xlu0 0
    %5755 = vperm.xlu0 %5754, %v5507
    %v5756 = vpop.permute.xlu0 %5755
    %5757 = vset.pattern.permute.xlu0 0
    %5758 = vperm.xlu0 %5757, %v5509
    %v5759 = vpop.permute.xlu0 %5758
    %5760 = vset.pattern.permute.xlu0 0
    %5761 = vperm.xlu0 %5760, %v5511
    %v5762 = vpop.permute.xlu0 %5761
    %5763 = vset.pattern.permute.xlu0 0
    %5764 = vperm.xlu0 %5763, %v5513
    %v5765 = vpop.permute.xlu0 %5764
    %5766 = vset.pattern.permute.xlu0 0
    %5767 = vperm.xlu0 %5766, %v5515
    %v5768 = vpop.permute.xlu0 %5767
    %5769 = vset.pattern.permute.xlu0 0
    %5770 = vperm.xlu0 %5769, %v5517
    %v5771 = vpop.permute.xlu0 %5770
    %5772 = vset.pattern.permute.xlu0 0
    %5773 = vperm.xlu0 %5772, %v5519
    %v5774 = vpop.permute.xlu0 %5773
    %5775 = vset.pattern.permute.xlu0 0
    %5776 = vperm.xlu0 %5775, %v5521
    %v5777 = vpop.permute.xlu0 %5776
    %v5778 = vlaneseq
    %v5779 = vshrl.u32 %v5778, 7
    %v5780 = vsub.s32 %v4908, %v5779
    %v5781 = vrot.slane %v5588, %v5780
    %v5782 = vlaneseq
    %v5783 = vshrl.u32 %v5782, 7
    %v5784 = vsub.s32 %v4913, %v5783
    %v5785 = vrot.slane %v5591, %v5784
    %v5786 = vsel %vm4918, %v5785, %v5781
    %v5787 = vlaneseq
    %v5788 = vshrl.u32 %v5787, 7
    %v5789 = vsub.s32 %v4920, %v5788
    %v5790 = vrot.slane %v5594, %v5789
    %v5791 = vsel %vm4925, %v5790, %v5786
    %v5792 = vlaneseq
    %v5793 = vshrl.u32 %v5792, 7
    %v5794 = vsub.s32 %v4927, %v5793
    %v5795 = vrot.slane %v5597, %v5794
    %v5796 = vsel %vm4932, %v5795, %v5791
    %v5797 = vlaneseq
    %v5798 = vshrl.u32 %v5797, 7
    %v5799 = vsub.s32 %v4908, %v5798
    %v5800 = vrot.slane %v5600, %v5799
    %v5801 = vlaneseq
    %v5802 = vshrl.u32 %v5801, 7
    %v5803 = vsub.s32 %v4913, %v5802
    %v5804 = vrot.slane %v5603, %v5803
    %v5805 = vsel %vm4918, %v5804, %v5800
    %v5806 = vlaneseq
    %v5807 = vshrl.u32 %v5806, 7
    %v5808 = vsub.s32 %v4920, %v5807
    %v5809 = vrot.slane %v5606, %v5808
    %v5810 = vsel %vm4925, %v5809, %v5805
    %v5811 = vlaneseq
    %v5812 = vshrl.u32 %v5811, 7
    %v5813 = vsub.s32 %v4927, %v5812
    %v5814 = vrot.slane %v5609, %v5813
    %v5815 = vsel %vm4932, %v5814, %v5810
    %v5816 = vlaneseq
    %v5817 = vshrl.u32 %v5816, 7
    %v5818 = vsub.s32 %v4908, %v5817
    %v5819 = vrot.slane %v5612, %v5818
    %v5820 = vlaneseq
    %v5821 = vshrl.u32 %v5820, 7
    %v5822 = vsub.s32 %v4913, %v5821
    %v5823 = vrot.slane %v5615, %v5822
    %v5824 = vsel %vm4918, %v5823, %v5819
    %v5825 = vlaneseq
    %v5826 = vshrl.u32 %v5825, 7
    %v5827 = vsub.s32 %v4920, %v5826
    %v5828 = vrot.slane %v5618, %v5827
    %v5829 = vsel %vm4925, %v5828, %v5824
    %v5830 = vlaneseq
    %v5831 = vshrl.u32 %v5830, 7
    %v5832 = vsub.s32 %v4927, %v5831
    %v5833 = vrot.slane %v5621, %v5832
    %v5834 = vsel %vm4932, %v5833, %v5829
    %v5835 = vlaneseq
    %v5836 = vshrl.u32 %v5835, 7
    %v5837 = vsub.s32 %v4908, %v5836
    %v5838 = vrot.slane %v5624, %v5837
    %v5839 = vlaneseq
    %v5840 = vshrl.u32 %v5839, 7
    %v5841 = vsub.s32 %v4913, %v5840
    %v5842 = vrot.slane %v5627, %v5841
    %v5843 = vsel %vm4918, %v5842, %v5838
    %v5844 = vlaneseq
    %v5845 = vshrl.u32 %v5844, 7
    %v5846 = vsub.s32 %v4920, %v5845
    %v5847 = vrot.slane %v5630, %v5846
    %v5848 = vsel %vm4925, %v5847, %v5843
    %v5849 = vlaneseq
    %v5850 = vshrl.u32 %v5849, 7
    %v5851 = vsub.s32 %v4927, %v5850
    %v5852 = vrot.slane %v5633, %v5851
    %v5853 = vsel %vm4932, %v5852, %v5848
    %v5854 = vlaneseq
    %v5855 = vshrl.u32 %v5854, 7
    %v5856 = vsub.s32 %v4908, %v5855
    %v5857 = vrot.slane %v5636, %v5856
    %v5858 = vlaneseq
    %v5859 = vshrl.u32 %v5858, 7
    %v5860 = vsub.s32 %v4913, %v5859
    %v5861 = vrot.slane %v5639, %v5860
    %v5862 = vsel %vm4918, %v5861, %v5857
    %v5863 = vlaneseq
    %v5864 = vshrl.u32 %v5863, 7
    %v5865 = vsub.s32 %v4920, %v5864
    %v5866 = vrot.slane %v5642, %v5865
    %v5867 = vsel %vm4925, %v5866, %v5862
    %v5868 = vlaneseq
    %v5869 = vshrl.u32 %v5868, 7
    %v5870 = vsub.s32 %v4927, %v5869
    %v5871 = vrot.slane %v5645, %v5870
    %v5872 = vsel %vm4932, %v5871, %v5867
    %v5873 = vlaneseq
    %v5874 = vshrl.u32 %v5873, 7
    %v5875 = vsub.s32 %v4908, %v5874
    %v5876 = vrot.slane %v5648, %v5875
    %v5877 = vlaneseq
    %v5878 = vshrl.u32 %v5877, 7
    %v5879 = vsub.s32 %v4913, %v5878
    %v5880 = vrot.slane %v5651, %v5879
    %v5881 = vsel %vm4918, %v5880, %v5876
    %v5882 = vlaneseq
    %v5883 = vshrl.u32 %v5882, 7
    %v5884 = vsub.s32 %v4920, %v5883
    %v5885 = vrot.slane %v5654, %v5884
    %v5886 = vsel %vm4925, %v5885, %v5881
    %v5887 = vlaneseq
    %v5888 = vshrl.u32 %v5887, 7
    %v5889 = vsub.s32 %v4927, %v5888
    %v5890 = vrot.slane %v5657, %v5889
    %v5891 = vsel %vm4932, %v5890, %v5886
    %v5892 = vlaneseq
    %v5893 = vshrl.u32 %v5892, 7
    %v5894 = vsub.s32 %v4908, %v5893
    %v5895 = vrot.slane %v5660, %v5894
    %v5896 = vlaneseq
    %v5897 = vshrl.u32 %v5896, 7
    %v5898 = vsub.s32 %v4913, %v5897
    %v5899 = vrot.slane %v5663, %v5898
    %v5900 = vsel %vm4918, %v5899, %v5895
    %v5901 = vlaneseq
    %v5902 = vshrl.u32 %v5901, 7
    %v5903 = vsub.s32 %v4920, %v5902
    %v5904 = vrot.slane %v5666, %v5903
    %v5905 = vsel %vm4925, %v5904, %v5900
    %v5906 = vlaneseq
    %v5907 = vshrl.u32 %v5906, 7
    %v5908 = vsub.s32 %v4927, %v5907
    %v5909 = vrot.slane %v5669, %v5908
    %v5910 = vsel %vm4932, %v5909, %v5905
    %v5911 = vlaneseq
    %v5912 = vshrl.u32 %v5911, 7
    %v5913 = vsub.s32 %v4908, %v5912
    %v5914 = vrot.slane %v5672, %v5913
    %v5915 = vlaneseq
    %v5916 = vshrl.u32 %v5915, 7
    %v5917 = vsub.s32 %v4913, %v5916
    %v5918 = vrot.slane %v5675, %v5917
    %v5919 = vsel %vm4918, %v5918, %v5914
    %v5920 = vlaneseq
    %v5921 = vshrl.u32 %v5920, 7
    %v5922 = vsub.s32 %v4920, %v5921
    %v5923 = vrot.slane %v5678, %v5922
    %v5924 = vsel %vm4925, %v5923, %v5919
    %v5925 = vlaneseq
    %v5926 = vshrl.u32 %v5925, 7
    %v5927 = vsub.s32 %v4927, %v5926
    %v5928 = vrot.slane %v5681, %v5927
    %v5929 = vsel %vm4932, %v5928, %v5924
    %v5930 = vlaneseq
    %v5931 = vshrl.u32 %v5930, 7
    %v5932 = vsub.s32 %v4908, %v5931
    %v5933 = vrot.slane %v5684, %v5932
    %v5934 = vlaneseq
    %v5935 = vshrl.u32 %v5934, 7
    %v5936 = vsub.s32 %v4913, %v5935
    %v5937 = vrot.slane %v5687, %v5936
    %v5938 = vsel %vm4918, %v5937, %v5933
    %v5939 = vlaneseq
    %v5940 = vshrl.u32 %v5939, 7
    %v5941 = vsub.s32 %v4920, %v5940
    %v5942 = vrot.slane %v5690, %v5941
    %v5943 = vsel %vm4925, %v5942, %v5938
    %v5944 = vlaneseq
    %v5945 = vshrl.u32 %v5944, 7
    %v5946 = vsub.s32 %v4927, %v5945
    %v5947 = vrot.slane %v5693, %v5946
    %v5948 = vsel %vm4932, %v5947, %v5943
    %v5949 = vlaneseq
    %v5950 = vshrl.u32 %v5949, 7
    %v5951 = vsub.s32 %v4908, %v5950
    %v5952 = vrot.slane %v5696, %v5951
    %v5953 = vlaneseq
    %v5954 = vshrl.u32 %v5953, 7
    %v5955 = vsub.s32 %v4913, %v5954
    %v5956 = vrot.slane %v5699, %v5955
    %v5957 = vsel %vm4918, %v5956, %v5952
    %v5958 = vlaneseq
    %v5959 = vshrl.u32 %v5958, 7
    %v5960 = vsub.s32 %v4920, %v5959
    %v5961 = vrot.slane %v5702, %v5960
    %v5962 = vsel %vm4925, %v5961, %v5957
    %v5963 = vlaneseq
    %v5964 = vshrl.u32 %v5963, 7
    %v5965 = vsub.s32 %v4927, %v5964
    %v5966 = vrot.slane %v5705, %v5965
    %v5967 = vsel %vm4932, %v5966, %v5962
    %v5968 = vlaneseq
    %v5969 = vshrl.u32 %v5968, 7
    %v5970 = vsub.s32 %v4908, %v5969
    %v5971 = vrot.slane %v5708, %v5970
    %v5972 = vlaneseq
    %v5973 = vshrl.u32 %v5972, 7
    %v5974 = vsub.s32 %v4913, %v5973
    %v5975 = vrot.slane %v5711, %v5974
    %v5976 = vsel %vm4918, %v5975, %v5971
    %v5977 = vlaneseq
    %v5978 = vshrl.u32 %v5977, 7
    %v5979 = vsub.s32 %v4920, %v5978
    %v5980 = vrot.slane %v5714, %v5979
    %v5981 = vsel %vm4925, %v5980, %v5976
    %v5982 = vlaneseq
    %v5983 = vshrl.u32 %v5982, 7
    %v5984 = vsub.s32 %v4927, %v5983
    %v5985 = vrot.slane %v5717, %v5984
    %v5986 = vsel %vm4932, %v5985, %v5981
    %v5987 = vlaneseq
    %v5988 = vshrl.u32 %v5987, 7
    %v5989 = vsub.s32 %v4908, %v5988
    %v5990 = vrot.slane %v5720, %v5989
    %v5991 = vlaneseq
    %v5992 = vshrl.u32 %v5991, 7
    %v5993 = vsub.s32 %v4913, %v5992
    %v5994 = vrot.slane %v5723, %v5993
    %v5995 = vsel %vm4918, %v5994, %v5990
    %v5996 = vlaneseq
    %v5997 = vshrl.u32 %v5996, 7
    %v5998 = vsub.s32 %v4920, %v5997
    %v5999 = vrot.slane %v5726, %v5998
    %v6000 = vsel %vm4925, %v5999, %v5995
    %v6001 = vlaneseq
    %v6002 = vshrl.u32 %v6001, 7
    %v6003 = vsub.s32 %v4927, %v6002
    %v6004 = vrot.slane %v5729, %v6003
    %v6005 = vsel %vm4932, %v6004, %v6000
    %v6006 = vlaneseq
    %v6007 = vshrl.u32 %v6006, 7
    %v6008 = vsub.s32 %v4908, %v6007
    %v6009 = vrot.slane %v5732, %v6008
    %v6010 = vlaneseq
    %v6011 = vshrl.u32 %v6010, 7
    %v6012 = vsub.s32 %v4913, %v6011
    %v6013 = vrot.slane %v5735, %v6012
    %v6014 = vsel %vm4918, %v6013, %v6009
    %v6015 = vlaneseq
    %v6016 = vshrl.u32 %v6015, 7
    %v6017 = vsub.s32 %v4920, %v6016
    %v6018 = vrot.slane %v5738, %v6017
    %v6019 = vsel %vm4925, %v6018, %v6014
    %v6020 = vlaneseq
    %v6021 = vshrl.u32 %v6020, 7
    %v6022 = vsub.s32 %v4927, %v6021
    %v6023 = vrot.slane %v5741, %v6022
    %v6024 = vsel %vm4932, %v6023, %v6019
    %v6025 = vlaneseq
    %v6026 = vshrl.u32 %v6025, 7
    %v6027 = vsub.s32 %v4908, %v6026
    %v6028 = vrot.slane %v5744, %v6027
    %v6029 = vlaneseq
    %v6030 = vshrl.u32 %v6029, 7
    %v6031 = vsub.s32 %v4913, %v6030
    %v6032 = vrot.slane %v5747, %v6031
    %v6033 = vsel %vm4918, %v6032, %v6028
    %v6034 = vlaneseq
    %v6035 = vshrl.u32 %v6034, 7
    %v6036 = vsub.s32 %v4920, %v6035
    %v6037 = vrot.slane %v5750, %v6036
    %v6038 = vsel %vm4925, %v6037, %v6033
    %v6039 = vlaneseq
    %v6040 = vshrl.u32 %v6039, 7
    %v6041 = vsub.s32 %v4927, %v6040
    %v6042 = vrot.slane %v5753, %v6041
    %v6043 = vsel %vm4932, %v6042, %v6038
    %v6044 = vlaneseq
    %v6045 = vshrl.u32 %v6044, 7
    %v6046 = vsub.s32 %v4908, %v6045
    %v6047 = vrot.slane %v5756, %v6046
    %v6048 = vlaneseq
    %v6049 = vshrl.u32 %v6048, 7
    %v6050 = vsub.s32 %v4913, %v6049
    %v6051 = vrot.slane %v5759, %v6050
    %v6052 = vsel %vm4918, %v6051, %v6047
    %v6053 = vlaneseq
    %v6054 = vshrl.u32 %v6053, 7
    %v6055 = vsub.s32 %v4920, %v6054
    %v6056 = vrot.slane %v5762, %v6055
    %v6057 = vsel %vm4925, %v6056, %v6052
    %v6058 = vlaneseq
    %v6059 = vshrl.u32 %v6058, 7
    %v6060 = vsub.s32 %v4927, %v6059
    %v6061 = vrot.slane %v5765, %v6060
    %v6062 = vsel %vm4932, %v6061, %v6057
    %v6063 = vlaneseq
    %v6064 = vshrl.u32 %v6063, 7
    %v6065 = vsub.s32 %v4908, %v6064
    %v6066 = vrot.slane %v5768, %v6065
    %v6067 = vlaneseq
    %v6068 = vshrl.u32 %v6067, 7
    %v6069 = vsub.s32 %v4913, %v6068
    %v6070 = vrot.slane %v5771, %v6069
    %v6071 = vsel %vm4918, %v6070, %v6066
    %v6072 = vlaneseq
    %v6073 = vshrl.u32 %v6072, 7
    %v6074 = vsub.s32 %v4920, %v6073
    %v6075 = vrot.slane %v5774, %v6074
    %v6076 = vsel %vm4925, %v6075, %v6071
    %v6077 = vlaneseq
    %v6078 = vshrl.u32 %v6077, 7
    %v6079 = vsub.s32 %v4927, %v6078
    %v6080 = vrot.slane %v5777, %v6079
    %v6081 = vsel %vm4932, %v6080, %v6076
    %v6082 = vsel %vm5219, %v5815, %v5796
    %v6083 = vsel %vm5221, %v5834, %v6082
    %v6084 = vsel %vm5223, %v5853, %v6083
    %v6085 = vsel %vm5225, %v5872, %v6084
    %v6086 = vsel %vm5227, %v5891, %v6085
    %v6087 = vsel %vm5229, %v5910, %v6086
    %v6088 = vsel %vm5231, %v5929, %v6087
    %v6089 = vsel %vm5219, %v5967, %v5948
    %v6090 = vsel %vm5221, %v5986, %v6089
    %v6091 = vsel %vm5223, %v6005, %v6090
    %v6092 = vsel %vm5225, %v6024, %v6091
    %v6093 = vsel %vm5227, %v6043, %v6092
    %v6094 = vsel %vm5229, %v6062, %v6093
    %v6095 = vsel %vm5231, %v6081, %v6094
    %v6098 = vsel %vm3208, %v6088, 0.0
    %6099 = vadd.xlane.f32.xlu0 %v6098
    %v6100 = vpop.xlane.xlu0 %6099
    %v6101 = vsel %vm3208, %v6095, 0.0
    %6102 = vadd.xlane.f32.xlu0 %v6101
    %v6103 = vpop.xlane.xlu0 %6102
    %v6106 = vlaneseq
    %v6107 = vshrl.u32 %v6106, 7
    %v6108 = vsub.s32 0, %v6107
    %v6109 = vrot.slane %v6100, %v6108
    %v6110 = vlaneseq
    %v6111 = vshrl.u32 %v6110, 7
    %v6112 = vsub.s32 1, %v6111
    %v6113 = vrot.slane %v6100, %v6112
    %v6114 = vlaneseq
    %v6115 = vshrl.u32 %v6114, 7
    %v6116 = vsub.s32 2, %v6115
    %v6117 = vrot.slane %v6100, %v6116
    %v6118 = vlaneseq
    %v6119 = vshrl.u32 %v6118, 7
    %v6120 = vsub.s32 3, %v6119
    %v6121 = vrot.slane %v6100, %v6120
    %v6122 = vlaneseq
    %v6123 = vshrl.u32 %v6122, 7
    %v6124 = vsub.s32 4, %v6123
    %v6125 = vrot.slane %v6100, %v6124
    %v6126 = vlaneseq
    %v6127 = vshrl.u32 %v6126, 7
    %v6128 = vsub.s32 5, %v6127
    %v6129 = vrot.slane %v6100, %v6128
    %v6130 = vlaneseq
    %v6131 = vshrl.u32 %v6130, 7
    %v6132 = vsub.s32 6, %v6131
    %v6133 = vrot.slane %v6100, %v6132
    %v6134 = vlaneseq
    %v6135 = vshrl.u32 %v6134, 7
    %v6136 = vsub.s32 7, %v6135
    %v6137 = vrot.slane %v6100, %v6136
    %v6138 = vlaneseq
    %v6139 = vshrl.u32 %v6138, 7
    %v6140 = vsub.s32 0, %v6139
    %v6141 = vrot.slane %v6103, %v6140
    %v6142 = vlaneseq
    %v6143 = vshrl.u32 %v6142, 7
    %v6144 = vsub.s32 1, %v6143
    %v6145 = vrot.slane %v6103, %v6144
    %v6146 = vlaneseq
    %v6147 = vshrl.u32 %v6146, 7
    %v6148 = vsub.s32 2, %v6147
    %v6149 = vrot.slane %v6103, %v6148
    %v6150 = vlaneseq
    %v6151 = vshrl.u32 %v6150, 7
    %v6152 = vsub.s32 3, %v6151
    %v6153 = vrot.slane %v6103, %v6152
    %v6154 = vlaneseq
    %v6155 = vshrl.u32 %v6154, 7
    %v6156 = vsub.s32 4, %v6155
    %v6157 = vrot.slane %v6103, %v6156
    %v6158 = vlaneseq
    %v6159 = vshrl.u32 %v6158, 7
    %v6160 = vsub.s32 5, %v6159
    %v6161 = vrot.slane %v6103, %v6160
    %v6162 = vlaneseq
    %v6163 = vshrl.u32 %v6162, 7
    %v6164 = vsub.s32 6, %v6163
    %v6165 = vrot.slane %v6103, %v6164
    %v6166 = vlaneseq
    %v6167 = vshrl.u32 %v6166, 7
    %v6168 = vsub.s32 7, %v6167
    %v6169 = vrot.slane %v6103, %v6168
    %v6186 = vrcp.pop %v6109
    %v6187 = vmul.f32 %v5395, %v6186
    %v6188 = vmul.f32 %v5397, %v6186
    %v6189 = vmul.f32 %v5399, %v6186
    %v6190 = vmul.f32 %v5401, %v6186
    %v6191 = vrcp.pop %v6113
    %v6192 = vmul.f32 %v5403, %v6191
    %v6193 = vmul.f32 %v5405, %v6191
    %v6194 = vmul.f32 %v5407, %v6191
    %v6195 = vmul.f32 %v5409, %v6191
    %v6196 = vrcp.pop %v6117
    %v6197 = vmul.f32 %v5411, %v6196
    %v6198 = vmul.f32 %v5413, %v6196
    %v6199 = vmul.f32 %v5415, %v6196
    %v6200 = vmul.f32 %v5417, %v6196
    %v6201 = vrcp.pop %v6121
    %v6202 = vmul.f32 %v5419, %v6201
    %v6203 = vmul.f32 %v5421, %v6201
    %v6204 = vmul.f32 %v5423, %v6201
    %v6205 = vmul.f32 %v5425, %v6201
    %v6206 = vrcp.pop %v6125
    %v6207 = vmul.f32 %v5427, %v6206
    %v6208 = vmul.f32 %v5429, %v6206
    %v6209 = vmul.f32 %v5431, %v6206
    %v6210 = vmul.f32 %v5433, %v6206
    %v6211 = vrcp.pop %v6129
    %v6212 = vmul.f32 %v5435, %v6211
    %v6213 = vmul.f32 %v5437, %v6211
    %v6214 = vmul.f32 %v5439, %v6211
    %v6215 = vmul.f32 %v5441, %v6211
    %v6216 = vrcp.pop %v6133
    %v6217 = vmul.f32 %v5443, %v6216
    %v6218 = vmul.f32 %v5445, %v6216
    %v6219 = vmul.f32 %v5447, %v6216
    %v6220 = vmul.f32 %v5449, %v6216
    %v6221 = vrcp.pop %v6137
    %v6222 = vmul.f32 %v5451, %v6221
    %v6223 = vmul.f32 %v5453, %v6221
    %v6224 = vmul.f32 %v5455, %v6221
    %v6225 = vmul.f32 %v5457, %v6221
    %v6226 = vrcp.pop %v6141
    %v6227 = vmul.f32 %v5459, %v6226
    %v6228 = vmul.f32 %v5461, %v6226
    %v6229 = vmul.f32 %v5463, %v6226
    %v6230 = vmul.f32 %v5465, %v6226
    %v6231 = vrcp.pop %v6145
    %v6232 = vmul.f32 %v5467, %v6231
    %v6233 = vmul.f32 %v5469, %v6231
    %v6234 = vmul.f32 %v5471, %v6231
    %v6235 = vmul.f32 %v5473, %v6231
    %v6236 = vrcp.pop %v6149
    %v6237 = vmul.f32 %v5475, %v6236
    %v6238 = vmul.f32 %v5477, %v6236
    %v6239 = vmul.f32 %v5479, %v6236
    %v6240 = vmul.f32 %v5481, %v6236
    %v6241 = vrcp.pop %v6153
    %v6242 = vmul.f32 %v5483, %v6241
    %v6243 = vmul.f32 %v5485, %v6241
    %v6244 = vmul.f32 %v5487, %v6241
    %v6245 = vmul.f32 %v5489, %v6241
    %v6246 = vrcp.pop %v6157
    %v6247 = vmul.f32 %v5491, %v6246
    %v6248 = vmul.f32 %v5493, %v6246
    %v6249 = vmul.f32 %v5495, %v6246
    %v6250 = vmul.f32 %v5497, %v6246
    %v6251 = vrcp.pop %v6161
    %v6252 = vmul.f32 %v5499, %v6251
    %v6253 = vmul.f32 %v5501, %v6251
    %v6254 = vmul.f32 %v5503, %v6251
    %v6255 = vmul.f32 %v5505, %v6251
    %v6256 = vrcp.pop %v6165
    %v6257 = vmul.f32 %v5507, %v6256
    %v6258 = vmul.f32 %v5509, %v6256
    %v6259 = vmul.f32 %v5511, %v6256
    %v6260 = vmul.f32 %v5513, %v6256
    %v6261 = vrcp.pop %v6169
    %v6262 = vmul.f32 %v5515, %v6261
    %v6263 = vmul.f32 %v5517, %v6261
    %v6264 = vmul.f32 %v5519, %v6261
    %v6265 = vmul.f32 %v5521, %v6261
    %6330 = vset.pattern.permute.xlu0 0
    %6331 = vperm.xlu0 %6330, %v6187
    %v6332 = vpop.permute.xlu0 %6331
    %6333 = vset.pattern.permute.xlu0 0
    %6334 = vperm.xlu0 %6333, %v6188
    %v6335 = vpop.permute.xlu0 %6334
    %6336 = vset.pattern.permute.xlu0 0
    %6337 = vperm.xlu0 %6336, %v6189
    %v6338 = vpop.permute.xlu0 %6337
    %6339 = vset.pattern.permute.xlu0 0
    %6340 = vperm.xlu0 %6339, %v6190
    %v6341 = vpop.permute.xlu0 %6340
    %6342 = vset.pattern.permute.xlu0 0
    %6343 = vperm.xlu0 %6342, %v6192
    %v6344 = vpop.permute.xlu0 %6343
    %6345 = vset.pattern.permute.xlu0 0
    %6346 = vperm.xlu0 %6345, %v6193
    %v6347 = vpop.permute.xlu0 %6346
    %6348 = vset.pattern.permute.xlu0 0
    %6349 = vperm.xlu0 %6348, %v6194
    %v6350 = vpop.permute.xlu0 %6349
    %6351 = vset.pattern.permute.xlu0 0
    %6352 = vperm.xlu0 %6351, %v6195
    %v6353 = vpop.permute.xlu0 %6352
    %6354 = vset.pattern.permute.xlu0 0
    %6355 = vperm.xlu0 %6354, %v6197
    %v6356 = vpop.permute.xlu0 %6355
    %6357 = vset.pattern.permute.xlu0 0
    %6358 = vperm.xlu0 %6357, %v6198
    %v6359 = vpop.permute.xlu0 %6358
    %6360 = vset.pattern.permute.xlu0 0
    %6361 = vperm.xlu0 %6360, %v6199
    %v6362 = vpop.permute.xlu0 %6361
    %6363 = vset.pattern.permute.xlu0 0
    %6364 = vperm.xlu0 %6363, %v6200
    %v6365 = vpop.permute.xlu0 %6364
    %6366 = vset.pattern.permute.xlu0 0
    %6367 = vperm.xlu0 %6366, %v6202
    %v6368 = vpop.permute.xlu0 %6367
    %6369 = vset.pattern.permute.xlu0 0
    %6370 = vperm.xlu0 %6369, %v6203
    %v6371 = vpop.permute.xlu0 %6370
    %6372 = vset.pattern.permute.xlu0 0
    %6373 = vperm.xlu0 %6372, %v6204
    %v6374 = vpop.permute.xlu0 %6373
    %6375 = vset.pattern.permute.xlu0 0
    %6376 = vperm.xlu0 %6375, %v6205
    %v6377 = vpop.permute.xlu0 %6376
    %6378 = vset.pattern.permute.xlu0 0
    %6379 = vperm.xlu0 %6378, %v6207
    %v6380 = vpop.permute.xlu0 %6379
    %6381 = vset.pattern.permute.xlu0 0
    %6382 = vperm.xlu0 %6381, %v6208
    %v6383 = vpop.permute.xlu0 %6382
    %6384 = vset.pattern.permute.xlu0 0
    %6385 = vperm.xlu0 %6384, %v6209
    %v6386 = vpop.permute.xlu0 %6385
    %6387 = vset.pattern.permute.xlu0 0
    %6388 = vperm.xlu0 %6387, %v6210
    %v6389 = vpop.permute.xlu0 %6388
    %6390 = vset.pattern.permute.xlu0 0
    %6391 = vperm.xlu0 %6390, %v6212
    %v6392 = vpop.permute.xlu0 %6391
    %6393 = vset.pattern.permute.xlu0 0
    %6394 = vperm.xlu0 %6393, %v6213
    %v6395 = vpop.permute.xlu0 %6394
    %6396 = vset.pattern.permute.xlu0 0
    %6397 = vperm.xlu0 %6396, %v6214
    %v6398 = vpop.permute.xlu0 %6397
    %6399 = vset.pattern.permute.xlu0 0
    %6400 = vperm.xlu0 %6399, %v6215
    %v6401 = vpop.permute.xlu0 %6400
    %6402 = vset.pattern.permute.xlu0 0
    %6403 = vperm.xlu0 %6402, %v6217
    %v6404 = vpop.permute.xlu0 %6403
    %6405 = vset.pattern.permute.xlu0 0
    %6406 = vperm.xlu0 %6405, %v6218
    %v6407 = vpop.permute.xlu0 %6406
    %6408 = vset.pattern.permute.xlu0 0
    %6409 = vperm.xlu0 %6408, %v6219
    %v6410 = vpop.permute.xlu0 %6409
    %6411 = vset.pattern.permute.xlu0 0
    %6412 = vperm.xlu0 %6411, %v6220
    %v6413 = vpop.permute.xlu0 %6412
    %6414 = vset.pattern.permute.xlu0 0
    %6415 = vperm.xlu0 %6414, %v6222
    %v6416 = vpop.permute.xlu0 %6415
    %6417 = vset.pattern.permute.xlu0 0
    %6418 = vperm.xlu0 %6417, %v6223
    %v6419 = vpop.permute.xlu0 %6418
    %6420 = vset.pattern.permute.xlu0 0
    %6421 = vperm.xlu0 %6420, %v6224
    %v6422 = vpop.permute.xlu0 %6421
    %6423 = vset.pattern.permute.xlu0 0
    %6424 = vperm.xlu0 %6423, %v6225
    %v6425 = vpop.permute.xlu0 %6424
    %6426 = vset.pattern.permute.xlu0 0
    %6427 = vperm.xlu0 %6426, %v6227
    %v6428 = vpop.permute.xlu0 %6427
    %6429 = vset.pattern.permute.xlu0 0
    %6430 = vperm.xlu0 %6429, %v6228
    %v6431 = vpop.permute.xlu0 %6430
    %6432 = vset.pattern.permute.xlu0 0
    %6433 = vperm.xlu0 %6432, %v6229
    %v6434 = vpop.permute.xlu0 %6433
    %6435 = vset.pattern.permute.xlu0 0
    %6436 = vperm.xlu0 %6435, %v6230
    %v6437 = vpop.permute.xlu0 %6436
    %6438 = vset.pattern.permute.xlu0 0
    %6439 = vperm.xlu0 %6438, %v6232
    %v6440 = vpop.permute.xlu0 %6439
    %6441 = vset.pattern.permute.xlu0 0
    %6442 = vperm.xlu0 %6441, %v6233
    %v6443 = vpop.permute.xlu0 %6442
    %6444 = vset.pattern.permute.xlu0 0
    %6445 = vperm.xlu0 %6444, %v6234
    %v6446 = vpop.permute.xlu0 %6445
    %6447 = vset.pattern.permute.xlu0 0
    %6448 = vperm.xlu0 %6447, %v6235
    %v6449 = vpop.permute.xlu0 %6448
    %6450 = vset.pattern.permute.xlu0 0
    %6451 = vperm.xlu0 %6450, %v6237
    %v6452 = vpop.permute.xlu0 %6451
    %6453 = vset.pattern.permute.xlu0 0
    %6454 = vperm.xlu0 %6453, %v6238
    %v6455 = vpop.permute.xlu0 %6454
    %6456 = vset.pattern.permute.xlu0 0
    %6457 = vperm.xlu0 %6456, %v6239
    %v6458 = vpop.permute.xlu0 %6457
    %6459 = vset.pattern.permute.xlu0 0
    %6460 = vperm.xlu0 %6459, %v6240
    %v6461 = vpop.permute.xlu0 %6460
    %6462 = vset.pattern.permute.xlu0 0
    %6463 = vperm.xlu0 %6462, %v6242
    %v6464 = vpop.permute.xlu0 %6463
    %6465 = vset.pattern.permute.xlu0 0
    %6466 = vperm.xlu0 %6465, %v6243
    %v6467 = vpop.permute.xlu0 %6466
    %6468 = vset.pattern.permute.xlu0 0
    %6469 = vperm.xlu0 %6468, %v6244
    %v6470 = vpop.permute.xlu0 %6469
    %6471 = vset.pattern.permute.xlu0 0
    %6472 = vperm.xlu0 %6471, %v6245
    %v6473 = vpop.permute.xlu0 %6472
    %6474 = vset.pattern.permute.xlu0 0
    %6475 = vperm.xlu0 %6474, %v6247
    %v6476 = vpop.permute.xlu0 %6475
    %6477 = vset.pattern.permute.xlu0 0
    %6478 = vperm.xlu0 %6477, %v6248
    %v6479 = vpop.permute.xlu0 %6478
    %6480 = vset.pattern.permute.xlu0 0
    %6481 = vperm.xlu0 %6480, %v6249
    %v6482 = vpop.permute.xlu0 %6481
    %6483 = vset.pattern.permute.xlu0 0
    %6484 = vperm.xlu0 %6483, %v6250
    %v6485 = vpop.permute.xlu0 %6484
    %6486 = vset.pattern.permute.xlu0 0
    %6487 = vperm.xlu0 %6486, %v6252
    %v6488 = vpop.permute.xlu0 %6487
    %6489 = vset.pattern.permute.xlu0 0
    %6490 = vperm.xlu0 %6489, %v6253
    %v6491 = vpop.permute.xlu0 %6490
    %6492 = vset.pattern.permute.xlu0 0
    %6493 = vperm.xlu0 %6492, %v6254
    %v6494 = vpop.permute.xlu0 %6493
    %6495 = vset.pattern.permute.xlu0 0
    %6496 = vperm.xlu0 %6495, %v6255
    %v6497 = vpop.permute.xlu0 %6496
    %6498 = vset.pattern.permute.xlu0 0
    %6499 = vperm.xlu0 %6498, %v6257
    %v6500 = vpop.permute.xlu0 %6499
    %6501 = vset.pattern.permute.xlu0 0
    %6502 = vperm.xlu0 %6501, %v6258
    %v6503 = vpop.permute.xlu0 %6502
    %6504 = vset.pattern.permute.xlu0 0
    %6505 = vperm.xlu0 %6504, %v6259
    %v6506 = vpop.permute.xlu0 %6505
    %6507 = vset.pattern.permute.xlu0 0
    %6508 = vperm.xlu0 %6507, %v6260
    %v6509 = vpop.permute.xlu0 %6508
    %6510 = vset.pattern.permute.xlu0 0
    %6511 = vperm.xlu0 %6510, %v6262
    %v6512 = vpop.permute.xlu0 %6511
    %6513 = vset.pattern.permute.xlu0 0
    %6514 = vperm.xlu0 %6513, %v6263
    %v6515 = vpop.permute.xlu0 %6514
    %6516 = vset.pattern.permute.xlu0 0
    %6517 = vperm.xlu0 %6516, %v6264
    %v6518 = vpop.permute.xlu0 %6517
    %6519 = vset.pattern.permute.xlu0 0
    %6520 = vperm.xlu0 %6519, %v6265
    %v6521 = vpop.permute.xlu0 %6520
    %v6522 = vlaneseq
    %v6523 = vshrl.u32 %v6522, 7
    %v6524 = vsub.s32 %v4908, %v6523
    %v6525 = vrot.slane %v6332, %v6524
    %v6526 = vlaneseq
    %v6527 = vshrl.u32 %v6526, 7
    %v6528 = vsub.s32 %v4913, %v6527
    %v6529 = vrot.slane %v6335, %v6528
    %v6530 = vsel %vm4918, %v6529, %v6525
    %v6531 = vlaneseq
    %v6532 = vshrl.u32 %v6531, 7
    %v6533 = vsub.s32 %v4920, %v6532
    %v6534 = vrot.slane %v6338, %v6533
    %v6535 = vsel %vm4925, %v6534, %v6530
    %v6536 = vlaneseq
    %v6537 = vshrl.u32 %v6536, 7
    %v6538 = vsub.s32 %v4927, %v6537
    %v6539 = vrot.slane %v6341, %v6538
    %v6540 = vsel %vm4932, %v6539, %v6535
    %v6541 = vlaneseq
    %v6542 = vshrl.u32 %v6541, 7
    %v6543 = vsub.s32 %v4908, %v6542
    %v6544 = vrot.slane %v6344, %v6543
    %v6545 = vlaneseq
    %v6546 = vshrl.u32 %v6545, 7
    %v6547 = vsub.s32 %v4913, %v6546
    %v6548 = vrot.slane %v6347, %v6547
    %v6549 = vsel %vm4918, %v6548, %v6544
    %v6550 = vlaneseq
    %v6551 = vshrl.u32 %v6550, 7
    %v6552 = vsub.s32 %v4920, %v6551
    %v6553 = vrot.slane %v6350, %v6552
    %v6554 = vsel %vm4925, %v6553, %v6549
    %v6555 = vlaneseq
    %v6556 = vshrl.u32 %v6555, 7
    %v6557 = vsub.s32 %v4927, %v6556
    %v6558 = vrot.slane %v6353, %v6557
    %v6559 = vsel %vm4932, %v6558, %v6554
    %v6560 = vlaneseq
    %v6561 = vshrl.u32 %v6560, 7
    %v6562 = vsub.s32 %v4908, %v6561
    %v6563 = vrot.slane %v6356, %v6562
    %v6564 = vlaneseq
    %v6565 = vshrl.u32 %v6564, 7
    %v6566 = vsub.s32 %v4913, %v6565
    %v6567 = vrot.slane %v6359, %v6566
    %v6568 = vsel %vm4918, %v6567, %v6563
    %v6569 = vlaneseq
    %v6570 = vshrl.u32 %v6569, 7
    %v6571 = vsub.s32 %v4920, %v6570
    %v6572 = vrot.slane %v6362, %v6571
    %v6573 = vsel %vm4925, %v6572, %v6568
    %v6574 = vlaneseq
    %v6575 = vshrl.u32 %v6574, 7
    %v6576 = vsub.s32 %v4927, %v6575
    %v6577 = vrot.slane %v6365, %v6576
    %v6578 = vsel %vm4932, %v6577, %v6573
    %v6579 = vlaneseq
    %v6580 = vshrl.u32 %v6579, 7
    %v6581 = vsub.s32 %v4908, %v6580
    %v6582 = vrot.slane %v6368, %v6581
    %v6583 = vlaneseq
    %v6584 = vshrl.u32 %v6583, 7
    %v6585 = vsub.s32 %v4913, %v6584
    %v6586 = vrot.slane %v6371, %v6585
    %v6587 = vsel %vm4918, %v6586, %v6582
    %v6588 = vlaneseq
    %v6589 = vshrl.u32 %v6588, 7
    %v6590 = vsub.s32 %v4920, %v6589
    %v6591 = vrot.slane %v6374, %v6590
    %v6592 = vsel %vm4925, %v6591, %v6587
    %v6593 = vlaneseq
    %v6594 = vshrl.u32 %v6593, 7
    %v6595 = vsub.s32 %v4927, %v6594
    %v6596 = vrot.slane %v6377, %v6595
    %v6597 = vsel %vm4932, %v6596, %v6592
    %v6598 = vlaneseq
    %v6599 = vshrl.u32 %v6598, 7
    %v6600 = vsub.s32 %v4908, %v6599
    %v6601 = vrot.slane %v6380, %v6600
    %v6602 = vlaneseq
    %v6603 = vshrl.u32 %v6602, 7
    %v6604 = vsub.s32 %v4913, %v6603
    %v6605 = vrot.slane %v6383, %v6604
    %v6606 = vsel %vm4918, %v6605, %v6601
    %v6607 = vlaneseq
    %v6608 = vshrl.u32 %v6607, 7
    %v6609 = vsub.s32 %v4920, %v6608
    %v6610 = vrot.slane %v6386, %v6609
    %v6611 = vsel %vm4925, %v6610, %v6606
    %v6612 = vlaneseq
    %v6613 = vshrl.u32 %v6612, 7
    %v6614 = vsub.s32 %v4927, %v6613
    %v6615 = vrot.slane %v6389, %v6614
    %v6616 = vsel %vm4932, %v6615, %v6611
    %v6617 = vlaneseq
    %v6618 = vshrl.u32 %v6617, 7
    %v6619 = vsub.s32 %v4908, %v6618
    %v6620 = vrot.slane %v6392, %v6619
    %v6621 = vlaneseq
    %v6622 = vshrl.u32 %v6621, 7
    %v6623 = vsub.s32 %v4913, %v6622
    %v6624 = vrot.slane %v6395, %v6623
    %v6625 = vsel %vm4918, %v6624, %v6620
    %v6626 = vlaneseq
    %v6627 = vshrl.u32 %v6626, 7
    %v6628 = vsub.s32 %v4920, %v6627
    %v6629 = vrot.slane %v6398, %v6628
    %v6630 = vsel %vm4925, %v6629, %v6625
    %v6631 = vlaneseq
    %v6632 = vshrl.u32 %v6631, 7
    %v6633 = vsub.s32 %v4927, %v6632
    %v6634 = vrot.slane %v6401, %v6633
    %v6635 = vsel %vm4932, %v6634, %v6630
    %v6636 = vlaneseq
    %v6637 = vshrl.u32 %v6636, 7
    %v6638 = vsub.s32 %v4908, %v6637
    %v6639 = vrot.slane %v6404, %v6638
    %v6640 = vlaneseq
    %v6641 = vshrl.u32 %v6640, 7
    %v6642 = vsub.s32 %v4913, %v6641
    %v6643 = vrot.slane %v6407, %v6642
    %v6644 = vsel %vm4918, %v6643, %v6639
    %v6645 = vlaneseq
    %v6646 = vshrl.u32 %v6645, 7
    %v6647 = vsub.s32 %v4920, %v6646
    %v6648 = vrot.slane %v6410, %v6647
    %v6649 = vsel %vm4925, %v6648, %v6644
    %v6650 = vlaneseq
    %v6651 = vshrl.u32 %v6650, 7
    %v6652 = vsub.s32 %v4927, %v6651
    %v6653 = vrot.slane %v6413, %v6652
    %v6654 = vsel %vm4932, %v6653, %v6649
    %v6655 = vlaneseq
    %v6656 = vshrl.u32 %v6655, 7
    %v6657 = vsub.s32 %v4908, %v6656
    %v6658 = vrot.slane %v6416, %v6657
    %v6659 = vlaneseq
    %v6660 = vshrl.u32 %v6659, 7
    %v6661 = vsub.s32 %v4913, %v6660
    %v6662 = vrot.slane %v6419, %v6661
    %v6663 = vsel %vm4918, %v6662, %v6658
    %v6664 = vlaneseq
    %v6665 = vshrl.u32 %v6664, 7
    %v6666 = vsub.s32 %v4920, %v6665
    %v6667 = vrot.slane %v6422, %v6666
    %v6668 = vsel %vm4925, %v6667, %v6663
    %v6669 = vlaneseq
    %v6670 = vshrl.u32 %v6669, 7
    %v6671 = vsub.s32 %v4927, %v6670
    %v6672 = vrot.slane %v6425, %v6671
    %v6673 = vsel %vm4932, %v6672, %v6668
    %v6674 = vlaneseq
    %v6675 = vshrl.u32 %v6674, 7
    %v6676 = vsub.s32 %v4908, %v6675
    %v6677 = vrot.slane %v6428, %v6676
    %v6678 = vlaneseq
    %v6679 = vshrl.u32 %v6678, 7
    %v6680 = vsub.s32 %v4913, %v6679
    %v6681 = vrot.slane %v6431, %v6680
    %v6682 = vsel %vm4918, %v6681, %v6677
    %v6683 = vlaneseq
    %v6684 = vshrl.u32 %v6683, 7
    %v6685 = vsub.s32 %v4920, %v6684
    %v6686 = vrot.slane %v6434, %v6685
    %v6687 = vsel %vm4925, %v6686, %v6682
    %v6688 = vlaneseq
    %v6689 = vshrl.u32 %v6688, 7
    %v6690 = vsub.s32 %v4927, %v6689
    %v6691 = vrot.slane %v6437, %v6690
    %v6692 = vsel %vm4932, %v6691, %v6687
    %v6693 = vlaneseq
    %v6694 = vshrl.u32 %v6693, 7
    %v6695 = vsub.s32 %v4908, %v6694
    %v6696 = vrot.slane %v6440, %v6695
    %v6697 = vlaneseq
    %v6698 = vshrl.u32 %v6697, 7
    %v6699 = vsub.s32 %v4913, %v6698
    %v6700 = vrot.slane %v6443, %v6699
    %v6701 = vsel %vm4918, %v6700, %v6696
    %v6702 = vlaneseq
    %v6703 = vshrl.u32 %v6702, 7
    %v6704 = vsub.s32 %v4920, %v6703
    %v6705 = vrot.slane %v6446, %v6704
    %v6706 = vsel %vm4925, %v6705, %v6701
    %v6707 = vlaneseq
    %v6708 = vshrl.u32 %v6707, 7
    %v6709 = vsub.s32 %v4927, %v6708
    %v6710 = vrot.slane %v6449, %v6709
    %v6711 = vsel %vm4932, %v6710, %v6706
    %v6712 = vlaneseq
    %v6713 = vshrl.u32 %v6712, 7
    %v6714 = vsub.s32 %v4908, %v6713
    %v6715 = vrot.slane %v6452, %v6714
    %v6716 = vlaneseq
    %v6717 = vshrl.u32 %v6716, 7
    %v6718 = vsub.s32 %v4913, %v6717
    %v6719 = vrot.slane %v6455, %v6718
    %v6720 = vsel %vm4918, %v6719, %v6715
    %v6721 = vlaneseq
    %v6722 = vshrl.u32 %v6721, 7
    %v6723 = vsub.s32 %v4920, %v6722
    %v6724 = vrot.slane %v6458, %v6723
    %v6725 = vsel %vm4925, %v6724, %v6720
    %v6726 = vlaneseq
    %v6727 = vshrl.u32 %v6726, 7
    %v6728 = vsub.s32 %v4927, %v6727
    %v6729 = vrot.slane %v6461, %v6728
    %v6730 = vsel %vm4932, %v6729, %v6725
    %v6731 = vlaneseq
    %v6732 = vshrl.u32 %v6731, 7
    %v6733 = vsub.s32 %v4908, %v6732
    %v6734 = vrot.slane %v6464, %v6733
    %v6735 = vlaneseq
    %v6736 = vshrl.u32 %v6735, 7
    %v6737 = vsub.s32 %v4913, %v6736
    %v6738 = vrot.slane %v6467, %v6737
    %v6739 = vsel %vm4918, %v6738, %v6734
    %v6740 = vlaneseq
    %v6741 = vshrl.u32 %v6740, 7
    %v6742 = vsub.s32 %v4920, %v6741
    %v6743 = vrot.slane %v6470, %v6742
    %v6744 = vsel %vm4925, %v6743, %v6739
    %v6745 = vlaneseq
    %v6746 = vshrl.u32 %v6745, 7
    %v6747 = vsub.s32 %v4927, %v6746
    %v6748 = vrot.slane %v6473, %v6747
    %v6749 = vsel %vm4932, %v6748, %v6744
    %v6750 = vlaneseq
    %v6751 = vshrl.u32 %v6750, 7
    %v6752 = vsub.s32 %v4908, %v6751
    %v6753 = vrot.slane %v6476, %v6752
    %v6754 = vlaneseq
    %v6755 = vshrl.u32 %v6754, 7
    %v6756 = vsub.s32 %v4913, %v6755
    %v6757 = vrot.slane %v6479, %v6756
    %v6758 = vsel %vm4918, %v6757, %v6753
    %v6759 = vlaneseq
    %v6760 = vshrl.u32 %v6759, 7
    %v6761 = vsub.s32 %v4920, %v6760
    %v6762 = vrot.slane %v6482, %v6761
    %v6763 = vsel %vm4925, %v6762, %v6758
    %v6764 = vlaneseq
    %v6765 = vshrl.u32 %v6764, 7
    %v6766 = vsub.s32 %v4927, %v6765
    %v6767 = vrot.slane %v6485, %v6766
    %v6768 = vsel %vm4932, %v6767, %v6763
    %v6769 = vlaneseq
    %v6770 = vshrl.u32 %v6769, 7
    %v6771 = vsub.s32 %v4908, %v6770
    %v6772 = vrot.slane %v6488, %v6771
    %v6773 = vlaneseq
    %v6774 = vshrl.u32 %v6773, 7
    %v6775 = vsub.s32 %v4913, %v6774
    %v6776 = vrot.slane %v6491, %v6775
    %v6777 = vsel %vm4918, %v6776, %v6772
    %v6778 = vlaneseq
    %v6779 = vshrl.u32 %v6778, 7
    %v6780 = vsub.s32 %v4920, %v6779
    %v6781 = vrot.slane %v6494, %v6780
    %v6782 = vsel %vm4925, %v6781, %v6777
    %v6783 = vlaneseq
    %v6784 = vshrl.u32 %v6783, 7
    %v6785 = vsub.s32 %v4927, %v6784
    %v6786 = vrot.slane %v6497, %v6785
    %v6787 = vsel %vm4932, %v6786, %v6782
    %v6788 = vlaneseq
    %v6789 = vshrl.u32 %v6788, 7
    %v6790 = vsub.s32 %v4908, %v6789
    %v6791 = vrot.slane %v6500, %v6790
    %v6792 = vlaneseq
    %v6793 = vshrl.u32 %v6792, 7
    %v6794 = vsub.s32 %v4913, %v6793
    %v6795 = vrot.slane %v6503, %v6794
    %v6796 = vsel %vm4918, %v6795, %v6791
    %v6797 = vlaneseq
    %v6798 = vshrl.u32 %v6797, 7
    %v6799 = vsub.s32 %v4920, %v6798
    %v6800 = vrot.slane %v6506, %v6799
    %v6801 = vsel %vm4925, %v6800, %v6796
    %v6802 = vlaneseq
    %v6803 = vshrl.u32 %v6802, 7
    %v6804 = vsub.s32 %v4927, %v6803
    %v6805 = vrot.slane %v6509, %v6804
    %v6806 = vsel %vm4932, %v6805, %v6801
    %v6807 = vlaneseq
    %v6808 = vshrl.u32 %v6807, 7
    %v6809 = vsub.s32 %v4908, %v6808
    %v6810 = vrot.slane %v6512, %v6809
    %v6811 = vlaneseq
    %v6812 = vshrl.u32 %v6811, 7
    %v6813 = vsub.s32 %v4913, %v6812
    %v6814 = vrot.slane %v6515, %v6813
    %v6815 = vsel %vm4918, %v6814, %v6810
    %v6816 = vlaneseq
    %v6817 = vshrl.u32 %v6816, 7
    %v6818 = vsub.s32 %v4920, %v6817
    %v6819 = vrot.slane %v6518, %v6818
    %v6820 = vsel %vm4925, %v6819, %v6815
    %v6821 = vlaneseq
    %v6822 = vshrl.u32 %v6821, 7
    %v6823 = vsub.s32 %v4927, %v6822
    %v6824 = vrot.slane %v6521, %v6823
    %v6825 = vsel %vm4932, %v6824, %v6820
    %v6826 = vsel %vm5219, %v6559, %v6540
    %v6827 = vsel %vm5221, %v6578, %v6826
    %v6828 = vsel %vm5223, %v6597, %v6827
    %v6829 = vsel %vm5225, %v6616, %v6828
    %v6830 = vsel %vm5227, %v6635, %v6829
    %v6831 = vsel %vm5229, %v6654, %v6830
    %v6832 = vsel %vm5231, %v6673, %v6831
    %v6833 = vsel %vm5219, %v6711, %v6692
    %v6834 = vsel %vm5221, %v6730, %v6833
    %v6835 = vsel %vm5223, %v6749, %v6834
    %v6836 = vsel %vm5225, %v6768, %v6835
    %v6837 = vsel %vm5227, %v6787, %v6836
    %v6838 = vsel %vm5229, %v6806, %v6837
    %v6839 = vsel %vm5231, %v6825, %v6838
    %6842 = vst.msk [vmem:[#allocation5] sm:$0xff] %vm3208, %v6832
    %6843 = vst.msk [vmem:[#allocation5 + $0x8] sm:$0xff] %vm3208, %v6839
    %v6908 = vmul.f32 %v4441, %v6332
    %v6909 = vmul.f32 %v4442, %v6335
    %v6910 = vmul.f32 %v4443, %v6338
    %v6911 = vmul.f32 %v4444, %v6341
    %v6912 = vmul.f32 %v4445, %v6344
    %v6913 = vmul.f32 %v4446, %v6347
    %v6914 = vmul.f32 %v4447, %v6350
    %v6915 = vmul.f32 %v4448, %v6353
    %v6916 = vmul.f32 %v4449, %v6356
    %v6917 = vmul.f32 %v4450, %v6359
    %v6918 = vmul.f32 %v4451, %v6362
    %v6919 = vmul.f32 %v4452, %v6365
    %v6920 = vmul.f32 %v4453, %v6368
    %v6921 = vmul.f32 %v4454, %v6371
    %v6922 = vmul.f32 %v4455, %v6374
    %v6923 = vmul.f32 %v4456, %v6377
    %v6924 = vmul.f32 %v4457, %v6380
    %v6925 = vmul.f32 %v4458, %v6383
    %v6926 = vmul.f32 %v4459, %v6386
    %v6927 = vmul.f32 %v4460, %v6389
    %v6928 = vmul.f32 %v4461, %v6392
    %v6929 = vmul.f32 %v4462, %v6395
    %v6930 = vmul.f32 %v4463, %v6398
    %v6931 = vmul.f32 %v4464, %v6401
    %v6932 = vmul.f32 %v4465, %v6404
    %v6933 = vmul.f32 %v4466, %v6407
    %v6934 = vmul.f32 %v4467, %v6410
    %v6935 = vmul.f32 %v4468, %v6413
    %v6936 = vmul.f32 %v4469, %v6416
    %v6937 = vmul.f32 %v4470, %v6419
    %v6938 = vmul.f32 %v4471, %v6422
    %v6939 = vmul.f32 %v4472, %v6425
    %v6940 = vmul.f32 %v4473, %v6428
    %v6941 = vmul.f32 %v4474, %v6431
    %v6942 = vmul.f32 %v4475, %v6434
    %v6943 = vmul.f32 %v4476, %v6437
    %v6944 = vmul.f32 %v4477, %v6440
    %v6945 = vmul.f32 %v4478, %v6443
    %v6946 = vmul.f32 %v4479, %v6446
    %v6947 = vmul.f32 %v4480, %v6449
    %v6948 = vmul.f32 %v4481, %v6452
    %v6949 = vmul.f32 %v4482, %v6455
    %v6950 = vmul.f32 %v4483, %v6458
    %v6951 = vmul.f32 %v4484, %v6461
    %v6952 = vmul.f32 %v4485, %v6464
    %v6953 = vmul.f32 %v4486, %v6467
    %v6954 = vmul.f32 %v4487, %v6470
    %v6955 = vmul.f32 %v4488, %v6473
    %v6956 = vmul.f32 %v4489, %v6476
    %v6957 = vmul.f32 %v4490, %v6479
    %v6958 = vmul.f32 %v4491, %v6482
    %v6959 = vmul.f32 %v4492, %v6485
    %v6960 = vmul.f32 %v4493, %v6488
    %v6961 = vmul.f32 %v4494, %v6491
    %v6962 = vmul.f32 %v4495, %v6494
    %v6963 = vmul.f32 %v4496, %v6497
    %v6964 = vmul.f32 %v4497, %v6500
    %v6965 = vmul.f32 %v4498, %v6503
    %v6966 = vmul.f32 %v4499, %v6506
    %v6967 = vmul.f32 %v4500, %v6509
    %v6968 = vmul.f32 %v4501, %v6512
    %v6969 = vmul.f32 %v4502, %v6515
    %v6970 = vmul.f32 %v4503, %v6518
    %v6971 = vmul.f32 %v4504, %v6521
    %v6972 = vsel %vm4576, %v6908, 0.0
    %v6973 = vsel %vm4576, %v6909, 0.0
    %v6974 = vadd.f32 %v6972, %v6973
    %v6975 = vsel %vm4576, %v6910, 0.0
    %v6976 = vadd.f32 %v6974, %v6975
    %v6977 = vsel %vm4576, %v6911, 0.0
    %v6978 = vadd.f32 %v6976, %v6977
    %v6979 = vrot.slane %v6978, 4
    %v6980 = vadd.f32 %v6978, %v6979
    %v6981 = vrot.slane %v6980, 2
    %v6982 = vadd.f32 %v6980, %v6981
    %v6983 = vrot.slane %v6982, 1
    %v6984 = vadd.f32 %v6982, %v6983
    %v6985 = vsel %vm4576, %v6912, 0.0
    %v6986 = vsel %vm4576, %v6913, 0.0
    %v6987 = vadd.f32 %v6985, %v6986
    %v6988 = vsel %vm4576, %v6914, 0.0
    %v6989 = vadd.f32 %v6987, %v6988
    %v6990 = vsel %vm4576, %v6915, 0.0
    %v6991 = vadd.f32 %v6989, %v6990
    %v6992 = vrot.slane %v6991, 4
    %v6993 = vadd.f32 %v6991, %v6992
    %v6994 = vrot.slane %v6993, 2
    %v6995 = vadd.f32 %v6993, %v6994
    %v6996 = vrot.slane %v6995, 1
    %v6997 = vadd.f32 %v6995, %v6996
    %v6998 = vsel %vm4576, %v6916, 0.0
    %v6999 = vsel %vm4576, %v6917, 0.0
    %v7000 = vadd.f32 %v6998, %v6999
    %v7001 = vsel %vm4576, %v6918, 0.0
    %v7002 = vadd.f32 %v7000, %v7001
    %v7003 = vsel %vm4576, %v6919, 0.0
    %v7004 = vadd.f32 %v7002, %v7003
    %v7005 = vrot.slane %v7004, 4
    %v7006 = vadd.f32 %v7004, %v7005
    %v7007 = vrot.slane %v7006, 2
    %v7008 = vadd.f32 %v7006, %v7007
    %v7009 = vrot.slane %v7008, 1
    %v7010 = vadd.f32 %v7008, %v7009
    %v7011 = vsel %vm4576, %v6920, 0.0
    %v7012 = vsel %vm4576, %v6921, 0.0
    %v7013 = vadd.f32 %v7011, %v7012
    %v7014 = vsel %vm4576, %v6922, 0.0
    %v7015 = vadd.f32 %v7013, %v7014
    %v7016 = vsel %vm4576, %v6923, 0.0
    %v7017 = vadd.f32 %v7015, %v7016
    %v7018 = vrot.slane %v7017, 4
    %v7019 = vadd.f32 %v7017, %v7018
    %v7020 = vrot.slane %v7019, 2
    %v7021 = vadd.f32 %v7019, %v7020
    %v7022 = vrot.slane %v7021, 1
    %v7023 = vadd.f32 %v7021, %v7022
    %v7024 = vsel %vm4576, %v6924, 0.0
    %v7025 = vsel %vm4576, %v6925, 0.0
    %v7026 = vadd.f32 %v7024, %v7025
    %v7027 = vsel %vm4576, %v6926, 0.0
    %v7028 = vadd.f32 %v7026, %v7027
    %v7029 = vsel %vm4576, %v6927, 0.0
    %v7030 = vadd.f32 %v7028, %v7029
    %v7031 = vrot.slane %v7030, 4
    %v7032 = vadd.f32 %v7030, %v7031
    %v7033 = vrot.slane %v7032, 2
    %v7034 = vadd.f32 %v7032, %v7033
    %v7035 = vrot.slane %v7034, 1
    %v7036 = vadd.f32 %v7034, %v7035
    %v7037 = vsel %vm4576, %v6928, 0.0
    %v7038 = vsel %vm4576, %v6929, 0.0
    %v7039 = vadd.f32 %v7037, %v7038
    %v7040 = vsel %vm4576, %v6930, 0.0
    %v7041 = vadd.f32 %v7039, %v7040
    %v7042 = vsel %vm4576, %v6931, 0.0
    %v7043 = vadd.f32 %v7041, %v7042
    %v7044 = vrot.slane %v7043, 4
    %v7045 = vadd.f32 %v7043, %v7044
    %v7046 = vrot.slane %v7045, 2
    %v7047 = vadd.f32 %v7045, %v7046
    %v7048 = vrot.slane %v7047, 1
    %v7049 = vadd.f32 %v7047, %v7048
    %v7050 = vsel %vm4576, %v6932, 0.0
    %v7051 = vsel %vm4576, %v6933, 0.0
    %v7052 = vadd.f32 %v7050, %v7051
    %v7053 = vsel %vm4576, %v6934, 0.0
    %v7054 = vadd.f32 %v7052, %v7053
    %v7055 = vsel %vm4576, %v6935, 0.0
    %v7056 = vadd.f32 %v7054, %v7055
    %v7057 = vrot.slane %v7056, 4
    %v7058 = vadd.f32 %v7056, %v7057
    %v7059 = vrot.slane %v7058, 2
    %v7060 = vadd.f32 %v7058, %v7059
    %v7061 = vrot.slane %v7060, 1
    %v7062 = vadd.f32 %v7060, %v7061
    %v7063 = vsel %vm4576, %v6936, 0.0
    %v7064 = vsel %vm4576, %v6937, 0.0
    %v7065 = vadd.f32 %v7063, %v7064
    %v7066 = vsel %vm4576, %v6938, 0.0
    %v7067 = vadd.f32 %v7065, %v7066
    %v7068 = vsel %vm4576, %v6939, 0.0
    %v7069 = vadd.f32 %v7067, %v7068
    %v7070 = vrot.slane %v7069, 4
    %v7071 = vadd.f32 %v7069, %v7070
    %v7072 = vrot.slane %v7071, 2
    %v7073 = vadd.f32 %v7071, %v7072
    %v7074 = vrot.slane %v7073, 1
    %v7075 = vadd.f32 %v7073, %v7074
    %v7076 = vsel %vm4576, %v6940, 0.0
    %v7077 = vsel %vm4576, %v6941, 0.0
    %v7078 = vadd.f32 %v7076, %v7077
    %v7079 = vsel %vm4576, %v6942, 0.0
    %v7080 = vadd.f32 %v7078, %v7079
    %v7081 = vsel %vm4576, %v6943, 0.0
    %v7082 = vadd.f32 %v7080, %v7081
    %v7083 = vrot.slane %v7082, 4
    %v7084 = vadd.f32 %v7082, %v7083
    %v7085 = vrot.slane %v7084, 2
    %v7086 = vadd.f32 %v7084, %v7085
    %v7087 = vrot.slane %v7086, 1
    %v7088 = vadd.f32 %v7086, %v7087
    %v7089 = vsel %vm4576, %v6944, 0.0
    %v7090 = vsel %vm4576, %v6945, 0.0
    %v7091 = vadd.f32 %v7089, %v7090
    %v7092 = vsel %vm4576, %v6946, 0.0
    %v7093 = vadd.f32 %v7091, %v7092
    %v7094 = vsel %vm4576, %v6947, 0.0
    %v7095 = vadd.f32 %v7093, %v7094
    %v7096 = vrot.slane %v7095, 4
    %v7097 = vadd.f32 %v7095, %v7096
    %v7098 = vrot.slane %v7097, 2
    %v7099 = vadd.f32 %v7097, %v7098
    %v7100 = vrot.slane %v7099, 1
    %v7101 = vadd.f32 %v7099, %v7100
    %v7102 = vsel %vm4576, %v6948, 0.0
    %v7103 = vsel %vm4576, %v6949, 0.0
    %v7104 = vadd.f32 %v7102, %v7103
    %v7105 = vsel %vm4576, %v6950, 0.0
    %v7106 = vadd.f32 %v7104, %v7105
    %v7107 = vsel %vm4576, %v6951, 0.0
    %v7108 = vadd.f32 %v7106, %v7107
    %v7109 = vrot.slane %v7108, 4
    %v7110 = vadd.f32 %v7108, %v7109
    %v7111 = vrot.slane %v7110, 2
    %v7112 = vadd.f32 %v7110, %v7111
    %v7113 = vrot.slane %v7112, 1
    %v7114 = vadd.f32 %v7112, %v7113
    %v7115 = vsel %vm4576, %v6952, 0.0
    %v7116 = vsel %vm4576, %v6953, 0.0
    %v7117 = vadd.f32 %v7115, %v7116
    %v7118 = vsel %vm4576, %v6954, 0.0
    %v7119 = vadd.f32 %v7117, %v7118
    %v7120 = vsel %vm4576, %v6955, 0.0
    %v7121 = vadd.f32 %v7119, %v7120
    %v7122 = vrot.slane %v7121, 4
    %v7123 = vadd.f32 %v7121, %v7122
    %v7124 = vrot.slane %v7123, 2
    %v7125 = vadd.f32 %v7123, %v7124
    %v7126 = vrot.slane %v7125, 1
    %v7127 = vadd.f32 %v7125, %v7126
    %v7128 = vsel %vm4576, %v6956, 0.0
    %v7129 = vsel %vm4576, %v6957, 0.0
    %v7130 = vadd.f32 %v7128, %v7129
    %v7131 = vsel %vm4576, %v6958, 0.0
    %v7132 = vadd.f32 %v7130, %v7131
    %v7133 = vsel %vm4576, %v6959, 0.0
    %v7134 = vadd.f32 %v7132, %v7133
    %v7135 = vrot.slane %v7134, 4
    %v7136 = vadd.f32 %v7134, %v7135
    %v7137 = vrot.slane %v7136, 2
    %v7138 = vadd.f32 %v7136, %v7137
    %v7139 = vrot.slane %v7138, 1
    %v7140 = vadd.f32 %v7138, %v7139
    %v7141 = vsel %vm4576, %v6960, 0.0
    %v7142 = vsel %vm4576, %v6961, 0.0
    %v7143 = vadd.f32 %v7141, %v7142
    %v7144 = vsel %vm4576, %v6962, 0.0
    %v7145 = vadd.f32 %v7143, %v7144
    %v7146 = vsel %vm4576, %v6963, 0.0
    %v7147 = vadd.f32 %v7145, %v7146
    %v7148 = vrot.slane %v7147, 4
    %v7149 = vadd.f32 %v7147, %v7148
    %v7150 = vrot.slane %v7149, 2
    %v7151 = vadd.f32 %v7149, %v7150
    %v7152 = vrot.slane %v7151, 1
    %v7153 = vadd.f32 %v7151, %v7152
    %v7154 = vsel %vm4576, %v6964, 0.0
    %v7155 = vsel %vm4576, %v6965, 0.0
    %v7156 = vadd.f32 %v7154, %v7155
    %v7157 = vsel %vm4576, %v6966, 0.0
    %v7158 = vadd.f32 %v7156, %v7157
    %v7159 = vsel %vm4576, %v6967, 0.0
    %v7160 = vadd.f32 %v7158, %v7159
    %v7161 = vrot.slane %v7160, 4
    %v7162 = vadd.f32 %v7160, %v7161
    %v7163 = vrot.slane %v7162, 2
    %v7164 = vadd.f32 %v7162, %v7163
    %v7165 = vrot.slane %v7164, 1
    %v7166 = vadd.f32 %v7164, %v7165
    %v7167 = vsel %vm4576, %v6968, 0.0
    %v7168 = vsel %vm4576, %v6969, 0.0
    %v7169 = vadd.f32 %v7167, %v7168
    %v7170 = vsel %vm4576, %v6970, 0.0
    %v7171 = vadd.f32 %v7169, %v7170
    %v7172 = vsel %vm4576, %v6971, 0.0
    %v7173 = vadd.f32 %v7171, %v7172
    %v7174 = vrot.slane %v7173, 4
    %v7175 = vadd.f32 %v7173, %v7174
    %v7176 = vrot.slane %v7175, 2
    %v7177 = vadd.f32 %v7175, %v7176
    %v7178 = vrot.slane %v7177, 1
    %v7179 = vadd.f32 %v7177, %v7178
    %v7180 = vld [vmem:[%s16] sm:$0xff]
    %v7181 = vld [vmem:[%s16 + $0x8] sm:$0xff]
    %v7182 = vld [vmem:[%s16 + $0x10] sm:$0xff]
    %v7183 = vld [vmem:[%s16 + $0x18] sm:$0xff]
    %v7184 = vld [vmem:[%s16 + $0x20] sm:$0xff]
    %v7185 = vld [vmem:[%s16 + $0x28] sm:$0xff]
    %v7186 = vld [vmem:[%s16 + $0x30] sm:$0xff]
    %v7187 = vld [vmem:[%s16 + $0x38] sm:$0xff]
    %v7188 = vld [vmem:[%s16 + $0x40] sm:$0xff]
    %v7189 = vld [vmem:[%s16 + $0x48] sm:$0xff]
    %v7190 = vld [vmem:[%s16 + $0x50] sm:$0xff]
    %v7191 = vld [vmem:[%s16 + $0x58] sm:$0xff]
    %v7192 = vld [vmem:[%s16 + $0x60] sm:$0xff]
    %v7193 = vld [vmem:[%s16 + $0x68] sm:$0xff]
    %v7194 = vld [vmem:[%s16 + $0x70] sm:$0xff]
    %v7195 = vld [vmem:[%s16 + $0x78] sm:$0xff]
    %v7196 = vld [vmem:[%s17] sm:$0x3]
    %v7198 = vlaneseq
    %v7199 = vshrl.u32 %v7198, 7
    %v7200 = vsub.s32 0, %v7199
    %v7201 = vrot.slane %v7196, %v7200
    %v7202 = vlaneseq
    %v7203 = vshrl.u32 %v7202, 7
    %v7204 = vsub.s32 1, %v7203
    %v7205 = vrot.slane %v7196, %v7204
    %v7224 = vsel %vm5219, %v6997, %v6984
    %v7225 = vsel %vm5221, %v7010, %v7224
    %v7226 = vsel %vm5223, %v7023, %v7225
    %v7227 = vsel %vm5225, %v7036, %v7226
    %v7228 = vsel %vm5227, %v7049, %v7227
    %v7229 = vsel %vm5229, %v7062, %v7228
    %v7230 = vsel %vm5231, %v7075, %v7229
    %v7231 = vsel %vm5219, %v7101, %v7088
    %v7232 = vsel %vm5221, %v7114, %v7231
    %v7233 = vsel %vm5223, %v7127, %v7232
    %v7234 = vsel %vm5225, %v7140, %v7233
    %v7235 = vsel %vm5227, %v7153, %v7234
    %v7236 = vsel %vm5229, %v7166, %v7235
    %v7237 = vsel %vm5231, %v7179, %v7236
    %v7238 = vsel %vm4576, %v7230, 0
    %v7240 = vsel %vm4576, %v7237, 0
    %7242 = vmatprep.subr.mxu0 0.0
    %7243 = vmatpush1.msra.mxu0 0.0
    %7244 = vmatprep.subr.mxu0 0.0
    %7245 = vmatpush1.msra.mxu0 0.0
    %7246 = vmatprep.subr.mxu0 0.0
    %7247 = vmatpush1.msra.mxu0 0.0
    %7248 = vmatprep.subr.mxu0 0.0
    %7249 = vmatpush1.msra.mxu0 0.0
    %7250 = vmatprep.subr.mxu0 0.0
    %7251 = vmatpush1.msra.mxu0 0.0
    %7252 = vmatprep.subr.mxu0 0.0
    %7253 = vmatpush1.msra.mxu0 0.0
    %7254 = vmatprep.subr.mxu0 0.0
    %7255 = vmatpush1.msra.mxu0 0.0
    %7256 = vmatprep.subr.mxu0 0.0
    %7257 = vmatpush1.msra.mxu0 0.0
    %7258 = vmatprep.subr.mxu0 %v7195
    %7259 = vmatpush1.msra.mxu0 %v7194
    %7260 = vmatprep.subr.mxu0 %v7193
    %7261 = vmatpush1.msra.mxu0 %v7192
    %7262 = vmatprep.subr.mxu0 %v7191
    %7263 = vmatpush1.msra.mxu0 %v7190
    %7264 = vmatprep.subr.mxu0 %v7189
    %7265 = vmatpush1.msra.mxu0 %v7188
    %7266 = vmatprep.subr.mxu0 %v7187
    %7267 = vmatpush1.msra.mxu0 %v7186
    %7268 = vmatprep.subr.mxu0 %v7185
    %7269 = vmatpush1.msra.mxu0 %v7184
    %7270 = vmatprep.subr.mxu0 %v7183
    %7271 = vmatpush1.msra.mxu0 %v7182
    %7272 = vmatprep.subr.mxu0 %v7181
    %7273 = vmatpush1.msra.mxu0 %v7180
    %7274 = vmatprep.subr.mxu0 0.0
    %7275 = vmatpush2.msra.mxu0 0.0
    %7276 = vmatprep.subr.mxu0 0.0
    %7277 = vmatpush2.msra.mxu0 0.0
    %7278 = vmatprep.subr.mxu0 0.0
    %7279 = vmatpush2.msra.mxu0 0.0
    %7280 = vmatprep.subr.mxu0 0.0
    %7281 = vmatpush2.msra.mxu0 0.0
    %7282 = vmatprep.subr.mxu0 0.0
    %7283 = vmatpush2.msra.mxu0 0.0
    %7284 = vmatprep.subr.mxu0 0.0
    %7285 = vmatpush2.msra.mxu0 0.0
    %7286 = vmatprep.subr.mxu0 0.0
    %7287 = vmatpush2.msra.mxu0 0.0
    %7288 = vmatprep.subr.mxu0 0.0
    %7289 = vmatpush2.msra.mxu0 0.0
    %7290 = vmatprep.subr.mxu0 0.0
    %7291 = vmatpush2.msra.mxu0 0.0
    %7292 = vmatprep.subr.mxu0 0.0
    %7293 = vmatpush2.msra.mxu0 0.0
    %7294 = vmatprep.subr.mxu0 0.0
    %7295 = vmatpush2.msra.mxu0 0.0
    %7296 = vmatprep.subr.mxu0 0.0
    %7297 = vmatpush2.msra.mxu0 0.0
    %7298 = vmatprep.subr.mxu0 0.0
    %7299 = vmatpush2.msra.mxu0 0.0
    %7300 = vmatprep.subr.mxu0 0.0
    %7301 = vmatpush2.msra.mxu0 0.0
    %7302 = vmatprep.subr.mxu0 0.0
    %7303 = vmatpush2.msra.mxu0 0.0
    %7304 = vmatprep.subr.mxu0 0.0
    %7305 = vmatpush2.msra.mxu0 0.0
    %7306 = vmatprep.mubr.f32.mxu0 0.0
    %7307 = vmatmul.mubr.f32.gmra.mxu0 %v7238
    %v7308 = vpop.f32.mrf.mxu0
    %v7309 = vadd.f32 %v7201, %v7308
    %v7310 = vpop.f32.mrf.mxu0
    %v7311 = vadd.f32 %v7205, %v7310
    %7312 = vmatprep.mubr.f32.mxu0 0.0
    %7313 = vmatmul.mubr.f32.gmra.mxu0 %v7240
    %v7314 = vpop.f32.mrf.mxu0
    %v7315 = vadd.f32 %v7201, %v7314
    %v7316 = vpop.f32.mrf.mxu0
    %v7317 = vadd.f32 %v7205, %v7316
    %7318 = vdwg.mxu0
    %7319 = vst [vmem:[#allocation3] sm:$0xff] %v7309
    %7320 = vst [vmem:[#allocation3 + $0x8] sm:$0xff] %v7311
    %7321 = vst [vmem:[#allocation3 + $0x10] sm:$0xff] %v7315
    %7322 = vst [vmem:[#allocation3 + $0x18] sm:$0xff] %v7317
    // Predicated region
    $region74: #{tpu_custom_call.1} parent=1 // pred_check
      _
    $region75: #{tpu_custom_call.1} parent=1 // pred_check_branch
      %7324 = sbr.rel (0) target = $region77
    $region76: #{tpu_custom_call.1} parent=1 // pred_region
      %s7326 = ssub.s32 512, 512
      %7327 = vsyncadd [#allocation4], %s7326
      %s7328 = sshll.u32 [#allocation3], 4
      %s7329 = int_to_ptr.vmem [resolvable:$true] %s7328
      %7334 = dma.vmem_to_hbm [thread:$0]  %s7329, 512, %s18, [#allocation4], 256, 256, 16
    $region77: #{tpu_custom_call.1} parent=1 // pred_fallthru
      _
    // Predicated region
    $region78: #{tpu_custom_call.1} parent=1 // pred_check
      _
    $region79: #{tpu_custom_call.1} parent=1 // pred_check_branch
      %7336 = sbr.rel (0) target = $region81
    $region80: #{tpu_custom_call.1} parent=1 // pred_region
      %s7338 = ssub.s32 256, 256
      %7339 = vsyncadd [#allocation6], %s7338
      %s7340 = sshll.u32 [#allocation5], 4
      %s7341 = int_to_ptr.vmem [resolvable:$true] %s7340
      %7346 = dma.vmem_to_hbm [thread:$0]  %s7341, 256, %s19, [#allocation6], 128, 128, 8
    $region81: #{tpu_custom_call.1} parent=1 // pred_fallthru
      _
    // Predicated region
    $region82: #{tpu_custom_call.1} parent=1 // pred_check
      _
    $region83: #{tpu_custom_call.1} parent=1 // pred_check_branch
      %7348 = sbr.rel (0) target = $region85
    $region84: #{tpu_custom_call.1} parent=1 // pred_region
      %7349 = dma.done [#allocation4], 512
    $region85: #{tpu_custom_call.1} parent=1 // pred_fallthru
      _
    // Predicated region
    $region86: #{tpu_custom_call.1} parent=1 // pred_check
      _
    $region87: #{tpu_custom_call.1} parent=1 // pred_check_branch
      %7351 = sbr.rel (0) target = $region89
    $region88: #{tpu_custom_call.1} parent=1 // pred_region
      %7352 = dma.done [#allocation6], 256
    $region89: #{tpu_custom_call.1} parent=1 // pred_fallthru
      _
    %7353 = vsyncpa [#allocation4], 1
    %7354 = vsyncpa [#allocation6], 1

</llo_original>
